<compile_context>
chip_gen: v5e
topology: v5e:2x2
jax: 0.10.0
libtpu: 0.0.40
codegen_flags: <defaults>
</compile_context>

<pallas_src>
import math
from functools import partial

import jax
import jax.numpy as jnp
from jax import lax
from jax.experimental import pallas as pl
from jax.experimental.pallas import tpu as pltpu


def _round_up(v, m):
    return ((v + m - 1) // m) * m


def _compiler_params(block_bytes, scratch_bytes=0):
    # Derive the VMEM limit from the buffer arithmetic: double-buffered in/out
    # blocks + resident scratch + headroom (review: do not hard-code 32 MiB).
    need = 2 * block_bytes + scratch_bytes + (4 << 20)
    return pltpu.CompilerParams(
        dimension_semantics=("parallel",),
        vmem_limit_bytes=int(min(100 << 20, max(32 << 20, need))),
    )


# ----------------------------------------------------------------------------
# call 1: conv_input  (3x3, pad 1, Cin -> F) as a single K = 9*Cin_p matmul.
# The (tiny, 3-channel) im2col slab is built in glue; output is bf16.
# ----------------------------------------------------------------------------
def _make_conv_input_call(B, rows, kdim, F):
    def kernel(x_ref, w_ref, o_ref):
        o_ref[0] = jnp.dot(
            x_ref[0], w_ref[...], preferred_element_type=jnp.float32
        ).astype(o_ref.dtype)

    block_bytes = rows * kdim * 2 + kdim * F * 2 + rows * F * 2

    def call(x_col, w_in):
        return pl.pallas_call(
            kernel,
            out_shape=jax.ShapeDtypeStruct((B, rows, F), jnp.bfloat16),
            grid_spec=pltpu.PrefetchScalarGridSpec(
                num_scalar_prefetch=0,
                grid=(B,),
                in_specs=[
                    pl.BlockSpec((1, rows, kdim), lambda b: (b, 0, 0)),
                    pl.BlockSpec((kdim, F), lambda b: (0, 0)),
                ],
                out_specs=pl.BlockSpec((1, rows, F), lambda b: (b, 0, 0)),
            ),
            compiler_params=_compiler_params(block_bytes),
        )(x_col, w_in)

    return call


# ----------------------------------------------------------------------------
# call 2: downscale(4x4 s2 + ReLU) -> residual blocks -> conv_mid -> upscale
# conv(+bias).  All low-res activations stay in VMEM; every 3x3 conv is 3 dots
# with K = 3*F (kw folded into the lane axis of the padded scratch).
# ----------------------------------------------------------------------------
def _make_trunk_call(B, H, W, F, n_resblocks, res_scale, scale):
    hs, ws = H // 2, W // 2
    wp = ws + 2                       # padded row stride at low resolution
    o_rows = hs * wp                  # O-space rows (cols >= ws are junk)
    pad_rows = _round_up((hs + 2) * wp, 8)
    K3 = 3 * F
    Fup = scale * scale * F
    n_res_taps = n_resblocks * 2 * 3
    bf = jnp.bfloat16

    def kernel(dcol_ref, wd_ref, wres_ref, wmid_ref, wup_ref, bup_ref,
               o_ref, pad_ref):
        # Zero once: the interior is rewritten before every conv, the zero
        # padding ring stays valid for the whole invocation.
        pad_ref[...] = jnp.zeros_like(pad_ref)
        # Static junk-column mask (hoisted; columns >= ws of each O-space row).
        col_ok = (lax.broadcasted_iota(jnp.int32, (o_rows, F), 0) % wp) < ws

        def fill(act):
            # One masked whole-slab store per kw group (3 stores total); the
            # masked junk columns land exactly on the zero padding ring.
            act = jnp.where(col_ok, act, 0.0).astype(pad_ref.dtype)
            for kw in range(3):
                pad_ref[pl.ds(wp + 1 - kw, o_rows), kw * F:(kw + 1) * F] = act

        def conv3x3(w_ref, base, cout):
            # kw is folded into the contraction -> 3 dots with K = 3*F.
            acc = jnp.zeros((o_rows, cout), jnp.float32)
            for kh in range(3):
                tap = pad_ref[pl.ds(kh * wp, o_rows), :].astype(bf)
                acc = acc + jnp.dot(tap, w_ref[base + kh],
                                    preferred_element_type=jnp.float32)
            return acc

        # ---- downscale: single K = 16*F dot on the glue-built im2col slab ----
        out = jnp.maximum(
            jnp.dot(dcol_ref[0], wd_ref[...],
                    preferred_element_type=jnp.float32), 0.0)

        # ---- residual blocks: x + res_scale * conv(relu(conv(x))) ----
        for r in range(n_resblocks):
            fill(out)
            hid = jnp.maximum(conv3x3(wres_ref, (2 * r) * 3, F), 0.0)
            fill(hid)
            out = out + res_scale * conv3x3(wres_ref, (2 * r + 1) * 3, F)

        # ---- conv_mid ----
        fill(out)
        out = conv3x3(wmid_ref, 0, F)

        # ---- upscale conv (+bias); output channels are shuffle-position major,
        # so the (o_rows, 128) result is lane-dense.
        fill(out)
        o_ref[0] = (conv3x3(wup_ref, 0, Fup) + bup_ref[...]).astype(o_ref.dtype)

    block_bytes = (o_rows * 16 * F * 2 + 16 * F * F * 2
                   + n_res_taps * K3 * F * 2 + 3 * K3 * F * 2
                   + 3 * K3 * Fup * 2 + Fup * 4 + o_rows * Fup * 2)
    scratch_bytes = pad_rows * K3 * 4

    def call(dcol, w_dn, w_res, w_mid, w_up, b_up):
        return pl.pallas_call(
            kernel,
            out_shape=jax.ShapeDtypeStruct((B, o_rows, Fup), jnp.bfloat16),
            grid_spec=pltpu.PrefetchScalarGridSpec(
                num_scalar_prefetch=0,
                grid=(B,),
                in_specs=[
                    pl.BlockSpec((1, o_rows, 16 * F), lambda b: (b, 0, 0)),
                    pl.BlockSpec((16 * F, F), lambda b: (0, 0)),
                    pl.BlockSpec((n_res_taps, K3, F), lambda b: (0, 0, 0)),
                    pl.BlockSpec((3, K3, F), lambda b: (0, 0, 0)),
                    pl.BlockSpec((3, K3, Fup), lambda b: (0, 0, 0)),
                    pl.BlockSpec((1, Fup), lambda b: (0, 0)),
                ],
                out_specs=pl.BlockSpec((1, o_rows, Fup), lambda b: (b, 0, 0)),
                scratch_shapes=[pltpu.VMEM((pad_rows, K3), jnp.float32)],
            ),
            compiler_params=_compiler_params(block_bytes, scratch_bytes),
        )(dcol, w_dn, w_res, w_mid, w_up, b_up)

    return call


# ----------------------------------------------------------------------------
# call 3: (pixel-shuffled output + skip) add fused with conv_output (3x3).
# Consumes both operands in O-space layout (junk columns masked in-kernel).
# ----------------------------------------------------------------------------
def _make_output_call(B, H, W, F, cout):
    Wp = W + 2
    rows_out = H * Wp
    pad_rows = _round_up((H + 2) * Wp, 8)
    K3 = 3 * F
    bf = jnp.bfloat16

    def kernel(shuf_ref, skip_ref, w_ref, o_ref, pad_ref):
        pad_ref[...] = jnp.zeros_like(pad_ref)
        col_ok = (lax.broadcasted_iota(jnp.int32, (rows_out, F), 0) % Wp) < W
        # fused global skip add (f32) + junk-column masking
        z = shuf_ref[0].astype(jnp.float32) + skip_ref[0].astype(jnp.float32)
        z = jnp.where(col_ok, z, 0.0)
        for kw in range(3):
            pad_ref[pl.ds(Wp + 1 - kw, rows_out), kw * F:(kw + 1) * F] = z
        acc = jnp.zeros((rows_out, cout), jnp.float32)
        for kh in range(3):
            tap = pad_ref[pl.ds(kh * Wp, rows_out), :].astype(bf)
            acc = acc + jnp.dot(tap, w_ref[kh],
                                preferred_element_type=jnp.float32)
        # Final network output stays cout(=3)-wide f32: padding it to 128 lanes
        # would inflate the HBM write ~42x for a tensor that is tiny anyway.
        o_ref[0] = acc

    block_bytes = 2 * rows_out * F * 2 + 3 * K3 * cout * 2 + rows_out * cout * 4
    scratch_bytes = pad_rows * K3 * 4

    def call(shuf_O, skip_O, w_out):
        return pl.pallas_call(
            kernel,
            out_shape=jax.ShapeDtypeStruct((B, rows_out, cout), jnp.float32),
            grid_spec=pltpu.PrefetchScalarGridSpec(
                num_scalar_prefetch=0,
                grid=(B,),
                in_specs=[
                    pl.BlockSpec((1, rows_out, F), lambda b: (b, 0, 0)),
                    pl.BlockSpec((1, rows_out, F), lambda b: (b, 0, 0)),
                    pl.BlockSpec((3, K3, cout), lambda b: (0, 0, 0)),
                ],
                out_specs=pl.BlockSpec((1, rows_out, cout), lambda b: (b, 0, 0)),
                scratch_shapes=[pltpu.VMEM((pad_rows, K3), jnp.float32)],
            ),
            compiler_params=_compiler_params(block_bytes, scratch_bytes),
        )(shuf_O, skip_O, w_out)

    return call


# ----------------------------------------------------------------------------
# Parameter init (matches the module's init loop: normal(0, sqrt(2/(k*k*Cout))),
# biases zeroed).  Weights stored HWIO for the NHWC kernels.
# ----------------------------------------------------------------------------
def init_conv(key, kh, kw, cin, cout, bias=False):
    std = math.sqrt(2.0 / (kh * kw * cout))
    w = std * jax.random.normal(key, (kh, kw, cin, cout), jnp.float32)
    b = jnp.zeros((cout,), jnp.float32) if bias else None
    return w, b


def init_net(key, in_channel, out_channel, n_feats, n_resblocks, scale):
    keys = jax.random.split(key, 5 + 2 * n_resblocks)
    params = {}
    params["conv_input"], _ = init_conv(keys[0], 3, 3, in_channel, n_feats)
    params["downscale"], _ = init_conv(keys[1], 4, 4, n_feats, n_feats)
    res = []
    for i in range(n_resblocks):
        w1, _ = init_conv(keys[2 + 2 * i], 3, 3, n_feats, n_feats)
        w2, _ = init_conv(keys[3 + 2 * i], 3, 3, n_feats, n_feats)
        res.append((w1, w2))
    params["residual"] = res
    params["conv_mid"], _ = init_conv(keys[2 + 2 * n_resblocks], 3, 3,
                                      n_feats, n_feats)
    params["upscale"] = init_conv(keys[3 + 2 * n_resblocks], 3, 3,
                                  n_feats, scale * scale * n_feats, bias=True)
    params["conv_output"], _ = init_conv(keys[4 + 2 * n_resblocks], 3, 3,
                                         n_feats, out_channel)
    return params


# ----------------------------------------------------------------------------
# Forward pass (mirrors Net.forward); glue between calls is bf16 data movement.
# ----------------------------------------------------------------------------
def net_forward(params, x, *, n_feats, n_resblocks, res_scale, scale,
                out_channel):
    B, H, W, Cin = x.shape
    assert scale == 2 and H % 2 == 0 and W % 2 == 0
    F = n_feats
    Fup = scale * scale * F
    hs, ws = H // 2, W // 2
    Wp, wp = W + 2, ws + 2
    cin_p = max(8, ((Cin + 7) // 8) * 8)
    bf = jnp.bfloat16

    # ---- weight stacks (K-packed layouts); one bf16 cast outside the kernels -
    w_in = jnp.pad(params["conv_input"],
                   ((0, 0), (0, 0), (0, cin_p - Cin), (0, 0)))
    w_in = w_in.reshape(9 * cin_p, F).astype(bf)             # (kh,kw,cin) major
    w_dn = params["downscale"].reshape(16 * F, F).astype(bf)  # (kh,kw,cin) major
    res_list = []
    for (wa, wb) in params["residual"]:
        res_list += [wa.reshape(3, 3 * F, F), wb.reshape(3, 3 * F, F)]
    w_res = jnp.concatenate(res_list, axis=0).astype(bf)      # (2R*3, 3F, F)
    w_mid = params["conv_mid"].reshape(3, 3 * F, F).astype(bf)
    w_up_, b_up_ = params["upscale"]
    # permute upscale output channels from (c,si,sj) to (si,sj,c): pixel shuffle
    # then becomes a contiguous-channel reshape in glue
    w_up = (w_up_.reshape(3, 3, F, F, scale, scale)
                 .transpose(0, 1, 2, 4, 5, 3)
                 .reshape(3, 3 * F, Fup).astype(bf))
    b_up = (b_up_.reshape(F, scale, scale).transpose(1, 2, 0)
                 .reshape(1, Fup).astype(jnp.float32))
    w_out = params["conv_output"].reshape(3, 3 * F, out_channel).astype(bf)

    # ---- call 1: conv_input (im2col of the tiny 3-channel input, one dot) ----
    xp = jnp.pad(x, ((0, 0), (1, 1), (1, 1), (0, cin_p - Cin)))
    cols = [xp[:, kh:kh + H, kw:kw + W, :] for kh in range(3) for kw in range(3)]
    x_col = jnp.stack(cols, axis=3).reshape(B, H, W, 9 * cin_p)
    x_col = jnp.pad(x_col, ((0, 0), (0, 0), (0, Wp - W), (0, 0)))
    x_col = x_col.reshape(B, H * Wp, 9 * cin_p).astype(bf)
    skip_O = _make_conv_input_call(B, H * Wp, 9 * cin_p, F)(x_col, w_in)

    # ---- glue: stride-2 4x4 im2col slab of the padded skip (bf16) ------------
    skip_hw = skip_O.reshape(B, H, Wp, F)[:, :, :W, :]
    sp = jnp.pad(skip_hw, ((0, 0), (1, 1), (1, 1), (0, 0)))
    dtaps = [sp[:, kh:kh + H:2, kw:kw + W:2, :]
             for kh in range(4) for kw in range(4)]
    dcol = jnp.stack(dtaps, axis=3).reshape(B, hs, ws, 16 * F)
    dcol = jnp.pad(dcol, ((0, 0), (0, 0), (0, wp - ws), (0, 0)))
    dcol = dcol.reshape(B, hs * wp, 16 * F)

    # ---- call 2: downscale -> residual blocks -> conv_mid -> upscale conv ----
    up_O = _make_trunk_call(B, H, W, F, n_resblocks, res_scale, scale)(
        dcol, w_dn, w_res, w_mid, w_up, b_up)                 # (B,hs*wp,Fup) bf16

    # ---- glue: pixel shuffle (channels already shuffle-position major), bf16 -
    up = up_O.reshape(B, hs, wp, scale, scale, F)[:, :, :ws]
    shuf = up.transpose(0, 1, 3, 2, 4, 5).reshape(B, H, W, F)
    shuf_O = jnp.pad(shuf, ((0, 0), (0, 0), (0, Wp - W), (0, 0)))
    shuf_O = shuf_O.reshape(B, H * Wp, F)

    # ---- call 3: (+ skip) fused with conv_output ------------------------------
    out_O = _make_output_call(B, H, W, F, out_channel)(shuf_O, skip_O, w_out)
    return out_O.reshape(B, H, Wp, out_channel)[:, :, :W, :]


# ----------------------------------------------------------------------------
# Pure-JAX reference with the same numeric contract as the kernels:
# bf16 matmul operands / f32 accumulation, bf16 activations at call boundaries.
# ----------------------------------------------------------------------------
def pixel_shuffle_nhwc(x, r):
    B, H, W, Cr2 = x.shape
    C = Cr2 // (r * r)
    x = x.reshape(B, H, W, C, r, r)
    x = x.transpose(0, 1, 4, 2, 5, 3)
    return x.reshape(B, H * r, W * r, C)


def reference_forward(params, x, res_scale, scale):
    dn = ("NHWC", "HWIO", "NHWC")

    def conv(v, w, stride=1):
        return lax.conv_general_dilated(
            v.astype(jnp.bfloat16), w.astype(jnp.bfloat16),
            (stride, stride), ((1, 1), (1, 1)), dimension_numbers=dn,
            preferred_element_type=jnp.float32)

    out = conv(x, params["conv_input"])
    skip = out
    out = jnp.maximum(conv(out, params["downscale"], stride=2), 0.0)
    for (w1, w2) in params["residual"]:
        t = jnp.maximum(conv(out, w1), 0.0)
        out = out + res_scale * conv(t, w2)
    out = conv(out, params["conv_mid"])
    w_up, b_up = params["upscale"]
    out = conv(out, w_up) + b_up
    out = pixel_shuffle_nhwc(out, scale)
    # mirror the kernel's bf16 activation contract at the call boundaries
    out = (out.astype(jnp.bfloat16).astype(jnp.float32)
           + skip.astype(jnp.bfloat16).astype(jnp.float32))
    return conv(out, params["conv_output"])


if __name__ == "__main__":
    in_channel, out_channel = 3, 3
    n_feats, n_resblocks, res_scale, scale = 32, 2, 0.1, 2
    B, H, W = 2, 16, 16

    key = jax.random.PRNGKey(0)
    k_x, k_p = jax.random.split(key)
    x_nchw = jax.random.normal(k_x, (B, in_channel, H, W), jnp.float32)
    x = jnp.transpose(x_nchw, (0, 2, 3, 1))          # NCHW -> NHWC at boundary

    params = init_net(k_p, in_channel, out_channel, n_feats, n_resblocks, scale)

    fwd = jax.jit(partial(net_forward, n_feats=n_feats,
                          n_resblocks=n_resblocks, res_scale=res_scale,
                          scale=scale, out_channel=out_channel))
    out = jax.block_until_ready(fwd(params, x))

    assert out.shape == (B, H, W, out_channel), out.shape
    assert bool(jnp.all(jnp.isfinite(out)))

    ref = reference_forward(params, x, res_scale, scale)
    err = float(jnp.max(jnp.abs(out - ref)))
    assert err < 2e-2, f"kernel/reference mismatch: max |err| = {err}"
    print("KERNEL_OK")
</pallas_src>

<mosaic_0001>
module attributes {stable_mosaic.version = 11 : i64} {
  func.func @kernel(%arg0: i32, %arg1: memref<1x288x72xbf16, #tpu.memory_space<vmem>>, %arg2: memref<72x32xbf16, #tpu.memory_space<vmem>>, %arg3: memref<1x288x32xbf16, #tpu.memory_space<vmem>>) attributes {dimension_semantics = [#tpu.dimension_semantics<parallel>], iteration_bounds = array<i64: 2>, scalar_prefetch = 0 : i64, scratch_operands = 0 : i64, tpu.core_type = #tpu.core_type<tc>, window_params = [{transform_indices = @transform_0, window_bounds = array<i64: 1, 288, 72>}, {pipeline_mode = #tpu.pipeline_mode<synchronous>, transform_indices = @transform_1, window_bounds = array<i64: 72, 32>}, {transform_indices = @transform_2, window_bounds = array<i64: 1, 288, 32>}]} {
    %c0 = arith.constant 0 : index
    %c0_0 = arith.constant 0 : index
    %c0_1 = arith.constant 0 : index
    %0 = vector.load %arg1[%c0, %c0_0, %c0_1] : memref<1x288x72xbf16, #tpu.memory_space<vmem>>, vector<1x288x72xbf16>
    %1 = vector.shape_cast %0 : vector<1x288x72xbf16> to vector<288x72xbf16>
    %c0_2 = arith.constant 0 : index
    %c0_3 = arith.constant 0 : index
    %2 = vector.load %arg2[%c0_2, %c0_3] : memref<72x32xbf16, #tpu.memory_space<vmem>>, vector<72x32xbf16>
    %cst = arith.constant dense<0.000000e+00> : vector<288x32xf32>
    %3 = tpu.matmul %1, %2, %cst {dimension_numbers = #tpu.dot_dimension_numbers<[1], [0], [0], [1], [0, 0, 1, 1], [], []>} : vector<288x72xbf16>, vector<72x32xbf16>, vector<288x32xf32> -> vector<288x32xf32>
    %4 = arith.truncf %3 : vector<288x32xf32> to vector<288x32xbf16>
    %c0_4 = arith.constant 0 : index
    %c0_5 = arith.constant 0 : index
    %c0_6 = arith.constant 0 : index
    %5 = vector.load %arg3[%c0_4, %c0_5, %c0_6] : memref<1x288x32xbf16, #tpu.memory_space<vmem>>, vector<1x288x32xbf16>
    %6 = vector.shape_cast %5 : vector<1x288x32xbf16> to vector<288x32xbf16>
    %7 = vector.shape_cast %4 : vector<288x32xbf16> to vector<1x288x32xbf16>
    tpu.vector_store %arg3[%c0_4, %c0_5, %c0_6], %7 {strides = array<i32>} : memref<1x288x32xbf16, #tpu.memory_space<vmem>>, vector<1x288x32xbf16>,
    return
  }
  func.func @transform_0(%arg0: i32) -> (i32, i32, i32) {
    %c0_i32 = arith.constant 0 : i32
    %c0_i32_0 = arith.constant 0 : i32
    %c0_i32_1 = arith.constant 0 : i32
    return %arg0, %c0_i32, %c0_i32_0 : i32, i32, i32
  }
  func.func @transform_1(%arg0: i32) -> (i32, i32) {
    %c0_i32 = arith.constant 0 : i32
    %c0_i32_0 = arith.constant 0 : i32
    %c0_i32_1 = arith.constant 0 : i32
    return %c0_i32, %c0_i32_0 : i32, i32
  }
  func.func @transform_2(%arg0: i32) -> (i32, i32, i32) {
    %c0_i32 = arith.constant 0 : i32
    %c0_i32_0 = arith.constant 0 : i32
    %c0_i32_1 = arith.constant 0 : i32
    return %arg0, %c0_i32, %c0_i32_0 : i32, i32, i32
  }
}

module attributes {stable_mosaic.version = 11 : i64} {
  func.func @kernel(%arg0: i32, %arg1: memref<1x80x512xbf16, #tpu.memory_space<vmem>>, %arg2: memref<512x32xbf16, #tpu.memory_space<vmem>>, %arg3: memref<12x96x32xbf16, #tpu.memory_space<vmem>>, %arg4: memref<3x96x32xbf16, #tpu.memory_space<vmem>>, %arg5: memref<3x96x128xbf16, #tpu.memory_space<vmem>>, %arg6: memref<1x128xf32, #tpu.memory_space<vmem>>, %arg7: memref<1x80x128xbf16, #tpu.memory_space<vmem>>, %arg8: memref<104x96xf32, #tpu.memory_space<vmem>>) attributes {dimension_semantics = [#tpu.dimension_semantics<parallel>], iteration_bounds = array<i64: 2>, scalar_prefetch = 0 : i64, scratch_operands = 1 : i64, tpu.core_type = #tpu.core_type<tc>, window_params = [{transform_indices = @transform_0, window_bounds = array<i64: 1, 80, 512>}, {pipeline_mode = #tpu.pipeline_mode<synchronous>, transform_indices = @transform_1, window_bounds = array<i64: 512, 32>}, {pipeline_mode = #tpu.pipeline_mode<synchronous>, transform_indices = @transform_2, window_bounds = array<i64: 12, 96, 32>}, {pipeline_mode = #tpu.pipeline_mode<synchronous>, transform_indices = @transform_3, window_bounds = array<i64: 3, 96, 32>}, {pipeline_mode = #tpu.pipeline_mode<synchronous>, transform_indices = @transform_4, window_bounds = array<i64: 3, 96, 128>}, {pipeline_mode = #tpu.pipeline_mode<synchronous>, transform_indices = @transform_5, window_bounds = array<i64: 1, 128>}, {transform_indices = @transform_6, window_bounds = array<i64: 1, 80, 128>}]} {
    %cst = arith.constant 0.000000e+00 : f32
    %0 = vector.broadcast %cst : f32 to vector<104x96xf32>
    %c0 = arith.constant 0 : index
    %c0_0 = arith.constant 0 : index
    %1 = vector.load %arg8[%c0, %c0_0] : memref<104x96xf32, #tpu.memory_space<vmem>>, vector<104x96xf32>
    tpu.vector_store %arg8[%c0, %c0_0], %0 {strides = array<i32>} : memref<104x96xf32, #tpu.memory_space<vmem>>, vector<104x96xf32>,
    %2 = tpu.iota {dimensions = array<i32: 0>} : vector<80x32xi32>
    %c10_i32 = arith.constant 10 : i32
    %c0_i32 = arith.constant 0 : i32
    %3 = arith.cmpi eq, %c10_i32, %c0_i32 : i32
    %c1_i32 = arith.constant 1 : i32
    %4 = arith.select %3, %c1_i32, %c10_i32 : i32
    %5 = vector.broadcast %4 : i32 to vector<80x32xi32>
    %6 = arith.remsi %2, %5 : vector<80x32xi32>
    %c0_i32_1 = arith.constant 0 : i32
    %7 = vector.broadcast %c0_i32_1 : i32 to vector<80x32xi32>
    %8 = arith.cmpi ne, %6, %7 : vector<80x32xi32>
    %c0_i32_2 = arith.constant 0 : i32
    %9 = vector.broadcast %c0_i32_2 : i32 to vector<80x32xi32>
    %10 = arith.cmpi slt, %6, %9 : vector<80x32xi32>
    %c0_i32_3 = arith.constant 0 : i32
    %11 = arith.cmpi slt, %4, %c0_i32_3 : i32
    %12 = vector.broadcast %11 : i1 to vector<80x32xi1>
    %13 = vector.broadcast %12 : vector<80x32xi1> to vector<80x32xi1>
    %14 = arith.xori %10, %13 : vector<80x32xi1>
    %15 = arith.andi %14, %8 : vector<80x32xi1>
    %16 = vector.broadcast %4 : i32 to vector<80x32xi32>
    %17 = arith.addi %6, %16 : vector<80x32xi32>
    %18 = arith.select %15, %17, %6 : vector<80x32xi1>, vector<80x32xi32>
    %c8_i32 = arith.constant 8 : i32
    %19 = vector.broadcast %c8_i32 : i32 to vector<80x32xi32>
    %20 = arith.cmpi slt, %18, %19 : vector<80x32xi32>
    %c0_4 = arith.constant 0 : index
    %c0_5 = arith.constant 0 : index
    %c0_6 = arith.constant 0 : index
    %21 = vector.load %arg1[%c0_4, %c0_5, %c0_6] : memref<1x80x512xbf16, #tpu.memory_space<vmem>>, vector<1x80x512xbf16>
    %22 = vector.shape_cast %21 : vector<1x80x512xbf16> to vector<80x512xbf16>
    %c0_7 = arith.constant 0 : index
    %c0_8 = arith.constant 0 : index
    %23 = vector.load %arg2[%c0_7, %c0_8] : memref<512x32xbf16, #tpu.memory_space<vmem>>, vector<512x32xbf16>
    %cst_9 = arith.constant dense<0.000000e+00> : vector<80x32xf32>
    %24 = tpu.matmul %22, %23, %cst_9 {dimension_numbers = #tpu.dot_dimension_numbers<[1], [0], [0], [1], [0, 0, 1, 1], [], []>} : vector<80x512xbf16>, vector<512x32xbf16>, vector<80x32xf32> -> vector<80x32xf32>
    %cst_10 = arith.constant 0.000000e+00 : f32
    %25 = vector.broadcast %cst_10 : f32 to vector<80x32xf32>
    %26 = arith.maximumf %24, %25 : vector<80x32xf32>
    %cst_11 = arith.constant 0.000000e+00 : f32
    %27 = vector.broadcast %cst_11 : f32 to vector<80x32xf32>
    %28 = arith.select %20, %26, %27 : vector<80x32xi1>, vector<80x32xf32>
    %c11 = arith.constant 11 : index
    %c0_12 = arith.constant 0 : index
    %29 = vector.load %arg8[%c11, %c0_12] : memref<104x96xf32, #tpu.memory_space<vmem>>, vector<80x32xf32>
    tpu.vector_store %arg8[%c11, %c0_12], %28 {strides = array<i32>} : memref<104x96xf32, #tpu.memory_space<vmem>>, vector<80x32xf32>,
    %c10 = arith.constant 10 : index
    %c32 = arith.constant 32 : index
    %30 = vector.load %arg8[%c10, %c32] : memref<104x96xf32, #tpu.memory_space<vmem>>, vector<80x32xf32>
    tpu.vector_store %arg8[%c10, %c32], %28 {strides = array<i32>} : memref<104x96xf32, #tpu.memory_space<vmem>>, vector<80x32xf32>,
    %c9 = arith.constant 9 : index
    %c64 = arith.constant 64 : index
    %31 = vector.load %arg8[%c9, %c64] : memref<104x96xf32, #tpu.memory_space<vmem>>, vector<80x32xf32>
    tpu.vector_store %arg8[%c9, %c64], %28 {strides = array<i32>} : memref<104x96xf32, #tpu.memory_space<vmem>>, vector<80x32xf32>,
    %cst_13 = arith.constant 0.000000e+00 : f32
    %32 = vector.broadcast %cst_13 : f32 to vector<80x32xf32>
    %c0_14 = arith.constant 0 : index
    %c0_15 = arith.constant 0 : index
    %33 = vector.load %arg8[%c0_14, %c0_15] : memref<104x96xf32, #tpu.memory_space<vmem>>, vector<80x96xf32>
    %34 = arith.truncf %33 : vector<80x96xf32> to vector<80x96xbf16>
    %c0_16 = arith.constant 0 : index
    %c0_17 = arith.constant 0 : index
    %c0_18 = arith.constant 0 : index
    %35 = vector.load %arg3[%c0_16, %c0_17, %c0_18] : memref<12x96x32xbf16, #tpu.memory_space<vmem>>, vector<1x96x32xbf16>
    %36 = vector.shape_cast %35 : vector<1x96x32xbf16> to vector<96x32xbf16>
    %cst_19 = arith.constant dense<0.000000e+00> : vector<80x32xf32>
    %37 = tpu.matmul %34, %36, %cst_19 {dimension_numbers = #tpu.dot_dimension_numbers<[1], [0], [0], [1], [0, 0, 1, 1], [], []>} : vector<80x96xbf16>, vector<96x32xbf16>, vector<80x32xf32> -> vector<80x32xf32>
    %38 = arith.addf %32, %37 : vector<80x32xf32>
    %c10_20 = arith.constant 10 : index
    %c0_21 = arith.constant 0 : index
    %39 = vector.load %arg8[%c10_20, %c0_21] : memref<104x96xf32, #tpu.memory_space<vmem>>, vector<80x96xf32>
    %40 = arith.truncf %39 : vector<80x96xf32> to vector<80x96xbf16>
    %c1 = arith.constant 1 : index
    %c0_22 = arith.constant 0 : index
    %c0_23 = arith.constant 0 : index
    %41 = vector.load %arg3[%c1, %c0_22, %c0_23] : memref<12x96x32xbf16, #tpu.memory_space<vmem>>, vector<1x96x32xbf16>
    %42 = vector.shape_cast %41 : vector<1x96x32xbf16> to vector<96x32xbf16>
    %cst_24 = arith.constant dense<0.000000e+00> : vector<80x32xf32>
    %43 = tpu.matmul %40, %42, %cst_24 {dimension_numbers = #tpu.dot_dimension_numbers<[1], [0], [0], [1], [0, 0, 1, 1], [], []>} : vector<80x96xbf16>, vector<96x32xbf16>, vector<80x32xf32> -> vector<80x32xf32>
    %44 = arith.addf %38, %43 : vector<80x32xf32>
    %c20 = arith.constant 20 : index
    %c0_25 = arith.constant 0 : index
    %45 = vector.load %arg8[%c20, %c0_25] : memref<104x96xf32, #tpu.memory_space<vmem>>, vector<80x96xf32>
    %46 = arith.truncf %45 : vector<80x96xf32> to vector<80x96xbf16>
    %c2 = arith.constant 2 : index
    %c0_26 = arith.constant 0 : index
    %c0_27 = arith.constant 0 : index
    %47 = vector.load %arg3[%c2, %c0_26, %c0_27] : memref<12x96x32xbf16, #tpu.memory_space<vmem>>, vector<1x96x32xbf16>
    %48 = vector.shape_cast %47 : vector<1x96x32xbf16> to vector<96x32xbf16>
    %cst_28 = arith.constant dense<0.000000e+00> : vector<80x32xf32>
    %49 = tpu.matmul %46, %48, %cst_28 {dimension_numbers = #tpu.dot_dimension_numbers<[1], [0], [0], [1], [0, 0, 1, 1], [], []>} : vector<80x96xbf16>, vector<96x32xbf16>, vector<80x32xf32> -> vector<80x32xf32>
    %50 = arith.addf %44, %49 : vector<80x32xf32>
    %cst_29 = arith.constant 0.000000e+00 : f32
    %51 = vector.broadcast %cst_29 : f32 to vector<80x32xf32>
    %52 = arith.maximumf %50, %51 : vector<80x32xf32>
    %cst_30 = arith.constant 0.000000e+00 : f32
    %53 = vector.broadcast %cst_30 : f32 to vector<80x32xf32>
    %54 = arith.select %20, %52, %53 : vector<80x32xi1>, vector<80x32xf32>
    %c11_31 = arith.constant 11 : index
    %c0_32 = arith.constant 0 : index
    %55 = vector.load %arg8[%c11_31, %c0_32] : memref<104x96xf32, #tpu.memory_space<vmem>>, vector<80x32xf32>
    tpu.vector_store %arg8[%c11_31, %c0_32], %54 {strides = array<i32>} : memref<104x96xf32, #tpu.memory_space<vmem>>, vector<80x32xf32>,
    %c10_33 = arith.constant 10 : index
    %c32_34 = arith.constant 32 : index
    %56 = vector.load %arg8[%c10_33, %c32_34] : memref<104x96xf32, #tpu.memory_space<vmem>>, vector<80x32xf32>
    tpu.vector_store %arg8[%c10_33, %c32_34], %54 {strides = array<i32>} : memref<104x96xf32, #tpu.memory_space<vmem>>, vector<80x32xf32>,
    %c9_35 = arith.constant 9 : index
    %c64_36 = arith.constant 64 : index
    %57 = vector.load %arg8[%c9_35, %c64_36] : memref<104x96xf32, #tpu.memory_space<vmem>>, vector<80x32xf32>
    tpu.vector_store %arg8[%c9_35, %c64_36], %54 {strides = array<i32>} : memref<104x96xf32, #tpu.memory_space<vmem>>, vector<80x32xf32>,
    %cst_37 = arith.constant 0.000000e+00 : f32
    %58 = vector.broadcast %cst_37 : f32 to vector<80x32xf32>
    %c0_38 = arith.constant 0 : index
    %c0_39 = arith.constant 0 : index
    %59 = vector.load %arg8[%c0_38, %c0_39] : memref<104x96xf32, #tpu.memory_space<vmem>>, vector<80x96xf32>
    %60 = arith.truncf %59 : vector<80x96xf32> to vector<80x96xbf16>
    %c3 = arith.constant 3 : index
    %c0_40 = arith.constant 0 : index
    %c0_41 = arith.constant 0 : index
    %61 = vector.load %arg3[%c3, %c0_40, %c0_41] : memref<12x96x32xbf16, #tpu.memory_space<vmem>>, vector<1x96x32xbf16>
    %62 = vector.shape_cast %61 : vector<1x96x32xbf16> to vector<96x32xbf16>
    %cst_42 = arith.constant dense<0.000000e+00> : vector<80x32xf32>
    %63 = tpu.matmul %60, %62, %cst_42 {dimension_numbers = #tpu.dot_dimension_numbers<[1], [0], [0], [1], [0, 0, 1, 1], [], []>} : vector<80x96xbf16>, vector<96x32xbf16>, vector<80x32xf32> -> vector<80x32xf32>
    %64 = arith.addf %58, %63 : vector<80x32xf32>
    %c10_43 = arith.constant 10 : index
    %c0_44 = arith.constant 0 : index
    %65 = vector.load %arg8[%c10_43, %c0_44] : memref<104x96xf32, #tpu.memory_space<vmem>>, vector<80x96xf32>
    %66 = arith.truncf %65 : vector<80x96xf32> to vector<80x96xbf16>
    %c4 = arith.constant 4 : index
    %c0_45 = arith.constant 0 : index
    %c0_46 = arith.constant 0 : index
    %67 = vector.load %arg3[%c4, %c0_45, %c0_46] : memref<12x96x32xbf16, #tpu.memory_space<vmem>>, vector<1x96x32xbf16>
    %68 = vector.shape_cast %67 : vector<1x96x32xbf16> to vector<96x32xbf16>
    %cst_47 = arith.constant dense<0.000000e+00> : vector<80x32xf32>
    %69 = tpu.matmul %66, %68, %cst_47 {dimension_numbers = #tpu.dot_dimension_numbers<[1], [0], [0], [1], [0, 0, 1, 1], [], []>} : vector<80x96xbf16>, vector<96x32xbf16>, vector<80x32xf32> -> vector<80x32xf32>
    %70 = arith.addf %64, %69 : vector<80x32xf32>
    %c20_48 = arith.constant 20 : index
    %c0_49 = arith.constant 0 : index
    %71 = vector.load %arg8[%c20_48, %c0_49] : memref<104x96xf32, #tpu.memory_space<vmem>>, vector<80x96xf32>
    %72 = arith.truncf %71 : vector<80x96xf32> to vector<80x96xbf16>
    %c5 = arith.constant 5 : index
    %c0_50 = arith.constant 0 : index
    %c0_51 = arith.constant 0 : index
    %73 = vector.load %arg3[%c5, %c0_50, %c0_51] : memref<12x96x32xbf16, #tpu.memory_space<vmem>>, vector<1x96x32xbf16>
    %74 = vector.shape_cast %73 : vector<1x96x32xbf16> to vector<96x32xbf16>
    %cst_52 = arith.constant dense<0.000000e+00> : vector<80x32xf32>
    %75 = tpu.matmul %72, %74, %cst_52 {dimension_numbers = #tpu.dot_dimension_numbers<[1], [0], [0], [1], [0, 0, 1, 1], [], []>} : vector<80x96xbf16>, vector<96x32xbf16>, vector<80x32xf32> -> vector<80x32xf32>
    %76 = arith.addf %70, %75 : vector<80x32xf32>
    %cst_53 = arith.constant 1.000000e-01 : f32
    %77 = vector.broadcast %cst_53 : f32 to vector<80x32xf32>
    %78 = arith.mulf %77, %76 : vector<80x32xf32>
    %79 = arith.addf %26, %78 : vector<80x32xf32>
    %cst_54 = arith.constant 0.000000e+00 : f32
    %80 = vector.broadcast %cst_54 : f32 to vector<80x32xf32>
    %81 = arith.select %20, %79, %80 : vector<80x32xi1>, vector<80x32xf32>
    %c11_55 = arith.constant 11 : index
    %c0_56 = arith.constant 0 : index
    %82 = vector.load %arg8[%c11_55, %c0_56] : memref<104x96xf32, #tpu.memory_space<vmem>>, vector<80x32xf32>
    tpu.vector_store %arg8[%c11_55, %c0_56], %81 {strides = array<i32>} : memref<104x96xf32, #tpu.memory_space<vmem>>, vector<80x32xf32>,
    %c10_57 = arith.constant 10 : index
    %c32_58 = arith.constant 32 : index
    %83 = vector.load %arg8[%c10_57, %c32_58] : memref<104x96xf32, #tpu.memory_space<vmem>>, vector<80x32xf32>
    tpu.vector_store %arg8[%c10_57, %c32_58], %81 {strides = array<i32>} : memref<104x96xf32, #tpu.memory_space<vmem>>, vector<80x32xf32>,
    %c9_59 = arith.constant 9 : index
    %c64_60 = arith.constant 64 : index
    %84 = vector.load %arg8[%c9_59, %c64_60] : memref<104x96xf32, #tpu.memory_space<vmem>>, vector<80x32xf32>
    tpu.vector_store %arg8[%c9_59, %c64_60], %81 {strides = array<i32>} : memref<104x96xf32, #tpu.memory_space<vmem>>, vector<80x32xf32>,
    %cst_61 = arith.constant 0.000000e+00 : f32
    %85 = vector.broadcast %cst_61 : f32 to vector<80x32xf32>
    %c0_62 = arith.constant 0 : index
    %c0_63 = arith.constant 0 : index
    %86 = vector.load %arg8[%c0_62, %c0_63] : memref<104x96xf32, #tpu.memory_space<vmem>>, vector<80x96xf32>
    %87 = arith.truncf %86 : vector<80x96xf32> to vector<80x96xbf16>
    %c6 = arith.constant 6 : index
    %c0_64 = arith.constant 0 : index
    %c0_65 = arith.constant 0 : index
    %88 = vector.load %arg3[%c6, %c0_64, %c0_65] : memref<12x96x32xbf16, #tpu.memory_space<vmem>>, vector<1x96x32xbf16>
    %89 = vector.shape_cast %88 : vector<1x96x32xbf16> to vector<96x32xbf16>
    %cst_66 = arith.constant dense<0.000000e+00> : vector<80x32xf32>
    %90 = tpu.matmul %87, %89, %cst_66 {dimension_numbers = #tpu.dot_dimension_numbers<[1], [0], [0], [1], [0, 0, 1, 1], [], []>} : vector<80x96xbf16>, vector<96x32xbf16>, vector<80x32xf32> -> vector<80x32xf32>
    %91 = arith.addf %85, %90 : vector<80x32xf32>
    %c10_67 = arith.constant 10 : index
    %c0_68 = arith.constant 0 : index
    %92 = vector.load %arg8[%c10_67, %c0_68] : memref<104x96xf32, #tpu.memory_space<vmem>>, vector<80x96xf32>
    %93 = arith.truncf %92 : vector<80x96xf32> to vector<80x96xbf16>
    %c7 = arith.constant 7 : index
    %c0_69 = arith.constant 0 : index
    %c0_70 = arith.constant 0 : index
    %94 = vector.load %arg3[%c7, %c0_69, %c0_70] : memref<12x96x32xbf16, #tpu.memory_space<vmem>>, vector<1x96x32xbf16>
    %95 = vector.shape_cast %94 : vector<1x96x32xbf16> to vector<96x32xbf16>
    %cst_71 = arith.constant dense<0.000000e+00> : vector<80x32xf32>
    %96 = tpu.matmul %93, %95, %cst_71 {dimension_numbers = #tpu.dot_dimension_numbers<[1], [0], [0], [1], [0, 0, 1, 1], [], []>} : vector<80x96xbf16>, vector<96x32xbf16>, vector<80x32xf32> -> vector<80x32xf32>
    %97 = arith.addf %91, %96 : vector<80x32xf32>
    %c20_72 = arith.constant 20 : index
    %c0_73 = arith.constant 0 : index
    %98 = vector.load %arg8[%c20_72, %c0_73] : memref<104x96xf32, #tpu.memory_space<vmem>>, vector<80x96xf32>
    %99 = arith.truncf %98 : vector<80x96xf32> to vector<80x96xbf16>
    %c8 = arith.constant 8 : index
    %c0_74 = arith.constant 0 : index
    %c0_75 = arith.constant 0 : index
    %100 = vector.load %arg3[%c8, %c0_74, %c0_75] : memref<12x96x32xbf16, #tpu.memory_space<vmem>>, vector<1x96x32xbf16>
    %101 = vector.shape_cast %100 : vector<1x96x32xbf16> to vector<96x32xbf16>
    %cst_76 = arith.constant dense<0.000000e+00> : vector<80x32xf32>
    %102 = tpu.matmul %99, %101, %cst_76 {dimension_numbers = #tpu.dot_dimension_numbers<[1], [0], [0], [1], [0, 0, 1, 1], [], []>} : vector<80x96xbf16>, vector<96x32xbf16>, vector<80x32xf32> -> vector<80x32xf32>
    %103 = arith.addf %97, %102 : vector<80x32xf32>
    %cst_77 = arith.constant 0.000000e+00 : f32
    %104 = vector.broadcast %cst_77 : f32 to vector<80x32xf32>
    %105 = arith.maximumf %103, %104 : vector<80x32xf32>
    %cst_78 = arith.constant 0.000000e+00 : f32
    %106 = vector.broadcast %cst_78 : f32 to vector<80x32xf32>
    %107 = arith.select %20, %105, %106 : vector<80x32xi1>, vector<80x32xf32>
    %c11_79 = arith.constant 11 : index
    %c0_80 = arith.constant 0 : index
    %108 = vector.load %arg8[%c11_79, %c0_80] : memref<104x96xf32, #tpu.memory_space<vmem>>, vector<80x32xf32>
    tpu.vector_store %arg8[%c11_79, %c0_80], %107 {strides = array<i32>} : memref<104x96xf32, #tpu.memory_space<vmem>>, vector<80x32xf32>,
    %c10_81 = arith.constant 10 : index
    %c32_82 = arith.constant 32 : index
    %109 = vector.load %arg8[%c10_81, %c32_82] : memref<104x96xf32, #tpu.memory_space<vmem>>, vector<80x32xf32>
    tpu.vector_store %arg8[%c10_81, %c32_82], %107 {strides = array<i32>} : memref<104x96xf32, #tpu.memory_space<vmem>>, vector<80x32xf32>,
    %c9_83 = arith.constant 9 : index
    %c64_84 = arith.constant 64 : index
    %110 = vector.load %arg8[%c9_83, %c64_84] : memref<104x96xf32, #tpu.memory_space<vmem>>, vector<80x32xf32>
    tpu.vector_store %arg8[%c9_83, %c64_84], %107 {strides = array<i32>} : memref<104x96xf32, #tpu.memory_space<vmem>>, vector<80x32xf32>,
    %cst_85 = arith.constant 0.000000e+00 : f32
    %111 = vector.broadcast %cst_85 : f32 to vector<80x32xf32>
    %c0_86 = arith.constant 0 : index
    %c0_87 = arith.constant 0 : index
    %112 = vector.load %arg8[%c0_86, %c0_87] : memref<104x96xf32, #tpu.memory_space<vmem>>, vector<80x96xf32>
    %113 = arith.truncf %112 : vector<80x96xf32> to vector<80x96xbf16>
    %c9_88 = arith.constant 9 : index
    %c0_89 = arith.constant 0 : index
    %c0_90 = arith.constant 0 : index
    %114 = vector.load %arg3[%c9_88, %c0_89, %c0_90] : memref<12x96x32xbf16, #tpu.memory_space<vmem>>, vector<1x96x32xbf16>
    %115 = vector.shape_cast %114 : vector<1x96x32xbf16> to vector<96x32xbf16>
    %cst_91 = arith.constant dense<0.000000e+00> : vector<80x32xf32>
    %116 = tpu.matmul %113, %115, %cst_91 {dimension_numbers = #tpu.dot_dimension_numbers<[1], [0], [0], [1], [0, 0, 1, 1], [], []>} : vector<80x96xbf16>, vector<96x32xbf16>, vector<80x32xf32> -> vector<80x32xf32>
    %117 = arith.addf %111, %116 : vector<80x32xf32>
    %c10_92 = arith.constant 10 : index
    %c0_93 = arith.constant 0 : index
    %118 = vector.load %arg8[%c10_92, %c0_93] : memref<104x96xf32, #tpu.memory_space<vmem>>, vector<80x96xf32>
    %119 = arith.truncf %118 : vector<80x96xf32> to vector<80x96xbf16>
    %c10_94 = arith.constant 10 : index
    %c0_95 = arith.constant 0 : index
    %c0_96 = arith.constant 0 : index
    %120 = vector.load %arg3[%c10_94, %c0_95, %c0_96] : memref<12x96x32xbf16, #tpu.memory_space<vmem>>, vector<1x96x32xbf16>
    %121 = vector.shape_cast %120 : vector<1x96x32xbf16> to vector<96x32xbf16>
    %cst_97 = arith.constant dense<0.000000e+00> : vector<80x32xf32>
    %122 = tpu.matmul %119, %121, %cst_97 {dimension_numbers = #tpu.dot_dimension_numbers<[1], [0], [0], [1], [0, 0, 1, 1], [], []>} : vector<80x96xbf16>, vector<96x32xbf16>, vector<80x32xf32> -> vector<80x32xf32>
    %123 = arith.addf %117, %122 : vector<80x32xf32>
    %c20_98 = arith.constant 20 : index
    %c0_99 = arith.constant 0 : index
    %124 = vector.load %arg8[%c20_98, %c0_99] : memref<104x96xf32, #tpu.memory_space<vmem>>, vector<80x96xf32>
    %125 = arith.truncf %124 : vector<80x96xf32> to vector<80x96xbf16>
    %c11_100 = arith.constant 11 : index
    %c0_101 = arith.constant 0 : index
    %c0_102 = arith.constant 0 : index
    %126 = vector.load %arg3[%c11_100, %c0_101, %c0_102] : memref<12x96x32xbf16, #tpu.memory_space<vmem>>, vector<1x96x32xbf16>
    %127 = vector.shape_cast %126 : vector<1x96x32xbf16> to vector<96x32xbf16>
    %cst_103 = arith.constant dense<0.000000e+00> : vector<80x32xf32>
    %128 = tpu.matmul %125, %127, %cst_103 {dimension_numbers = #tpu.dot_dimension_numbers<[1], [0], [0], [1], [0, 0, 1, 1], [], []>} : vector<80x96xbf16>, vector<96x32xbf16>, vector<80x32xf32> -> vector<80x32xf32>
    %129 = arith.addf %123, %128 : vector<80x32xf32>
    %cst_104 = arith.constant 1.000000e-01 : f32
    %130 = vector.broadcast %cst_104 : f32 to vector<80x32xf32>
    %131 = arith.mulf %130, %129 : vector<80x32xf32>
    %132 = arith.addf %79, %131 : vector<80x32xf32>
    %cst_105 = arith.constant 0.000000e+00 : f32
    %133 = vector.broadcast %cst_105 : f32 to vector<80x32xf32>
    %134 = arith.select %20, %132, %133 : vector<80x32xi1>, vector<80x32xf32>
    %c11_106 = arith.constant 11 : index
    %c0_107 = arith.constant 0 : index
    %135 = vector.load %arg8[%c11_106, %c0_107] : memref<104x96xf32, #tpu.memory_space<vmem>>, vector<80x32xf32>
    tpu.vector_store %arg8[%c11_106, %c0_107], %134 {strides = array<i32>} : memref<104x96xf32, #tpu.memory_space<vmem>>, vector<80x32xf32>,
    %c10_108 = arith.constant 10 : index
    %c32_109 = arith.constant 32 : index
    %136 = vector.load %arg8[%c10_108, %c32_109] : memref<104x96xf32, #tpu.memory_space<vmem>>, vector<80x32xf32>
    tpu.vector_store %arg8[%c10_108, %c32_109], %134 {strides = array<i32>} : memref<104x96xf32, #tpu.memory_space<vmem>>, vector<80x32xf32>,
    %c9_110 = arith.constant 9 : index
    %c64_111 = arith.constant 64 : index
    %137 = vector.load %arg8[%c9_110, %c64_111] : memref<104x96xf32, #tpu.memory_space<vmem>>, vector<80x32xf32>
    tpu.vector_store %arg8[%c9_110, %c64_111], %134 {strides = array<i32>} : memref<104x96xf32, #tpu.memory_space<vmem>>, vector<80x32xf32>,
    %cst_112 = arith.constant 0.000000e+00 : f32
    %138 = vector.broadcast %cst_112 : f32 to vector<80x32xf32>
    %c0_113 = arith.constant 0 : index
    %c0_114 = arith.constant 0 : index
    %139 = vector.load %arg8[%c0_113, %c0_114] : memref<104x96xf32, #tpu.memory_space<vmem>>, vector<80x96xf32>
    %140 = arith.truncf %139 : vector<80x96xf32> to vector<80x96xbf16>
    %c0_115 = arith.constant 0 : index
    %c0_116 = arith.constant 0 : index
    %c0_117 = arith.constant 0 : index
    %141 = vector.load %arg4[%c0_115, %c0_116, %c0_117] : memref<3x96x32xbf16, #tpu.memory_space<vmem>>, vector<1x96x32xbf16>
    %142 = vector.shape_cast %141 : vector<1x96x32xbf16> to vector<96x32xbf16>
    %cst_118 = arith.constant dense<0.000000e+00> : vector<80x32xf32>
    %143 = tpu.matmul %140, %142, %cst_118 {dimension_numbers = #tpu.dot_dimension_numbers<[1], [0], [0], [1], [0, 0, 1, 1], [], []>} : vector<80x96xbf16>, vector<96x32xbf16>, vector<80x32xf32> -> vector<80x32xf32>
    %144 = arith.addf %138, %143 : vector<80x32xf32>
    %c10_119 = arith.constant 10 : index
    %c0_120 = arith.constant 0 : index
    %145 = vector.load %arg8[%c10_119, %c0_120] : memref<104x96xf32, #tpu.memory_space<vmem>>, vector<80x96xf32>
    %146 = arith.truncf %145 : vector<80x96xf32> to vector<80x96xbf16>
    %c1_121 = arith.constant 1 : index
    %c0_122 = arith.constant 0 : index
    %c0_123 = arith.constant 0 : index
    %147 = vector.load %arg4[%c1_121, %c0_122, %c0_123] : memref<3x96x32xbf16, #tpu.memory_space<vmem>>, vector<1x96x32xbf16>
    %148 = vector.shape_cast %147 : vector<1x96x32xbf16> to vector<96x32xbf16>
    %cst_124 = arith.constant dense<0.000000e+00> : vector<80x32xf32>
    %149 = tpu.matmul %146, %148, %cst_124 {dimension_numbers = #tpu.dot_dimension_numbers<[1], [0], [0], [1], [0, 0, 1, 1], [], []>} : vector<80x96xbf16>, vector<96x32xbf16>, vector<80x32xf32> -> vector<80x32xf32>
    %150 = arith.addf %144, %149 : vector<80x32xf32>
    %c20_125 = arith.constant 20 : index
    %c0_126 = arith.constant 0 : index
    %151 = vector.load %arg8[%c20_125, %c0_126] : memref<104x96xf32, #tpu.memory_space<vmem>>, vector<80x96xf32>
    %152 = arith.truncf %151 : vector<80x96xf32> to vector<80x96xbf16>
    %c2_127 = arith.constant 2 : index
    %c0_128 = arith.constant 0 : index
    %c0_129 = arith.constant 0 : index
    %153 = vector.load %arg4[%c2_127, %c0_128, %c0_129] : memref<3x96x32xbf16, #tpu.memory_space<vmem>>, vector<1x96x32xbf16>
    %154 = vector.shape_cast %153 : vector<1x96x32xbf16> to vector<96x32xbf16>
    %cst_130 = arith.constant dense<0.000000e+00> : vector<80x32xf32>
    %155 = tpu.matmul %152, %154, %cst_130 {dimension_numbers = #tpu.dot_dimension_numbers<[1], [0], [0], [1], [0, 0, 1, 1], [], []>} : vector<80x96xbf16>, vector<96x32xbf16>, vector<80x32xf32> -> vector<80x32xf32>
    %156 = arith.addf %150, %155 : vector<80x32xf32>
    %cst_131 = arith.constant 0.000000e+00 : f32
    %157 = vector.broadcast %cst_131 : f32 to vector<80x32xf32>
    %158 = arith.select %20, %156, %157 : vector<80x32xi1>, vector<80x32xf32>
    %c11_132 = arith.constant 11 : index
    %c0_133 = arith.constant 0 : index
    %159 = vector.load %arg8[%c11_132, %c0_133] : memref<104x96xf32, #tpu.memory_space<vmem>>, vector<80x32xf32>
    tpu.vector_store %arg8[%c11_132, %c0_133], %158 {strides = array<i32>} : memref<104x96xf32, #tpu.memory_space<vmem>>, vector<80x32xf32>,
    %c10_134 = arith.constant 10 : index
    %c32_135 = arith.constant 32 : index
    %160 = vector.load %arg8[%c10_134, %c32_135] : memref<104x96xf32, #tpu.memory_space<vmem>>, vector<80x32xf32>
    tpu.vector_store %arg8[%c10_134, %c32_135], %158 {strides = array<i32>} : memref<104x96xf32, #tpu.memory_space<vmem>>, vector<80x32xf32>,
    %c9_136 = arith.constant 9 : index
    %c64_137 = arith.constant 64 : index
    %161 = vector.load %arg8[%c9_136, %c64_137] : memref<104x96xf32, #tpu.memory_space<vmem>>, vector<80x32xf32>
    tpu.vector_store %arg8[%c9_136, %c64_137], %158 {strides = array<i32>} : memref<104x96xf32, #tpu.memory_space<vmem>>, vector<80x32xf32>,
    %cst_138 = arith.constant 0.000000e+00 : f32
    %162 = vector.broadcast %cst_138 : f32 to vector<80x128xf32>
    %c0_139 = arith.constant 0 : index
    %c0_140 = arith.constant 0 : index
    %163 = vector.load %arg8[%c0_139, %c0_140] : memref<104x96xf32, #tpu.memory_space<vmem>>, vector<80x96xf32>
    %164 = arith.truncf %163 : vector<80x96xf32> to vector<80x96xbf16>
    %c0_141 = arith.constant 0 : index
    %c0_142 = arith.constant 0 : index
    %c0_143 = arith.constant 0 : index
    %165 = vector.load %arg5[%c0_141, %c0_142, %c0_143] : memref<3x96x128xbf16, #tpu.memory_space<vmem>>, vector<1x96x128xbf16>
    %166 = vector.shape_cast %165 : vector<1x96x128xbf16> to vector<96x128xbf16>
    %cst_144 = arith.constant dense<0.000000e+00> : vector<80x128xf32>
    %167 = tpu.matmul %164, %166, %cst_144 {dimension_numbers = #tpu.dot_dimension_numbers<[1], [0], [0], [1], [0, 0, 1, 1], [], []>} : vector<80x96xbf16>, vector<96x128xbf16>, vector<80x128xf32> -> vector<80x128xf32>
    %168 = arith.addf %162, %167 : vector<80x128xf32>
    %c10_145 = arith.constant 10 : index
    %c0_146 = arith.constant 0 : index
    %169 = vector.load %arg8[%c10_145, %c0_146] : memref<104x96xf32, #tpu.memory_space<vmem>>, vector<80x96xf32>
    %170 = arith.truncf %169 : vector<80x96xf32> to vector<80x96xbf16>
    %c1_147 = arith.constant 1 : index
    %c0_148 = arith.constant 0 : index
    %c0_149 = arith.constant 0 : index
    %171 = vector.load %arg5[%c1_147, %c0_148, %c0_149] : memref<3x96x128xbf16, #tpu.memory_space<vmem>>, vector<1x96x128xbf16>
    %172 = vector.shape_cast %171 : vector<1x96x128xbf16> to vector<96x128xbf16>
    %cst_150 = arith.constant dense<0.000000e+00> : vector<80x128xf32>
    %173 = tpu.matmul %170, %172, %cst_150 {dimension_numbers = #tpu.dot_dimension_numbers<[1], [0], [0], [1], [0, 0, 1, 1], [], []>} : vector<80x96xbf16>, vector<96x128xbf16>, vector<80x128xf32> -> vector<80x128xf32>
    %174 = arith.addf %168, %173 : vector<80x128xf32>
    %c20_151 = arith.constant 20 : index
    %c0_152 = arith.constant 0 : index
    %175 = vector.load %arg8[%c20_151, %c0_152] : memref<104x96xf32, #tpu.memory_space<vmem>>, vector<80x96xf32>
    %176 = arith.truncf %175 : vector<80x96xf32> to vector<80x96xbf16>
    %c2_153 = arith.constant 2 : index
    %c0_154 = arith.constant 0 : index
    %c0_155 = arith.constant 0 : index
    %177 = vector.load %arg5[%c2_153, %c0_154, %c0_155] : memref<3x96x128xbf16, #tpu.memory_space<vmem>>, vector<1x96x128xbf16>
    %178 = vector.shape_cast %177 : vector<1x96x128xbf16> to vector<96x128xbf16>
    %cst_156 = arith.constant dense<0.000000e+00> : vector<80x128xf32>
    %179 = tpu.matmul %176, %178, %cst_156 {dimension_numbers = #tpu.dot_dimension_numbers<[1], [0], [0], [1], [0, 0, 1, 1], [], []>} : vector<80x96xbf16>, vector<96x128xbf16>, vector<80x128xf32> -> vector<80x128xf32>
    %180 = arith.addf %174, %179 : vector<80x128xf32>
    %c0_157 = arith.constant 0 : index
    %c0_158 = arith.constant 0 : index
    %181 = vector.load %arg6[%c0_157, %c0_158] : memref<1x128xf32, #tpu.memory_space<vmem>>, vector<1x128xf32>
    %182 = vector.broadcast %181 : vector<1x128xf32> to vector<80x128xf32>
    %183 = arith.addf %180, %182 : vector<80x128xf32>
    %184 = arith.truncf %183 : vector<80x128xf32> to vector<80x128xbf16>
    %c0_159 = arith.constant 0 : index
    %c0_160 = arith.constant 0 : index
    %c0_161 = arith.constant 0 : index
    %185 = vector.load %arg7[%c0_159, %c0_160, %c0_161] : memref<1x80x128xbf16, #tpu.memory_space<vmem>>, vector<1x80x128xbf16>
    %186 = vector.shape_cast %185 : vector<1x80x128xbf16> to vector<80x128xbf16>
    %187 = vector.shape_cast %184 : vector<80x128xbf16> to vector<1x80x128xbf16>
    tpu.vector_store %arg7[%c0_159, %c0_160, %c0_161], %187 {strides = array<i32>} : memref<1x80x128xbf16, #tpu.memory_space<vmem>>, vector<1x80x128xbf16>,
    return
  }
  func.func @transform_0(%arg0: i32) -> (i32, i32, i32) {
    %c0_i32 = arith.constant 0 : i32
    %c0_i32_0 = arith.constant 0 : i32
    %c0_i32_1 = arith.constant 0 : i32
    return %arg0, %c0_i32, %c0_i32_0 : i32, i32, i32
  }
  func.func @transform_1(%arg0: i32) -> (i32, i32) {
    %c0_i32 = arith.constant 0 : i32
    %c0_i32_0 = arith.constant 0 : i32
    %c0_i32_1 = arith.constant 0 : i32
    return %c0_i32, %c0_i32_0 : i32, i32
  }
  func.func @transform_2(%arg0: i32) -> (i32, i32, i32) {
    %c0_i32 = arith.constant 0 : i32
    %c0_i32_0 = arith.constant 0 : i32
    %c0_i32_1 = arith.constant 0 : i32
    %c0_i32_2 = arith.constant 0 : i32
    return %c0_i32, %c0_i32_0, %c0_i32_1 : i32, i32, i32
  }
  func.func @transform_3(%arg0: i32) -> (i32, i32, i32) {
    %c0_i32 = arith.constant 0 : i32
    %c0_i32_0 = arith.constant 0 : i32
    %c0_i32_1 = arith.constant 0 : i32
    %c0_i32_2 = arith.constant 0 : i32
    return %c0_i32, %c0_i32_0, %c0_i32_1 : i32, i32, i32
  }
  func.func @transform_4(%arg0: i32) -> (i32, i32, i32) {
    %c0_i32 = arith.constant 0 : i32
    %c0_i32_0 = arith.constant 0 : i32
    %c0_i32_1 = arith.constant 0 : i32
    %c0_i32_2 = arith.constant 0 : i32
    return %c0_i32, %c0_i32_0, %c0_i32_1 : i32, i32, i32
  }
  func.func @transform_5(%arg0: i32) -> (i32, i32) {
    %c0_i32 = arith.constant 0 : i32
    %c0_i32_0 = arith.constant 0 : i32
    %c0_i32_1 = arith.constant 0 : i32
    return %c0_i32, %c0_i32_0 : i32, i32
  }
  func.func @transform_6(%arg0: i32) -> (i32, i32, i32) {
    %c0_i32 = arith.constant 0 : i32
    %c0_i32_0 = arith.constant 0 : i32
    %c0_i32_1 = arith.constant 0 : i32
    return %arg0, %c0_i32, %c0_i32_0 : i32, i32, i32
  }
}

module attributes {stable_mosaic.version = 11 : i64} {
  func.func @kernel(%arg0: i32, %arg1: memref<1x288x32xbf16, #tpu.memory_space<vmem>>, %arg2: memref<1x288x32xbf16, #tpu.memory_space<vmem>>, %arg3: memref<3x96x3xbf16, #tpu.memory_space<vmem>>, %arg4: memref<1x288x3xf32, #tpu.memory_space<vmem>>, %arg5: memref<328x96xf32, #tpu.memory_space<vmem>>) attributes {dimension_semantics = [#tpu.dimension_semantics<parallel>], iteration_bounds = array<i64: 2>, scalar_prefetch = 0 : i64, scratch_operands = 1 : i64, tpu.core_type = #tpu.core_type<tc>, window_params = [{transform_indices = @transform_0, window_bounds = array<i64: 1, 288, 32>}, {transform_indices = @transform_1, window_bounds = array<i64: 1, 288, 32>}, {pipeline_mode = #tpu.pipeline_mode<synchronous>, transform_indices = @transform_2, window_bounds = array<i64: 3, 96, 3>}, {transform_indices = @transform_3, window_bounds = array<i64: 1, 288, 3>}]} {
    %cst = arith.constant 0.000000e+00 : f32
    %0 = vector.broadcast %cst : f32 to vector<328x96xf32>
    %c0 = arith.constant 0 : index
    %c0_0 = arith.constant 0 : index
    %1 = vector.load %arg5[%c0, %c0_0] : memref<328x96xf32, #tpu.memory_space<vmem>>, vector<328x96xf32>
    tpu.vector_store %arg5[%c0, %c0_0], %0 {strides = array<i32>} : memref<328x96xf32, #tpu.memory_space<vmem>>, vector<328x96xf32>,
    %2 = tpu.iota {dimensions = array<i32: 0>} : vector<288x32xi32>
    %c18_i32 = arith.constant 18 : i32
    %c0_i32 = arith.constant 0 : i32
    %3 = arith.cmpi eq, %c18_i32, %c0_i32 : i32
    %c1_i32 = arith.constant 1 : i32
    %4 = arith.select %3, %c1_i32, %c18_i32 : i32
    %5 = vector.broadcast %4 : i32 to vector<288x32xi32>
    %6 = arith.remsi %2, %5 : vector<288x32xi32>
    %c0_i32_1 = arith.constant 0 : i32
    %7 = vector.broadcast %c0_i32_1 : i32 to vector<288x32xi32>
    %8 = arith.cmpi ne, %6, %7 : vector<288x32xi32>
    %c0_i32_2 = arith.constant 0 : i32
    %9 = vector.broadcast %c0_i32_2 : i32 to vector<288x32xi32>
    %10 = arith.cmpi slt, %6, %9 : vector<288x32xi32>
    %c0_i32_3 = arith.constant 0 : i32
    %11 = arith.cmpi slt, %4, %c0_i32_3 : i32
    %12 = vector.broadcast %11 : i1 to vector<288x32xi1>
    %13 = vector.broadcast %12 : vector<288x32xi1> to vector<288x32xi1>
    %14 = arith.xori %10, %13 : vector<288x32xi1>
    %15 = arith.andi %14, %8 : vector<288x32xi1>
    %16 = vector.broadcast %4 : i32 to vector<288x32xi32>
    %17 = arith.addi %6, %16 : vector<288x32xi32>
    %18 = arith.select %15, %17, %6 : vector<288x32xi1>, vector<288x32xi32>
    %c16_i32 = arith.constant 16 : i32
    %19 = vector.broadcast %c16_i32 : i32 to vector<288x32xi32>
    %20 = arith.cmpi slt, %18, %19 : vector<288x32xi32>
    %c0_4 = arith.constant 0 : index
    %c0_5 = arith.constant 0 : index
    %c0_6 = arith.constant 0 : index
    %21 = vector.load %arg1[%c0_4, %c0_5, %c0_6] : memref<1x288x32xbf16, #tpu.memory_space<vmem>>, vector<1x288x32xbf16>
    %22 = vector.shape_cast %21 : vector<1x288x32xbf16> to vector<288x32xbf16>
    %23 = arith.extf %22 : vector<288x32xbf16> to vector<288x32xf32>
    %c0_7 = arith.constant 0 : index
    %c0_8 = arith.constant 0 : index
    %c0_9 = arith.constant 0 : index
    %24 = vector.load %arg2[%c0_7, %c0_8, %c0_9] : memref<1x288x32xbf16, #tpu.memory_space<vmem>>, vector<1x288x32xbf16>
    %25 = vector.shape_cast %24 : vector<1x288x32xbf16> to vector<288x32xbf16>
    %26 = arith.extf %25 : vector<288x32xbf16> to vector<288x32xf32>
    %27 = arith.addf %23, %26 : vector<288x32xf32>
    %cst_10 = arith.constant 0.000000e+00 : f32
    %28 = vector.broadcast %cst_10 : f32 to vector<288x32xf32>
    %29 = arith.select %20, %27, %28 : vector<288x32xi1>, vector<288x32xf32>
    %c19 = arith.constant 19 : index
    %c0_11 = arith.constant 0 : index
    %30 = vector.load %arg5[%c19, %c0_11] : memref<328x96xf32, #tpu.memory_space<vmem>>, vector<288x32xf32>
    tpu.vector_store %arg5[%c19, %c0_11], %29 {strides = array<i32>} : memref<328x96xf32, #tpu.memory_space<vmem>>, vector<288x32xf32>,
    %c18 = arith.constant 18 : index
    %c32 = arith.constant 32 : index
    %31 = vector.load %arg5[%c18, %c32] : memref<328x96xf32, #tpu.memory_space<vmem>>, vector<288x32xf32>
    tpu.vector_store %arg5[%c18, %c32], %29 {strides = array<i32>} : memref<328x96xf32, #tpu.memory_space<vmem>>, vector<288x32xf32>,
    %c17 = arith.constant 17 : index
    %c64 = arith.constant 64 : index
    %32 = vector.load %arg5[%c17, %c64] : memref<328x96xf32, #tpu.memory_space<vmem>>, vector<288x32xf32>
    tpu.vector_store %arg5[%c17, %c64], %29 {strides = array<i32>} : memref<328x96xf32, #tpu.memory_space<vmem>>, vector<288x32xf32>,
    %cst_12 = arith.constant 0.000000e+00 : f32
    %33 = vector.broadcast %cst_12 : f32 to vector<288x3xf32>
    %c0_13 = arith.constant 0 : index
    %c0_14 = arith.constant 0 : index
    %34 = vector.load %arg5[%c0_13, %c0_14] : memref<328x96xf32, #tpu.memory_space<vmem>>, vector<288x96xf32>
    %35 = arith.truncf %34 : vector<288x96xf32> to vector<288x96xbf16>
    %c0_15 = arith.constant 0 : index
    %c0_16 = arith.constant 0 : index
    %c0_17 = arith.constant 0 : index
    %36 = vector.load %arg3[%c0_15, %c0_16, %c0_17] : memref<3x96x3xbf16, #tpu.memory_space<vmem>>, vector<1x96x3xbf16>
    %37 = vector.shape_cast %36 : vector<1x96x3xbf16> to vector<96x3xbf16>
    %cst_18 = arith.constant dense<0.000000e+00> : vector<288x3xf32>
    %38 = tpu.matmul %35, %37, %cst_18 {dimension_numbers = #tpu.dot_dimension_numbers<[1], [0], [0], [1], [0, 0, 1, 1], [], []>} : vector<288x96xbf16>, vector<96x3xbf16>, vector<288x3xf32> -> vector<288x3xf32>
    %39 = arith.addf %33, %38 : vector<288x3xf32>
    %c18_19 = arith.constant 18 : index
    %c0_20 = arith.constant 0 : index
    %40 = vector.load %arg5[%c18_19, %c0_20] : memref<328x96xf32, #tpu.memory_space<vmem>>, vector<288x96xf32>
    %41 = arith.truncf %40 : vector<288x96xf32> to vector<288x96xbf16>
    %c1 = arith.constant 1 : index
    %c0_21 = arith.constant 0 : index
    %c0_22 = arith.constant 0 : index
    %42 = vector.load %arg3[%c1, %c0_21, %c0_22] : memref<3x96x3xbf16, #tpu.memory_space<vmem>>, vector<1x96x3xbf16>
    %43 = vector.shape_cast %42 : vector<1x96x3xbf16> to vector<96x3xbf16>
    %cst_23 = arith.constant dense<0.000000e+00> : vector<288x3xf32>
    %44 = tpu.matmul %41, %43, %cst_23 {dimension_numbers = #tpu.dot_dimension_numbers<[1], [0], [0], [1], [0, 0, 1, 1], [], []>} : vector<288x96xbf16>, vector<96x3xbf16>, vector<288x3xf32> -> vector<288x3xf32>
    %45 = arith.addf %39, %44 : vector<288x3xf32>
    %c36 = arith.constant 36 : index
    %c0_24 = arith.constant 0 : index
    %46 = vector.load %arg5[%c36, %c0_24] : memref<328x96xf32, #tpu.memory_space<vmem>>, vector<288x96xf32>
    %47 = arith.truncf %46 : vector<288x96xf32> to vector<288x96xbf16>
    %c2 = arith.constant 2 : index
    %c0_25 = arith.constant 0 : index
    %c0_26 = arith.constant 0 : index
    %48 = vector.load %arg3[%c2, %c0_25, %c0_26] : memref<3x96x3xbf16, #tpu.memory_space<vmem>>, vector<1x96x3xbf16>
    %49 = vector.shape_cast %48 : vector<1x96x3xbf16> to vector<96x3xbf16>
    %cst_27 = arith.constant dense<0.000000e+00> : vector<288x3xf32>
    %50 = tpu.matmul %47, %49, %cst_27 {dimension_numbers = #tpu.dot_dimension_numbers<[1], [0], [0], [1], [0, 0, 1, 1], [], []>} : vector<288x96xbf16>, vector<96x3xbf16>, vector<288x3xf32> -> vector<288x3xf32>
    %51 = arith.addf %45, %50 : vector<288x3xf32>
    %c0_28 = arith.constant 0 : index
    %c0_29 = arith.constant 0 : index
    %c0_30 = arith.constant 0 : index
    %52 = vector.load %arg4[%c0_28, %c0_29, %c0_30] : memref<1x288x3xf32, #tpu.memory_space<vmem>>, vector<1x288x3xf32>
    %53 = vector.shape_cast %52 : vector<1x288x3xf32> to vector<288x3xf32>
    %54 = vector.shape_cast %51 : vector<288x3xf32> to vector<1x288x3xf32>
    tpu.vector_store %arg4[%c0_28, %c0_29, %c0_30], %54 {strides = array<i32>} : memref<1x288x3xf32, #tpu.memory_space<vmem>>, vector<1x288x3xf32>,
    return
  }
  func.func @transform_0(%arg0: i32) -> (i32, i32, i32) {
    %c0_i32 = arith.constant 0 : i32
    %c0_i32_0 = arith.constant 0 : i32
    %c0_i32_1 = arith.constant 0 : i32
    return %arg0, %c0_i32, %c0_i32_0 : i32, i32, i32
  }
  func.func @transform_1(%arg0: i32) -> (i32, i32, i32) {
    %c0_i32 = arith.constant 0 : i32
    %c0_i32_0 = arith.constant 0 : i32
    %c0_i32_1 = arith.constant 0 : i32
    return %arg0, %c0_i32, %c0_i32_0 : i32, i32, i32
  }
  func.func @transform_2(%arg0: i32) -> (i32, i32, i32) {
    %c0_i32 = arith.constant 0 : i32
    %c0_i32_0 = arith.constant 0 : i32
    %c0_i32_1 = arith.constant 0 : i32
    %c0_i32_2 = arith.constant 0 : i32
    return %c0_i32, %c0_i32_0, %c0_i32_1 : i32, i32, i32
  }
  func.func @transform_3(%arg0: i32) -> (i32, i32, i32) {
    %c0_i32 = arith.constant 0 : i32
    %c0_i32_0 = arith.constant 0 : i32
    %c0_i32_1 = arith.constant 0 : i32
    return %arg0, %c0_i32, %c0_i32_0 : i32, i32, i32
  }
}

</mosaic_0001>

<llo_original>
// kernel: net_forward.3
$region0: #{net_forward.3}
  #allocation0 [shape = 'u32[]', space=smem, size = 0x4, offset = 0x4, fixed_abs, tag = 'smem constant byte address 0x4 - core index']
  #allocation1 [shape = 'u32[72,128]{1,0:T(1,128)}', space=vmem, size = 0x9000, scoped, tag = 'internal scratch']
  %s0 = inlined_call_operand.vmem [shape: bf16[2,288,72], index: 0, kind: input, shape index: {}]
  %s1 = inlined_call_operand.vmem [shape: bf16[72,32], index: 1, kind: input, shape index: {}]
  %s2 = inlined_call_operand.vmem [shape: bf16[2,288,32], index: 2, kind: output, shape index: {}]
  %s3 = sld [smem:[#allocation0]]
  $region41: #{net_forward.3} parent=0
    _
  %s5 = ssub.s32 1, %s3
  %s6 = scalar_select 0, %s5, %s3
  loop: start=0, step=1, limit=4
  $region2: #{net_forward.3} parent=0 // loop_pre_header
    _
  $region3: #{net_forward.3} parent=0 // loop_header
    %s8 = sphi 0, %s12
    %p9 = scmp.ge.s32.totalorder %s8, 4
    %s18 = sphi 0, %s20
    %s21 = sphi 0, %s18
    %s22 = sphi 0, %s21
    %s38 = sphi 0, %s22
    %s42 = sphi 0, %s42
    %s44 = sphi 0, %s42
    %s45 = sphi 0, %s44
    %s59 = sphi 0, %s45
    %s65 = sphi 0, %s67
    %s68 = sphi 0, %s65
    %s69 = sphi 0, %s68
    %s85 = sphi 0, %s69
  $region4: #{net_forward.3} parent=0 // loop_header_branch
    %11 = sbr.rel (%p9) target = $region8
  $region5: #{net_forward.3} parent=0 // loop_body
    %s13 = ssub.s32 %s8, 1
    %s14 = ssub.s32 %s8, 2
    %s15 = sadd.s32 %s8, 1
    %s16 = ssub.s32 %s8, %s15
    %p17 = scmp.eq.s32.totalorder %s16, 0
    %s19 = sadd.s32 %s18, 1
    %s20 = scalar_select %p17, %s18, %s19
    %p23 = pneg %p17
    %p24 = scmp.eq.s32.totalorder %s8, 1
    %p25 = por %p23, %p24
    %p26 = scmp.ne.s32.totalorder %s18, %s21
    %p27 = scmp.eq.s32.totalorder %s8, 0
    %p28 = por %p26, %p27
    %p29 = scmp.ne.s32.totalorder %s18, %s21
    %p30 = scmp.eq.s32.totalorder %s13, 1
    %p31 = por %p29, %p30
    %p32 = scmp.ne.s32.totalorder %s21, %s22
    %p33 = scmp.eq.s32.totalorder %s13, 0
    %p34 = por %p32, %p33
    %p35 = scmp.ne.s32.totalorder %s21, %s22
    %p36 = scmp.eq.s32.totalorder %s14, 1
    %p37 = por %p35, %p36
    %p39 = scmp.ne.s32.totalorder %s22, %s38
    %p40 = scmp.eq.s32.totalorder %s14, 0
    %p41 = por %p39, %p40
    %s43 = sadd.s32 %s42, 1
    %p46 = scmp.eq.s32.totalorder %s8, 1
    %p47 = scmp.ne.s32.totalorder %s42, %s44
    %p48 = scmp.eq.s32.totalorder %s8, 0
    %p49 = por %p47, %p48
    %p50 = scmp.ne.s32.totalorder %s42, %s44
    %p51 = scmp.eq.s32.totalorder %s13, 1
    %p52 = por %p50, %p51
    %p53 = scmp.ne.s32.totalorder %s44, %s45
    %p54 = scmp.eq.s32.totalorder %s13, 0
    %p55 = por %p53, %p54
    %p56 = scmp.ne.s32.totalorder %s44, %s45
    %p57 = scmp.eq.s32.totalorder %s14, 1
    %p58 = por %p56, %p57
    %p60 = scmp.ne.s32.totalorder %s45, %s59
    %p61 = scmp.eq.s32.totalorder %s14, 0
    %p62 = por %p60, %p61
    %s63 = ssub.s32 %s8, %s15
    %p64 = scmp.eq.s32.totalorder %s63, 0
    %s66 = sadd.s32 %s65, 1
    %s67 = scalar_select %p64, %s65, %s66
    %p70 = pneg %p64
    %p71 = scmp.eq.s32.totalorder %s8, 1
    %p72 = por %p70, %p71
    %p73 = scmp.ne.s32.totalorder %s65, %s68
    %p74 = scmp.eq.s32.totalorder %s8, 0
    %p75 = por %p73, %p74
    %p76 = scmp.ne.s32.totalorder %s65, %s68
    %p77 = scmp.eq.s32.totalorder %s13, 1
    %p78 = por %p76, %p77
    %p79 = scmp.ne.s32.totalorder %s68, %s69
    %p80 = scmp.eq.s32.totalorder %s13, 0
    %p81 = por %p79, %p80
    %p82 = scmp.ne.s32.totalorder %s68, %s69
    %p83 = scmp.eq.s32.totalorder %s14, 1
    %p84 = por %p82, %p83
    %p86 = scmp.ne.s32.totalorder %s69, %s85
    %p87 = scmp.eq.s32.totalorder %s14, 0
    %p88 = por %p86, %p87
    %p89 = scmp.le.s32.totalorder 1, %s8
    %p90 = scmp.lt.s32.totalorder %s8, 3
    %p91 = pnand %p89, %p90
    %p92 = pneg %p91
    // Predicated region
    $region9: #{net_forward.3} parent=5 // pred_check
      _
    $region10: #{net_forward.3} parent=5 // pred_check_branch
      %94 = sbr.rel (%p91) target = $region12
    $region11: #{net_forward.3} parent=5 // pred_region
      %s95 = ssub.s32 %s8, 1
      // Predicated region
      $region13: #{net_forward.3} parent=11 // pred_check
        %p96 = pneg %p55
      $region14: #{net_forward.3} parent=11 // pred_check_branch
        %98 = sbr.rel (%p96) target = $region16
      $region15: #{net_forward.3} parent=11 // pred_region
        _
      $region16: #{net_forward.3} parent=11 // pred_fallthru
        _
    $region12: #{net_forward.3} parent=5 // pred_fallthru
      _
    %p99 = scmp.lt.s32.totalorder %s8, 2
    // Predicated region
    $region17: #{net_forward.3} parent=5 // pred_check
      %p100 = pneg %p99
    $region18: #{net_forward.3} parent=5 // pred_check_branch
      %102 = sbr.rel (%p100) target = $region20
    $region19: #{net_forward.3} parent=5 // pred_region
      // Predicated region
      $region21: #{net_forward.3} parent=19 // pred_check
        %p103 = pneg %p28
      $region22: #{net_forward.3} parent=19 // pred_check_branch
        %105 = sbr.rel (%p103) target = $region24
      $region23: #{net_forward.3} parent=19 // pred_region
        %p106 = scmp.lt.s32.totalorder %s8, 1
        %s107 = scalar_select %p106, %s8, 1
        %s108 = smul.addr %s107, 36
        %s109 = smul.addr %s108, 4
        %s110 = scalar_lea.vmem %s0, %s109
      $region24: #{net_forward.3} parent=19 // pred_fallthru
        _
    $region20: #{net_forward.3} parent=5 // pred_fallthru
      _
    %p111 = scmp.le.s32.totalorder 1, %s8
    %p112 = scmp.lt.s32.totalorder %s8, 3
    %p113 = pnand %p111, %p112
    %p114 = pneg %p113
    // Predicated region
    $region25: #{net_forward.3} parent=5 // pred_check
      _
    $region26: #{net_forward.3} parent=5 // pred_check_branch
      %116 = sbr.rel (%p113) target = $region28
    $region27: #{net_forward.3} parent=5 // pred_region
      %s117 = ssub.s32 %s8, 1
      %p118 = scmp.lt.s32.totalorder %s13, 1
      %s119 = scalar_select %p118, %s13, 1
      %s120 = smul.addr %s119, 36
      %s121 = smul.addr %s120, 4
      %s122 = scalar_lea.vmem %s0, %s121
      %p123 = pneg %p34
      %p124 = pneg %p31
      %p125 = pneg %p55
      %p126 = pneg %p52
      %p127 = pneg %p81
      %p128 = pneg %p78
      %p129 = scmp.lt.s32.totalorder %s13, 1
      %s130 = scalar_select %p129, %s13, 1
      %s131 = smul.addr %s130, 36
      %s132 = smul.addr %s131, 4
      %s133 = scalar_lea.vmem %s2, %s132
      %p134 = scmp.lt.s32.totalorder %s13, 1
      %s135 = scalar_select %p134, %s13, 1
      %s136 = smul.addr %s135, 36
      %s137 = smul.addr %s136, 4
      %s138 = scalar_lea.vmem %s0, %s137
      %p139 = scmp.lt.s32.totalorder %s13, 1
      %s140 = scalar_select %p139, %s13, 1
      %s141 = smul.addr %s140, 36
      %s142 = smul.addr %s141, 4
      %s143 = scalar_lea.vmem %s2, %s142
      %v145 = vld [vmem:[%s138] sm:$0xf]
      %v146 = vld [vmem:[%s138 + $0x4] sm:$0xf]
      %v147 = vld [vmem:[%s138 + $0x8] sm:$0xf]
      %v148 = vld [vmem:[%s138 + $0xc] sm:$0xf]
      %v149 = vld [vmem:[%s138 + $0x10] sm:$0xf]
      %v150 = vld [vmem:[%s138 + $0x14] sm:$0xf]
      %v151 = vld [vmem:[%s138 + $0x18] sm:$0xf]
      %v152 = vld [vmem:[%s138 + $0x1c] sm:$0xf]
      %v153 = vld [vmem:[%s138 + $0x20] sm:$0xf]
      %v154 = vld [vmem:[%s138 + $0x24] sm:$0xf]
      %v155 = vld [vmem:[%s138 + $0x28] sm:$0xf]
      %v156 = vld [vmem:[%s138 + $0x2c] sm:$0xf]
      %v157 = vld [vmem:[%s138 + $0x30] sm:$0xf]
      %v158 = vld [vmem:[%s138 + $0x34] sm:$0xf]
      %v159 = vld [vmem:[%s138 + $0x38] sm:$0xf]
      %v160 = vld [vmem:[%s138 + $0x3c] sm:$0xf]
      %v161 = vld [vmem:[%s138 + $0x40] sm:$0xf]
      %v162 = vld [vmem:[%s138 + $0x44] sm:$0xf]
      %v163 = vld [vmem:[%s138 + $0x48] sm:$0xf]
      %v164 = vld [vmem:[%s138 + $0x4c] sm:$0xf]
      %v165 = vld [vmem:[%s138 + $0x50] sm:$0xf]
      %v166 = vld [vmem:[%s138 + $0x54] sm:$0xf]
      %v167 = vld [vmem:[%s138 + $0x58] sm:$0xf]
      %v168 = vld [vmem:[%s138 + $0x5c] sm:$0xf]
      %v169 = vld [vmem:[%s138 + $0x60] sm:$0xf]
      %v170 = vld [vmem:[%s138 + $0x64] sm:$0xf]
      %v171 = vld [vmem:[%s138 + $0x68] sm:$0xf]
      %v172 = vld [vmem:[%s138 + $0x6c] sm:$0xf]
      %v173 = vld [vmem:[%s138 + $0x70] sm:$0xf]
      %v174 = vld [vmem:[%s138 + $0x74] sm:$0xf]
      %v175 = vld [vmem:[%s138 + $0x78] sm:$0xf]
      %v176 = vld [vmem:[%s138 + $0x7c] sm:$0xf]
      %v177 = vld [vmem:[%s138 + $0x80] sm:$0xf]
      %v178 = vld [vmem:[%s138 + $0x84] sm:$0xf]
      %v179 = vld [vmem:[%s138 + $0x88] sm:$0xf]
      %v180 = vld [vmem:[%s138 + $0x8c] sm:$0xf]
      %v181 = vld [vmem:[%s1] sm:$0xf]
      %v182 = vld [vmem:[%s1 + $0x4] sm:$0xf]
      %v183 = vld [vmem:[%s1 + $0x8] sm:$0xf]
      %v184 = vld [vmem:[%s1 + $0xc] sm:$0xf]
      %v185 = vld [vmem:[%s1 + $0x10] sm:$0xf]
      %v186 = vld [vmem:[%s1 + $0x14] sm:$0xf]
      %v187 = vld [vmem:[%s1 + $0x18] sm:$0xf]
      %v188 = vld [vmem:[%s1 + $0x1c] sm:$0xf]
      %v189 = vld [vmem:[%s1 + $0x20] sm:$0xf]
      %v226 = vunpack.c.l.b16 %v145
      %v227 = vunpack.c.l.b16 %v146
      %v228 = vunpack.c.l.b16 %v147
      %v229 = vunpack.c.l.b16 %v148
      %v230 = vunpack.c.l.b16 %v149
      %v231 = vunpack.c.l.b16 %v150
      %v232 = vunpack.c.l.b16 %v151
      %v233 = vunpack.c.l.b16 %v152
      %v234 = vunpack.c.l.b16 %v153
      %v235 = vunpack.c.l.b16 %v154
      %v236 = vunpack.c.l.b16 %v155
      %v237 = vunpack.c.l.b16 %v156
      %v238 = vunpack.c.l.b16 %v157
      %v239 = vunpack.c.l.b16 %v158
      %v240 = vunpack.c.l.b16 %v159
      %v241 = vunpack.c.l.b16 %v160
      %v242 = vunpack.c.l.b16 %v161
      %v243 = vunpack.c.l.b16 %v162
      %v244 = vunpack.c.l.b16 %v163
      %v245 = vunpack.c.l.b16 %v164
      %v246 = vunpack.c.l.b16 %v165
      %v247 = vunpack.c.l.b16 %v166
      %v248 = vunpack.c.l.b16 %v167
      %v249 = vunpack.c.l.b16 %v168
      %v250 = vunpack.c.l.b16 %v169
      %v251 = vunpack.c.l.b16 %v170
      %v252 = vunpack.c.l.b16 %v171
      %v253 = vunpack.c.l.b16 %v172
      %v254 = vunpack.c.l.b16 %v173
      %v255 = vunpack.c.l.b16 %v174
      %v256 = vunpack.c.l.b16 %v175
      %v257 = vunpack.c.l.b16 %v176
      %v258 = vunpack.c.l.b16 %v177
      %v259 = vunpack.c.l.b16 %v178
      %v260 = vunpack.c.l.b16 %v179
      %v261 = vunpack.c.l.b16 %v180
      %v262 = vpack.c.b16 %v227, %v226
      %v263 = vpack.c.b16 %v229, %v228
      %v264 = vpack.c.b16 %v231, %v230
      %v265 = vpack.c.b16 %v233, %v232
      %v266 = vpack.c.b16 %v235, %v234
      %v267 = vpack.c.b16 %v237, %v236
      %v268 = vpack.c.b16 %v239, %v238
      %v269 = vpack.c.b16 %v241, %v240
      %v270 = vpack.c.b16 %v243, %v242
      %v271 = vpack.c.b16 %v245, %v244
      %v272 = vpack.c.b16 %v247, %v246
      %v273 = vpack.c.b16 %v249, %v248
      %v274 = vpack.c.b16 %v251, %v250
      %v275 = vpack.c.b16 %v253, %v252
      %v276 = vpack.c.b16 %v255, %v254
      %v277 = vpack.c.b16 %v257, %v256
      %v278 = vpack.c.b16 %v259, %v258
      %v279 = vpack.c.b16 %v261, %v260
      %v289 = vunpack.c.l.b16 %v181
      %v290 = vunpack.c.l.b16 %v182
      %v291 = vunpack.c.l.b16 %v183
      %v292 = vunpack.c.l.b16 %v184
      %v293 = vunpack.c.l.b16 %v185
      %v294 = vunpack.c.l.b16 %v186
      %v295 = vunpack.c.l.b16 %v187
      %v296 = vunpack.c.l.b16 %v188
      %v297 = vunpack.c.l.b16 %v189
      %v298 = vpack.c.b16 %v290, %v289
      %v299 = vpack.c.b16 %v292, %v291
      %v300 = vpack.c.b16 %v294, %v293
      %v301 = vpack.c.b16 %v296, %v295
      %v302 = vpack.c.b16 %v297, %v297
      %vm307 = vcmask 588800
      %v309 = vsel %vm307, %v262, 0
      %v312 = vsel %vm307, %v263, 0
      %v315 = vsel %vm307, %v264, 0
      %v318 = vsel %vm307, %v265, 0
      %v321 = vsel %vm307, %v266, 0
      %v324 = vsel %vm307, %v267, 0
      %v327 = vsel %vm307, %v268, 0
      %v330 = vsel %vm307, %v269, 0
      %v333 = vsel %vm307, %v270, 0
      %v336 = vsel %vm307, %v271, 0
      %v339 = vsel %vm307, %v272, 0
      %v342 = vsel %vm307, %v273, 0
      %v345 = vsel %vm307, %v274, 0
      %v348 = vsel %vm307, %v275, 0
      %v351 = vsel %vm307, %v276, 0
      %v354 = vsel %vm307, %v277, 0
      %v357 = vsel %vm307, %v278, 0
      %v360 = vsel %vm307, %v279, 0
      %vm362 = vcmask 1043456
      %v364 = vsel %vm362, %v302, 0
      %366 = vmatpush.bf16.msra.mxu0 0
      %367 = vmatpush.bf16.msra.mxu0 0
      %368 = vmatpush.bf16.msra.mxu0 0
      %369 = vmatpush.bf16.msra.mxu0 %v364
      %370 = vmatpush.bf16.msra.mxu0 %v301
      %371 = vmatpush.bf16.msra.mxu0 %v300
      %372 = vmatpush.bf16.msra.mxu0 %v299
      %373 = vmatpush.bf16.msra.mxu0 %v298
      %374 = vmatmul.bf16.gmra.mxu0 %v309
      %v375 = vpop.f32.mrf.mxu0
      %v376 = vadd.f32 0.0, %v375
      %v377 = vpop.f32.mrf.mxu0
      %v378 = vadd.f32 0.0, %v377
      %379 = vmatmul.bf16.gmra.mxu0 %v312
      %v380 = vpop.f32.mrf.mxu0
      %v381 = vadd.f32 0.0, %v380
      %v382 = vpop.f32.mrf.mxu0
      %v383 = vadd.f32 0.0, %v382
      %384 = vmatmul.bf16.gmra.mxu0 %v315
      %v385 = vpop.f32.mrf.mxu0
      %v386 = vadd.f32 0.0, %v385
      %v387 = vpop.f32.mrf.mxu0
      %v388 = vadd.f32 0.0, %v387
      %389 = vmatmul.bf16.gmra.mxu0 %v318
      %v390 = vpop.f32.mrf.mxu0
      %v391 = vadd.f32 0.0, %v390
      %v392 = vpop.f32.mrf.mxu0
      %v393 = vadd.f32 0.0, %v392
      %394 = vmatmul.bf16.gmra.mxu0 %v321
      %v395 = vpop.f32.mrf.mxu0
      %v396 = vadd.f32 0.0, %v395
      %v397 = vpop.f32.mrf.mxu0
      %v398 = vadd.f32 0.0, %v397
      %399 = vmatmul.bf16.gmra.mxu0 %v324
      %v400 = vpop.f32.mrf.mxu0
      %v401 = vadd.f32 0.0, %v400
      %v402 = vpop.f32.mrf.mxu0
      %v403 = vadd.f32 0.0, %v402
      %404 = vmatmul.bf16.gmra.mxu0 %v327
      %v405 = vpop.f32.mrf.mxu0
      %v406 = vadd.f32 0.0, %v405
      %v407 = vpop.f32.mrf.mxu0
      %v408 = vadd.f32 0.0, %v407
      %409 = vmatmul.bf16.gmra.mxu0 %v330
      %v410 = vpop.f32.mrf.mxu0
      %v411 = vadd.f32 0.0, %v410
      %v412 = vpop.f32.mrf.mxu0
      %v413 = vadd.f32 0.0, %v412
      %414 = vmatmul.bf16.gmra.mxu0 %v333
      %v415 = vpop.f32.mrf.mxu0
      %v416 = vadd.f32 0.0, %v415
      %v417 = vpop.f32.mrf.mxu0
      %v418 = vadd.f32 0.0, %v417
      %419 = vmatmul.bf16.gmra.mxu0 %v336
      %v420 = vpop.f32.mrf.mxu0
      %v421 = vadd.f32 0.0, %v420
      %v422 = vpop.f32.mrf.mxu0
      %v423 = vadd.f32 0.0, %v422
      %424 = vmatmul.bf16.gmra.mxu0 %v339
      %v425 = vpop.f32.mrf.mxu0
      %v426 = vadd.f32 0.0, %v425
      %v427 = vpop.f32.mrf.mxu0
      %v428 = vadd.f32 0.0, %v427
      %429 = vmatmul.bf16.gmra.mxu0 %v342
      %v430 = vpop.f32.mrf.mxu0
      %v431 = vadd.f32 0.0, %v430
      %v432 = vpop.f32.mrf.mxu0
      %v433 = vadd.f32 0.0, %v432
      %434 = vmatmul.bf16.gmra.mxu0 %v345
      %v435 = vpop.f32.mrf.mxu0
      %v436 = vadd.f32 0.0, %v435
      %v437 = vpop.f32.mrf.mxu0
      %v438 = vadd.f32 0.0, %v437
      %439 = vmatmul.bf16.gmra.mxu0 %v348
      %v440 = vpop.f32.mrf.mxu0
      %v441 = vadd.f32 0.0, %v440
      %v442 = vpop.f32.mrf.mxu0
      %v443 = vadd.f32 0.0, %v442
      %444 = vmatmul.bf16.gmra.mxu0 %v351
      %v445 = vpop.f32.mrf.mxu0
      %v446 = vadd.f32 0.0, %v445
      %v447 = vpop.f32.mrf.mxu0
      %v448 = vadd.f32 0.0, %v447
      %449 = vmatmul.bf16.gmra.mxu0 %v354
      %v450 = vpop.f32.mrf.mxu0
      %v451 = vadd.f32 0.0, %v450
      %v452 = vpop.f32.mrf.mxu0
      %v453 = vadd.f32 0.0, %v452
      %454 = vmatmul.bf16.gmra.mxu0 %v357
      %v455 = vpop.f32.mrf.mxu0
      %v456 = vadd.f32 0.0, %v455
      %v457 = vpop.f32.mrf.mxu0
      %v458 = vadd.f32 0.0, %v457
      %459 = vmatmul.bf16.gmra.mxu0 %v360
      %v460 = vpop.f32.mrf.mxu0
      %v461 = vadd.f32 0.0, %v460
      %v462 = vpop.f32.mrf.mxu0
      %v463 = vadd.f32 0.0, %v462
      %464 = vdwg.mxu0
      %v465 = vpack.c.bf16 %v376, %v376
      %v466 = vpack.c.bf16 %v378, %v378
      %v467 = vpack.c.bf16 %v381, %v381
      %v468 = vpack.c.bf16 %v383, %v383
      %v469 = vpack.c.bf16 %v386, %v386
      %v470 = vpack.c.bf16 %v388, %v388
      %v471 = vpack.c.bf16 %v391, %v391
      %v472 = vpack.c.bf16 %v393, %v393
      %v473 = vpack.c.bf16 %v396, %v396
      %v474 = vpack.c.bf16 %v398, %v398
      %v475 = vpack.c.bf16 %v401, %v401
      %v476 = vpack.c.bf16 %v403, %v403
      %v477 = vpack.c.bf16 %v406, %v406
      %v478 = vpack.c.bf16 %v408, %v408
      %v479 = vpack.c.bf16 %v411, %v411
      %v480 = vpack.c.bf16 %v413, %v413
      %v481 = vpack.c.bf16 %v416, %v416
      %v482 = vpack.c.bf16 %v418, %v418
      %v483 = vpack.c.bf16 %v421, %v421
      %v484 = vpack.c.bf16 %v423, %v423
      %v485 = vpack.c.bf16 %v426, %v426
      %v486 = vpack.c.bf16 %v428, %v428
      %v487 = vpack.c.bf16 %v431, %v431
      %v488 = vpack.c.bf16 %v433, %v433
      %v489 = vpack.c.bf16 %v436, %v436
      %v490 = vpack.c.bf16 %v438, %v438
      %v491 = vpack.c.bf16 %v441, %v441
      %v492 = vpack.c.bf16 %v443, %v443
      %v493 = vpack.c.bf16 %v446, %v446
      %v494 = vpack.c.bf16 %v448, %v448
      %v495 = vpack.c.bf16 %v451, %v451
      %v496 = vpack.c.bf16 %v453, %v453
      %v497 = vpack.c.bf16 %v456, %v456
      %v498 = vpack.c.bf16 %v458, %v458
      %v499 = vpack.c.bf16 %v461, %v461
      %v500 = vpack.c.bf16 %v463, %v463
      %vm501 = vcmask 257024
      %502 = vst.msk [vmem:[%s143] sm:$0xf] %vm501, %v465
      %503 = vst.msk [vmem:[%s143 + $0x4] sm:$0xf] %vm501, %v466
      %504 = vst.msk [vmem:[%s143 + $0x8] sm:$0xf] %vm501, %v467
      %505 = vst.msk [vmem:[%s143 + $0xc] sm:$0xf] %vm501, %v468
      %506 = vst.msk [vmem:[%s143 + $0x10] sm:$0xf] %vm501, %v469
      %507 = vst.msk [vmem:[%s143 + $0x14] sm:$0xf] %vm501, %v470
      %508 = vst.msk [vmem:[%s143 + $0x18] sm:$0xf] %vm501, %v471
      %509 = vst.msk [vmem:[%s143 + $0x1c] sm:$0xf] %vm501, %v472
      %510 = vst.msk [vmem:[%s143 + $0x20] sm:$0xf] %vm501, %v473
      %511 = vst.msk [vmem:[%s143 + $0x24] sm:$0xf] %vm501, %v474
      %512 = vst.msk [vmem:[%s143 + $0x28] sm:$0xf] %vm501, %v475
      %513 = vst.msk [vmem:[%s143 + $0x2c] sm:$0xf] %vm501, %v476
      %514 = vst.msk [vmem:[%s143 + $0x30] sm:$0xf] %vm501, %v477
      %515 = vst.msk [vmem:[%s143 + $0x34] sm:$0xf] %vm501, %v478
      %516 = vst.msk [vmem:[%s143 + $0x38] sm:$0xf] %vm501, %v479
      %517 = vst.msk [vmem:[%s143 + $0x3c] sm:$0xf] %vm501, %v480
      %518 = vst.msk [vmem:[%s143 + $0x40] sm:$0xf] %vm501, %v481
      %519 = vst.msk [vmem:[%s143 + $0x44] sm:$0xf] %vm501, %v482
      %520 = vst.msk [vmem:[%s143 + $0x48] sm:$0xf] %vm501, %v483
      %521 = vst.msk [vmem:[%s143 + $0x4c] sm:$0xf] %vm501, %v484
      %522 = vst.msk [vmem:[%s143 + $0x50] sm:$0xf] %vm501, %v485
      %523 = vst.msk [vmem:[%s143 + $0x54] sm:$0xf] %vm501, %v486
      %524 = vst.msk [vmem:[%s143 + $0x58] sm:$0xf] %vm501, %v487
      %525 = vst.msk [vmem:[%s143 + $0x5c] sm:$0xf] %vm501, %v488
      %526 = vst.msk [vmem:[%s143 + $0x60] sm:$0xf] %vm501, %v489
      %527 = vst.msk [vmem:[%s143 + $0x64] sm:$0xf] %vm501, %v490
      %528 = vst.msk [vmem:[%s143 + $0x68] sm:$0xf] %vm501, %v491
      %529 = vst.msk [vmem:[%s143 + $0x6c] sm:$0xf] %vm501, %v492
      %530 = vst.msk [vmem:[%s143 + $0x70] sm:$0xf] %vm501, %v493
      %531 = vst.msk [vmem:[%s143 + $0x74] sm:$0xf] %vm501, %v494
      %532 = vst.msk [vmem:[%s143 + $0x78] sm:$0xf] %vm501, %v495
      %533 = vst.msk [vmem:[%s143 + $0x7c] sm:$0xf] %vm501, %v496
      %534 = vst.msk [vmem:[%s143 + $0x80] sm:$0xf] %vm501, %v497
      %535 = vst.msk [vmem:[%s143 + $0x84] sm:$0xf] %vm501, %v498
      %536 = vst.msk [vmem:[%s143 + $0x88] sm:$0xf] %vm501, %v499
      %537 = vst.msk [vmem:[%s143 + $0x8c] sm:$0xf] %vm501, %v500
      %p538 = scmp.lt.s32.totalorder %s13, 1
      %s539 = scalar_select %p538, %s13, 1
      %s540 = smul.addr %s539, 36
      %s541 = smul.addr %s540, 4
      %s542 = scalar_lea.vmem %s2, %s541
      // Predicated region
      $region29: #{net_forward.3} parent=27 // pred_check
        %p543 = pneg %p78
      $region30: #{net_forward.3} parent=27 // pred_check_branch
        %545 = sbr.rel (%p543) target = $region32
      $region31: #{net_forward.3} parent=27 // pred_region
        _
      $region32: #{net_forward.3} parent=27 // pred_fallthru
        _
    $region28: #{net_forward.3} parent=5 // pred_fallthru
      _
    %p546 = scmp.le.s32.totalorder 2, %s8
    // Predicated region
    $region33: #{net_forward.3} parent=5 // pred_check
      %p547 = pneg %p546
    $region34: #{net_forward.3} parent=5 // pred_check_branch
      %549 = sbr.rel (%p547) target = $region36
    $region35: #{net_forward.3} parent=5 // pred_region
      %s550 = ssub.s32 %s8, 2
      // Predicated region
      $region37: #{net_forward.3} parent=35 // pred_check
        %p551 = pneg %p84
      $region38: #{net_forward.3} parent=35 // pred_check_branch
        %553 = sbr.rel (%p551) target = $region40
      $region39: #{net_forward.3} parent=35 // pred_region
        %p554 = scmp.lt.s32.totalorder %s14, 1
        %s555 = scalar_select %p554, %s14, 1
        %s556 = smul.addr %s555, 36
        %s557 = smul.addr %s556, 4
        %s558 = scalar_lea.vmem %s2, %s557
      $region40: #{net_forward.3} parent=35 // pred_fallthru
        _
    $region36: #{net_forward.3} parent=5 // pred_fallthru
      _
  $region6: #{net_forward.3} parent=0 // loop_footer
    %s12 = sadd.s32 1, %s8
  $region7: #{net_forward.3} parent=0 // loop_footer_branch
    %7 = sbr.rel target = $region3
  $region8: #{net_forward.3} parent=0 // loop_exit
    _

// kernel: net_forward.4
$region0: #{net_forward.4}
  #allocation0 [shape = 'u32[]', space=smem, size = 0x4, offset = 0x4, fixed_abs, tag = 'smem constant byte address 0x4 - core index']
  #allocation1 [shape = 'u32[72,128]{1,0:T(1,128)}', space=vmem, size = 0x9000, scoped, tag = 'internal scratch']
  #allocation2 [shape = 'f32[104,96]{1,0:T(8,128)}', space=vmem, size = 0xd000, scoped, tag = 'scratch operand']
  %s0 = inlined_call_operand.vmem [shape: bf16[2,80,512], index: 0, kind: input, shape index: {}]
  %s1 = inlined_call_operand.vmem [shape: bf16[512,32], index: 1, kind: input, shape index: {}]
  %s2 = inlined_call_operand.vmem [shape: bf16[12,96,32], index: 2, kind: input, shape index: {}]
  %s3 = inlined_call_operand.vmem [shape: bf16[3,96,32], index: 3, kind: input, shape index: {}]
  %s4 = inlined_call_operand.vmem [shape: bf16[3,96,128], index: 4, kind: input, shape index: {}]
  %s5 = inlined_call_operand.vmem [shape: f32[1,128], index: 5, kind: input, shape index: {}]
  %s6 = inlined_call_operand.vmem [shape: bf16[2,80,128], index: 6, kind: output, shape index: {}]
  %s7 = sld [smem:[#allocation0]]
  $region57: #{net_forward.4} parent=0
    _
  %s9 = ssub.s32 1, %s7
  %s10 = scalar_select 0, %s9, %s7
  loop: start=0, step=1, limit=4
  $region2: #{net_forward.4} parent=0 // loop_pre_header
    _
  $region3: #{net_forward.4} parent=0 // loop_header
    %s12 = sphi 0, %s16
    %p13 = scmp.ge.s32.totalorder %s12, 4
    %s22 = sphi 0, %s24
    %s25 = sphi 0, %s22
    %s26 = sphi 0, %s25
    %s42 = sphi 0, %s26
    %s46 = sphi 0, %s46
    %s48 = sphi 0, %s46
    %s49 = sphi 0, %s48
    %s63 = sphi 0, %s49
    %s67 = sphi 0, %s67
    %s69 = sphi 0, %s67
    %s70 = sphi 0, %s69
    %s84 = sphi 0, %s70
    %s88 = sphi 0, %s88
    %s90 = sphi 0, %s88
    %s91 = sphi 0, %s90
    %s105 = sphi 0, %s91
    %s109 = sphi 0, %s109
    %s111 = sphi 0, %s109
    %s112 = sphi 0, %s111
    %s126 = sphi 0, %s112
    %s130 = sphi 0, %s130
    %s132 = sphi 0, %s130
    %s133 = sphi 0, %s132
    %s147 = sphi 0, %s133
    %s153 = sphi 0, %s155
    %s156 = sphi 0, %s153
    %s157 = sphi 0, %s156
    %s173 = sphi 0, %s157
  $region4: #{net_forward.4} parent=0 // loop_header_branch
    %15 = sbr.rel (%p13) target = $region8
  $region5: #{net_forward.4} parent=0 // loop_body
    %s17 = ssub.s32 %s12, 1
    %s18 = ssub.s32 %s12, 2
    %s19 = sadd.s32 %s12, 1
    %s20 = ssub.s32 %s12, %s19
    %p21 = scmp.eq.s32.totalorder %s20, 0
    %s23 = sadd.s32 %s22, 1
    %s24 = scalar_select %p21, %s22, %s23
    %p27 = pneg %p21
    %p28 = scmp.eq.s32.totalorder %s12, 1
    %p29 = por %p27, %p28
    %p30 = scmp.ne.s32.totalorder %s22, %s25
    %p31 = scmp.eq.s32.totalorder %s12, 0
    %p32 = por %p30, %p31
    %p33 = scmp.ne.s32.totalorder %s22, %s25
    %p34 = scmp.eq.s32.totalorder %s17, 1
    %p35 = por %p33, %p34
    %p36 = scmp.ne.s32.totalorder %s25, %s26
    %p37 = scmp.eq.s32.totalorder %s17, 0
    %p38 = por %p36, %p37
    %p39 = scmp.ne.s32.totalorder %s25, %s26
    %p40 = scmp.eq.s32.totalorder %s18, 1
    %p41 = por %p39, %p40
    %p43 = scmp.ne.s32.totalorder %s26, %s42
    %p44 = scmp.eq.s32.totalorder %s18, 0
    %p45 = por %p43, %p44
    %s47 = sadd.s32 %s46, 1
    %p50 = scmp.eq.s32.totalorder %s12, 1
    %p51 = scmp.ne.s32.totalorder %s46, %s48
    %p52 = scmp.eq.s32.totalorder %s12, 0
    %p53 = por %p51, %p52
    %p54 = scmp.ne.s32.totalorder %s46, %s48
    %p55 = scmp.eq.s32.totalorder %s17, 1
    %p56 = por %p54, %p55
    %p57 = scmp.ne.s32.totalorder %s48, %s49
    %p58 = scmp.eq.s32.totalorder %s17, 0
    %p59 = por %p57, %p58
    %p60 = scmp.ne.s32.totalorder %s48, %s49
    %p61 = scmp.eq.s32.totalorder %s18, 1
    %p62 = por %p60, %p61
    %p64 = scmp.ne.s32.totalorder %s49, %s63
    %p65 = scmp.eq.s32.totalorder %s18, 0
    %p66 = por %p64, %p65
    %s68 = sadd.s32 %s67, 1
    %p71 = scmp.eq.s32.totalorder %s12, 1
    %p72 = scmp.ne.s32.totalorder %s67, %s69
    %p73 = scmp.eq.s32.totalorder %s12, 0
    %p74 = por %p72, %p73
    %p75 = scmp.ne.s32.totalorder %s67, %s69
    %p76 = scmp.eq.s32.totalorder %s17, 1
    %p77 = por %p75, %p76
    %p78 = scmp.ne.s32.totalorder %s69, %s70
    %p79 = scmp.eq.s32.totalorder %s17, 0
    %p80 = por %p78, %p79
    %p81 = scmp.ne.s32.totalorder %s69, %s70
    %p82 = scmp.eq.s32.totalorder %s18, 1
    %p83 = por %p81, %p82
    %p85 = scmp.ne.s32.totalorder %s70, %s84
    %p86 = scmp.eq.s32.totalorder %s18, 0
    %p87 = por %p85, %p86
    %s89 = sadd.s32 %s88, 1
    %p92 = scmp.eq.s32.totalorder %s12, 1
    %p93 = scmp.ne.s32.totalorder %s88, %s90
    %p94 = scmp.eq.s32.totalorder %s12, 0
    %p95 = por %p93, %p94
    %p96 = scmp.ne.s32.totalorder %s88, %s90
    %p97 = scmp.eq.s32.totalorder %s17, 1
    %p98 = por %p96, %p97
    %p99 = scmp.ne.s32.totalorder %s90, %s91
    %p100 = scmp.eq.s32.totalorder %s17, 0
    %p101 = por %p99, %p100
    %p102 = scmp.ne.s32.totalorder %s90, %s91
    %p103 = scmp.eq.s32.totalorder %s18, 1
    %p104 = por %p102, %p103
    %p106 = scmp.ne.s32.totalorder %s91, %s105
    %p107 = scmp.eq.s32.totalorder %s18, 0
    %p108 = por %p106, %p107
    %s110 = sadd.s32 %s109, 1
    %p113 = scmp.eq.s32.totalorder %s12, 1
    %p114 = scmp.ne.s32.totalorder %s109, %s111
    %p115 = scmp.eq.s32.totalorder %s12, 0
    %p116 = por %p114, %p115
    %p117 = scmp.ne.s32.totalorder %s109, %s111
    %p118 = scmp.eq.s32.totalorder %s17, 1
    %p119 = por %p117, %p118
    %p120 = scmp.ne.s32.totalorder %s111, %s112
    %p121 = scmp.eq.s32.totalorder %s17, 0
    %p122 = por %p120, %p121
    %p123 = scmp.ne.s32.totalorder %s111, %s112
    %p124 = scmp.eq.s32.totalorder %s18, 1
    %p125 = por %p123, %p124
    %p127 = scmp.ne.s32.totalorder %s112, %s126
    %p128 = scmp.eq.s32.totalorder %s18, 0
    %p129 = por %p127, %p128
    %s131 = sadd.s32 %s130, 1
    %p134 = scmp.eq.s32.totalorder %s12, 1
    %p135 = scmp.ne.s32.totalorder %s130, %s132
    %p136 = scmp.eq.s32.totalorder %s12, 0
    %p137 = por %p135, %p136
    %p138 = scmp.ne.s32.totalorder %s130, %s132
    %p139 = scmp.eq.s32.totalorder %s17, 1
    %p140 = por %p138, %p139
    %p141 = scmp.ne.s32.totalorder %s132, %s133
    %p142 = scmp.eq.s32.totalorder %s17, 0
    %p143 = por %p141, %p142
    %p144 = scmp.ne.s32.totalorder %s132, %s133
    %p145 = scmp.eq.s32.totalorder %s18, 1
    %p146 = por %p144, %p145
    %p148 = scmp.ne.s32.totalorder %s133, %s147
    %p149 = scmp.eq.s32.totalorder %s18, 0
    %p150 = por %p148, %p149
    %s151 = ssub.s32 %s12, %s19
    %p152 = scmp.eq.s32.totalorder %s151, 0
    %s154 = sadd.s32 %s153, 1
    %s155 = scalar_select %p152, %s153, %s154
    %p158 = pneg %p152
    %p159 = scmp.eq.s32.totalorder %s12, 1
    %p160 = por %p158, %p159
    %p161 = scmp.ne.s32.totalorder %s153, %s156
    %p162 = scmp.eq.s32.totalorder %s12, 0
    %p163 = por %p161, %p162
    %p164 = scmp.ne.s32.totalorder %s153, %s156
    %p165 = scmp.eq.s32.totalorder %s17, 1
    %p166 = por %p164, %p165
    %p167 = scmp.ne.s32.totalorder %s156, %s157
    %p168 = scmp.eq.s32.totalorder %s17, 0
    %p169 = por %p167, %p168
    %p170 = scmp.ne.s32.totalorder %s156, %s157
    %p171 = scmp.eq.s32.totalorder %s18, 1
    %p172 = por %p170, %p171
    %p174 = scmp.ne.s32.totalorder %s157, %s173
    %p175 = scmp.eq.s32.totalorder %s18, 0
    %p176 = por %p174, %p175
    %p177 = scmp.le.s32.totalorder 1, %s12
    %p178 = scmp.lt.s32.totalorder %s12, 3
    %p179 = pnand %p177, %p178
    %p180 = pneg %p179
    // Predicated region
    $region9: #{net_forward.4} parent=5 // pred_check
      _
    $region10: #{net_forward.4} parent=5 // pred_check_branch
      %182 = sbr.rel (%p179) target = $region12
    $region11: #{net_forward.4} parent=5 // pred_region
      %s183 = ssub.s32 %s12, 1
      // Predicated region
      $region13: #{net_forward.4} parent=11 // pred_check
        %p184 = pneg %p59
      $region14: #{net_forward.4} parent=11 // pred_check_branch
        %186 = sbr.rel (%p184) target = $region16
      $region15: #{net_forward.4} parent=11 // pred_region
        _
      $region16: #{net_forward.4} parent=11 // pred_fallthru
        _
      // Predicated region
      $region17: #{net_forward.4} parent=11 // pred_check
        %p187 = pneg %p80
      $region18: #{net_forward.4} parent=11 // pred_check_branch
        %189 = sbr.rel (%p187) target = $region20
      $region19: #{net_forward.4} parent=11 // pred_region
        _
      $region20: #{net_forward.4} parent=11 // pred_fallthru
        _
      // Predicated region
      $region21: #{net_forward.4} parent=11 // pred_check
        %p190 = pneg %p101
      $region22: #{net_forward.4} parent=11 // pred_check_branch
        %192 = sbr.rel (%p190) target = $region24
      $region23: #{net_forward.4} parent=11 // pred_region
        _
      $region24: #{net_forward.4} parent=11 // pred_fallthru
        _
      // Predicated region
      $region25: #{net_forward.4} parent=11 // pred_check
        %p193 = pneg %p122
      $region26: #{net_forward.4} parent=11 // pred_check_branch
        %195 = sbr.rel (%p193) target = $region28
      $region27: #{net_forward.4} parent=11 // pred_region
        _
      $region28: #{net_forward.4} parent=11 // pred_fallthru
        _
      // Predicated region
      $region29: #{net_forward.4} parent=11 // pred_check
        %p196 = pneg %p143
      $region30: #{net_forward.4} parent=11 // pred_check_branch
        %198 = sbr.rel (%p196) target = $region32
      $region31: #{net_forward.4} parent=11 // pred_region
        _
      $region32: #{net_forward.4} parent=11 // pred_fallthru
        _
    $region12: #{net_forward.4} parent=5 // pred_fallthru
      _
    %p199 = scmp.lt.s32.totalorder %s12, 2
    // Predicated region
    $region33: #{net_forward.4} parent=5 // pred_check
      %p200 = pneg %p199
    $region34: #{net_forward.4} parent=5 // pred_check_branch
      %202 = sbr.rel (%p200) target = $region36
    $region35: #{net_forward.4} parent=5 // pred_region
      // Predicated region
      $region37: #{net_forward.4} parent=35 // pred_check
        %p203 = pneg %p32
      $region38: #{net_forward.4} parent=35 // pred_check_branch
        %205 = sbr.rel (%p203) target = $region40
      $region39: #{net_forward.4} parent=35 // pred_region
        %p206 = scmp.lt.s32.totalorder %s12, 1
        %s207 = scalar_select %p206, %s12, 1
        %s208 = smul.addr %s207, 40
        %s209 = smul.addr %s208, 4
        %s210 = scalar_lea.vmem %s0, %s209
      $region40: #{net_forward.4} parent=35 // pred_fallthru
        _
    $region36: #{net_forward.4} parent=5 // pred_fallthru
      _
    %p211 = scmp.le.s32.totalorder 1, %s12
    %p212 = scmp.lt.s32.totalorder %s12, 3
    %p213 = pnand %p211, %p212
    %p214 = pneg %p213
    // Predicated region
    $region41: #{net_forward.4} parent=5 // pred_check
      _
    $region42: #{net_forward.4} parent=5 // pred_check_branch
      %216 = sbr.rel (%p213) target = $region44
    $region43: #{net_forward.4} parent=5 // pred_region
      %s217 = ssub.s32 %s12, 1
      %p218 = scmp.lt.s32.totalorder %s17, 1
      %s219 = scalar_select %p218, %s17, 1
      %s220 = smul.addr %s219, 40
      %s221 = smul.addr %s220, 4
      %s222 = scalar_lea.vmem %s0, %s221
      %p223 = pneg %p38
      %p224 = pneg %p35
      %p225 = pneg %p59
      %p226 = pneg %p56
      %p227 = pneg %p80
      %p228 = pneg %p77
      %p229 = pneg %p101
      %p230 = pneg %p98
      %p231 = pneg %p122
      %p232 = pneg %p119
      %p233 = pneg %p143
      %p234 = pneg %p140
      %p235 = pneg %p169
      %p236 = pneg %p166
      %p237 = scmp.lt.s32.totalorder %s17, 1
      %s238 = scalar_select %p237, %s17, 1
      %s239 = smul.addr %s238, 10
      %s240 = smul.addr %s239, 4
      %s241 = scalar_lea.vmem %s6, %s240
      %p242 = scmp.lt.s32.totalorder %s17, 1
      %s243 = scalar_select %p242, %s17, 1
      %s244 = smul.addr %s243, 40
      %s245 = smul.addr %s244, 4
      %s246 = scalar_lea.vmem %s0, %s245
      %p247 = scmp.lt.s32.totalorder %s17, 1
      %s248 = scalar_select %p247, %s17, 1
      %s249 = smul.addr %s248, 10
      %s250 = smul.addr %s249, 4
      %s251 = scalar_lea.vmem %s6, %s250
      %vm253 = vcmask 785408
      %254 = vst.msk [vmem:[#allocation2] sm:$0xff] %vm253, 0.0
      %255 = vst.msk [vmem:[#allocation2 + $0x8] sm:$0xff] %vm253, 0.0
      %256 = vst.msk [vmem:[#allocation2 + $0x10] sm:$0xff] %vm253, 0.0
      %257 = vst.msk [vmem:[#allocation2 + $0x18] sm:$0xff] %vm253, 0.0
      %258 = vst.msk [vmem:[#allocation2 + $0x20] sm:$0xff] %vm253, 0.0
      %259 = vst.msk [vmem:[#allocation2 + $0x28] sm:$0xff] %vm253, 0.0
      %260 = vst.msk [vmem:[#allocation2 + $0x30] sm:$0xff] %vm253, 0.0
      %261 = vst.msk [vmem:[#allocation2 + $0x38] sm:$0xff] %vm253, 0.0
      %262 = vst.msk [vmem:[#allocation2 + $0x40] sm:$0xff] %vm253, 0.0
      %263 = vst.msk [vmem:[#allocation2 + $0x48] sm:$0xff] %vm253, 0.0
      %264 = vst.msk [vmem:[#allocation2 + $0x50] sm:$0xff] %vm253, 0.0
      %265 = vst.msk [vmem:[#allocation2 + $0x58] sm:$0xff] %vm253, 0.0
      %266 = vst.msk [vmem:[#allocation2 + $0x60] sm:$0xff] %vm253, 0.0
      %v267 = vlaneseq
      %v268 = vshrl.u32 %v267, 7
      %v269 = vadd.s32 %v268, 8
      %v270 = vadd.s32 %v268, 16
      %v271 = vadd.s32 %v268, 24
      %v272 = vadd.s32 %v268, 32
      %v273 = vadd.s32 %v268, 40
      %v274 = vadd.s32 %v268, 48
      %v275 = vadd.s32 %v268, 56
      %v276 = vadd.s32 %v268, 64
      %v277 = vadd.s32 %v268, 72
      %vm278 = vcmp.lt.s32.totalorder %v268, 0
      %v279 = vsub.s32 0, %v268
      %v280 = vsel %vm278, %v279, %v268
      %v281 = vand.u32 %v280, 65535
      %v282 = vshrl.u32 %v280, 16
      %v284 = vmul.u32 %v281, 52429
      %v285 = vmul.u32 %v281, 52428
      %v286 = vmul.u32 %v282, 52429
      %v287 = vmul.u32 %v282, 52428
      %v288 = vshll.u32 %v285, 16
      %v289 = vshrl.u32 %v285, 16
      %v290 = vshll.u32 %v286, 16
      %v291 = vshrl.u32 %v286, 16
      %vm292 = vc.u32 %v284, %v288
      %v293 = vsel %vm292, 1, 0
      %v294 = vadd.s32 %v284, %v288
      %v295 = vadd.s32 %v287, %v293
      %vm296 = vc.u32 %v294, %v290
      %v297 = vsel %vm296, 1, 0
      %v298 = vadd.s32 %v294, %v290
      %v299 = vadd.s32 %v295, %v297
      %v300 = vadd.s32 %v299, %v289
      %v301 = vadd.s32 %v300, %v291
      %v302 = vshrl.u32 %v301, 3
      %v303 = vmul.u32 %v302, 10
      %v304 = vsub.s32 %v280, %v303
      %v305 = vsub.s32 0, %v304
      %v306 = vsel %vm278, %v305, %v304
      %vm307 = vcmp.lt.s32.totalorder %v269, 0
      %v308 = vsub.s32 0, %v269
      %v309 = vsel %vm307, %v308, %v269
      %v310 = vand.u32 %v309, 65535
      %v311 = vshrl.u32 %v309, 16
      %v313 = vmul.u32 %v310, 52429
      %v314 = vmul.u32 %v310, 52428
      %v315 = vmul.u32 %v311, 52429
      %v316 = vmul.u32 %v311, 52428
      %v317 = vshll.u32 %v314, 16
      %v318 = vshrl.u32 %v314, 16
      %v319 = vshll.u32 %v315, 16
      %v320 = vshrl.u32 %v315, 16
      %vm321 = vc.u32 %v313, %v317
      %v322 = vsel %vm321, 1, 0
      %v323 = vadd.s32 %v313, %v317
      %v324 = vadd.s32 %v316, %v322
      %vm325 = vc.u32 %v323, %v319
      %v326 = vsel %vm325, 1, 0
      %v327 = vadd.s32 %v323, %v319
      %v328 = vadd.s32 %v324, %v326
      %v329 = vadd.s32 %v328, %v318
      %v330 = vadd.s32 %v329, %v320
      %v331 = vshrl.u32 %v330, 3
      %v332 = vmul.u32 %v331, 10
      %v333 = vsub.s32 %v309, %v332
      %v334 = vsub.s32 0, %v333
      %v335 = vsel %vm307, %v334, %v333
      %vm336 = vcmp.lt.s32.totalorder %v270, 0
      %v337 = vsub.s32 0, %v270
      %v338 = vsel %vm336, %v337, %v270
      %v339 = vand.u32 %v338, 65535
      %v340 = vshrl.u32 %v338, 16
      %v342 = vmul.u32 %v339, 52429
      %v343 = vmul.u32 %v339, 52428
      %v344 = vmul.u32 %v340, 52429
      %v345 = vmul.u32 %v340, 52428
      %v346 = vshll.u32 %v343, 16
      %v347 = vshrl.u32 %v343, 16
      %v348 = vshll.u32 %v344, 16
      %v349 = vshrl.u32 %v344, 16
      %vm350 = vc.u32 %v342, %v346
      %v351 = vsel %vm350, 1, 0
      %v352 = vadd.s32 %v342, %v346
      %v353 = vadd.s32 %v345, %v351
      %vm354 = vc.u32 %v352, %v348
      %v355 = vsel %vm354, 1, 0
      %v356 = vadd.s32 %v352, %v348
      %v357 = vadd.s32 %v353, %v355
      %v358 = vadd.s32 %v357, %v347
      %v359 = vadd.s32 %v358, %v349
      %v360 = vshrl.u32 %v359, 3
      %v361 = vmul.u32 %v360, 10
      %v362 = vsub.s32 %v338, %v361
      %v363 = vsub.s32 0, %v362
      %v364 = vsel %vm336, %v363, %v362
      %vm365 = vcmp.lt.s32.totalorder %v271, 0
      %v366 = vsub.s32 0, %v271
      %v367 = vsel %vm365, %v366, %v271
      %v368 = vand.u32 %v367, 65535
      %v369 = vshrl.u32 %v367, 16
      %v371 = vmul.u32 %v368, 52429
      %v372 = vmul.u32 %v368, 52428
      %v373 = vmul.u32 %v369, 52429
      %v374 = vmul.u32 %v369, 52428
      %v375 = vshll.u32 %v372, 16
      %v376 = vshrl.u32 %v372, 16
      %v377 = vshll.u32 %v373, 16
      %v378 = vshrl.u32 %v373, 16
      %vm379 = vc.u32 %v371, %v375
      %v380 = vsel %vm379, 1, 0
      %v381 = vadd.s32 %v371, %v375
      %v382 = vadd.s32 %v374, %v380
      %vm383 = vc.u32 %v381, %v377
      %v384 = vsel %vm383, 1, 0
      %v385 = vadd.s32 %v381, %v377
      %v386 = vadd.s32 %v382, %v384
      %v387 = vadd.s32 %v386, %v376
      %v388 = vadd.s32 %v387, %v378
      %v389 = vshrl.u32 %v388, 3
      %v390 = vmul.u32 %v389, 10
      %v391 = vsub.s32 %v367, %v390
      %v392 = vsub.s32 0, %v391
      %v393 = vsel %vm365, %v392, %v391
      %vm394 = vcmp.lt.s32.totalorder %v272, 0
      %v395 = vsub.s32 0, %v272
      %v396 = vsel %vm394, %v395, %v272
      %v397 = vand.u32 %v396, 65535
      %v398 = vshrl.u32 %v396, 16
      %v400 = vmul.u32 %v397, 52429
      %v401 = vmul.u32 %v397, 52428
      %v402 = vmul.u32 %v398, 52429
      %v403 = vmul.u32 %v398, 52428
      %v404 = vshll.u32 %v401, 16
      %v405 = vshrl.u32 %v401, 16
      %v406 = vshll.u32 %v402, 16
      %v407 = vshrl.u32 %v402, 16
      %vm408 = vc.u32 %v400, %v404
      %v409 = vsel %vm408, 1, 0
      %v410 = vadd.s32 %v400, %v404
      %v411 = vadd.s32 %v403, %v409
      %vm412 = vc.u32 %v410, %v406
      %v413 = vsel %vm412, 1, 0
      %v414 = vadd.s32 %v410, %v406
      %v415 = vadd.s32 %v411, %v413
      %v416 = vadd.s32 %v415, %v405
      %v417 = vadd.s32 %v416, %v407
      %v418 = vshrl.u32 %v417, 3
      %v419 = vmul.u32 %v418, 10
      %v420 = vsub.s32 %v396, %v419
      %v421 = vsub.s32 0, %v420
      %v422 = vsel %vm394, %v421, %v420
      %vm423 = vcmp.lt.s32.totalorder %v273, 0
      %v424 = vsub.s32 0, %v273
      %v425 = vsel %vm423, %v424, %v273
      %v426 = vand.u32 %v425, 65535
      %v427 = vshrl.u32 %v425, 16
      %v429 = vmul.u32 %v426, 52429
      %v430 = vmul.u32 %v426, 52428
      %v431 = vmul.u32 %v427, 52429
      %v432 = vmul.u32 %v427, 52428
      %v433 = vshll.u32 %v430, 16
      %v434 = vshrl.u32 %v430, 16
      %v435 = vshll.u32 %v431, 16
      %v436 = vshrl.u32 %v431, 16
      %vm437 = vc.u32 %v429, %v433
      %v438 = vsel %vm437, 1, 0
      %v439 = vadd.s32 %v429, %v433
      %v440 = vadd.s32 %v432, %v438
      %vm441 = vc.u32 %v439, %v435
      %v442 = vsel %vm441, 1, 0
      %v443 = vadd.s32 %v439, %v435
      %v444 = vadd.s32 %v440, %v442
      %v445 = vadd.s32 %v444, %v434
      %v446 = vadd.s32 %v445, %v436
      %v447 = vshrl.u32 %v446, 3
      %v448 = vmul.u32 %v447, 10
      %v449 = vsub.s32 %v425, %v448
      %v450 = vsub.s32 0, %v449
      %v451 = vsel %vm423, %v450, %v449
      %vm452 = vcmp.lt.s32.totalorder %v274, 0
      %v453 = vsub.s32 0, %v274
      %v454 = vsel %vm452, %v453, %v274
      %v455 = vand.u32 %v454, 65535
      %v456 = vshrl.u32 %v454, 16
      %v458 = vmul.u32 %v455, 52429
      %v459 = vmul.u32 %v455, 52428
      %v460 = vmul.u32 %v456, 52429
      %v461 = vmul.u32 %v456, 52428
      %v462 = vshll.u32 %v459, 16
      %v463 = vshrl.u32 %v459, 16
      %v464 = vshll.u32 %v460, 16
      %v465 = vshrl.u32 %v460, 16
      %vm466 = vc.u32 %v458, %v462
      %v467 = vsel %vm466, 1, 0
      %v468 = vadd.s32 %v458, %v462
      %v469 = vadd.s32 %v461, %v467
      %vm470 = vc.u32 %v468, %v464
      %v471 = vsel %vm470, 1, 0
      %v472 = vadd.s32 %v468, %v464
      %v473 = vadd.s32 %v469, %v471
      %v474 = vadd.s32 %v473, %v463
      %v475 = vadd.s32 %v474, %v465
      %v476 = vshrl.u32 %v475, 3
      %v477 = vmul.u32 %v476, 10
      %v478 = vsub.s32 %v454, %v477
      %v479 = vsub.s32 0, %v478
      %v480 = vsel %vm452, %v479, %v478
      %vm481 = vcmp.lt.s32.totalorder %v275, 0
      %v482 = vsub.s32 0, %v275
      %v483 = vsel %vm481, %v482, %v275
      %v484 = vand.u32 %v483, 65535
      %v485 = vshrl.u32 %v483, 16
      %v487 = vmul.u32 %v484, 52429
      %v488 = vmul.u32 %v484, 52428
      %v489 = vmul.u32 %v485, 52429
      %v490 = vmul.u32 %v485, 52428
      %v491 = vshll.u32 %v488, 16
      %v492 = vshrl.u32 %v488, 16
      %v493 = vshll.u32 %v489, 16
      %v494 = vshrl.u32 %v489, 16
      %vm495 = vc.u32 %v487, %v491
      %v496 = vsel %vm495, 1, 0
      %v497 = vadd.s32 %v487, %v491
      %v498 = vadd.s32 %v490, %v496
      %vm499 = vc.u32 %v497, %v493
      %v500 = vsel %vm499, 1, 0
      %v501 = vadd.s32 %v497, %v493
      %v502 = vadd.s32 %v498, %v500
      %v503 = vadd.s32 %v502, %v492
      %v504 = vadd.s32 %v503, %v494
      %v505 = vshrl.u32 %v504, 3
      %v506 = vmul.u32 %v505, 10
      %v507 = vsub.s32 %v483, %v506
      %v508 = vsub.s32 0, %v507
      %v509 = vsel %vm481, %v508, %v507
      %vm510 = vcmp.lt.s32.totalorder %v276, 0
      %v511 = vsub.s32 0, %v276
      %v512 = vsel %vm510, %v511, %v276
      %v513 = vand.u32 %v512, 65535
      %v514 = vshrl.u32 %v512, 16
      %v516 = vmul.u32 %v513, 52429
      %v517 = vmul.u32 %v513, 52428
      %v518 = vmul.u32 %v514, 52429
      %v519 = vmul.u32 %v514, 52428
      %v520 = vshll.u32 %v517, 16
      %v521 = vshrl.u32 %v517, 16
      %v522 = vshll.u32 %v518, 16
      %v523 = vshrl.u32 %v518, 16
      %vm524 = vc.u32 %v516, %v520
      %v525 = vsel %vm524, 1, 0
      %v526 = vadd.s32 %v516, %v520
      %v527 = vadd.s32 %v519, %v525
      %vm528 = vc.u32 %v526, %v522
      %v529 = vsel %vm528, 1, 0
      %v530 = vadd.s32 %v526, %v522
      %v531 = vadd.s32 %v527, %v529
      %v532 = vadd.s32 %v531, %v521
      %v533 = vadd.s32 %v532, %v523
      %v534 = vshrl.u32 %v533, 3
      %v535 = vmul.u32 %v534, 10
      %v536 = vsub.s32 %v512, %v535
      %v537 = vsub.s32 0, %v536
      %v538 = vsel %vm510, %v537, %v536
      %vm539 = vcmp.lt.s32.totalorder %v277, 0
      %v540 = vsub.s32 0, %v277
      %v541 = vsel %vm539, %v540, %v277
      %v542 = vand.u32 %v541, 65535
      %v543 = vshrl.u32 %v541, 16
      %v545 = vmul.u32 %v542, 52429
      %v546 = vmul.u32 %v542, 52428
      %v547 = vmul.u32 %v543, 52429
      %v548 = vmul.u32 %v543, 52428
      %v549 = vshll.u32 %v546, 16
      %v550 = vshrl.u32 %v546, 16
      %v551 = vshll.u32 %v547, 16
      %v552 = vshrl.u32 %v547, 16
      %vm553 = vc.u32 %v545, %v549
      %v554 = vsel %vm553, 1, 0
      %v555 = vadd.s32 %v545, %v549
      %v556 = vadd.s32 %v548, %v554
      %vm557 = vc.u32 %v555, %v551
      %v558 = vsel %vm557, 1, 0
      %v559 = vadd.s32 %v555, %v551
      %v560 = vadd.s32 %v556, %v558
      %v561 = vadd.s32 %v560, %v550
      %v562 = vadd.s32 %v561, %v552
      %v563 = vshrl.u32 %v562, 3
      %v564 = vmul.u32 %v563, 10
      %v565 = vsub.s32 %v541, %v564
      %v566 = vsub.s32 0, %v565
      %v567 = vsel %vm539, %v566, %v565
      %vm568 = vcmp.ne.s32.totalorder %v306, 0
      %vm569 = vcmp.ne.s32.totalorder %v335, 0
      %vm570 = vcmp.ne.s32.totalorder %v364, 0
      %vm571 = vcmp.ne.s32.totalorder %v393, 0
      %vm572 = vcmp.ne.s32.totalorder %v422, 0
      %vm573 = vcmp.ne.s32.totalorder %v451, 0
      %vm574 = vcmp.ne.s32.totalorder %v480, 0
      %vm575 = vcmp.ne.s32.totalorder %v509, 0
      %vm576 = vcmp.ne.s32.totalorder %v538, 0
      %vm577 = vcmp.ne.s32.totalorder %v567, 0
      %vm578 = vcmp.lt.s32.totalorder %v306, 0
      %vm579 = vcmp.lt.s32.totalorder %v335, 0
      %vm580 = vcmp.lt.s32.totalorder %v364, 0
      %vm581 = vcmp.lt.s32.totalorder %v393, 0
      %vm582 = vcmp.lt.s32.totalorder %v422, 0
      %vm583 = vcmp.lt.s32.totalorder %v451, 0
      %vm584 = vcmp.lt.s32.totalorder %v480, 0
      %vm585 = vcmp.lt.s32.totalorder %v509, 0
      %vm586 = vcmp.lt.s32.totalorder %v538, 0
      %vm587 = vcmp.lt.s32.totalorder %v567, 0
      %vm588 = vmand %vm578, %vm568
      %vm589 = vmand %vm579, %vm569
      %vm590 = vmand %vm580, %vm570
      %vm591 = vmand %vm581, %vm571
      %vm592 = vmand %vm582, %vm572
      %vm593 = vmand %vm583, %vm573
      %vm594 = vmand %vm584, %vm574
      %vm595 = vmand %vm585, %vm575
      %vm596 = vmand %vm586, %vm576
      %vm597 = vmand %vm587, %vm577
      %v598 = vadd.s32 %v306, 10
      %v599 = vadd.s32 %v335, 10
      %v600 = vadd.s32 %v364, 10
      %v601 = vadd.s32 %v393, 10
      %v602 = vadd.s32 %v422, 10
      %v603 = vadd.s32 %v451, 10
      %v604 = vadd.s32 %v480, 10
      %v605 = vadd.s32 %v509, 10
      %v606 = vadd.s32 %v538, 10
      %v607 = vadd.s32 %v567, 10
      %v608 = vsel %vm588, %v598, %v306
      %v609 = vsel %vm589, %v599, %v335
      %v610 = vsel %vm590, %v600, %v364
      %v611 = vsel %vm591, %v601, %v393
      %v612 = vsel %vm592, %v602, %v422
      %v613 = vsel %vm593, %v603, %v451
      %v614 = vsel %vm594, %v604, %v480
      %v615 = vsel %vm595, %v605, %v509
      %v616 = vsel %vm596, %v606, %v538
      %v617 = vsel %vm597, %v607, %v567
      %vm618 = vcmp.lt.s32.totalorder %v608, 8
      %vm619 = vcmp.lt.s32.totalorder %v609, 8
      %vm620 = vcmp.lt.s32.totalorder %v610, 8
      %vm621 = vcmp.lt.s32.totalorder %v611, 8
      %vm622 = vcmp.lt.s32.totalorder %v612, 8
      %vm623 = vcmp.lt.s32.totalorder %v613, 8
      %vm624 = vcmp.lt.s32.totalorder %v614, 8
      %vm625 = vcmp.lt.s32.totalorder %v615, 8
      %vm626 = vcmp.lt.s32.totalorder %v616, 8
      %vm627 = vcmp.lt.s32.totalorder %v617, 8
      %v628 = vld [vmem:[%s246] sm:$0xff]
      %v629 = vld [vmem:[%s246 + $0x8] sm:$0xff]
      %v630 = vld [vmem:[%s246 + $0x10] sm:$0xff]
      %v631 = vld [vmem:[%s246 + $0x18] sm:$0xff]
      %v632 = vld [vmem:[%s246 + $0x20] sm:$0xff]
      %v633 = vld [vmem:[%s246 + $0x28] sm:$0xff]
      %v634 = vld [vmem:[%s246 + $0x30] sm:$0xff]
      %v635 = vld [vmem:[%s246 + $0x38] sm:$0xff]
      %v636 = vld [vmem:[%s246 + $0x40] sm:$0xff]
      %v637 = vld [vmem:[%s246 + $0x48] sm:$0xff]
      %v638 = vld [vmem:[%s246 + $0x50] sm:$0xff]
      %v639 = vld [vmem:[%s246 + $0x58] sm:$0xff]
      %v640 = vld [vmem:[%s246 + $0x60] sm:$0xff]
      %v641 = vld [vmem:[%s246 + $0x68] sm:$0xff]
      %v642 = vld [vmem:[%s246 + $0x70] sm:$0xff]
      %v643 = vld [vmem:[%s246 + $0x78] sm:$0xff]
      %v644 = vld [vmem:[%s246 + $0x80] sm:$0xff]
      %v645 = vld [vmem:[%s246 + $0x88] sm:$0xff]
      %v646 = vld [vmem:[%s246 + $0x90] sm:$0xff]
      %v647 = vld [vmem:[%s246 + $0x98] sm:$0xff]
      %v648 = vld [vmem:[%s1] sm:$0xf]
      %v649 = vld [vmem:[%s1 + $0x4] sm:$0xf]
      %v650 = vld [vmem:[%s1 + $0x8] sm:$0xf]
      %v651 = vld [vmem:[%s1 + $0xc] sm:$0xf]
      %v652 = vld [vmem:[%s1 + $0x10] sm:$0xf]
      %v653 = vld [vmem:[%s1 + $0x14] sm:$0xf]
      %v654 = vld [vmem:[%s1 + $0x18] sm:$0xf]
      %v655 = vld [vmem:[%s1 + $0x1c] sm:$0xf]
      %v656 = vld [vmem:[%s1 + $0x20] sm:$0xf]
      %v657 = vld [vmem:[%s1 + $0x24] sm:$0xf]
      %v658 = vld [vmem:[%s1 + $0x28] sm:$0xf]
      %v659 = vld [vmem:[%s1 + $0x2c] sm:$0xf]
      %v660 = vld [vmem:[%s1 + $0x30] sm:$0xf]
      %v661 = vld [vmem:[%s1 + $0x34] sm:$0xf]
      %v662 = vld [vmem:[%s1 + $0x38] sm:$0xf]
      %v663 = vld [vmem:[%s1 + $0x3c] sm:$0xf]
      %v664 = vld [vmem:[%s1 + $0x40] sm:$0xf]
      %v665 = vld [vmem:[%s1 + $0x44] sm:$0xf]
      %v666 = vld [vmem:[%s1 + $0x48] sm:$0xf]
      %v667 = vld [vmem:[%s1 + $0x4c] sm:$0xf]
      %v668 = vld [vmem:[%s1 + $0x50] sm:$0xf]
      %v669 = vld [vmem:[%s1 + $0x54] sm:$0xf]
      %v670 = vld [vmem:[%s1 + $0x58] sm:$0xf]
      %v671 = vld [vmem:[%s1 + $0x5c] sm:$0xf]
      %v672 = vld [vmem:[%s1 + $0x60] sm:$0xf]
      %v673 = vld [vmem:[%s1 + $0x64] sm:$0xf]
      %v674 = vld [vmem:[%s1 + $0x68] sm:$0xf]
      %v675 = vld [vmem:[%s1 + $0x6c] sm:$0xf]
      %v676 = vld [vmem:[%s1 + $0x70] sm:$0xf]
      %v677 = vld [vmem:[%s1 + $0x74] sm:$0xf]
      %v678 = vld [vmem:[%s1 + $0x78] sm:$0xf]
      %v679 = vld [vmem:[%s1 + $0x7c] sm:$0xf]
      %v680 = vld [vmem:[%s1 + $0x80] sm:$0xf]
      %v681 = vld [vmem:[%s1 + $0x84] sm:$0xf]
      %v682 = vld [vmem:[%s1 + $0x88] sm:$0xf]
      %v683 = vld [vmem:[%s1 + $0x8c] sm:$0xf]
      %v684 = vld [vmem:[%s1 + $0x90] sm:$0xf]
      %v685 = vld [vmem:[%s1 + $0x94] sm:$0xf]
      %v686 = vld [vmem:[%s1 + $0x98] sm:$0xf]
      %v687 = vld [vmem:[%s1 + $0x9c] sm:$0xf]
      %v688 = vld [vmem:[%s1 + $0xa0] sm:$0xf]
      %v689 = vld [vmem:[%s1 + $0xa4] sm:$0xf]
      %v690 = vld [vmem:[%s1 + $0xa8] sm:$0xf]
      %v691 = vld [vmem:[%s1 + $0xac] sm:$0xf]
      %v692 = vld [vmem:[%s1 + $0xb0] sm:$0xf]
      %v693 = vld [vmem:[%s1 + $0xb4] sm:$0xf]
      %v694 = vld [vmem:[%s1 + $0xb8] sm:$0xf]
      %v695 = vld [vmem:[%s1 + $0xbc] sm:$0xf]
      %v696 = vld [vmem:[%s1 + $0xc0] sm:$0xf]
      %v697 = vld [vmem:[%s1 + $0xc4] sm:$0xf]
      %v698 = vld [vmem:[%s1 + $0xc8] sm:$0xf]
      %v699 = vld [vmem:[%s1 + $0xcc] sm:$0xf]
      %v700 = vld [vmem:[%s1 + $0xd0] sm:$0xf]
      %v701 = vld [vmem:[%s1 + $0xd4] sm:$0xf]
      %v702 = vld [vmem:[%s1 + $0xd8] sm:$0xf]
      %v703 = vld [vmem:[%s1 + $0xdc] sm:$0xf]
      %v704 = vld [vmem:[%s1 + $0xe0] sm:$0xf]
      %v705 = vld [vmem:[%s1 + $0xe4] sm:$0xf]
      %v706 = vld [vmem:[%s1 + $0xe8] sm:$0xf]
      %v707 = vld [vmem:[%s1 + $0xec] sm:$0xf]
      %v708 = vld [vmem:[%s1 + $0xf0] sm:$0xf]
      %v709 = vld [vmem:[%s1 + $0xf4] sm:$0xf]
      %v710 = vld [vmem:[%s1 + $0xf8] sm:$0xf]
      %v711 = vld [vmem:[%s1 + $0xfc] sm:$0xf]
      %v732 = vunpack.c.l.b16 %v628
      %v733 = vunpack.c.h.b16 %v628
      %v734 = vunpack.c.l.b16 %v629
      %v735 = vunpack.c.h.b16 %v629
      %v736 = vunpack.c.l.b16 %v630
      %v737 = vunpack.c.h.b16 %v630
      %v738 = vunpack.c.l.b16 %v631
      %v739 = vunpack.c.h.b16 %v631
      %v740 = vunpack.c.l.b16 %v632
      %v741 = vunpack.c.h.b16 %v632
      %v742 = vunpack.c.l.b16 %v633
      %v743 = vunpack.c.h.b16 %v633
      %v744 = vunpack.c.l.b16 %v634
      %v745 = vunpack.c.h.b16 %v634
      %v746 = vunpack.c.l.b16 %v635
      %v747 = vunpack.c.h.b16 %v635
      %v748 = vunpack.c.l.b16 %v636
      %v749 = vunpack.c.h.b16 %v636
      %v750 = vunpack.c.l.b16 %v637
      %v751 = vunpack.c.h.b16 %v637
      %v752 = vunpack.c.l.b16 %v638
      %v753 = vunpack.c.h.b16 %v638
      %v754 = vunpack.c.l.b16 %v639
      %v755 = vunpack.c.h.b16 %v639
      %v756 = vunpack.c.l.b16 %v640
      %v757 = vunpack.c.h.b16 %v640
      %v758 = vunpack.c.l.b16 %v641
      %v759 = vunpack.c.h.b16 %v641
      %v760 = vunpack.c.l.b16 %v642
      %v761 = vunpack.c.h.b16 %v642
      %v762 = vunpack.c.l.b16 %v643
      %v763 = vunpack.c.h.b16 %v643
      %v764 = vunpack.c.l.b16 %v644
      %v765 = vunpack.c.h.b16 %v644
      %v766 = vunpack.c.l.b16 %v645
      %v767 = vunpack.c.h.b16 %v645
      %v768 = vunpack.c.l.b16 %v646
      %v769 = vunpack.c.h.b16 %v646
      %v770 = vunpack.c.l.b16 %v647
      %v771 = vunpack.c.h.b16 %v647
      %v772 = vpack.c.b16 %v736, %v732
      %v773 = vpack.c.b16 %v737, %v733
      %v774 = vpack.c.b16 %v738, %v734
      %v775 = vpack.c.b16 %v739, %v735
      %v776 = vpack.c.b16 %v744, %v740
      %v777 = vpack.c.b16 %v745, %v741
      %v778 = vpack.c.b16 %v746, %v742
      %v779 = vpack.c.b16 %v747, %v743
      %v780 = vpack.c.b16 %v752, %v748
      %v781 = vpack.c.b16 %v753, %v749
      %v782 = vpack.c.b16 %v754, %v750
      %v783 = vpack.c.b16 %v755, %v751
      %v784 = vpack.c.b16 %v760, %v756
      %v785 = vpack.c.b16 %v761, %v757
      %v786 = vpack.c.b16 %v762, %v758
      %v787 = vpack.c.b16 %v763, %v759
      %v788 = vpack.c.b16 %v768, %v764
      %v789 = vpack.c.b16 %v769, %v765
      %v790 = vpack.c.b16 %v770, %v766
      %v791 = vpack.c.b16 %v771, %v767
      %v876 = vunpack.c.l.b16 %v648
      %v877 = vunpack.c.l.b16 %v649
      %v878 = vunpack.c.l.b16 %v650
      %v879 = vunpack.c.l.b16 %v651
      %v880 = vunpack.c.l.b16 %v652
      %v881 = vunpack.c.l.b16 %v653
      %v882 = vunpack.c.l.b16 %v654
      %v883 = vunpack.c.l.b16 %v655
      %v884 = vunpack.c.l.b16 %v656
      %v885 = vunpack.c.l.b16 %v657
      %v886 = vunpack.c.l.b16 %v658
      %v887 = vunpack.c.l.b16 %v659
      %v888 = vunpack.c.l.b16 %v660
      %v889 = vunpack.c.l.b16 %v661
      %v890 = vunpack.c.l.b16 %v662
      %v891 = vunpack.c.l.b16 %v663
      %v892 = vunpack.c.l.b16 %v664
      %v893 = vunpack.c.l.b16 %v665
      %v894 = vunpack.c.l.b16 %v666
      %v895 = vunpack.c.l.b16 %v667
      %v896 = vunpack.c.l.b16 %v668
      %v897 = vunpack.c.l.b16 %v669
      %v898 = vunpack.c.l.b16 %v670
      %v899 = vunpack.c.l.b16 %v671
      %v900 = vunpack.c.l.b16 %v672
      %v901 = vunpack.c.l.b16 %v673
      %v902 = vunpack.c.l.b16 %v674
      %v903 = vunpack.c.l.b16 %v675
      %v904 = vunpack.c.l.b16 %v676
      %v905 = vunpack.c.l.b16 %v677
      %v906 = vunpack.c.l.b16 %v678
      %v907 = vunpack.c.l.b16 %v679
      %v908 = vunpack.c.l.b16 %v680
      %v909 = vunpack.c.l.b16 %v681
      %v910 = vunpack.c.l.b16 %v682
      %v911 = vunpack.c.l.b16 %v683
      %v912 = vunpack.c.l.b16 %v684
      %v913 = vunpack.c.l.b16 %v685
      %v914 = vunpack.c.l.b16 %v686
      %v915 = vunpack.c.l.b16 %v687
      %v916 = vunpack.c.l.b16 %v688
      %v917 = vunpack.c.l.b16 %v689
      %v918 = vunpack.c.l.b16 %v690
      %v919 = vunpack.c.l.b16 %v691
      %v920 = vunpack.c.l.b16 %v692
      %v921 = vunpack.c.l.b16 %v693
      %v922 = vunpack.c.l.b16 %v694
      %v923 = vunpack.c.l.b16 %v695
      %v924 = vunpack.c.l.b16 %v696
      %v925 = vunpack.c.l.b16 %v697
      %v926 = vunpack.c.l.b16 %v698
      %v927 = vunpack.c.l.b16 %v699
      %v928 = vunpack.c.l.b16 %v700
      %v929 = vunpack.c.l.b16 %v701
      %v930 = vunpack.c.l.b16 %v702
      %v931 = vunpack.c.l.b16 %v703
      %v932 = vunpack.c.l.b16 %v704
      %v933 = vunpack.c.l.b16 %v705
      %v934 = vunpack.c.l.b16 %v706
      %v935 = vunpack.c.l.b16 %v707
      %v936 = vunpack.c.l.b16 %v708
      %v937 = vunpack.c.l.b16 %v709
      %v938 = vunpack.c.l.b16 %v710
      %v939 = vunpack.c.l.b16 %v711
      %v940 = vpack.c.b16 %v877, %v876
      %v941 = vpack.c.b16 %v879, %v878
      %v942 = vpack.c.b16 %v881, %v880
      %v943 = vpack.c.b16 %v883, %v882
      %v944 = vpack.c.b16 %v885, %v884
      %v945 = vpack.c.b16 %v887, %v886
      %v946 = vpack.c.b16 %v889, %v888
      %v947 = vpack.c.b16 %v891, %v890
      %v948 = vpack.c.b16 %v893, %v892
      %v949 = vpack.c.b16 %v895, %v894
      %v950 = vpack.c.b16 %v897, %v896
      %v951 = vpack.c.b16 %v899, %v898
      %v952 = vpack.c.b16 %v901, %v900
      %v953 = vpack.c.b16 %v903, %v902
      %v954 = vpack.c.b16 %v905, %v904
      %v955 = vpack.c.b16 %v907, %v906
      %v956 = vpack.c.b16 %v909, %v908
      %v957 = vpack.c.b16 %v911, %v910
      %v958 = vpack.c.b16 %v913, %v912
      %v959 = vpack.c.b16 %v915, %v914
      %v960 = vpack.c.b16 %v917, %v916
      %v961 = vpack.c.b16 %v919, %v918
      %v962 = vpack.c.b16 %v921, %v920
      %v963 = vpack.c.b16 %v923, %v922
      %v964 = vpack.c.b16 %v925, %v924
      %v965 = vpack.c.b16 %v927, %v926
      %v966 = vpack.c.b16 %v929, %v928
      %v967 = vpack.c.b16 %v931, %v930
      %v968 = vpack.c.b16 %v933, %v932
      %v969 = vpack.c.b16 %v935, %v934
      %v970 = vpack.c.b16 %v937, %v936
      %v971 = vpack.c.b16 %v939, %v938
      %1004 = vmatpush.bf16.msra.mxu0 %v947
      %1005 = vmatpush.bf16.msra.mxu0 %v946
      %1006 = vmatpush.bf16.msra.mxu0 %v945
      %1007 = vmatpush.bf16.msra.mxu0 %v944
      %1008 = vmatpush.bf16.msra.mxu0 %v943
      %1009 = vmatpush.bf16.msra.mxu0 %v942
      %1010 = vmatpush.bf16.msra.mxu0 %v941
      %1011 = vmatpush.bf16.msra.mxu0 %v940
      %1012 = vmatmul.bf16.gmra.mxu0 %v772
      %v1013 = vpop.f32.mrf.mxu0
      %v1014 = vadd.f32 0.0, %v1013
      %v1015 = vpop.f32.mrf.mxu0
      %v1016 = vadd.f32 0.0, %v1015
      %1017 = vmatmul.bf16.gmra.mxu0 %v776
      %v1018 = vpop.f32.mrf.mxu0
      %v1019 = vadd.f32 0.0, %v1018
      %v1020 = vpop.f32.mrf.mxu0
      %v1021 = vadd.f32 0.0, %v1020
      %1022 = vmatmul.bf16.gmra.mxu0 %v780
      %v1023 = vpop.f32.mrf.mxu0
      %v1024 = vadd.f32 0.0, %v1023
      %v1025 = vpop.f32.mrf.mxu0
      %v1026 = vadd.f32 0.0, %v1025
      %1027 = vmatmul.bf16.gmra.mxu0 %v784
      %v1028 = vpop.f32.mrf.mxu0
      %v1029 = vadd.f32 0.0, %v1028
      %v1030 = vpop.f32.mrf.mxu0
      %v1031 = vadd.f32 0.0, %v1030
      %1032 = vmatmul.bf16.gmra.mxu0 %v788
      %v1033 = vpop.f32.mrf.mxu0
      %v1034 = vadd.f32 0.0, %v1033
      %v1035 = vpop.f32.mrf.mxu0
      %v1036 = vadd.f32 0.0, %v1035
      %1037 = vdwg.mxu0
      %1038 = vmatpush.bf16.msra.mxu0 %v955
      %1039 = vmatpush.bf16.msra.mxu0 %v954
      %1040 = vmatpush.bf16.msra.mxu0 %v953
      %1041 = vmatpush.bf16.msra.mxu0 %v952
      %1042 = vmatpush.bf16.msra.mxu0 %v951
      %1043 = vmatpush.bf16.msra.mxu0 %v950
      %1044 = vmatpush.bf16.msra.mxu0 %v949
      %1045 = vmatpush.bf16.msra.mxu0 %v948
      %1046 = vmatmul.bf16.gmra.mxu0 %v773
      %v1047 = vpop.f32.mrf.mxu0
      %v1048 = vadd.f32 %v1014, %v1047
      %v1049 = vpop.f32.mrf.mxu0
      %v1050 = vadd.f32 %v1016, %v1049
      %1051 = vmatmul.bf16.gmra.mxu0 %v777
      %v1052 = vpop.f32.mrf.mxu0
      %v1053 = vadd.f32 %v1019, %v1052
      %v1054 = vpop.f32.mrf.mxu0
      %v1055 = vadd.f32 %v1021, %v1054
      %1056 = vmatmul.bf16.gmra.mxu0 %v781
      %v1057 = vpop.f32.mrf.mxu0
      %v1058 = vadd.f32 %v1024, %v1057
      %v1059 = vpop.f32.mrf.mxu0
      %v1060 = vadd.f32 %v1026, %v1059
      %1061 = vmatmul.bf16.gmra.mxu0 %v785
      %v1062 = vpop.f32.mrf.mxu0
      %v1063 = vadd.f32 %v1029, %v1062
      %v1064 = vpop.f32.mrf.mxu0
      %v1065 = vadd.f32 %v1031, %v1064
      %1066 = vmatmul.bf16.gmra.mxu0 %v789
      %v1067 = vpop.f32.mrf.mxu0
      %v1068 = vadd.f32 %v1034, %v1067
      %v1069 = vpop.f32.mrf.mxu0
      %v1070 = vadd.f32 %v1036, %v1069
      %1071 = vdwg.mxu0
      %1072 = vmatpush.bf16.msra.mxu0 %v963
      %1073 = vmatpush.bf16.msra.mxu0 %v962
      %1074 = vmatpush.bf16.msra.mxu0 %v961
      %1075 = vmatpush.bf16.msra.mxu0 %v960
      %1076 = vmatpush.bf16.msra.mxu0 %v959
      %1077 = vmatpush.bf16.msra.mxu0 %v958
      %1078 = vmatpush.bf16.msra.mxu0 %v957
      %1079 = vmatpush.bf16.msra.mxu0 %v956
      %1080 = vmatmul.bf16.gmra.mxu0 %v774
      %v1081 = vpop.f32.mrf.mxu0
      %v1082 = vadd.f32 %v1048, %v1081
      %v1083 = vpop.f32.mrf.mxu0
      %v1084 = vadd.f32 %v1050, %v1083
      %1085 = vmatmul.bf16.gmra.mxu0 %v778
      %v1086 = vpop.f32.mrf.mxu0
      %v1087 = vadd.f32 %v1053, %v1086
      %v1088 = vpop.f32.mrf.mxu0
      %v1089 = vadd.f32 %v1055, %v1088
      %1090 = vmatmul.bf16.gmra.mxu0 %v782
      %v1091 = vpop.f32.mrf.mxu0
      %v1092 = vadd.f32 %v1058, %v1091
      %v1093 = vpop.f32.mrf.mxu0
      %v1094 = vadd.f32 %v1060, %v1093
      %1095 = vmatmul.bf16.gmra.mxu0 %v786
      %v1096 = vpop.f32.mrf.mxu0
      %v1097 = vadd.f32 %v1063, %v1096
      %v1098 = vpop.f32.mrf.mxu0
      %v1099 = vadd.f32 %v1065, %v1098
      %1100 = vmatmul.bf16.gmra.mxu0 %v790
      %v1101 = vpop.f32.mrf.mxu0
      %v1102 = vadd.f32 %v1068, %v1101
      %v1103 = vpop.f32.mrf.mxu0
      %v1104 = vadd.f32 %v1070, %v1103
      %1105 = vdwg.mxu0
      %1106 = vmatpush.bf16.msra.mxu0 %v971
      %1107 = vmatpush.bf16.msra.mxu0 %v970
      %1108 = vmatpush.bf16.msra.mxu0 %v969
      %1109 = vmatpush.bf16.msra.mxu0 %v968
      %1110 = vmatpush.bf16.msra.mxu0 %v967
      %1111 = vmatpush.bf16.msra.mxu0 %v966
      %1112 = vmatpush.bf16.msra.mxu0 %v965
      %1113 = vmatpush.bf16.msra.mxu0 %v964
      %1114 = vmatmul.bf16.gmra.mxu0 %v775
      %v1115 = vpop.f32.mrf.mxu0
      %v1116 = vadd.f32 %v1082, %v1115
      %v1117 = vpop.f32.mrf.mxu0
      %v1118 = vadd.f32 %v1084, %v1117
      %1119 = vmatmul.bf16.gmra.mxu0 %v779
      %v1120 = vpop.f32.mrf.mxu0
      %v1121 = vadd.f32 %v1087, %v1120
      %v1122 = vpop.f32.mrf.mxu0
      %v1123 = vadd.f32 %v1089, %v1122
      %1124 = vmatmul.bf16.gmra.mxu0 %v783
      %v1125 = vpop.f32.mrf.mxu0
      %v1126 = vadd.f32 %v1092, %v1125
      %v1127 = vpop.f32.mrf.mxu0
      %v1128 = vadd.f32 %v1094, %v1127
      %1129 = vmatmul.bf16.gmra.mxu0 %v787
      %v1130 = vpop.f32.mrf.mxu0
      %v1131 = vadd.f32 %v1097, %v1130
      %v1132 = vpop.f32.mrf.mxu0
      %v1133 = vadd.f32 %v1099, %v1132
      %1134 = vmatmul.bf16.gmra.mxu0 %v791
      %v1135 = vpop.f32.mrf.mxu0
      %v1136 = vadd.f32 %v1102, %v1135
      %v1137 = vpop.f32.mrf.mxu0
      %v1138 = vadd.f32 %v1104, %v1137
      %1139 = vdwg.mxu0
      %v1140 = vmax.f32 %v1116, 0.0
      %v1141 = vmax.f32 %v1118, 0.0
      %v1142 = vmax.f32 %v1121, 0.0
      %v1143 = vmax.f32 %v1123, 0.0
      %v1144 = vmax.f32 %v1126, 0.0
      %v1145 = vmax.f32 %v1128, 0.0
      %v1146 = vmax.f32 %v1131, 0.0
      %v1147 = vmax.f32 %v1133, 0.0
      %v1148 = vmax.f32 %v1136, 0.0
      %v1149 = vmax.f32 %v1138, 0.0
      %v1150 = vsel %vm618, %v1140, 0.0
      %v1151 = vsel %vm619, %v1141, 0.0
      %v1152 = vsel %vm620, %v1142, 0.0
      %v1153 = vsel %vm621, %v1143, 0.0
      %v1154 = vsel %vm622, %v1144, 0.0
      %v1155 = vsel %vm623, %v1145, 0.0
      %v1156 = vsel %vm624, %v1146, 0.0
      %v1157 = vsel %vm625, %v1147, 0.0
      %v1158 = vsel %vm626, %v1148, 0.0
      %v1159 = vsel %vm627, %v1149, 0.0
      %vm1160 = vcmask 261120
      %1161 = vst.msk [vmem:[#allocation2 + $0xb] sm:$0xff] %vm1160, %v1150
      %1162 = vst.msk [vmem:[#allocation2 + $0x13] sm:$0xff] %vm1160, %v1151
      %1163 = vst.msk [vmem:[#allocation2 + $0x1b] sm:$0xff] %vm1160, %v1152
      %1164 = vst.msk [vmem:[#allocation2 + $0x23] sm:$0xff] %vm1160, %v1153
      %1165 = vst.msk [vmem:[#allocation2 + $0x2b] sm:$0xff] %vm1160, %v1154
      %1166 = vst.msk [vmem:[#allocation2 + $0x33] sm:$0xff] %vm1160, %v1155
      %1167 = vst.msk [vmem:[#allocation2 + $0x3b] sm:$0xff] %vm1160, %v1156
      %1168 = vst.msk [vmem:[#allocation2 + $0x43] sm:$0xff] %vm1160, %v1157
      %1169 = vst.msk [vmem:[#allocation2 + $0x4b] sm:$0xff] %vm1160, %v1158
      %1170 = vst.msk [vmem:[#allocation2 + $0x53] sm:$0xff] %vm1160, %v1159
      %1181 = vrot.lane.b32.xlu0 %v1150, 32
      %v1182 = vpop.permute.xlu0 %1181
      %1183 = vrot.lane.b32.xlu0 %v1151, 32
      %v1184 = vpop.permute.xlu0 %1183
      %1185 = vrot.lane.b32.xlu0 %v1152, 32
      %v1186 = vpop.permute.xlu0 %1185
      %1187 = vrot.lane.b32.xlu0 %v1153, 32
      %v1188 = vpop.permute.xlu0 %1187
      %1189 = vrot.lane.b32.xlu0 %v1154, 32
      %v1190 = vpop.permute.xlu0 %1189
      %1191 = vrot.lane.b32.xlu0 %v1155, 32
      %v1192 = vpop.permute.xlu0 %1191
      %1193 = vrot.lane.b32.xlu0 %v1156, 32
      %v1194 = vpop.permute.xlu0 %1193
      %1195 = vrot.lane.b32.xlu0 %v1157, 32
      %v1196 = vpop.permute.xlu0 %1195
      %1197 = vrot.lane.b32.xlu0 %v1158, 32
      %v1198 = vpop.permute.xlu0 %1197
      %1199 = vrot.lane.b32.xlu0 %v1159, 32
      %v1200 = vpop.permute.xlu0 %1199
      %vm1211 = vcmask 523520
      %1212 = vst.msk [vmem:[#allocation2 + $0xa] sm:$0xff] %vm1211, %v1182
      %1213 = vst.msk [vmem:[#allocation2 + $0x12] sm:$0xff] %vm1211, %v1184
      %1214 = vst.msk [vmem:[#allocation2 + $0x1a] sm:$0xff] %vm1211, %v1186
      %1215 = vst.msk [vmem:[#allocation2 + $0x22] sm:$0xff] %vm1211, %v1188
      %1216 = vst.msk [vmem:[#allocation2 + $0x2a] sm:$0xff] %vm1211, %v1190
      %1217 = vst.msk [vmem:[#allocation2 + $0x32] sm:$0xff] %vm1211, %v1192
      %1218 = vst.msk [vmem:[#allocation2 + $0x3a] sm:$0xff] %vm1211, %v1194
      %1219 = vst.msk [vmem:[#allocation2 + $0x42] sm:$0xff] %vm1211, %v1196
      %1220 = vst.msk [vmem:[#allocation2 + $0x4a] sm:$0xff] %vm1211, %v1198
      %1221 = vst.msk [vmem:[#allocation2 + $0x52] sm:$0xff] %vm1211, %v1200
      %1222 = vrot.lane.b32.xlu0 %v1150, 64
      %v1223 = vpop.permute.xlu0 %1222
      %1224 = vrot.lane.b32.xlu0 %v1151, 64
      %v1225 = vpop.permute.xlu0 %1224
      %1226 = vrot.lane.b32.xlu0 %v1152, 64
      %v1227 = vpop.permute.xlu0 %1226
      %1228 = vrot.lane.b32.xlu0 %v1153, 64
      %v1229 = vpop.permute.xlu0 %1228
      %1230 = vrot.lane.b32.xlu0 %v1154, 64
      %v1231 = vpop.permute.xlu0 %1230
      %1232 = vrot.lane.b32.xlu0 %v1155, 64
      %v1233 = vpop.permute.xlu0 %1232
      %1234 = vrot.lane.b32.xlu0 %v1156, 64
      %v1235 = vpop.permute.xlu0 %1234
      %1236 = vrot.lane.b32.xlu0 %v1157, 64
      %v1237 = vpop.permute.xlu0 %1236
      %1238 = vrot.lane.b32.xlu0 %v1158, 64
      %v1239 = vpop.permute.xlu0 %1238
      %1240 = vrot.lane.b32.xlu0 %v1159, 64
      %v1241 = vpop.permute.xlu0 %1240
      %vm1252 = vcmask 785920
      %1253 = vst.msk [vmem:[#allocation2 + $0x9] sm:$0xff] %vm1252, %v1223
      %1254 = vst.msk [vmem:[#allocation2 + $0x11] sm:$0xff] %vm1252, %v1225
      %1255 = vst.msk [vmem:[#allocation2 + $0x19] sm:$0xff] %vm1252, %v1227
      %1256 = vst.msk [vmem:[#allocation2 + $0x21] sm:$0xff] %vm1252, %v1229
      %1257 = vst.msk [vmem:[#allocation2 + $0x29] sm:$0xff] %vm1252, %v1231
      %1258 = vst.msk [vmem:[#allocation2 + $0x31] sm:$0xff] %vm1252, %v1233
      %1259 = vst.msk [vmem:[#allocation2 + $0x39] sm:$0xff] %vm1252, %v1235
      %1260 = vst.msk [vmem:[#allocation2 + $0x41] sm:$0xff] %vm1252, %v1237
      %1261 = vst.msk [vmem:[#allocation2 + $0x49] sm:$0xff] %vm1252, %v1239
      %1262 = vst.msk [vmem:[#allocation2 + $0x51] sm:$0xff] %vm1252, %v1241
      %v1263 = vld [vmem:[#allocation2] sm:$0xff]
      %v1264 = vld [vmem:[#allocation2 + $0x8] sm:$0xff]
      %v1265 = vld [vmem:[#allocation2 + $0x10] sm:$0xff]
      %v1266 = vld [vmem:[#allocation2 + $0x18] sm:$0xff]
      %v1267 = vld [vmem:[#allocation2 + $0x20] sm:$0xff]
      %v1268 = vld [vmem:[#allocation2 + $0x28] sm:$0xff]
      %v1269 = vld [vmem:[#allocation2 + $0x30] sm:$0xff]
      %v1270 = vld [vmem:[#allocation2 + $0x38] sm:$0xff]
      %v1271 = vld [vmem:[#allocation2 + $0x40] sm:$0xff]
      %v1272 = vld [vmem:[#allocation2 + $0x48] sm:$0xff]
      %v1273 = vpack.c.bf16 %v1264, %v1263
      %v1274 = vpack.c.bf16 %v1266, %v1265
      %v1275 = vpack.c.bf16 %v1268, %v1267
      %v1276 = vpack.c.bf16 %v1270, %v1269
      %v1277 = vpack.c.bf16 %v1272, %v1271
      %v1278 = vld [vmem:[%s2] sm:$0xf]
      %v1279 = vld [vmem:[%s2 + $0x4] sm:$0xf]
      %v1280 = vld [vmem:[%s2 + $0x8] sm:$0xf]
      %v1281 = vld [vmem:[%s2 + $0xc] sm:$0xf]
      %v1282 = vld [vmem:[%s2 + $0x10] sm:$0xf]
      %v1283 = vld [vmem:[%s2 + $0x14] sm:$0xf]
      %v1284 = vld [vmem:[%s2 + $0x18] sm:$0xf]
      %v1285 = vld [vmem:[%s2 + $0x1c] sm:$0xf]
      %v1286 = vld [vmem:[%s2 + $0x20] sm:$0xf]
      %v1287 = vld [vmem:[%s2 + $0x24] sm:$0xf]
      %v1288 = vld [vmem:[%s2 + $0x28] sm:$0xf]
      %v1289 = vld [vmem:[%s2 + $0x2c] sm:$0xf]
      %v1290 = vld [vmem:[#allocation2 + $0xa] sm:$0xff]
      %v1291 = vld [vmem:[#allocation2 + $0x12] sm:$0xff]
      %v1292 = vld [vmem:[#allocation2 + $0x1a] sm:$0xff]
      %v1293 = vld [vmem:[#allocation2 + $0x22] sm:$0xff]
      %v1294 = vld [vmem:[#allocation2 + $0x2a] sm:$0xff]
      %v1295 = vld [vmem:[#allocation2 + $0x32] sm:$0xff]
      %v1296 = vld [vmem:[#allocation2 + $0x3a] sm:$0xff]
      %v1297 = vld [vmem:[#allocation2 + $0x42] sm:$0xff]
      %v1298 = vld [vmem:[#allocation2 + $0x4a] sm:$0xff]
      %v1299 = vld [vmem:[#allocation2 + $0x52] sm:$0xff]
      %v1300 = vpack.c.bf16 %v1291, %v1290
      %v1301 = vpack.c.bf16 %v1293, %v1292
      %v1302 = vpack.c.bf16 %v1295, %v1294
      %v1303 = vpack.c.bf16 %v1297, %v1296
      %v1304 = vpack.c.bf16 %v1299, %v1298
      %s1305 = scalar_lea.vmem %s2, 48
      %v1306 = vld [vmem:[%s1305] sm:$0xf]
      %v1307 = vld [vmem:[%s1305 + $0x4] sm:$0xf]
      %v1308 = vld [vmem:[%s1305 + $0x8] sm:$0xf]
      %v1309 = vld [vmem:[%s1305 + $0xc] sm:$0xf]
      %v1310 = vld [vmem:[%s1305 + $0x10] sm:$0xf]
      %v1311 = vld [vmem:[%s1305 + $0x14] sm:$0xf]
      %v1312 = vld [vmem:[%s1305 + $0x18] sm:$0xf]
      %v1313 = vld [vmem:[%s1305 + $0x1c] sm:$0xf]
      %v1314 = vld [vmem:[%s1305 + $0x20] sm:$0xf]
      %v1315 = vld [vmem:[%s1305 + $0x24] sm:$0xf]
      %v1316 = vld [vmem:[%s1305 + $0x28] sm:$0xf]
      %v1317 = vld [vmem:[%s1305 + $0x2c] sm:$0xf]
      %v1330 = vunpack.c.l.b16 %v1306
      %v1331 = vunpack.c.l.b16 %v1307
      %v1332 = vunpack.c.l.b16 %v1308
      %v1333 = vunpack.c.l.b16 %v1309
      %v1334 = vunpack.c.l.b16 %v1310
      %v1335 = vunpack.c.l.b16 %v1311
      %v1336 = vunpack.c.l.b16 %v1312
      %v1337 = vunpack.c.l.b16 %v1313
      %v1338 = vunpack.c.l.b16 %v1314
      %v1339 = vunpack.c.l.b16 %v1315
      %v1340 = vunpack.c.l.b16 %v1316
      %v1341 = vunpack.c.l.b16 %v1317
      %v1342 = vpack.c.b16 %v1331, %v1330
      %v1343 = vpack.c.b16 %v1333, %v1332
      %v1344 = vpack.c.b16 %v1335, %v1334
      %v1345 = vpack.c.b16 %v1337, %v1336
      %v1346 = vpack.c.b16 %v1339, %v1338
      %v1347 = vpack.c.b16 %v1341, %v1340
      %v1355 = vsel %vm253, %v1300, 0
      %v1358 = vsel %vm253, %v1301, 0
      %v1361 = vsel %vm253, %v1302, 0
      %v1364 = vsel %vm253, %v1303, 0
      %v1367 = vsel %vm253, %v1304, 0
      %1369 = vmatpush.bf16.msra.mxu0 0
      %1370 = vmatpush.bf16.msra.mxu0 0
      %1371 = vmatpush.bf16.msra.mxu0 %v1347
      %1372 = vmatpush.bf16.msra.mxu0 %v1346
      %1373 = vmatpush.bf16.msra.mxu0 %v1345
      %1374 = vmatpush.bf16.msra.mxu0 %v1344
      %1375 = vmatpush.bf16.msra.mxu0 %v1343
      %1376 = vmatpush.bf16.msra.mxu0 %v1342
      %1377 = vmatmul.bf16.gmra.mxu0 %v1355
      %v1378 = vpop.f32.mrf.mxu0
      %v1379 = vadd.f32 0.0, %v1378
      %v1380 = vpop.f32.mrf.mxu0
      %v1381 = vadd.f32 0.0, %v1380
      %1382 = vmatmul.bf16.gmra.mxu0 %v1358
      %v1383 = vpop.f32.mrf.mxu0
      %v1384 = vadd.f32 0.0, %v1383
      %v1385 = vpop.f32.mrf.mxu0
      %v1386 = vadd.f32 0.0, %v1385
      %1387 = vmatmul.bf16.gmra.mxu0 %v1361
      %v1388 = vpop.f32.mrf.mxu0
      %v1389 = vadd.f32 0.0, %v1388
      %v1390 = vpop.f32.mrf.mxu0
      %v1391 = vadd.f32 0.0, %v1390
      %1392 = vmatmul.bf16.gmra.mxu0 %v1364
      %v1393 = vpop.f32.mrf.mxu0
      %v1394 = vadd.f32 0.0, %v1393
      %v1395 = vpop.f32.mrf.mxu0
      %v1396 = vadd.f32 0.0, %v1395
      %1397 = vmatmul.bf16.gmra.mxu0 %v1367
      %v1398 = vpop.f32.mrf.mxu0
      %v1399 = vadd.f32 0.0, %v1398
      %v1400 = vpop.f32.mrf.mxu0
      %v1401 = vadd.f32 0.0, %v1400
      %1402 = vdwg.mxu0
      %v1415 = vunpack.c.l.b16 %v1278
      %v1416 = vunpack.c.l.b16 %v1279
      %v1417 = vunpack.c.l.b16 %v1280
      %v1418 = vunpack.c.l.b16 %v1281
      %v1419 = vunpack.c.l.b16 %v1282
      %v1420 = vunpack.c.l.b16 %v1283
      %v1421 = vunpack.c.l.b16 %v1284
      %v1422 = vunpack.c.l.b16 %v1285
      %v1423 = vunpack.c.l.b16 %v1286
      %v1424 = vunpack.c.l.b16 %v1287
      %v1425 = vunpack.c.l.b16 %v1288
      %v1426 = vunpack.c.l.b16 %v1289
      %v1427 = vpack.c.b16 %v1416, %v1415
      %v1428 = vpack.c.b16 %v1418, %v1417
      %v1429 = vpack.c.b16 %v1420, %v1419
      %v1430 = vpack.c.b16 %v1422, %v1421
      %v1431 = vpack.c.b16 %v1424, %v1423
      %v1432 = vpack.c.b16 %v1426, %v1425
      %v1440 = vsel %vm253, %v1273, 0
      %v1443 = vsel %vm253, %v1274, 0
      %v1446 = vsel %vm253, %v1275, 0
      %v1449 = vsel %vm253, %v1276, 0
      %v1452 = vsel %vm253, %v1277, 0
      %1454 = vmatpush.bf16.msra.mxu0 0
      %1455 = vmatpush.bf16.msra.mxu0 0
      %1456 = vmatpush.bf16.msra.mxu0 %v1432
      %1457 = vmatpush.bf16.msra.mxu0 %v1431
      %1458 = vmatpush.bf16.msra.mxu0 %v1430
      %1459 = vmatpush.bf16.msra.mxu0 %v1429
      %1460 = vmatpush.bf16.msra.mxu0 %v1428
      %1461 = vmatpush.bf16.msra.mxu0 %v1427
      %1462 = vmatmul.bf16.gmra.mxu0 %v1440
      %v1463 = vpop.f32.mrf.mxu0
      %v1464 = vadd.f32 %v1379, %v1463
      %v1465 = vpop.f32.mrf.mxu0
      %v1466 = vadd.f32 %v1381, %v1465
      %1467 = vmatmul.bf16.gmra.mxu0 %v1443
      %v1468 = vpop.f32.mrf.mxu0
      %v1469 = vadd.f32 %v1384, %v1468
      %v1470 = vpop.f32.mrf.mxu0
      %v1471 = vadd.f32 %v1386, %v1470
      %1472 = vmatmul.bf16.gmra.mxu0 %v1446
      %v1473 = vpop.f32.mrf.mxu0
      %v1474 = vadd.f32 %v1389, %v1473
      %v1475 = vpop.f32.mrf.mxu0
      %v1476 = vadd.f32 %v1391, %v1475
      %1477 = vmatmul.bf16.gmra.mxu0 %v1449
      %v1478 = vpop.f32.mrf.mxu0
      %v1479 = vadd.f32 %v1394, %v1478
      %v1480 = vpop.f32.mrf.mxu0
      %v1481 = vadd.f32 %v1396, %v1480
      %1482 = vmatmul.bf16.gmra.mxu0 %v1452
      %v1483 = vpop.f32.mrf.mxu0
      %v1484 = vadd.f32 %v1399, %v1483
      %v1485 = vpop.f32.mrf.mxu0
      %v1486 = vadd.f32 %v1401, %v1485
      %1487 = vdwg.mxu0
      %v1488 = vld [vmem:[#allocation2 + $0x14] sm:$0xff]
      %v1489 = vld [vmem:[#allocation2 + $0x1c] sm:$0xff]
      %v1490 = vld [vmem:[#allocation2 + $0x24] sm:$0xff]
      %v1491 = vld [vmem:[#allocation2 + $0x2c] sm:$0xff]
      %v1492 = vld [vmem:[#allocation2 + $0x34] sm:$0xff]
      %v1493 = vld [vmem:[#allocation2 + $0x3c] sm:$0xff]
      %v1494 = vld [vmem:[#allocation2 + $0x44] sm:$0xff]
      %v1495 = vld [vmem:[#allocation2 + $0x4c] sm:$0xff]
      %v1496 = vld [vmem:[#allocation2 + $0x54] sm:$0xff]
      %v1497 = vld [vmem:[#allocation2 + $0x5c] sm:$0xff]
      %v1498 = vpack.c.bf16 %v1489, %v1488
      %v1499 = vpack.c.bf16 %v1491, %v1490
      %v1500 = vpack.c.bf16 %v1493, %v1492
      %v1501 = vpack.c.bf16 %v1495, %v1494
      %v1502 = vpack.c.bf16 %v1497, %v1496
      %s1503 = scalar_lea.vmem %s2, 96
      %v1504 = vld [vmem:[%s1503] sm:$0xf]
      %v1505 = vld [vmem:[%s1503 + $0x4] sm:$0xf]
      %v1506 = vld [vmem:[%s1503 + $0x8] sm:$0xf]
      %v1507 = vld [vmem:[%s1503 + $0xc] sm:$0xf]
      %v1508 = vld [vmem:[%s1503 + $0x10] sm:$0xf]
      %v1509 = vld [vmem:[%s1503 + $0x14] sm:$0xf]
      %v1510 = vld [vmem:[%s1503 + $0x18] sm:$0xf]
      %v1511 = vld [vmem:[%s1503 + $0x1c] sm:$0xf]
      %v1512 = vld [vmem:[%s1503 + $0x20] sm:$0xf]
      %v1513 = vld [vmem:[%s1503 + $0x24] sm:$0xf]
      %v1514 = vld [vmem:[%s1503 + $0x28] sm:$0xf]
      %v1515 = vld [vmem:[%s1503 + $0x2c] sm:$0xf]
      %v1528 = vunpack.c.l.b16 %v1504
      %v1529 = vunpack.c.l.b16 %v1505
      %v1530 = vunpack.c.l.b16 %v1506
      %v1531 = vunpack.c.l.b16 %v1507
      %v1532 = vunpack.c.l.b16 %v1508
      %v1533 = vunpack.c.l.b16 %v1509
      %v1534 = vunpack.c.l.b16 %v1510
      %v1535 = vunpack.c.l.b16 %v1511
      %v1536 = vunpack.c.l.b16 %v1512
      %v1537 = vunpack.c.l.b16 %v1513
      %v1538 = vunpack.c.l.b16 %v1514
      %v1539 = vunpack.c.l.b16 %v1515
      %v1540 = vpack.c.b16 %v1529, %v1528
      %v1541 = vpack.c.b16 %v1531, %v1530
      %v1542 = vpack.c.b16 %v1533, %v1532
      %v1543 = vpack.c.b16 %v1535, %v1534
      %v1544 = vpack.c.b16 %v1537, %v1536
      %v1545 = vpack.c.b16 %v1539, %v1538
      %v1553 = vsel %vm253, %v1498, 0
      %v1556 = vsel %vm253, %v1499, 0
      %v1559 = vsel %vm253, %v1500, 0
      %v1562 = vsel %vm253, %v1501, 0
      %v1565 = vsel %vm253, %v1502, 0
      %1567 = vmatpush.bf16.msra.mxu0 0
      %1568 = vmatpush.bf16.msra.mxu0 0
      %1569 = vmatpush.bf16.msra.mxu0 %v1545
      %1570 = vmatpush.bf16.msra.mxu0 %v1544
      %1571 = vmatpush.bf16.msra.mxu0 %v1543
      %1572 = vmatpush.bf16.msra.mxu0 %v1542
      %1573 = vmatpush.bf16.msra.mxu0 %v1541
      %1574 = vmatpush.bf16.msra.mxu0 %v1540
      %1575 = vmatmul.bf16.gmra.mxu0 %v1553
      %v1576 = vpop.f32.mrf.mxu0
      %v1577 = vadd.f32 0.0, %v1576
      %v1578 = vpop.f32.mrf.mxu0
      %v1579 = vadd.f32 0.0, %v1578
      %1580 = vmatmul.bf16.gmra.mxu0 %v1556
      %v1581 = vpop.f32.mrf.mxu0
      %v1582 = vadd.f32 0.0, %v1581
      %v1583 = vpop.f32.mrf.mxu0
      %v1584 = vadd.f32 0.0, %v1583
      %1585 = vmatmul.bf16.gmra.mxu0 %v1559
      %v1586 = vpop.f32.mrf.mxu0
      %v1587 = vadd.f32 0.0, %v1586
      %v1588 = vpop.f32.mrf.mxu0
      %v1589 = vadd.f32 0.0, %v1588
      %1590 = vmatmul.bf16.gmra.mxu0 %v1562
      %v1591 = vpop.f32.mrf.mxu0
      %v1592 = vadd.f32 0.0, %v1591
      %v1593 = vpop.f32.mrf.mxu0
      %v1594 = vadd.f32 0.0, %v1593
      %1595 = vmatmul.bf16.gmra.mxu0 %v1565
      %v1596 = vpop.f32.mrf.mxu0
      %v1597 = vadd.f32 0.0, %v1596
      %v1598 = vpop.f32.mrf.mxu0
      %v1599 = vadd.f32 0.0, %v1598
      %1600 = vdwg.mxu0
      %v1601 = vadd.f32 %v1464, %v1577
      %v1602 = vadd.f32 %v1466, %v1579
      %v1603 = vadd.f32 %v1469, %v1582
      %v1604 = vadd.f32 %v1471, %v1584
      %v1605 = vadd.f32 %v1474, %v1587
      %v1606 = vadd.f32 %v1476, %v1589
      %v1607 = vadd.f32 %v1479, %v1592
      %v1608 = vadd.f32 %v1481, %v1594
      %v1609 = vadd.f32 %v1484, %v1597
      %v1610 = vadd.f32 %v1486, %v1599
      %v1611 = vmax.f32 %v1601, 0.0
      %v1612 = vmax.f32 %v1602, 0.0
      %v1613 = vmax.f32 %v1603, 0.0
      %v1614 = vmax.f32 %v1604, 0.0
      %v1615 = vmax.f32 %v1605, 0.0
      %v1616 = vmax.f32 %v1606, 0.0
      %v1617 = vmax.f32 %v1607, 0.0
      %v1618 = vmax.f32 %v1608, 0.0
      %v1619 = vmax.f32 %v1609, 0.0
      %v1620 = vmax.f32 %v1610, 0.0
      %v1621 = vsel %vm618, %v1611, 0.0
      %v1622 = vsel %vm619, %v1612, 0.0
      %v1623 = vsel %vm620, %v1613, 0.0
      %v1624 = vsel %vm621, %v1614, 0.0
      %v1625 = vsel %vm622, %v1615, 0.0
      %v1626 = vsel %vm623, %v1616, 0.0
      %v1627 = vsel %vm624, %v1617, 0.0
      %v1628 = vsel %vm625, %v1618, 0.0
      %v1629 = vsel %vm626, %v1619, 0.0
      %v1630 = vsel %vm627, %v1620, 0.0
      %1631 = vst.msk [vmem:[#allocation2 + $0xb] sm:$0xff] %vm1160, %v1621
      %1632 = vst.msk [vmem:[#allocation2 + $0x13] sm:$0xff] %vm1160, %v1622
      %1633 = vst.msk [vmem:[#allocation2 + $0x1b] sm:$0xff] %vm1160, %v1623
      %1634 = vst.msk [vmem:[#allocation2 + $0x23] sm:$0xff] %vm1160, %v1624
      %1635 = vst.msk [vmem:[#allocation2 + $0x2b] sm:$0xff] %vm1160, %v1625
      %1636 = vst.msk [vmem:[#allocation2 + $0x33] sm:$0xff] %vm1160, %v1626
      %1637 = vst.msk [vmem:[#allocation2 + $0x3b] sm:$0xff] %vm1160, %v1627
      %1638 = vst.msk [vmem:[#allocation2 + $0x43] sm:$0xff] %vm1160, %v1628
      %1639 = vst.msk [vmem:[#allocation2 + $0x4b] sm:$0xff] %vm1160, %v1629
      %1640 = vst.msk [vmem:[#allocation2 + $0x53] sm:$0xff] %vm1160, %v1630
      %1651 = vrot.lane.b32.xlu0 %v1621, 32
      %v1652 = vpop.permute.xlu0 %1651
      %1653 = vrot.lane.b32.xlu0 %v1622, 32
      %v1654 = vpop.permute.xlu0 %1653
      %1655 = vrot.lane.b32.xlu0 %v1623, 32
      %v1656 = vpop.permute.xlu0 %1655
      %1657 = vrot.lane.b32.xlu0 %v1624, 32
      %v1658 = vpop.permute.xlu0 %1657
      %1659 = vrot.lane.b32.xlu0 %v1625, 32
      %v1660 = vpop.permute.xlu0 %1659
      %1661 = vrot.lane.b32.xlu0 %v1626, 32
      %v1662 = vpop.permute.xlu0 %1661
      %1663 = vrot.lane.b32.xlu0 %v1627, 32
      %v1664 = vpop.permute.xlu0 %1663
      %1665 = vrot.lane.b32.xlu0 %v1628, 32
      %v1666 = vpop.permute.xlu0 %1665
      %1667 = vrot.lane.b32.xlu0 %v1629, 32
      %v1668 = vpop.permute.xlu0 %1667
      %1669 = vrot.lane.b32.xlu0 %v1630, 32
      %v1670 = vpop.permute.xlu0 %1669
      %1681 = vst.msk [vmem:[#allocation2 + $0xa] sm:$0xff] %vm1211, %v1652
      %1682 = vst.msk [vmem:[#allocation2 + $0x12] sm:$0xff] %vm1211, %v1654
      %1683 = vst.msk [vmem:[#allocation2 + $0x1a] sm:$0xff] %vm1211, %v1656
      %1684 = vst.msk [vmem:[#allocation2 + $0x22] sm:$0xff] %vm1211, %v1658
      %1685 = vst.msk [vmem:[#allocation2 + $0x2a] sm:$0xff] %vm1211, %v1660
      %1686 = vst.msk [vmem:[#allocation2 + $0x32] sm:$0xff] %vm1211, %v1662
      %1687 = vst.msk [vmem:[#allocation2 + $0x3a] sm:$0xff] %vm1211, %v1664
      %1688 = vst.msk [vmem:[#allocation2 + $0x42] sm:$0xff] %vm1211, %v1666
      %1689 = vst.msk [vmem:[#allocation2 + $0x4a] sm:$0xff] %vm1211, %v1668
      %1690 = vst.msk [vmem:[#allocation2 + $0x52] sm:$0xff] %vm1211, %v1670
      %1691 = vrot.lane.b32.xlu0 %v1621, 64
      %v1692 = vpop.permute.xlu0 %1691
      %1693 = vrot.lane.b32.xlu0 %v1622, 64
      %v1694 = vpop.permute.xlu0 %1693
      %1695 = vrot.lane.b32.xlu0 %v1623, 64
      %v1696 = vpop.permute.xlu0 %1695
      %1697 = vrot.lane.b32.xlu0 %v1624, 64
      %v1698 = vpop.permute.xlu0 %1697
      %1699 = vrot.lane.b32.xlu0 %v1625, 64
      %v1700 = vpop.permute.xlu0 %1699
      %1701 = vrot.lane.b32.xlu0 %v1626, 64
      %v1702 = vpop.permute.xlu0 %1701
      %1703 = vrot.lane.b32.xlu0 %v1627, 64
      %v1704 = vpop.permute.xlu0 %1703
      %1705 = vrot.lane.b32.xlu0 %v1628, 64
      %v1706 = vpop.permute.xlu0 %1705
      %1707 = vrot.lane.b32.xlu0 %v1629, 64
      %v1708 = vpop.permute.xlu0 %1707
      %1709 = vrot.lane.b32.xlu0 %v1630, 64
      %v1710 = vpop.permute.xlu0 %1709
      %1721 = vst.msk [vmem:[#allocation2 + $0x9] sm:$0xff] %vm1252, %v1692
      %1722 = vst.msk [vmem:[#allocation2 + $0x11] sm:$0xff] %vm1252, %v1694
      %1723 = vst.msk [vmem:[#allocation2 + $0x19] sm:$0xff] %vm1252, %v1696
      %1724 = vst.msk [vmem:[#allocation2 + $0x21] sm:$0xff] %vm1252, %v1698
      %1725 = vst.msk [vmem:[#allocation2 + $0x29] sm:$0xff] %vm1252, %v1700
      %1726 = vst.msk [vmem:[#allocation2 + $0x31] sm:$0xff] %vm1252, %v1702
      %1727 = vst.msk [vmem:[#allocation2 + $0x39] sm:$0xff] %vm1252, %v1704
      %1728 = vst.msk [vmem:[#allocation2 + $0x41] sm:$0xff] %vm1252, %v1706
      %1729 = vst.msk [vmem:[#allocation2 + $0x49] sm:$0xff] %vm1252, %v1708
      %1730 = vst.msk [vmem:[#allocation2 + $0x51] sm:$0xff] %vm1252, %v1710
      %v1731 = vld [vmem:[#allocation2] sm:$0xff]
      %v1732 = vld [vmem:[#allocation2 + $0x8] sm:$0xff]
      %v1733 = vld [vmem:[#allocation2 + $0x10] sm:$0xff]
      %v1734 = vld [vmem:[#allocation2 + $0x18] sm:$0xff]
      %v1735 = vld [vmem:[#allocation2 + $0x20] sm:$0xff]
      %v1736 = vld [vmem:[#allocation2 + $0x28] sm:$0xff]
      %v1737 = vld [vmem:[#allocation2 + $0x30] sm:$0xff]
      %v1738 = vld [vmem:[#allocation2 + $0x38] sm:$0xff]
      %v1739 = vld [vmem:[#allocation2 + $0x40] sm:$0xff]
      %v1740 = vld [vmem:[#allocation2 + $0x48] sm:$0xff]
      %v1741 = vpack.c.bf16 %v1732, %v1731
      %v1742 = vpack.c.bf16 %v1734, %v1733
      %v1743 = vpack.c.bf16 %v1736, %v1735
      %v1744 = vpack.c.bf16 %v1738, %v1737
      %v1745 = vpack.c.bf16 %v1740, %v1739
      %s1746 = scalar_lea.vmem %s2, 144
      %v1747 = vld [vmem:[%s1746] sm:$0xf]
      %v1748 = vld [vmem:[%s1746 + $0x4] sm:$0xf]
      %v1749 = vld [vmem:[%s1746 + $0x8] sm:$0xf]
      %v1750 = vld [vmem:[%s1746 + $0xc] sm:$0xf]
      %v1751 = vld [vmem:[%s1746 + $0x10] sm:$0xf]
      %v1752 = vld [vmem:[%s1746 + $0x14] sm:$0xf]
      %v1753 = vld [vmem:[%s1746 + $0x18] sm:$0xf]
      %v1754 = vld [vmem:[%s1746 + $0x1c] sm:$0xf]
      %v1755 = vld [vmem:[%s1746 + $0x20] sm:$0xf]
      %v1756 = vld [vmem:[%s1746 + $0x24] sm:$0xf]
      %v1757 = vld [vmem:[%s1746 + $0x28] sm:$0xf]
      %v1758 = vld [vmem:[%s1746 + $0x2c] sm:$0xf]
      %v1759 = vld [vmem:[#allocation2 + $0xa] sm:$0xff]
      %v1760 = vld [vmem:[#allocation2 + $0x12] sm:$0xff]
      %v1761 = vld [vmem:[#allocation2 + $0x1a] sm:$0xff]
      %v1762 = vld [vmem:[#allocation2 + $0x22] sm:$0xff]
      %v1763 = vld [vmem:[#allocation2 + $0x2a] sm:$0xff]
      %v1764 = vld [vmem:[#allocation2 + $0x32] sm:$0xff]
      %v1765 = vld [vmem:[#allocation2 + $0x3a] sm:$0xff]
      %v1766 = vld [vmem:[#allocation2 + $0x42] sm:$0xff]
      %v1767 = vld [vmem:[#allocation2 + $0x4a] sm:$0xff]
      %v1768 = vld [vmem:[#allocation2 + $0x52] sm:$0xff]
      %v1769 = vpack.c.bf16 %v1760, %v1759
      %v1770 = vpack.c.bf16 %v1762, %v1761
      %v1771 = vpack.c.bf16 %v1764, %v1763
      %v1772 = vpack.c.bf16 %v1766, %v1765
      %v1773 = vpack.c.bf16 %v1768, %v1767
      %s1774 = scalar_lea.vmem %s2, 192
      %v1775 = vld [vmem:[%s1774] sm:$0xf]
      %v1776 = vld [vmem:[%s1774 + $0x4] sm:$0xf]
      %v1777 = vld [vmem:[%s1774 + $0x8] sm:$0xf]
      %v1778 = vld [vmem:[%s1774 + $0xc] sm:$0xf]
      %v1779 = vld [vmem:[%s1774 + $0x10] sm:$0xf]
      %v1780 = vld [vmem:[%s1774 + $0x14] sm:$0xf]
      %v1781 = vld [vmem:[%s1774 + $0x18] sm:$0xf]
      %v1782 = vld [vmem:[%s1774 + $0x1c] sm:$0xf]
      %v1783 = vld [vmem:[%s1774 + $0x20] sm:$0xf]
      %v1784 = vld [vmem:[%s1774 + $0x24] sm:$0xf]
      %v1785 = vld [vmem:[%s1774 + $0x28] sm:$0xf]
      %v1786 = vld [vmem:[%s1774 + $0x2c] sm:$0xf]
      %v1799 = vunpack.c.l.b16 %v1775
      %v1800 = vunpack.c.l.b16 %v1776
      %v1801 = vunpack.c.l.b16 %v1777
      %v1802 = vunpack.c.l.b16 %v1778
      %v1803 = vunpack.c.l.b16 %v1779
      %v1804 = vunpack.c.l.b16 %v1780
      %v1805 = vunpack.c.l.b16 %v1781
      %v1806 = vunpack.c.l.b16 %v1782
      %v1807 = vunpack.c.l.b16 %v1783
      %v1808 = vunpack.c.l.b16 %v1784
      %v1809 = vunpack.c.l.b16 %v1785
      %v1810 = vunpack.c.l.b16 %v1786
      %v1811 = vpack.c.b16 %v1800, %v1799
      %v1812 = vpack.c.b16 %v1802, %v1801
      %v1813 = vpack.c.b16 %v1804, %v1803
      %v1814 = vpack.c.b16 %v1806, %v1805
      %v1815 = vpack.c.b16 %v1808, %v1807
      %v1816 = vpack.c.b16 %v1810, %v1809
      %v1824 = vsel %vm253, %v1769, 0
      %v1827 = vsel %vm253, %v1770, 0
      %v1830 = vsel %vm253, %v1771, 0
      %v1833 = vsel %vm253, %v1772, 0
      %v1836 = vsel %vm253, %v1773, 0
      %1838 = vmatpush.bf16.msra.mxu0 0
      %1839 = vmatpush.bf16.msra.mxu0 0
      %1840 = vmatpush.bf16.msra.mxu0 %v1816
      %1841 = vmatpush.bf16.msra.mxu0 %v1815
      %1842 = vmatpush.bf16.msra.mxu0 %v1814
      %1843 = vmatpush.bf16.msra.mxu0 %v1813
      %1844 = vmatpush.bf16.msra.mxu0 %v1812
      %1845 = vmatpush.bf16.msra.mxu0 %v1811
      %1846 = vmatmul.bf16.gmra.mxu0 %v1824
      %v1847 = vpop.f32.mrf.mxu0
      %v1848 = vadd.f32 0.0, %v1847
      %v1849 = vpop.f32.mrf.mxu0
      %v1850 = vadd.f32 0.0, %v1849
      %1851 = vmatmul.bf16.gmra.mxu0 %v1827
      %v1852 = vpop.f32.mrf.mxu0
      %v1853 = vadd.f32 0.0, %v1852
      %v1854 = vpop.f32.mrf.mxu0
      %v1855 = vadd.f32 0.0, %v1854
      %1856 = vmatmul.bf16.gmra.mxu0 %v1830
      %v1857 = vpop.f32.mrf.mxu0
      %v1858 = vadd.f32 0.0, %v1857
      %v1859 = vpop.f32.mrf.mxu0
      %v1860 = vadd.f32 0.0, %v1859
      %1861 = vmatmul.bf16.gmra.mxu0 %v1833
      %v1862 = vpop.f32.mrf.mxu0
      %v1863 = vadd.f32 0.0, %v1862
      %v1864 = vpop.f32.mrf.mxu0
      %v1865 = vadd.f32 0.0, %v1864
      %1866 = vmatmul.bf16.gmra.mxu0 %v1836
      %v1867 = vpop.f32.mrf.mxu0
      %v1868 = vadd.f32 0.0, %v1867
      %v1869 = vpop.f32.mrf.mxu0
      %v1870 = vadd.f32 0.0, %v1869
      %1871 = vdwg.mxu0
      %v1884 = vunpack.c.l.b16 %v1747
      %v1885 = vunpack.c.l.b16 %v1748
      %v1886 = vunpack.c.l.b16 %v1749
      %v1887 = vunpack.c.l.b16 %v1750
      %v1888 = vunpack.c.l.b16 %v1751
      %v1889 = vunpack.c.l.b16 %v1752
      %v1890 = vunpack.c.l.b16 %v1753
      %v1891 = vunpack.c.l.b16 %v1754
      %v1892 = vunpack.c.l.b16 %v1755
      %v1893 = vunpack.c.l.b16 %v1756
      %v1894 = vunpack.c.l.b16 %v1757
      %v1895 = vunpack.c.l.b16 %v1758
      %v1896 = vpack.c.b16 %v1885, %v1884
      %v1897 = vpack.c.b16 %v1887, %v1886
      %v1898 = vpack.c.b16 %v1889, %v1888
      %v1899 = vpack.c.b16 %v1891, %v1890
      %v1900 = vpack.c.b16 %v1893, %v1892
      %v1901 = vpack.c.b16 %v1895, %v1894
      %v1909 = vsel %vm253, %v1741, 0
      %v1912 = vsel %vm253, %v1742, 0
      %v1915 = vsel %vm253, %v1743, 0
      %v1918 = vsel %vm253, %v1744, 0
      %v1921 = vsel %vm253, %v1745, 0
      %1923 = vmatpush.bf16.msra.mxu0 0
      %1924 = vmatpush.bf16.msra.mxu0 0
      %1925 = vmatpush.bf16.msra.mxu0 %v1901
      %1926 = vmatpush.bf16.msra.mxu0 %v1900
      %1927 = vmatpush.bf16.msra.mxu0 %v1899
      %1928 = vmatpush.bf16.msra.mxu0 %v1898
      %1929 = vmatpush.bf16.msra.mxu0 %v1897
      %1930 = vmatpush.bf16.msra.mxu0 %v1896
      %1931 = vmatmul.bf16.gmra.mxu0 %v1909
      %v1932 = vpop.f32.mrf.mxu0
      %v1933 = vadd.f32 %v1848, %v1932
      %v1934 = vpop.f32.mrf.mxu0
      %v1935 = vadd.f32 %v1850, %v1934
      %1936 = vmatmul.bf16.gmra.mxu0 %v1912
      %v1937 = vpop.f32.mrf.mxu0
      %v1938 = vadd.f32 %v1853, %v1937
      %v1939 = vpop.f32.mrf.mxu0
      %v1940 = vadd.f32 %v1855, %v1939
      %1941 = vmatmul.bf16.gmra.mxu0 %v1915
      %v1942 = vpop.f32.mrf.mxu0
      %v1943 = vadd.f32 %v1858, %v1942
      %v1944 = vpop.f32.mrf.mxu0
      %v1945 = vadd.f32 %v1860, %v1944
      %1946 = vmatmul.bf16.gmra.mxu0 %v1918
      %v1947 = vpop.f32.mrf.mxu0
      %v1948 = vadd.f32 %v1863, %v1947
      %v1949 = vpop.f32.mrf.mxu0
      %v1950 = vadd.f32 %v1865, %v1949
      %1951 = vmatmul.bf16.gmra.mxu0 %v1921
      %v1952 = vpop.f32.mrf.mxu0
      %v1953 = vadd.f32 %v1868, %v1952
      %v1954 = vpop.f32.mrf.mxu0
      %v1955 = vadd.f32 %v1870, %v1954
      %1956 = vdwg.mxu0
      %v1957 = vld [vmem:[#allocation2 + $0x14] sm:$0xff]
      %v1958 = vld [vmem:[#allocation2 + $0x1c] sm:$0xff]
      %v1959 = vld [vmem:[#allocation2 + $0x24] sm:$0xff]
      %v1960 = vld [vmem:[#allocation2 + $0x2c] sm:$0xff]
      %v1961 = vld [vmem:[#allocation2 + $0x34] sm:$0xff]
      %v1962 = vld [vmem:[#allocation2 + $0x3c] sm:$0xff]
      %v1963 = vld [vmem:[#allocation2 + $0x44] sm:$0xff]
      %v1964 = vld [vmem:[#allocation2 + $0x4c] sm:$0xff]
      %v1965 = vld [vmem:[#allocation2 + $0x54] sm:$0xff]
      %v1966 = vld [vmem:[#allocation2 + $0x5c] sm:$0xff]
      %v1967 = vpack.c.bf16 %v1958, %v1957
      %v1968 = vpack.c.bf16 %v1960, %v1959
      %v1969 = vpack.c.bf16 %v1962, %v1961
      %v1970 = vpack.c.bf16 %v1964, %v1963
      %v1971 = vpack.c.bf16 %v1966, %v1965
      %s1972 = scalar_lea.vmem %s2, 240
      %v1973 = vld [vmem:[%s1972] sm:$0xf]
      %v1974 = vld [vmem:[%s1972 + $0x4] sm:$0xf]
      %v1975 = vld [vmem:[%s1972 + $0x8] sm:$0xf]
      %v1976 = vld [vmem:[%s1972 + $0xc] sm:$0xf]
      %v1977 = vld [vmem:[%s1972 + $0x10] sm:$0xf]
      %v1978 = vld [vmem:[%s1972 + $0x14] sm:$0xf]
      %v1979 = vld [vmem:[%s1972 + $0x18] sm:$0xf]
      %v1980 = vld [vmem:[%s1972 + $0x1c] sm:$0xf]
      %v1981 = vld [vmem:[%s1972 + $0x20] sm:$0xf]
      %v1982 = vld [vmem:[%s1972 + $0x24] sm:$0xf]
      %v1983 = vld [vmem:[%s1972 + $0x28] sm:$0xf]
      %v1984 = vld [vmem:[%s1972 + $0x2c] sm:$0xf]
      %v1997 = vunpack.c.l.b16 %v1973
      %v1998 = vunpack.c.l.b16 %v1974
      %v1999 = vunpack.c.l.b16 %v1975
      %v2000 = vunpack.c.l.b16 %v1976
      %v2001 = vunpack.c.l.b16 %v1977
      %v2002 = vunpack.c.l.b16 %v1978
      %v2003 = vunpack.c.l.b16 %v1979
      %v2004 = vunpack.c.l.b16 %v1980
      %v2005 = vunpack.c.l.b16 %v1981
      %v2006 = vunpack.c.l.b16 %v1982
      %v2007 = vunpack.c.l.b16 %v1983
      %v2008 = vunpack.c.l.b16 %v1984
      %v2009 = vpack.c.b16 %v1998, %v1997
      %v2010 = vpack.c.b16 %v2000, %v1999
      %v2011 = vpack.c.b16 %v2002, %v2001
      %v2012 = vpack.c.b16 %v2004, %v2003
      %v2013 = vpack.c.b16 %v2006, %v2005
      %v2014 = vpack.c.b16 %v2008, %v2007
      %v2022 = vsel %vm253, %v1967, 0
      %v2025 = vsel %vm253, %v1968, 0
      %v2028 = vsel %vm253, %v1969, 0
      %v2031 = vsel %vm253, %v1970, 0
      %v2034 = vsel %vm253, %v1971, 0
      %2036 = vmatpush.bf16.msra.mxu0 0
      %2037 = vmatpush.bf16.msra.mxu0 0
      %2038 = vmatpush.bf16.msra.mxu0 %v2014
      %2039 = vmatpush.bf16.msra.mxu0 %v2013
      %2040 = vmatpush.bf16.msra.mxu0 %v2012
      %2041 = vmatpush.bf16.msra.mxu0 %v2011
      %2042 = vmatpush.bf16.msra.mxu0 %v2010
      %2043 = vmatpush.bf16.msra.mxu0 %v2009
      %2044 = vmatmul.bf16.gmra.mxu0 %v2022
      %v2045 = vpop.f32.mrf.mxu0
      %v2046 = vadd.f32 0.0, %v2045
      %v2047 = vpop.f32.mrf.mxu0
      %v2048 = vadd.f32 0.0, %v2047
      %2049 = vmatmul.bf16.gmra.mxu0 %v2025
      %v2050 = vpop.f32.mrf.mxu0
      %v2051 = vadd.f32 0.0, %v2050
      %v2052 = vpop.f32.mrf.mxu0
      %v2053 = vadd.f32 0.0, %v2052
      %2054 = vmatmul.bf16.gmra.mxu0 %v2028
      %v2055 = vpop.f32.mrf.mxu0
      %v2056 = vadd.f32 0.0, %v2055
      %v2057 = vpop.f32.mrf.mxu0
      %v2058 = vadd.f32 0.0, %v2057
      %2059 = vmatmul.bf16.gmra.mxu0 %v2031
      %v2060 = vpop.f32.mrf.mxu0
      %v2061 = vadd.f32 0.0, %v2060
      %v2062 = vpop.f32.mrf.mxu0
      %v2063 = vadd.f32 0.0, %v2062
      %2064 = vmatmul.bf16.gmra.mxu0 %v2034
      %v2065 = vpop.f32.mrf.mxu0
      %v2066 = vadd.f32 0.0, %v2065
      %v2067 = vpop.f32.mrf.mxu0
      %v2068 = vadd.f32 0.0, %v2067
      %2069 = vdwg.mxu0
      %v2070 = vadd.f32 %v1933, %v2046
      %v2071 = vadd.f32 %v1935, %v2048
      %v2072 = vadd.f32 %v1938, %v2051
      %v2073 = vadd.f32 %v1940, %v2053
      %v2074 = vadd.f32 %v1943, %v2056
      %v2075 = vadd.f32 %v1945, %v2058
      %v2076 = vadd.f32 %v1948, %v2061
      %v2077 = vadd.f32 %v1950, %v2063
      %v2078 = vadd.f32 %v1953, %v2066
      %v2079 = vadd.f32 %v1955, %v2068
      %v2080 = vmul.f32 %v2070, 0.1
      %v2081 = vmul.f32 %v2071, 0.1
      %v2082 = vmul.f32 %v2072, 0.1
      %v2083 = vmul.f32 %v2073, 0.1
      %v2084 = vmul.f32 %v2074, 0.1
      %v2085 = vmul.f32 %v2075, 0.1
      %v2086 = vmul.f32 %v2076, 0.1
      %v2087 = vmul.f32 %v2077, 0.1
      %v2088 = vmul.f32 %v2078, 0.1
      %v2089 = vmul.f32 %v2079, 0.1
      %v2090 = vadd.f32 %v1140, %v2080
      %v2091 = vadd.f32 %v1141, %v2081
      %v2092 = vadd.f32 %v1142, %v2082
      %v2093 = vadd.f32 %v1143, %v2083
      %v2094 = vadd.f32 %v1144, %v2084
      %v2095 = vadd.f32 %v1145, %v2085
      %v2096 = vadd.f32 %v1146, %v2086
      %v2097 = vadd.f32 %v1147, %v2087
      %v2098 = vadd.f32 %v1148, %v2088
      %v2099 = vadd.f32 %v1149, %v2089
      %v2100 = vsel %vm618, %v2090, 0.0
      %v2101 = vsel %vm619, %v2091, 0.0
      %v2102 = vsel %vm620, %v2092, 0.0
      %v2103 = vsel %vm621, %v2093, 0.0
      %v2104 = vsel %vm622, %v2094, 0.0
      %v2105 = vsel %vm623, %v2095, 0.0
      %v2106 = vsel %vm624, %v2096, 0.0
      %v2107 = vsel %vm625, %v2097, 0.0
      %v2108 = vsel %vm626, %v2098, 0.0
      %v2109 = vsel %vm627, %v2099, 0.0
      %2110 = vst.msk [vmem:[#allocation2 + $0xb] sm:$0xff] %vm1160, %v2100
      %2111 = vst.msk [vmem:[#allocation2 + $0x13] sm:$0xff] %vm1160, %v2101
      %2112 = vst.msk [vmem:[#allocation2 + $0x1b] sm:$0xff] %vm1160, %v2102
      %2113 = vst.msk [vmem:[#allocation2 + $0x23] sm:$0xff] %vm1160, %v2103
      %2114 = vst.msk [vmem:[#allocation2 + $0x2b] sm:$0xff] %vm1160, %v2104
      %2115 = vst.msk [vmem:[#allocation2 + $0x33] sm:$0xff] %vm1160, %v2105
      %2116 = vst.msk [vmem:[#allocation2 + $0x3b] sm:$0xff] %vm1160, %v2106
      %2117 = vst.msk [vmem:[#allocation2 + $0x43] sm:$0xff] %vm1160, %v2107
      %2118 = vst.msk [vmem:[#allocation2 + $0x4b] sm:$0xff] %vm1160, %v2108
      %2119 = vst.msk [vmem:[#allocation2 + $0x53] sm:$0xff] %vm1160, %v2109
      %2130 = vrot.lane.b32.xlu0 %v2100, 32
      %v2131 = vpop.permute.xlu0 %2130
      %2132 = vrot.lane.b32.xlu0 %v2101, 32
      %v2133 = vpop.permute.xlu0 %2132
      %2134 = vrot.lane.b32.xlu0 %v2102, 32
      %v2135 = vpop.permute.xlu0 %2134
      %2136 = vrot.lane.b32.xlu0 %v2103, 32
      %v2137 = vpop.permute.xlu0 %2136
      %2138 = vrot.lane.b32.xlu0 %v2104, 32
      %v2139 = vpop.permute.xlu0 %2138
      %2140 = vrot.lane.b32.xlu0 %v2105, 32
      %v2141 = vpop.permute.xlu0 %2140
      %2142 = vrot.lane.b32.xlu0 %v2106, 32
      %v2143 = vpop.permute.xlu0 %2142
      %2144 = vrot.lane.b32.xlu0 %v2107, 32
      %v2145 = vpop.permute.xlu0 %2144
      %2146 = vrot.lane.b32.xlu0 %v2108, 32
      %v2147 = vpop.permute.xlu0 %2146
      %2148 = vrot.lane.b32.xlu0 %v2109, 32
      %v2149 = vpop.permute.xlu0 %2148
      %2160 = vst.msk [vmem:[#allocation2 + $0xa] sm:$0xff] %vm1211, %v2131
      %2161 = vst.msk [vmem:[#allocation2 + $0x12] sm:$0xff] %vm1211, %v2133
      %2162 = vst.msk [vmem:[#allocation2 + $0x1a] sm:$0xff] %vm1211, %v2135
      %2163 = vst.msk [vmem:[#allocation2 + $0x22] sm:$0xff] %vm1211, %v2137
      %2164 = vst.msk [vmem:[#allocation2 + $0x2a] sm:$0xff] %vm1211, %v2139
      %2165 = vst.msk [vmem:[#allocation2 + $0x32] sm:$0xff] %vm1211, %v2141
      %2166 = vst.msk [vmem:[#allocation2 + $0x3a] sm:$0xff] %vm1211, %v2143
      %2167 = vst.msk [vmem:[#allocation2 + $0x42] sm:$0xff] %vm1211, %v2145
      %2168 = vst.msk [vmem:[#allocation2 + $0x4a] sm:$0xff] %vm1211, %v2147
      %2169 = vst.msk [vmem:[#allocation2 + $0x52] sm:$0xff] %vm1211, %v2149
      %2170 = vrot.lane.b32.xlu0 %v2100, 64
      %v2171 = vpop.permute.xlu0 %2170
      %2172 = vrot.lane.b32.xlu0 %v2101, 64
      %v2173 = vpop.permute.xlu0 %2172
      %2174 = vrot.lane.b32.xlu0 %v2102, 64
      %v2175 = vpop.permute.xlu0 %2174
      %2176 = vrot.lane.b32.xlu0 %v2103, 64
      %v2177 = vpop.permute.xlu0 %2176
      %2178 = vrot.lane.b32.xlu0 %v2104, 64
      %v2179 = vpop.permute.xlu0 %2178
      %2180 = vrot.lane.b32.xlu0 %v2105, 64
      %v2181 = vpop.permute.xlu0 %2180
      %2182 = vrot.lane.b32.xlu0 %v2106, 64
      %v2183 = vpop.permute.xlu0 %2182
      %2184 = vrot.lane.b32.xlu0 %v2107, 64
      %v2185 = vpop.permute.xlu0 %2184
      %2186 = vrot.lane.b32.xlu0 %v2108, 64
      %v2187 = vpop.permute.xlu0 %2186
      %2188 = vrot.lane.b32.xlu0 %v2109, 64
      %v2189 = vpop.permute.xlu0 %2188
      %2200 = vst.msk [vmem:[#allocation2 + $0x9] sm:$0xff] %vm1252, %v2171
      %2201 = vst.msk [vmem:[#allocation2 + $0x11] sm:$0xff] %vm1252, %v2173
      %2202 = vst.msk [vmem:[#allocation2 + $0x19] sm:$0xff] %vm1252, %v2175
      %2203 = vst.msk [vmem:[#allocation2 + $0x21] sm:$0xff] %vm1252, %v2177
      %2204 = vst.msk [vmem:[#allocation2 + $0x29] sm:$0xff] %vm1252, %v2179
      %2205 = vst.msk [vmem:[#allocation2 + $0x31] sm:$0xff] %vm1252, %v2181
      %2206 = vst.msk [vmem:[#allocation2 + $0x39] sm:$0xff] %vm1252, %v2183
      %2207 = vst.msk [vmem:[#allocation2 + $0x41] sm:$0xff] %vm1252, %v2185
      %2208 = vst.msk [vmem:[#allocation2 + $0x49] sm:$0xff] %vm1252, %v2187
      %2209 = vst.msk [vmem:[#allocation2 + $0x51] sm:$0xff] %vm1252, %v2189
      %v2210 = vld [vmem:[#allocation2] sm:$0xff]
      %v2211 = vld [vmem:[#allocation2 + $0x8] sm:$0xff]
      %v2212 = vld [vmem:[#allocation2 + $0x10] sm:$0xff]
      %v2213 = vld [vmem:[#allocation2 + $0x18] sm:$0xff]
      %v2214 = vld [vmem:[#allocation2 + $0x20] sm:$0xff]
      %v2215 = vld [vmem:[#allocation2 + $0x28] sm:$0xff]
      %v2216 = vld [vmem:[#allocation2 + $0x30] sm:$0xff]
      %v2217 = vld [vmem:[#allocation2 + $0x38] sm:$0xff]
      %v2218 = vld [vmem:[#allocation2 + $0x40] sm:$0xff]
      %v2219 = vld [vmem:[#allocation2 + $0x48] sm:$0xff]
      %v2220 = vpack.c.bf16 %v2211, %v2210
      %v2221 = vpack.c.bf16 %v2213, %v2212
      %v2222 = vpack.c.bf16 %v2215, %v2214
      %v2223 = vpack.c.bf16 %v2217, %v2216
      %v2224 = vpack.c.bf16 %v2219, %v2218
      %s2225 = scalar_lea.vmem %s2, 288
      %v2226 = vld [vmem:[%s2225] sm:$0xf]
      %v2227 = vld [vmem:[%s2225 + $0x4] sm:$0xf]
      %v2228 = vld [vmem:[%s2225 + $0x8] sm:$0xf]
      %v2229 = vld [vmem:[%s2225 + $0xc] sm:$0xf]
      %v2230 = vld [vmem:[%s2225 + $0x10] sm:$0xf]
      %v2231 = vld [vmem:[%s2225 + $0x14] sm:$0xf]
      %v2232 = vld [vmem:[%s2225 + $0x18] sm:$0xf]
      %v2233 = vld [vmem:[%s2225 + $0x1c] sm:$0xf]
      %v2234 = vld [vmem:[%s2225 + $0x20] sm:$0xf]
      %v2235 = vld [vmem:[%s2225 + $0x24] sm:$0xf]
      %v2236 = vld [vmem:[%s2225 + $0x28] sm:$0xf]
      %v2237 = vld [vmem:[%s2225 + $0x2c] sm:$0xf]
      %v2238 = vld [vmem:[#allocation2 + $0xa] sm:$0xff]
      %v2239 = vld [vmem:[#allocation2 + $0x12] sm:$0xff]
      %v2240 = vld [vmem:[#allocation2 + $0x1a] sm:$0xff]
      %v2241 = vld [vmem:[#allocation2 + $0x22] sm:$0xff]
      %v2242 = vld [vmem:[#allocation2 + $0x2a] sm:$0xff]
      %v2243 = vld [vmem:[#allocation2 + $0x32] sm:$0xff]
      %v2244 = vld [vmem:[#allocation2 + $0x3a] sm:$0xff]
      %v2245 = vld [vmem:[#allocation2 + $0x42] sm:$0xff]
      %v2246 = vld [vmem:[#allocation2 + $0x4a] sm:$0xff]
      %v2247 = vld [vmem:[#allocation2 + $0x52] sm:$0xff]
      %v2248 = vpack.c.bf16 %v2239, %v2238
      %v2249 = vpack.c.bf16 %v2241, %v2240
      %v2250 = vpack.c.bf16 %v2243, %v2242
      %v2251 = vpack.c.bf16 %v2245, %v2244
      %v2252 = vpack.c.bf16 %v2247, %v2246
      %s2253 = scalar_lea.vmem %s2, 336
      %v2254 = vld [vmem:[%s2253] sm:$0xf]
      %v2255 = vld [vmem:[%s2253 + $0x4] sm:$0xf]
      %v2256 = vld [vmem:[%s2253 + $0x8] sm:$0xf]
      %v2257 = vld [vmem:[%s2253 + $0xc] sm:$0xf]
      %v2258 = vld [vmem:[%s2253 + $0x10] sm:$0xf]
      %v2259 = vld [vmem:[%s2253 + $0x14] sm:$0xf]
      %v2260 = vld [vmem:[%s2253 + $0x18] sm:$0xf]
      %v2261 = vld [vmem:[%s2253 + $0x1c] sm:$0xf]
      %v2262 = vld [vmem:[%s2253 + $0x20] sm:$0xf]
      %v2263 = vld [vmem:[%s2253 + $0x24] sm:$0xf]
      %v2264 = vld [vmem:[%s2253 + $0x28] sm:$0xf]
      %v2265 = vld [vmem:[%s2253 + $0x2c] sm:$0xf]
      %v2278 = vunpack.c.l.b16 %v2254
      %v2279 = vunpack.c.l.b16 %v2255
      %v2280 = vunpack.c.l.b16 %v2256
      %v2281 = vunpack.c.l.b16 %v2257
      %v2282 = vunpack.c.l.b16 %v2258
      %v2283 = vunpack.c.l.b16 %v2259
      %v2284 = vunpack.c.l.b16 %v2260
      %v2285 = vunpack.c.l.b16 %v2261
      %v2286 = vunpack.c.l.b16 %v2262
      %v2287 = vunpack.c.l.b16 %v2263
      %v2288 = vunpack.c.l.b16 %v2264
      %v2289 = vunpack.c.l.b16 %v2265
      %v2290 = vpack.c.b16 %v2279, %v2278
      %v2291 = vpack.c.b16 %v2281, %v2280
      %v2292 = vpack.c.b16 %v2283, %v2282
      %v2293 = vpack.c.b16 %v2285, %v2284
      %v2294 = vpack.c.b16 %v2287, %v2286
      %v2295 = vpack.c.b16 %v2289, %v2288
      %v2303 = vsel %vm253, %v2248, 0
      %v2306 = vsel %vm253, %v2249, 0
      %v2309 = vsel %vm253, %v2250, 0
      %v2312 = vsel %vm253, %v2251, 0
      %v2315 = vsel %vm253, %v2252, 0
      %2317 = vmatpush.bf16.msra.mxu0 0
      %2318 = vmatpush.bf16.msra.mxu0 0
      %2319 = vmatpush.bf16.msra.mxu0 %v2295
      %2320 = vmatpush.bf16.msra.mxu0 %v2294
      %2321 = vmatpush.bf16.msra.mxu0 %v2293
      %2322 = vmatpush.bf16.msra.mxu0 %v2292
      %2323 = vmatpush.bf16.msra.mxu0 %v2291
      %2324 = vmatpush.bf16.msra.mxu0 %v2290
      %2325 = vmatmul.bf16.gmra.mxu0 %v2303
      %v2326 = vpop.f32.mrf.mxu0
      %v2327 = vadd.f32 0.0, %v2326
      %v2328 = vpop.f32.mrf.mxu0
      %v2329 = vadd.f32 0.0, %v2328
      %2330 = vmatmul.bf16.gmra.mxu0 %v2306
      %v2331 = vpop.f32.mrf.mxu0
      %v2332 = vadd.f32 0.0, %v2331
      %v2333 = vpop.f32.mrf.mxu0
      %v2334 = vadd.f32 0.0, %v2333
      %2335 = vmatmul.bf16.gmra.mxu0 %v2309
      %v2336 = vpop.f32.mrf.mxu0
      %v2337 = vadd.f32 0.0, %v2336
      %v2338 = vpop.f32.mrf.mxu0
      %v2339 = vadd.f32 0.0, %v2338
      %2340 = vmatmul.bf16.gmra.mxu0 %v2312
      %v2341 = vpop.f32.mrf.mxu0
      %v2342 = vadd.f32 0.0, %v2341
      %v2343 = vpop.f32.mrf.mxu0
      %v2344 = vadd.f32 0.0, %v2343
      %2345 = vmatmul.bf16.gmra.mxu0 %v2315
      %v2346 = vpop.f32.mrf.mxu0
      %v2347 = vadd.f32 0.0, %v2346
      %v2348 = vpop.f32.mrf.mxu0
      %v2349 = vadd.f32 0.0, %v2348
      %2350 = vdwg.mxu0
      %v2363 = vunpack.c.l.b16 %v2226
      %v2364 = vunpack.c.l.b16 %v2227
      %v2365 = vunpack.c.l.b16 %v2228
      %v2366 = vunpack.c.l.b16 %v2229
      %v2367 = vunpack.c.l.b16 %v2230
      %v2368 = vunpack.c.l.b16 %v2231
      %v2369 = vunpack.c.l.b16 %v2232
      %v2370 = vunpack.c.l.b16 %v2233
      %v2371 = vunpack.c.l.b16 %v2234
      %v2372 = vunpack.c.l.b16 %v2235
      %v2373 = vunpack.c.l.b16 %v2236
      %v2374 = vunpack.c.l.b16 %v2237
      %v2375 = vpack.c.b16 %v2364, %v2363
      %v2376 = vpack.c.b16 %v2366, %v2365
      %v2377 = vpack.c.b16 %v2368, %v2367
      %v2378 = vpack.c.b16 %v2370, %v2369
      %v2379 = vpack.c.b16 %v2372, %v2371
      %v2380 = vpack.c.b16 %v2374, %v2373
      %v2388 = vsel %vm253, %v2220, 0
      %v2391 = vsel %vm253, %v2221, 0
      %v2394 = vsel %vm253, %v2222, 0
      %v2397 = vsel %vm253, %v2223, 0
      %v2400 = vsel %vm253, %v2224, 0
      %2402 = vmatpush.bf16.msra.mxu0 0
      %2403 = vmatpush.bf16.msra.mxu0 0
      %2404 = vmatpush.bf16.msra.mxu0 %v2380
      %2405 = vmatpush.bf16.msra.mxu0 %v2379
      %2406 = vmatpush.bf16.msra.mxu0 %v2378
      %2407 = vmatpush.bf16.msra.mxu0 %v2377
      %2408 = vmatpush.bf16.msra.mxu0 %v2376
      %2409 = vmatpush.bf16.msra.mxu0 %v2375
      %2410 = vmatmul.bf16.gmra.mxu0 %v2388
      %v2411 = vpop.f32.mrf.mxu0
      %v2412 = vadd.f32 %v2327, %v2411
      %v2413 = vpop.f32.mrf.mxu0
      %v2414 = vadd.f32 %v2329, %v2413
      %2415 = vmatmul.bf16.gmra.mxu0 %v2391
      %v2416 = vpop.f32.mrf.mxu0
      %v2417 = vadd.f32 %v2332, %v2416
      %v2418 = vpop.f32.mrf.mxu0
      %v2419 = vadd.f32 %v2334, %v2418
      %2420 = vmatmul.bf16.gmra.mxu0 %v2394
      %v2421 = vpop.f32.mrf.mxu0
      %v2422 = vadd.f32 %v2337, %v2421
      %v2423 = vpop.f32.mrf.mxu0
      %v2424 = vadd.f32 %v2339, %v2423
      %2425 = vmatmul.bf16.gmra.mxu0 %v2397
      %v2426 = vpop.f32.mrf.mxu0
      %v2427 = vadd.f32 %v2342, %v2426
      %v2428 = vpop.f32.mrf.mxu0
      %v2429 = vadd.f32 %v2344, %v2428
      %2430 = vmatmul.bf16.gmra.mxu0 %v2400
      %v2431 = vpop.f32.mrf.mxu0
      %v2432 = vadd.f32 %v2347, %v2431
      %v2433 = vpop.f32.mrf.mxu0
      %v2434 = vadd.f32 %v2349, %v2433
      %2435 = vdwg.mxu0
      %v2436 = vld [vmem:[#allocation2 + $0x14] sm:$0xff]
      %v2437 = vld [vmem:[#allocation2 + $0x1c] sm:$0xff]
      %v2438 = vld [vmem:[#allocation2 + $0x24] sm:$0xff]
      %v2439 = vld [vmem:[#allocation2 + $0x2c] sm:$0xff]
      %v2440 = vld [vmem:[#allocation2 + $0x34] sm:$0xff]
      %v2441 = vld [vmem:[#allocation2 + $0x3c] sm:$0xff]
      %v2442 = vld [vmem:[#allocation2 + $0x44] sm:$0xff]
      %v2443 = vld [vmem:[#allocation2 + $0x4c] sm:$0xff]
      %v2444 = vld [vmem:[#allocation2 + $0x54] sm:$0xff]
      %v2445 = vld [vmem:[#allocation2 + $0x5c] sm:$0xff]
      %v2446 = vpack.c.bf16 %v2437, %v2436
      %v2447 = vpack.c.bf16 %v2439, %v2438
      %v2448 = vpack.c.bf16 %v2441, %v2440
      %v2449 = vpack.c.bf16 %v2443, %v2442
      %v2450 = vpack.c.bf16 %v2445, %v2444
      %s2451 = scalar_lea.vmem %s2, 384
      %v2452 = vld [vmem:[%s2451] sm:$0xf]
      %v2453 = vld [vmem:[%s2451 + $0x4] sm:$0xf]
      %v2454 = vld [vmem:[%s2451 + $0x8] sm:$0xf]
      %v2455 = vld [vmem:[%s2451 + $0xc] sm:$0xf]
      %v2456 = vld [vmem:[%s2451 + $0x10] sm:$0xf]
      %v2457 = vld [vmem:[%s2451 + $0x14] sm:$0xf]
      %v2458 = vld [vmem:[%s2451 + $0x18] sm:$0xf]
      %v2459 = vld [vmem:[%s2451 + $0x1c] sm:$0xf]
      %v2460 = vld [vmem:[%s2451 + $0x20] sm:$0xf]
      %v2461 = vld [vmem:[%s2451 + $0x24] sm:$0xf]
      %v2462 = vld [vmem:[%s2451 + $0x28] sm:$0xf]
      %v2463 = vld [vmem:[%s2451 + $0x2c] sm:$0xf]
      %v2476 = vunpack.c.l.b16 %v2452
      %v2477 = vunpack.c.l.b16 %v2453
      %v2478 = vunpack.c.l.b16 %v2454
      %v2479 = vunpack.c.l.b16 %v2455
      %v2480 = vunpack.c.l.b16 %v2456
      %v2481 = vunpack.c.l.b16 %v2457
      %v2482 = vunpack.c.l.b16 %v2458
      %v2483 = vunpack.c.l.b16 %v2459
      %v2484 = vunpack.c.l.b16 %v2460
      %v2485 = vunpack.c.l.b16 %v2461
      %v2486 = vunpack.c.l.b16 %v2462
      %v2487 = vunpack.c.l.b16 %v2463
      %v2488 = vpack.c.b16 %v2477, %v2476
      %v2489 = vpack.c.b16 %v2479, %v2478
      %v2490 = vpack.c.b16 %v2481, %v2480
      %v2491 = vpack.c.b16 %v2483, %v2482
      %v2492 = vpack.c.b16 %v2485, %v2484
      %v2493 = vpack.c.b16 %v2487, %v2486
      %v2501 = vsel %vm253, %v2446, 0
      %v2504 = vsel %vm253, %v2447, 0
      %v2507 = vsel %vm253, %v2448, 0
      %v2510 = vsel %vm253, %v2449, 0
      %v2513 = vsel %vm253, %v2450, 0
      %2515 = vmatpush.bf16.msra.mxu0 0
      %2516 = vmatpush.bf16.msra.mxu0 0
      %2517 = vmatpush.bf16.msra.mxu0 %v2493
      %2518 = vmatpush.bf16.msra.mxu0 %v2492
      %2519 = vmatpush.bf16.msra.mxu0 %v2491
      %2520 = vmatpush.bf16.msra.mxu0 %v2490
      %2521 = vmatpush.bf16.msra.mxu0 %v2489
      %2522 = vmatpush.bf16.msra.mxu0 %v2488
      %2523 = vmatmul.bf16.gmra.mxu0 %v2501
      %v2524 = vpop.f32.mrf.mxu0
      %v2525 = vadd.f32 0.0, %v2524
      %v2526 = vpop.f32.mrf.mxu0
      %v2527 = vadd.f32 0.0, %v2526
      %2528 = vmatmul.bf16.gmra.mxu0 %v2504
      %v2529 = vpop.f32.mrf.mxu0
      %v2530 = vadd.f32 0.0, %v2529
      %v2531 = vpop.f32.mrf.mxu0
      %v2532 = vadd.f32 0.0, %v2531
      %2533 = vmatmul.bf16.gmra.mxu0 %v2507
      %v2534 = vpop.f32.mrf.mxu0
      %v2535 = vadd.f32 0.0, %v2534
      %v2536 = vpop.f32.mrf.mxu0
      %v2537 = vadd.f32 0.0, %v2536
      %2538 = vmatmul.bf16.gmra.mxu0 %v2510
      %v2539 = vpop.f32.mrf.mxu0
      %v2540 = vadd.f32 0.0, %v2539
      %v2541 = vpop.f32.mrf.mxu0
      %v2542 = vadd.f32 0.0, %v2541
      %2543 = vmatmul.bf16.gmra.mxu0 %v2513
      %v2544 = vpop.f32.mrf.mxu0
      %v2545 = vadd.f32 0.0, %v2544
      %v2546 = vpop.f32.mrf.mxu0
      %v2547 = vadd.f32 0.0, %v2546
      %2548 = vdwg.mxu0
      %v2549 = vadd.f32 %v2412, %v2525
      %v2550 = vadd.f32 %v2414, %v2527
      %v2551 = vadd.f32 %v2417, %v2530
      %v2552 = vadd.f32 %v2419, %v2532
      %v2553 = vadd.f32 %v2422, %v2535
      %v2554 = vadd.f32 %v2424, %v2537
      %v2555 = vadd.f32 %v2427, %v2540
      %v2556 = vadd.f32 %v2429, %v2542
      %v2557 = vadd.f32 %v2432, %v2545
      %v2558 = vadd.f32 %v2434, %v2547
      %v2559 = vmax.f32 %v2549, 0.0
      %v2560 = vmax.f32 %v2550, 0.0
      %v2561 = vmax.f32 %v2551, 0.0
      %v2562 = vmax.f32 %v2552, 0.0
      %v2563 = vmax.f32 %v2553, 0.0
      %v2564 = vmax.f32 %v2554, 0.0
      %v2565 = vmax.f32 %v2555, 0.0
      %v2566 = vmax.f32 %v2556, 0.0
      %v2567 = vmax.f32 %v2557, 0.0
      %v2568 = vmax.f32 %v2558, 0.0
      %v2569 = vsel %vm618, %v2559, 0.0
      %v2570 = vsel %vm619, %v2560, 0.0
      %v2571 = vsel %vm620, %v2561, 0.0
      %v2572 = vsel %vm621, %v2562, 0.0
      %v2573 = vsel %vm622, %v2563, 0.0
      %v2574 = vsel %vm623, %v2564, 0.0
      %v2575 = vsel %vm624, %v2565, 0.0
      %v2576 = vsel %vm625, %v2566, 0.0
      %v2577 = vsel %vm626, %v2567, 0.0
      %v2578 = vsel %vm627, %v2568, 0.0
      %2579 = vst.msk [vmem:[#allocation2 + $0xb] sm:$0xff] %vm1160, %v2569
      %2580 = vst.msk [vmem:[#allocation2 + $0x13] sm:$0xff] %vm1160, %v2570
      %2581 = vst.msk [vmem:[#allocation2 + $0x1b] sm:$0xff] %vm1160, %v2571
      %2582 = vst.msk [vmem:[#allocation2 + $0x23] sm:$0xff] %vm1160, %v2572
      %2583 = vst.msk [vmem:[#allocation2 + $0x2b] sm:$0xff] %vm1160, %v2573
      %2584 = vst.msk [vmem:[#allocation2 + $0x33] sm:$0xff] %vm1160, %v2574
      %2585 = vst.msk [vmem:[#allocation2 + $0x3b] sm:$0xff] %vm1160, %v2575
      %2586 = vst.msk [vmem:[#allocation2 + $0x43] sm:$0xff] %vm1160, %v2576
      %2587 = vst.msk [vmem:[#allocation2 + $0x4b] sm:$0xff] %vm1160, %v2577
      %2588 = vst.msk [vmem:[#allocation2 + $0x53] sm:$0xff] %vm1160, %v2578
      %2599 = vrot.lane.b32.xlu0 %v2569, 32
      %v2600 = vpop.permute.xlu0 %2599
      %2601 = vrot.lane.b32.xlu0 %v2570, 32
      %v2602 = vpop.permute.xlu0 %2601
      %2603 = vrot.lane.b32.xlu0 %v2571, 32
      %v2604 = vpop.permute.xlu0 %2603
      %2605 = vrot.lane.b32.xlu0 %v2572, 32
      %v2606 = vpop.permute.xlu0 %2605
      %2607 = vrot.lane.b32.xlu0 %v2573, 32
      %v2608 = vpop.permute.xlu0 %2607
      %2609 = vrot.lane.b32.xlu0 %v2574, 32
      %v2610 = vpop.permute.xlu0 %2609
      %2611 = vrot.lane.b32.xlu0 %v2575, 32
      %v2612 = vpop.permute.xlu0 %2611
      %2613 = vrot.lane.b32.xlu0 %v2576, 32
      %v2614 = vpop.permute.xlu0 %2613
      %2615 = vrot.lane.b32.xlu0 %v2577, 32
      %v2616 = vpop.permute.xlu0 %2615
      %2617 = vrot.lane.b32.xlu0 %v2578, 32
      %v2618 = vpop.permute.xlu0 %2617
      %2629 = vst.msk [vmem:[#allocation2 + $0xa] sm:$0xff] %vm1211, %v2600
      %2630 = vst.msk [vmem:[#allocation2 + $0x12] sm:$0xff] %vm1211, %v2602
      %2631 = vst.msk [vmem:[#allocation2 + $0x1a] sm:$0xff] %vm1211, %v2604
      %2632 = vst.msk [vmem:[#allocation2 + $0x22] sm:$0xff] %vm1211, %v2606
      %2633 = vst.msk [vmem:[#allocation2 + $0x2a] sm:$0xff] %vm1211, %v2608
      %2634 = vst.msk [vmem:[#allocation2 + $0x32] sm:$0xff] %vm1211, %v2610
      %2635 = vst.msk [vmem:[#allocation2 + $0x3a] sm:$0xff] %vm1211, %v2612
      %2636 = vst.msk [vmem:[#allocation2 + $0x42] sm:$0xff] %vm1211, %v2614
      %2637 = vst.msk [vmem:[#allocation2 + $0x4a] sm:$0xff] %vm1211, %v2616
      %2638 = vst.msk [vmem:[#allocation2 + $0x52] sm:$0xff] %vm1211, %v2618
      %2639 = vrot.lane.b32.xlu0 %v2569, 64
      %v2640 = vpop.permute.xlu0 %2639
      %2641 = vrot.lane.b32.xlu0 %v2570, 64
      %v2642 = vpop.permute.xlu0 %2641
      %2643 = vrot.lane.b32.xlu0 %v2571, 64
      %v2644 = vpop.permute.xlu0 %2643
      %2645 = vrot.lane.b32.xlu0 %v2572, 64
      %v2646 = vpop.permute.xlu0 %2645
      %2647 = vrot.lane.b32.xlu0 %v2573, 64
      %v2648 = vpop.permute.xlu0 %2647
      %2649 = vrot.lane.b32.xlu0 %v2574, 64
      %v2650 = vpop.permute.xlu0 %2649
      %2651 = vrot.lane.b32.xlu0 %v2575, 64
      %v2652 = vpop.permute.xlu0 %2651
      %2653 = vrot.lane.b32.xlu0 %v2576, 64
      %v2654 = vpop.permute.xlu0 %2653
      %2655 = vrot.lane.b32.xlu0 %v2577, 64
      %v2656 = vpop.permute.xlu0 %2655
      %2657 = vrot.lane.b32.xlu0 %v2578, 64
      %v2658 = vpop.permute.xlu0 %2657
      %2669 = vst.msk [vmem:[#allocation2 + $0x9] sm:$0xff] %vm1252, %v2640
      %2670 = vst.msk [vmem:[#allocation2 + $0x11] sm:$0xff] %vm1252, %v2642
      %2671 = vst.msk [vmem:[#allocation2 + $0x19] sm:$0xff] %vm1252, %v2644
      %2672 = vst.msk [vmem:[#allocation2 + $0x21] sm:$0xff] %vm1252, %v2646
      %2673 = vst.msk [vmem:[#allocation2 + $0x29] sm:$0xff] %vm1252, %v2648
      %2674 = vst.msk [vmem:[#allocation2 + $0x31] sm:$0xff] %vm1252, %v2650
      %2675 = vst.msk [vmem:[#allocation2 + $0x39] sm:$0xff] %vm1252, %v2652
      %2676 = vst.msk [vmem:[#allocation2 + $0x41] sm:$0xff] %vm1252, %v2654
      %2677 = vst.msk [vmem:[#allocation2 + $0x49] sm:$0xff] %vm1252, %v2656
      %2678 = vst.msk [vmem:[#allocation2 + $0x51] sm:$0xff] %vm1252, %v2658
      %v2679 = vld [vmem:[#allocation2] sm:$0xff]
      %v2680 = vld [vmem:[#allocation2 + $0x8] sm:$0xff]
      %v2681 = vld [vmem:[#allocation2 + $0x10] sm:$0xff]
      %v2682 = vld [vmem:[#allocation2 + $0x18] sm:$0xff]
      %v2683 = vld [vmem:[#allocation2 + $0x20] sm:$0xff]
      %v2684 = vld [vmem:[#allocation2 + $0x28] sm:$0xff]
      %v2685 = vld [vmem:[#allocation2 + $0x30] sm:$0xff]
      %v2686 = vld [vmem:[#allocation2 + $0x38] sm:$0xff]
      %v2687 = vld [vmem:[#allocation2 + $0x40] sm:$0xff]
      %v2688 = vld [vmem:[#allocation2 + $0x48] sm:$0xff]
      %v2689 = vpack.c.bf16 %v2680, %v2679
      %v2690 = vpack.c.bf16 %v2682, %v2681
      %v2691 = vpack.c.bf16 %v2684, %v2683
      %v2692 = vpack.c.bf16 %v2686, %v2685
      %v2693 = vpack.c.bf16 %v2688, %v2687
      %s2694 = scalar_lea.vmem %s2, 432
      %v2695 = vld [vmem:[%s2694] sm:$0xf]
      %v2696 = vld [vmem:[%s2694 + $0x4] sm:$0xf]
      %v2697 = vld [vmem:[%s2694 + $0x8] sm:$0xf]
      %v2698 = vld [vmem:[%s2694 + $0xc] sm:$0xf]
      %v2699 = vld [vmem:[%s2694 + $0x10] sm:$0xf]
      %v2700 = vld [vmem:[%s2694 + $0x14] sm:$0xf]
      %v2701 = vld [vmem:[%s2694 + $0x18] sm:$0xf]
      %v2702 = vld [vmem:[%s2694 + $0x1c] sm:$0xf]
      %v2703 = vld [vmem:[%s2694 + $0x20] sm:$0xf]
      %v2704 = vld [vmem:[%s2694 + $0x24] sm:$0xf]
      %v2705 = vld [vmem:[%s2694 + $0x28] sm:$0xf]
      %v2706 = vld [vmem:[%s2694 + $0x2c] sm:$0xf]
      %v2707 = vld [vmem:[#allocation2 + $0xa] sm:$0xff]
      %v2708 = vld [vmem:[#allocation2 + $0x12] sm:$0xff]
      %v2709 = vld [vmem:[#allocation2 + $0x1a] sm:$0xff]
      %v2710 = vld [vmem:[#allocation2 + $0x22] sm:$0xff]
      %v2711 = vld [vmem:[#allocation2 + $0x2a] sm:$0xff]
      %v2712 = vld [vmem:[#allocation2 + $0x32] sm:$0xff]
      %v2713 = vld [vmem:[#allocation2 + $0x3a] sm:$0xff]
      %v2714 = vld [vmem:[#allocation2 + $0x42] sm:$0xff]
      %v2715 = vld [vmem:[#allocation2 + $0x4a] sm:$0xff]
      %v2716 = vld [vmem:[#allocation2 + $0x52] sm:$0xff]
      %v2717 = vpack.c.bf16 %v2708, %v2707
      %v2718 = vpack.c.bf16 %v2710, %v2709
      %v2719 = vpack.c.bf16 %v2712, %v2711
      %v2720 = vpack.c.bf16 %v2714, %v2713
      %v2721 = vpack.c.bf16 %v2716, %v2715
      %s2722 = scalar_lea.vmem %s2, 480
      %v2723 = vld [vmem:[%s2722] sm:$0xf]
      %v2724 = vld [vmem:[%s2722 + $0x4] sm:$0xf]
      %v2725 = vld [vmem:[%s2722 + $0x8] sm:$0xf]
      %v2726 = vld [vmem:[%s2722 + $0xc] sm:$0xf]
      %v2727 = vld [vmem:[%s2722 + $0x10] sm:$0xf]
      %v2728 = vld [vmem:[%s2722 + $0x14] sm:$0xf]
      %v2729 = vld [vmem:[%s2722 + $0x18] sm:$0xf]
      %v2730 = vld [vmem:[%s2722 + $0x1c] sm:$0xf]
      %v2731 = vld [vmem:[%s2722 + $0x20] sm:$0xf]
      %v2732 = vld [vmem:[%s2722 + $0x24] sm:$0xf]
      %v2733 = vld [vmem:[%s2722 + $0x28] sm:$0xf]
      %v2734 = vld [vmem:[%s2722 + $0x2c] sm:$0xf]
      %v2747 = vunpack.c.l.b16 %v2723
      %v2748 = vunpack.c.l.b16 %v2724
      %v2749 = vunpack.c.l.b16 %v2725
      %v2750 = vunpack.c.l.b16 %v2726
      %v2751 = vunpack.c.l.b16 %v2727
      %v2752 = vunpack.c.l.b16 %v2728
      %v2753 = vunpack.c.l.b16 %v2729
      %v2754 = vunpack.c.l.b16 %v2730
      %v2755 = vunpack.c.l.b16 %v2731
      %v2756 = vunpack.c.l.b16 %v2732
      %v2757 = vunpack.c.l.b16 %v2733
      %v2758 = vunpack.c.l.b16 %v2734
      %v2759 = vpack.c.b16 %v2748, %v2747
      %v2760 = vpack.c.b16 %v2750, %v2749
      %v2761 = vpack.c.b16 %v2752, %v2751
      %v2762 = vpack.c.b16 %v2754, %v2753
      %v2763 = vpack.c.b16 %v2756, %v2755
      %v2764 = vpack.c.b16 %v2758, %v2757
      %v2772 = vsel %vm253, %v2717, 0
      %v2775 = vsel %vm253, %v2718, 0
      %v2778 = vsel %vm253, %v2719, 0
      %v2781 = vsel %vm253, %v2720, 0
      %v2784 = vsel %vm253, %v2721, 0
      %2786 = vmatpush.bf16.msra.mxu0 0
      %2787 = vmatpush.bf16.msra.mxu0 0
      %2788 = vmatpush.bf16.msra.mxu0 %v2764
      %2789 = vmatpush.bf16.msra.mxu0 %v2763
      %2790 = vmatpush.bf16.msra.mxu0 %v2762
      %2791 = vmatpush.bf16.msra.mxu0 %v2761
      %2792 = vmatpush.bf16.msra.mxu0 %v2760
      %2793 = vmatpush.bf16.msra.mxu0 %v2759
      %2794 = vmatmul.bf16.gmra.mxu0 %v2772
      %v2795 = vpop.f32.mrf.mxu0
      %v2796 = vadd.f32 0.0, %v2795
      %v2797 = vpop.f32.mrf.mxu0
      %v2798 = vadd.f32 0.0, %v2797
      %2799 = vmatmul.bf16.gmra.mxu0 %v2775
      %v2800 = vpop.f32.mrf.mxu0
      %v2801 = vadd.f32 0.0, %v2800
      %v2802 = vpop.f32.mrf.mxu0
      %v2803 = vadd.f32 0.0, %v2802
      %2804 = vmatmul.bf16.gmra.mxu0 %v2778
      %v2805 = vpop.f32.mrf.mxu0
      %v2806 = vadd.f32 0.0, %v2805
      %v2807 = vpop.f32.mrf.mxu0
      %v2808 = vadd.f32 0.0, %v2807
      %2809 = vmatmul.bf16.gmra.mxu0 %v2781
      %v2810 = vpop.f32.mrf.mxu0
      %v2811 = vadd.f32 0.0, %v2810
      %v2812 = vpop.f32.mrf.mxu0
      %v2813 = vadd.f32 0.0, %v2812
      %2814 = vmatmul.bf16.gmra.mxu0 %v2784
      %v2815 = vpop.f32.mrf.mxu0
      %v2816 = vadd.f32 0.0, %v2815
      %v2817 = vpop.f32.mrf.mxu0
      %v2818 = vadd.f32 0.0, %v2817
      %2819 = vdwg.mxu0
      %v2832 = vunpack.c.l.b16 %v2695
      %v2833 = vunpack.c.l.b16 %v2696
      %v2834 = vunpack.c.l.b16 %v2697
      %v2835 = vunpack.c.l.b16 %v2698
      %v2836 = vunpack.c.l.b16 %v2699
      %v2837 = vunpack.c.l.b16 %v2700
      %v2838 = vunpack.c.l.b16 %v2701
      %v2839 = vunpack.c.l.b16 %v2702
      %v2840 = vunpack.c.l.b16 %v2703
      %v2841 = vunpack.c.l.b16 %v2704
      %v2842 = vunpack.c.l.b16 %v2705
      %v2843 = vunpack.c.l.b16 %v2706
      %v2844 = vpack.c.b16 %v2833, %v2832
      %v2845 = vpack.c.b16 %v2835, %v2834
      %v2846 = vpack.c.b16 %v2837, %v2836
      %v2847 = vpack.c.b16 %v2839, %v2838
      %v2848 = vpack.c.b16 %v2841, %v2840
      %v2849 = vpack.c.b16 %v2843, %v2842
      %v2857 = vsel %vm253, %v2689, 0
      %v2860 = vsel %vm253, %v2690, 0
      %v2863 = vsel %vm253, %v2691, 0
      %v2866 = vsel %vm253, %v2692, 0
      %v2869 = vsel %vm253, %v2693, 0
      %2871 = vmatpush.bf16.msra.mxu0 0
      %2872 = vmatpush.bf16.msra.mxu0 0
      %2873 = vmatpush.bf16.msra.mxu0 %v2849
      %2874 = vmatpush.bf16.msra.mxu0 %v2848
      %2875 = vmatpush.bf16.msra.mxu0 %v2847
      %2876 = vmatpush.bf16.msra.mxu0 %v2846
      %2877 = vmatpush.bf16.msra.mxu0 %v2845
      %2878 = vmatpush.bf16.msra.mxu0 %v2844
      %2879 = vmatmul.bf16.gmra.mxu0 %v2857
      %v2880 = vpop.f32.mrf.mxu0
      %v2881 = vadd.f32 %v2796, %v2880
      %v2882 = vpop.f32.mrf.mxu0
      %v2883 = vadd.f32 %v2798, %v2882
      %2884 = vmatmul.bf16.gmra.mxu0 %v2860
      %v2885 = vpop.f32.mrf.mxu0
      %v2886 = vadd.f32 %v2801, %v2885
      %v2887 = vpop.f32.mrf.mxu0
      %v2888 = vadd.f32 %v2803, %v2887
      %2889 = vmatmul.bf16.gmra.mxu0 %v2863
      %v2890 = vpop.f32.mrf.mxu0
      %v2891 = vadd.f32 %v2806, %v2890
      %v2892 = vpop.f32.mrf.mxu0
      %v2893 = vadd.f32 %v2808, %v2892
      %2894 = vmatmul.bf16.gmra.mxu0 %v2866
      %v2895 = vpop.f32.mrf.mxu0
      %v2896 = vadd.f32 %v2811, %v2895
      %v2897 = vpop.f32.mrf.mxu0
      %v2898 = vadd.f32 %v2813, %v2897
      %2899 = vmatmul.bf16.gmra.mxu0 %v2869
      %v2900 = vpop.f32.mrf.mxu0
      %v2901 = vadd.f32 %v2816, %v2900
      %v2902 = vpop.f32.mrf.mxu0
      %v2903 = vadd.f32 %v2818, %v2902
      %2904 = vdwg.mxu0
      %v2905 = vld [vmem:[#allocation2 + $0x14] sm:$0xff]
      %v2906 = vld [vmem:[#allocation2 + $0x1c] sm:$0xff]
      %v2907 = vld [vmem:[#allocation2 + $0x24] sm:$0xff]
      %v2908 = vld [vmem:[#allocation2 + $0x2c] sm:$0xff]
      %v2909 = vld [vmem:[#allocation2 + $0x34] sm:$0xff]
      %v2910 = vld [vmem:[#allocation2 + $0x3c] sm:$0xff]
      %v2911 = vld [vmem:[#allocation2 + $0x44] sm:$0xff]
      %v2912 = vld [vmem:[#allocation2 + $0x4c] sm:$0xff]
      %v2913 = vld [vmem:[#allocation2 + $0x54] sm:$0xff]
      %v2914 = vld [vmem:[#allocation2 + $0x5c] sm:$0xff]
      %v2915 = vpack.c.bf16 %v2906, %v2905
      %v2916 = vpack.c.bf16 %v2908, %v2907
      %v2917 = vpack.c.bf16 %v2910, %v2909
      %v2918 = vpack.c.bf16 %v2912, %v2911
      %v2919 = vpack.c.bf16 %v2914, %v2913
      %s2920 = scalar_lea.vmem %s2, 528
      %v2921 = vld [vmem:[%s2920] sm:$0xf]
      %v2922 = vld [vmem:[%s2920 + $0x4] sm:$0xf]
      %v2923 = vld [vmem:[%s2920 + $0x8] sm:$0xf]
      %v2924 = vld [vmem:[%s2920 + $0xc] sm:$0xf]
      %v2925 = vld [vmem:[%s2920 + $0x10] sm:$0xf]
      %v2926 = vld [vmem:[%s2920 + $0x14] sm:$0xf]
      %v2927 = vld [vmem:[%s2920 + $0x18] sm:$0xf]
      %v2928 = vld [vmem:[%s2920 + $0x1c] sm:$0xf]
      %v2929 = vld [vmem:[%s2920 + $0x20] sm:$0xf]
      %v2930 = vld [vmem:[%s2920 + $0x24] sm:$0xf]
      %v2931 = vld [vmem:[%s2920 + $0x28] sm:$0xf]
      %v2932 = vld [vmem:[%s2920 + $0x2c] sm:$0xf]
      %v2945 = vunpack.c.l.b16 %v2921
      %v2946 = vunpack.c.l.b16 %v2922
      %v2947 = vunpack.c.l.b16 %v2923
      %v2948 = vunpack.c.l.b16 %v2924
      %v2949 = vunpack.c.l.b16 %v2925
      %v2950 = vunpack.c.l.b16 %v2926
      %v2951 = vunpack.c.l.b16 %v2927
      %v2952 = vunpack.c.l.b16 %v2928
      %v2953 = vunpack.c.l.b16 %v2929
      %v2954 = vunpack.c.l.b16 %v2930
      %v2955 = vunpack.c.l.b16 %v2931
      %v2956 = vunpack.c.l.b16 %v2932
      %v2957 = vpack.c.b16 %v2946, %v2945
      %v2958 = vpack.c.b16 %v2948, %v2947
      %v2959 = vpack.c.b16 %v2950, %v2949
      %v2960 = vpack.c.b16 %v2952, %v2951
      %v2961 = vpack.c.b16 %v2954, %v2953
      %v2962 = vpack.c.b16 %v2956, %v2955
      %v2970 = vsel %vm253, %v2915, 0
      %v2973 = vsel %vm253, %v2916, 0
      %v2976 = vsel %vm253, %v2917, 0
      %v2979 = vsel %vm253, %v2918, 0
      %v2982 = vsel %vm253, %v2919, 0
      %2984 = vmatpush.bf16.msra.mxu0 0
      %2985 = vmatpush.bf16.msra.mxu0 0
      %2986 = vmatpush.bf16.msra.mxu0 %v2962
      %2987 = vmatpush.bf16.msra.mxu0 %v2961
      %2988 = vmatpush.bf16.msra.mxu0 %v2960
      %2989 = vmatpush.bf16.msra.mxu0 %v2959
      %2990 = vmatpush.bf16.msra.mxu0 %v2958
      %2991 = vmatpush.bf16.msra.mxu0 %v2957
      %2992 = vmatmul.bf16.gmra.mxu0 %v2970
      %v2993 = vpop.f32.mrf.mxu0
      %v2994 = vadd.f32 0.0, %v2993
      %v2995 = vpop.f32.mrf.mxu0
      %v2996 = vadd.f32 0.0, %v2995
      %2997 = vmatmul.bf16.gmra.mxu0 %v2973
      %v2998 = vpop.f32.mrf.mxu0
      %v2999 = vadd.f32 0.0, %v2998
      %v3000 = vpop.f32.mrf.mxu0
      %v3001 = vadd.f32 0.0, %v3000
      %3002 = vmatmul.bf16.gmra.mxu0 %v2976
      %v3003 = vpop.f32.mrf.mxu0
      %v3004 = vadd.f32 0.0, %v3003
      %v3005 = vpop.f32.mrf.mxu0
      %v3006 = vadd.f32 0.0, %v3005
      %3007 = vmatmul.bf16.gmra.mxu0 %v2979
      %v3008 = vpop.f32.mrf.mxu0
      %v3009 = vadd.f32 0.0, %v3008
      %v3010 = vpop.f32.mrf.mxu0
      %v3011 = vadd.f32 0.0, %v3010
      %3012 = vmatmul.bf16.gmra.mxu0 %v2982
      %v3013 = vpop.f32.mrf.mxu0
      %v3014 = vadd.f32 0.0, %v3013
      %v3015 = vpop.f32.mrf.mxu0
      %v3016 = vadd.f32 0.0, %v3015
      %3017 = vdwg.mxu0
      %v3018 = vadd.f32 %v2881, %v2994
      %v3019 = vadd.f32 %v2883, %v2996
      %v3020 = vadd.f32 %v2886, %v2999
      %v3021 = vadd.f32 %v2888, %v3001
      %v3022 = vadd.f32 %v2891, %v3004
      %v3023 = vadd.f32 %v2893, %v3006
      %v3024 = vadd.f32 %v2896, %v3009
      %v3025 = vadd.f32 %v2898, %v3011
      %v3026 = vadd.f32 %v2901, %v3014
      %v3027 = vadd.f32 %v2903, %v3016
      %v3028 = vmul.f32 %v3018, 0.1
      %v3029 = vmul.f32 %v3019, 0.1
      %v3030 = vmul.f32 %v3020, 0.1
      %v3031 = vmul.f32 %v3021, 0.1
      %v3032 = vmul.f32 %v3022, 0.1
      %v3033 = vmul.f32 %v3023, 0.1
      %v3034 = vmul.f32 %v3024, 0.1
      %v3035 = vmul.f32 %v3025, 0.1
      %v3036 = vmul.f32 %v3026, 0.1
      %v3037 = vmul.f32 %v3027, 0.1
      %v3038 = vadd.f32 %v2090, %v3028
      %v3039 = vadd.f32 %v2091, %v3029
      %v3040 = vadd.f32 %v2092, %v3030
      %v3041 = vadd.f32 %v2093, %v3031
      %v3042 = vadd.f32 %v2094, %v3032
      %v3043 = vadd.f32 %v2095, %v3033
      %v3044 = vadd.f32 %v2096, %v3034
      %v3045 = vadd.f32 %v2097, %v3035
      %v3046 = vadd.f32 %v2098, %v3036
      %v3047 = vadd.f32 %v2099, %v3037
      %v3048 = vsel %vm618, %v3038, 0.0
      %v3049 = vsel %vm619, %v3039, 0.0
      %v3050 = vsel %vm620, %v3040, 0.0
      %v3051 = vsel %vm621, %v3041, 0.0
      %v3052 = vsel %vm622, %v3042, 0.0
      %v3053 = vsel %vm623, %v3043, 0.0
      %v3054 = vsel %vm624, %v3044, 0.0
      %v3055 = vsel %vm625, %v3045, 0.0
      %v3056 = vsel %vm626, %v3046, 0.0
      %v3057 = vsel %vm627, %v3047, 0.0
      %3058 = vst.msk [vmem:[#allocation2 + $0xb] sm:$0xff] %vm1160, %v3048
      %3059 = vst.msk [vmem:[#allocation2 + $0x13] sm:$0xff] %vm1160, %v3049
      %3060 = vst.msk [vmem:[#allocation2 + $0x1b] sm:$0xff] %vm1160, %v3050
      %3061 = vst.msk [vmem:[#allocation2 + $0x23] sm:$0xff] %vm1160, %v3051
      %3062 = vst.msk [vmem:[#allocation2 + $0x2b] sm:$0xff] %vm1160, %v3052
      %3063 = vst.msk [vmem:[#allocation2 + $0x33] sm:$0xff] %vm1160, %v3053
      %3064 = vst.msk [vmem:[#allocation2 + $0x3b] sm:$0xff] %vm1160, %v3054
      %3065 = vst.msk [vmem:[#allocation2 + $0x43] sm:$0xff] %vm1160, %v3055
      %3066 = vst.msk [vmem:[#allocation2 + $0x4b] sm:$0xff] %vm1160, %v3056
      %3067 = vst.msk [vmem:[#allocation2 + $0x53] sm:$0xff] %vm1160, %v3057
      %3078 = vrot.lane.b32.xlu0 %v3048, 32
      %v3079 = vpop.permute.xlu0 %3078
      %3080 = vrot.lane.b32.xlu0 %v3049, 32
      %v3081 = vpop.permute.xlu0 %3080
      %3082 = vrot.lane.b32.xlu0 %v3050, 32
      %v3083 = vpop.permute.xlu0 %3082
      %3084 = vrot.lane.b32.xlu0 %v3051, 32
      %v3085 = vpop.permute.xlu0 %3084
      %3086 = vrot.lane.b32.xlu0 %v3052, 32
      %v3087 = vpop.permute.xlu0 %3086
      %3088 = vrot.lane.b32.xlu0 %v3053, 32
      %v3089 = vpop.permute.xlu0 %3088
      %3090 = vrot.lane.b32.xlu0 %v3054, 32
      %v3091 = vpop.permute.xlu0 %3090
      %3092 = vrot.lane.b32.xlu0 %v3055, 32
      %v3093 = vpop.permute.xlu0 %3092
      %3094 = vrot.lane.b32.xlu0 %v3056, 32
      %v3095 = vpop.permute.xlu0 %3094
      %3096 = vrot.lane.b32.xlu0 %v3057, 32
      %v3097 = vpop.permute.xlu0 %3096
      %3108 = vst.msk [vmem:[#allocation2 + $0xa] sm:$0xff] %vm1211, %v3079
      %3109 = vst.msk [vmem:[#allocation2 + $0x12] sm:$0xff] %vm1211, %v3081
      %3110 = vst.msk [vmem:[#allocation2 + $0x1a] sm:$0xff] %vm1211, %v3083
      %3111 = vst.msk [vmem:[#allocation2 + $0x22] sm:$0xff] %vm1211, %v3085
      %3112 = vst.msk [vmem:[#allocation2 + $0x2a] sm:$0xff] %vm1211, %v3087
      %3113 = vst.msk [vmem:[#allocation2 + $0x32] sm:$0xff] %vm1211, %v3089
      %3114 = vst.msk [vmem:[#allocation2 + $0x3a] sm:$0xff] %vm1211, %v3091
      %3115 = vst.msk [vmem:[#allocation2 + $0x42] sm:$0xff] %vm1211, %v3093
      %3116 = vst.msk [vmem:[#allocation2 + $0x4a] sm:$0xff] %vm1211, %v3095
      %3117 = vst.msk [vmem:[#allocation2 + $0x52] sm:$0xff] %vm1211, %v3097
      %3118 = vrot.lane.b32.xlu0 %v3048, 64
      %v3119 = vpop.permute.xlu0 %3118
      %3120 = vrot.lane.b32.xlu0 %v3049, 64
      %v3121 = vpop.permute.xlu0 %3120
      %3122 = vrot.lane.b32.xlu0 %v3050, 64
      %v3123 = vpop.permute.xlu0 %3122
      %3124 = vrot.lane.b32.xlu0 %v3051, 64
      %v3125 = vpop.permute.xlu0 %3124
      %3126 = vrot.lane.b32.xlu0 %v3052, 64
      %v3127 = vpop.permute.xlu0 %3126
      %3128 = vrot.lane.b32.xlu0 %v3053, 64
      %v3129 = vpop.permute.xlu0 %3128
      %3130 = vrot.lane.b32.xlu0 %v3054, 64
      %v3131 = vpop.permute.xlu0 %3130
      %3132 = vrot.lane.b32.xlu0 %v3055, 64
      %v3133 = vpop.permute.xlu0 %3132
      %3134 = vrot.lane.b32.xlu0 %v3056, 64
      %v3135 = vpop.permute.xlu0 %3134
      %3136 = vrot.lane.b32.xlu0 %v3057, 64
      %v3137 = vpop.permute.xlu0 %3136
      %3148 = vst.msk [vmem:[#allocation2 + $0x9] sm:$0xff] %vm1252, %v3119
      %3149 = vst.msk [vmem:[#allocation2 + $0x11] sm:$0xff] %vm1252, %v3121
      %3150 = vst.msk [vmem:[#allocation2 + $0x19] sm:$0xff] %vm1252, %v3123
      %3151 = vst.msk [vmem:[#allocation2 + $0x21] sm:$0xff] %vm1252, %v3125
      %3152 = vst.msk [vmem:[#allocation2 + $0x29] sm:$0xff] %vm1252, %v3127
      %3153 = vst.msk [vmem:[#allocation2 + $0x31] sm:$0xff] %vm1252, %v3129
      %3154 = vst.msk [vmem:[#allocation2 + $0x39] sm:$0xff] %vm1252, %v3131
      %3155 = vst.msk [vmem:[#allocation2 + $0x41] sm:$0xff] %vm1252, %v3133
      %3156 = vst.msk [vmem:[#allocation2 + $0x49] sm:$0xff] %vm1252, %v3135
      %3157 = vst.msk [vmem:[#allocation2 + $0x51] sm:$0xff] %vm1252, %v3137
      %v3158 = vld [vmem:[#allocation2] sm:$0xff]
      %v3159 = vld [vmem:[#allocation2 + $0x8] sm:$0xff]
      %v3160 = vld [vmem:[#allocation2 + $0x10] sm:$0xff]
      %v3161 = vld [vmem:[#allocation2 + $0x18] sm:$0xff]
      %v3162 = vld [vmem:[#allocation2 + $0x20] sm:$0xff]
      %v3163 = vld [vmem:[#allocation2 + $0x28] sm:$0xff]
      %v3164 = vld [vmem:[#allocation2 + $0x30] sm:$0xff]
      %v3165 = vld [vmem:[#allocation2 + $0x38] sm:$0xff]
      %v3166 = vld [vmem:[#allocation2 + $0x40] sm:$0xff]
      %v3167 = vld [vmem:[#allocation2 + $0x48] sm:$0xff]
      %v3168 = vpack.c.bf16 %v3159, %v3158
      %v3169 = vpack.c.bf16 %v3161, %v3160
      %v3170 = vpack.c.bf16 %v3163, %v3162
      %v3171 = vpack.c.bf16 %v3165, %v3164
      %v3172 = vpack.c.bf16 %v3167, %v3166
      %v3173 = vld [vmem:[%s3] sm:$0xf]
      %v3174 = vld [vmem:[%s3 + $0x4] sm:$0xf]
      %v3175 = vld [vmem:[%s3 + $0x8] sm:$0xf]
      %v3176 = vld [vmem:[%s3 + $0xc] sm:$0xf]
      %v3177 = vld [vmem:[%s3 + $0x10] sm:$0xf]
      %v3178 = vld [vmem:[%s3 + $0x14] sm:$0xf]
      %v3179 = vld [vmem:[%s3 + $0x18] sm:$0xf]
      %v3180 = vld [vmem:[%s3 + $0x1c] sm:$0xf]
      %v3181 = vld [vmem:[%s3 + $0x20] sm:$0xf]
      %v3182 = vld [vmem:[%s3 + $0x24] sm:$0xf]
      %v3183 = vld [vmem:[%s3 + $0x28] sm:$0xf]
      %v3184 = vld [vmem:[%s3 + $0x2c] sm:$0xf]
      %v3185 = vld [vmem:[#allocation2 + $0xa] sm:$0xff]
      %v3186 = vld [vmem:[#allocation2 + $0x12] sm:$0xff]
      %v3187 = vld [vmem:[#allocation2 + $0x1a] sm:$0xff]
      %v3188 = vld [vmem:[#allocation2 + $0x22] sm:$0xff]
      %v3189 = vld [vmem:[#allocation2 + $0x2a] sm:$0xff]
      %v3190 = vld [vmem:[#allocation2 + $0x32] sm:$0xff]
      %v3191 = vld [vmem:[#allocation2 + $0x3a] sm:$0xff]
      %v3192 = vld [vmem:[#allocation2 + $0x42] sm:$0xff]
      %v3193 = vld [vmem:[#allocation2 + $0x4a] sm:$0xff]
      %v3194 = vld [vmem:[#allocation2 + $0x52] sm:$0xff]
      %v3195 = vpack.c.bf16 %v3186, %v3185
      %v3196 = vpack.c.bf16 %v3188, %v3187
      %v3197 = vpack.c.bf16 %v3190, %v3189
      %v3198 = vpack.c.bf16 %v3192, %v3191
      %v3199 = vpack.c.bf16 %v3194, %v3193
      %s3200 = scalar_lea.vmem %s3, 48
      %v3201 = vld [vmem:[%s3200] sm:$0xf]
      %v3202 = vld [vmem:[%s3200 + $0x4] sm:$0xf]
      %v3203 = vld [vmem:[%s3200 + $0x8] sm:$0xf]
      %v3204 = vld [vmem:[%s3200 + $0xc] sm:$0xf]
      %v3205 = vld [vmem:[%s3200 + $0x10] sm:$0xf]
      %v3206 = vld [vmem:[%s3200 + $0x14] sm:$0xf]
      %v3207 = vld [vmem:[%s3200 + $0x18] sm:$0xf]
      %v3208 = vld [vmem:[%s3200 + $0x1c] sm:$0xf]
      %v3209 = vld [vmem:[%s3200 + $0x20] sm:$0xf]
      %v3210 = vld [vmem:[%s3200 + $0x24] sm:$0xf]
      %v3211 = vld [vmem:[%s3200 + $0x28] sm:$0xf]
      %v3212 = vld [vmem:[%s3200 + $0x2c] sm:$0xf]
      %v3225 = vunpack.c.l.b16 %v3201
      %v3226 = vunpack.c.l.b16 %v3202
      %v3227 = vunpack.c.l.b16 %v3203
      %v3228 = vunpack.c.l.b16 %v3204
      %v3229 = vunpack.c.l.b16 %v3205
      %v3230 = vunpack.c.l.b16 %v3206
      %v3231 = vunpack.c.l.b16 %v3207
      %v3232 = vunpack.c.l.b16 %v3208
      %v3233 = vunpack.c.l.b16 %v3209
      %v3234 = vunpack.c.l.b16 %v3210
      %v3235 = vunpack.c.l.b16 %v3211
      %v3236 = vunpack.c.l.b16 %v3212
      %v3237 = vpack.c.b16 %v3226, %v3225
      %v3238 = vpack.c.b16 %v3228, %v3227
      %v3239 = vpack.c.b16 %v3230, %v3229
      %v3240 = vpack.c.b16 %v3232, %v3231
      %v3241 = vpack.c.b16 %v3234, %v3233
      %v3242 = vpack.c.b16 %v3236, %v3235
      %v3250 = vsel %vm253, %v3195, 0
      %v3253 = vsel %vm253, %v3196, 0
      %v3256 = vsel %vm253, %v3197, 0
      %v3259 = vsel %vm253, %v3198, 0
      %v3262 = vsel %vm253, %v3199, 0
      %3264 = vmatpush.bf16.msra.mxu0 0
      %3265 = vmatpush.bf16.msra.mxu0 0
      %3266 = vmatpush.bf16.msra.mxu0 %v3242
      %3267 = vmatpush.bf16.msra.mxu0 %v3241
      %3268 = vmatpush.bf16.msra.mxu0 %v3240
      %3269 = vmatpush.bf16.msra.mxu0 %v3239
      %3270 = vmatpush.bf16.msra.mxu0 %v3238
      %3271 = vmatpush.bf16.msra.mxu0 %v3237
      %3272 = vmatmul.bf16.gmra.mxu0 %v3250
      %v3273 = vpop.f32.mrf.mxu0
      %v3274 = vadd.f32 0.0, %v3273
      %v3275 = vpop.f32.mrf.mxu0
      %v3276 = vadd.f32 0.0, %v3275
      %3277 = vmatmul.bf16.gmra.mxu0 %v3253
      %v3278 = vpop.f32.mrf.mxu0
      %v3279 = vadd.f32 0.0, %v3278
      %v3280 = vpop.f32.mrf.mxu0
      %v3281 = vadd.f32 0.0, %v3280
      %3282 = vmatmul.bf16.gmra.mxu0 %v3256
      %v3283 = vpop.f32.mrf.mxu0
      %v3284 = vadd.f32 0.0, %v3283
      %v3285 = vpop.f32.mrf.mxu0
      %v3286 = vadd.f32 0.0, %v3285
      %3287 = vmatmul.bf16.gmra.mxu0 %v3259
      %v3288 = vpop.f32.mrf.mxu0
      %v3289 = vadd.f32 0.0, %v3288
      %v3290 = vpop.f32.mrf.mxu0
      %v3291 = vadd.f32 0.0, %v3290
      %3292 = vmatmul.bf16.gmra.mxu0 %v3262
      %v3293 = vpop.f32.mrf.mxu0
      %v3294 = vadd.f32 0.0, %v3293
      %v3295 = vpop.f32.mrf.mxu0
      %v3296 = vadd.f32 0.0, %v3295
      %3297 = vdwg.mxu0
      %v3310 = vunpack.c.l.b16 %v3173
      %v3311 = vunpack.c.l.b16 %v3174
      %v3312 = vunpack.c.l.b16 %v3175
      %v3313 = vunpack.c.l.b16 %v3176
      %v3314 = vunpack.c.l.b16 %v3177
      %v3315 = vunpack.c.l.b16 %v3178
      %v3316 = vunpack.c.l.b16 %v3179
      %v3317 = vunpack.c.l.b16 %v3180
      %v3318 = vunpack.c.l.b16 %v3181
      %v3319 = vunpack.c.l.b16 %v3182
      %v3320 = vunpack.c.l.b16 %v3183
      %v3321 = vunpack.c.l.b16 %v3184
      %v3322 = vpack.c.b16 %v3311, %v3310
      %v3323 = vpack.c.b16 %v3313, %v3312
      %v3324 = vpack.c.b16 %v3315, %v3314
      %v3325 = vpack.c.b16 %v3317, %v3316
      %v3326 = vpack.c.b16 %v3319, %v3318
      %v3327 = vpack.c.b16 %v3321, %v3320
      %v3335 = vsel %vm253, %v3168, 0
      %v3338 = vsel %vm253, %v3169, 0
      %v3341 = vsel %vm253, %v3170, 0
      %v3344 = vsel %vm253, %v3171, 0
      %v3347 = vsel %vm253, %v3172, 0
      %3349 = vmatpush.bf16.msra.mxu0 0
      %3350 = vmatpush.bf16.msra.mxu0 0
      %3351 = vmatpush.bf16.msra.mxu0 %v3327
      %3352 = vmatpush.bf16.msra.mxu0 %v3326
      %3353 = vmatpush.bf16.msra.mxu0 %v3325
      %3354 = vmatpush.bf16.msra.mxu0 %v3324
      %3355 = vmatpush.bf16.msra.mxu0 %v3323
      %3356 = vmatpush.bf16.msra.mxu0 %v3322
      %3357 = vmatmul.bf16.gmra.mxu0 %v3335
      %v3358 = vpop.f32.mrf.mxu0
      %v3359 = vadd.f32 %v3274, %v3358
      %v3360 = vpop.f32.mrf.mxu0
      %v3361 = vadd.f32 %v3276, %v3360
      %3362 = vmatmul.bf16.gmra.mxu0 %v3338
      %v3363 = vpop.f32.mrf.mxu0
      %v3364 = vadd.f32 %v3279, %v3363
      %v3365 = vpop.f32.mrf.mxu0
      %v3366 = vadd.f32 %v3281, %v3365
      %3367 = vmatmul.bf16.gmra.mxu0 %v3341
      %v3368 = vpop.f32.mrf.mxu0
      %v3369 = vadd.f32 %v3284, %v3368
      %v3370 = vpop.f32.mrf.mxu0
      %v3371 = vadd.f32 %v3286, %v3370
      %3372 = vmatmul.bf16.gmra.mxu0 %v3344
      %v3373 = vpop.f32.mrf.mxu0
      %v3374 = vadd.f32 %v3289, %v3373
      %v3375 = vpop.f32.mrf.mxu0
      %v3376 = vadd.f32 %v3291, %v3375
      %3377 = vmatmul.bf16.gmra.mxu0 %v3347
      %v3378 = vpop.f32.mrf.mxu0
      %v3379 = vadd.f32 %v3294, %v3378
      %v3380 = vpop.f32.mrf.mxu0
      %v3381 = vadd.f32 %v3296, %v3380
      %3382 = vdwg.mxu0
      %v3383 = vld [vmem:[#allocation2 + $0x14] sm:$0xff]
      %v3384 = vld [vmem:[#allocation2 + $0x1c] sm:$0xff]
      %v3385 = vld [vmem:[#allocation2 + $0x24] sm:$0xff]
      %v3386 = vld [vmem:[#allocation2 + $0x2c] sm:$0xff]
      %v3387 = vld [vmem:[#allocation2 + $0x34] sm:$0xff]
      %v3388 = vld [vmem:[#allocation2 + $0x3c] sm:$0xff]
      %v3389 = vld [vmem:[#allocation2 + $0x44] sm:$0xff]
      %v3390 = vld [vmem:[#allocation2 + $0x4c] sm:$0xff]
      %v3391 = vld [vmem:[#allocation2 + $0x54] sm:$0xff]
      %v3392 = vld [vmem:[#allocation2 + $0x5c] sm:$0xff]
      %v3393 = vpack.c.bf16 %v3384, %v3383
      %v3394 = vpack.c.bf16 %v3386, %v3385
      %v3395 = vpack.c.bf16 %v3388, %v3387
      %v3396 = vpack.c.bf16 %v3390, %v3389
      %v3397 = vpack.c.bf16 %v3392, %v3391
      %s3398 = scalar_lea.vmem %s3, 96
      %v3399 = vld [vmem:[%s3398] sm:$0xf]
      %v3400 = vld [vmem:[%s3398 + $0x4] sm:$0xf]
      %v3401 = vld [vmem:[%s3398 + $0x8] sm:$0xf]
      %v3402 = vld [vmem:[%s3398 + $0xc] sm:$0xf]
      %v3403 = vld [vmem:[%s3398 + $0x10] sm:$0xf]
      %v3404 = vld [vmem:[%s3398 + $0x14] sm:$0xf]
      %v3405 = vld [vmem:[%s3398 + $0x18] sm:$0xf]
      %v3406 = vld [vmem:[%s3398 + $0x1c] sm:$0xf]
      %v3407 = vld [vmem:[%s3398 + $0x20] sm:$0xf]
      %v3408 = vld [vmem:[%s3398 + $0x24] sm:$0xf]
      %v3409 = vld [vmem:[%s3398 + $0x28] sm:$0xf]
      %v3410 = vld [vmem:[%s3398 + $0x2c] sm:$0xf]
      %v3423 = vunpack.c.l.b16 %v3399
      %v3424 = vunpack.c.l.b16 %v3400
      %v3425 = vunpack.c.l.b16 %v3401
      %v3426 = vunpack.c.l.b16 %v3402
      %v3427 = vunpack.c.l.b16 %v3403
      %v3428 = vunpack.c.l.b16 %v3404
      %v3429 = vunpack.c.l.b16 %v3405
      %v3430 = vunpack.c.l.b16 %v3406
      %v3431 = vunpack.c.l.b16 %v3407
      %v3432 = vunpack.c.l.b16 %v3408
      %v3433 = vunpack.c.l.b16 %v3409
      %v3434 = vunpack.c.l.b16 %v3410
      %v3435 = vpack.c.b16 %v3424, %v3423
      %v3436 = vpack.c.b16 %v3426, %v3425
      %v3437 = vpack.c.b16 %v3428, %v3427
      %v3438 = vpack.c.b16 %v3430, %v3429
      %v3439 = vpack.c.b16 %v3432, %v3431
      %v3440 = vpack.c.b16 %v3434, %v3433
      %v3448 = vsel %vm253, %v3393, 0
      %v3451 = vsel %vm253, %v3394, 0
      %v3454 = vsel %vm253, %v3395, 0
      %v3457 = vsel %vm253, %v3396, 0
      %v3460 = vsel %vm253, %v3397, 0
      %3462 = vmatpush.bf16.msra.mxu0 0
      %3463 = vmatpush.bf16.msra.mxu0 0
      %3464 = vmatpush.bf16.msra.mxu0 %v3440
      %3465 = vmatpush.bf16.msra.mxu0 %v3439
      %3466 = vmatpush.bf16.msra.mxu0 %v3438
      %3467 = vmatpush.bf16.msra.mxu0 %v3437
      %3468 = vmatpush.bf16.msra.mxu0 %v3436
      %3469 = vmatpush.bf16.msra.mxu0 %v3435
      %3470 = vmatmul.bf16.gmra.mxu0 %v3448
      %v3471 = vpop.f32.mrf.mxu0
      %v3472 = vadd.f32 0.0, %v3471
      %v3473 = vpop.f32.mrf.mxu0
      %v3474 = vadd.f32 0.0, %v3473
      %3475 = vmatmul.bf16.gmra.mxu0 %v3451
      %v3476 = vpop.f32.mrf.mxu0
      %v3477 = vadd.f32 0.0, %v3476
      %v3478 = vpop.f32.mrf.mxu0
      %v3479 = vadd.f32 0.0, %v3478
      %3480 = vmatmul.bf16.gmra.mxu0 %v3454
      %v3481 = vpop.f32.mrf.mxu0
      %v3482 = vadd.f32 0.0, %v3481
      %v3483 = vpop.f32.mrf.mxu0
      %v3484 = vadd.f32 0.0, %v3483
      %3485 = vmatmul.bf16.gmra.mxu0 %v3457
      %v3486 = vpop.f32.mrf.mxu0
      %v3487 = vadd.f32 0.0, %v3486
      %v3488 = vpop.f32.mrf.mxu0
      %v3489 = vadd.f32 0.0, %v3488
      %3490 = vmatmul.bf16.gmra.mxu0 %v3460
      %v3491 = vpop.f32.mrf.mxu0
      %v3492 = vadd.f32 0.0, %v3491
      %v3493 = vpop.f32.mrf.mxu0
      %v3494 = vadd.f32 0.0, %v3493
      %3495 = vdwg.mxu0
      %v3496 = vadd.f32 %v3359, %v3472
      %v3497 = vadd.f32 %v3361, %v3474
      %v3498 = vadd.f32 %v3364, %v3477
      %v3499 = vadd.f32 %v3366, %v3479
      %v3500 = vadd.f32 %v3369, %v3482
      %v3501 = vadd.f32 %v3371, %v3484
      %v3502 = vadd.f32 %v3374, %v3487
      %v3503 = vadd.f32 %v3376, %v3489
      %v3504 = vadd.f32 %v3379, %v3492
      %v3505 = vadd.f32 %v3381, %v3494
      %v3506 = vsel %vm618, %v3496, 0.0
      %v3507 = vsel %vm619, %v3497, 0.0
      %v3508 = vsel %vm620, %v3498, 0.0
      %v3509 = vsel %vm621, %v3499, 0.0
      %v3510 = vsel %vm622, %v3500, 0.0
      %v3511 = vsel %vm623, %v3501, 0.0
      %v3512 = vsel %vm624, %v3502, 0.0
      %v3513 = vsel %vm625, %v3503, 0.0
      %v3514 = vsel %vm626, %v3504, 0.0
      %v3515 = vsel %vm627, %v3505, 0.0
      %3516 = vst.msk [vmem:[#allocation2 + $0xb] sm:$0xff] %vm1160, %v3506
      %3517 = vst.msk [vmem:[#allocation2 + $0x13] sm:$0xff] %vm1160, %v3507
      %3518 = vst.msk [vmem:[#allocation2 + $0x1b] sm:$0xff] %vm1160, %v3508
      %3519 = vst.msk [vmem:[#allocation2 + $0x23] sm:$0xff] %vm1160, %v3509
      %3520 = vst.msk [vmem:[#allocation2 + $0x2b] sm:$0xff] %vm1160, %v3510
      %3521 = vst.msk [vmem:[#allocation2 + $0x33] sm:$0xff] %vm1160, %v3511
      %3522 = vst.msk [vmem:[#allocation2 + $0x3b] sm:$0xff] %vm1160, %v3512
      %3523 = vst.msk [vmem:[#allocation2 + $0x43] sm:$0xff] %vm1160, %v3513
      %3524 = vst.msk [vmem:[#allocation2 + $0x4b] sm:$0xff] %vm1160, %v3514
      %3525 = vst.msk [vmem:[#allocation2 + $0x53] sm:$0xff] %vm1160, %v3515
      %3536 = vrot.lane.b32.xlu0 %v3506, 32
      %v3537 = vpop.permute.xlu0 %3536
      %3538 = vrot.lane.b32.xlu0 %v3507, 32
      %v3539 = vpop.permute.xlu0 %3538
      %3540 = vrot.lane.b32.xlu0 %v3508, 32
      %v3541 = vpop.permute.xlu0 %3540
      %3542 = vrot.lane.b32.xlu0 %v3509, 32
      %v3543 = vpop.permute.xlu0 %3542
      %3544 = vrot.lane.b32.xlu0 %v3510, 32
      %v3545 = vpop.permute.xlu0 %3544
      %3546 = vrot.lane.b32.xlu0 %v3511, 32
      %v3547 = vpop.permute.xlu0 %3546
      %3548 = vrot.lane.b32.xlu0 %v3512, 32
      %v3549 = vpop.permute.xlu0 %3548
      %3550 = vrot.lane.b32.xlu0 %v3513, 32
      %v3551 = vpop.permute.xlu0 %3550
      %3552 = vrot.lane.b32.xlu0 %v3514, 32
      %v3553 = vpop.permute.xlu0 %3552
      %3554 = vrot.lane.b32.xlu0 %v3515, 32
      %v3555 = vpop.permute.xlu0 %3554
      %3566 = vst.msk [vmem:[#allocation2 + $0xa] sm:$0xff] %vm1211, %v3537
      %3567 = vst.msk [vmem:[#allocation2 + $0x12] sm:$0xff] %vm1211, %v3539
      %3568 = vst.msk [vmem:[#allocation2 + $0x1a] sm:$0xff] %vm1211, %v3541
      %3569 = vst.msk [vmem:[#allocation2 + $0x22] sm:$0xff] %vm1211, %v3543
      %3570 = vst.msk [vmem:[#allocation2 + $0x2a] sm:$0xff] %vm1211, %v3545
      %3571 = vst.msk [vmem:[#allocation2 + $0x32] sm:$0xff] %vm1211, %v3547
      %3572 = vst.msk [vmem:[#allocation2 + $0x3a] sm:$0xff] %vm1211, %v3549
      %3573 = vst.msk [vmem:[#allocation2 + $0x42] sm:$0xff] %vm1211, %v3551
      %3574 = vst.msk [vmem:[#allocation2 + $0x4a] sm:$0xff] %vm1211, %v3553
      %3575 = vst.msk [vmem:[#allocation2 + $0x52] sm:$0xff] %vm1211, %v3555
      %3576 = vrot.lane.b32.xlu0 %v3506, 64
      %v3577 = vpop.permute.xlu0 %3576
      %3578 = vrot.lane.b32.xlu0 %v3507, 64
      %v3579 = vpop.permute.xlu0 %3578
      %3580 = vrot.lane.b32.xlu0 %v3508, 64
      %v3581 = vpop.permute.xlu0 %3580
      %3582 = vrot.lane.b32.xlu0 %v3509, 64
      %v3583 = vpop.permute.xlu0 %3582
      %3584 = vrot.lane.b32.xlu0 %v3510, 64
      %v3585 = vpop.permute.xlu0 %3584
      %3586 = vrot.lane.b32.xlu0 %v3511, 64
      %v3587 = vpop.permute.xlu0 %3586
      %3588 = vrot.lane.b32.xlu0 %v3512, 64
      %v3589 = vpop.permute.xlu0 %3588
      %3590 = vrot.lane.b32.xlu0 %v3513, 64
      %v3591 = vpop.permute.xlu0 %3590
      %3592 = vrot.lane.b32.xlu0 %v3514, 64
      %v3593 = vpop.permute.xlu0 %3592
      %3594 = vrot.lane.b32.xlu0 %v3515, 64
      %v3595 = vpop.permute.xlu0 %3594
      %3606 = vst.msk [vmem:[#allocation2 + $0x9] sm:$0xff] %vm1252, %v3577
      %3607 = vst.msk [vmem:[#allocation2 + $0x11] sm:$0xff] %vm1252, %v3579
      %3608 = vst.msk [vmem:[#allocation2 + $0x19] sm:$0xff] %vm1252, %v3581
      %3609 = vst.msk [vmem:[#allocation2 + $0x21] sm:$0xff] %vm1252, %v3583
      %3610 = vst.msk [vmem:[#allocation2 + $0x29] sm:$0xff] %vm1252, %v3585
      %3611 = vst.msk [vmem:[#allocation2 + $0x31] sm:$0xff] %vm1252, %v3587
      %3612 = vst.msk [vmem:[#allocation2 + $0x39] sm:$0xff] %vm1252, %v3589
      %3613 = vst.msk [vmem:[#allocation2 + $0x41] sm:$0xff] %vm1252, %v3591
      %3614 = vst.msk [vmem:[#allocation2 + $0x49] sm:$0xff] %vm1252, %v3593
      %3615 = vst.msk [vmem:[#allocation2 + $0x51] sm:$0xff] %vm1252, %v3595
      %v3616 = vld [vmem:[#allocation2] sm:$0xff]
      %v3617 = vld [vmem:[#allocation2 + $0x8] sm:$0xff]
      %v3618 = vld [vmem:[#allocation2 + $0x10] sm:$0xff]
      %v3619 = vld [vmem:[#allocation2 + $0x18] sm:$0xff]
      %v3620 = vld [vmem:[#allocation2 + $0x20] sm:$0xff]
      %v3621 = vld [vmem:[#allocation2 + $0x28] sm:$0xff]
      %v3622 = vld [vmem:[#allocation2 + $0x30] sm:$0xff]
      %v3623 = vld [vmem:[#allocation2 + $0x38] sm:$0xff]
      %v3624 = vld [vmem:[#allocation2 + $0x40] sm:$0xff]
      %v3625 = vld [vmem:[#allocation2 + $0x48] sm:$0xff]
      %v3626 = vpack.c.bf16 %v3617, %v3616
      %v3627 = vpack.c.bf16 %v3619, %v3618
      %v3628 = vpack.c.bf16 %v3621, %v3620
      %v3629 = vpack.c.bf16 %v3623, %v3622
      %v3630 = vpack.c.bf16 %v3625, %v3624
      %v3631 = vld [vmem:[%s4] sm:$0xf]
      %v3632 = vld [vmem:[%s4 + $0x4] sm:$0xf]
      %v3633 = vld [vmem:[%s4 + $0x8] sm:$0xf]
      %v3634 = vld [vmem:[%s4 + $0xc] sm:$0xf]
      %v3635 = vld [vmem:[%s4 + $0x10] sm:$0xf]
      %v3636 = vld [vmem:[%s4 + $0x14] sm:$0xf]
      %v3637 = vld [vmem:[%s4 + $0x18] sm:$0xf]
      %v3638 = vld [vmem:[%s4 + $0x1c] sm:$0xf]
      %v3639 = vld [vmem:[%s4 + $0x20] sm:$0xf]
      %v3640 = vld [vmem:[%s4 + $0x24] sm:$0xf]
      %v3641 = vld [vmem:[%s4 + $0x28] sm:$0xf]
      %v3642 = vld [vmem:[%s4 + $0x2c] sm:$0xf]
      %v3643 = vld [vmem:[#allocation2 + $0xa] sm:$0xff]
      %v3644 = vld [vmem:[#allocation2 + $0x12] sm:$0xff]
      %v3645 = vld [vmem:[#allocation2 + $0x1a] sm:$0xff]
      %v3646 = vld [vmem:[#allocation2 + $0x22] sm:$0xff]
      %v3647 = vld [vmem:[#allocation2 + $0x2a] sm:$0xff]
      %v3648 = vld [vmem:[#allocation2 + $0x32] sm:$0xff]
      %v3649 = vld [vmem:[#allocation2 + $0x3a] sm:$0xff]
      %v3650 = vld [vmem:[#allocation2 + $0x42] sm:$0xff]
      %v3651 = vld [vmem:[#allocation2 + $0x4a] sm:$0xff]
      %v3652 = vld [vmem:[#allocation2 + $0x52] sm:$0xff]
      %v3653 = vpack.c.bf16 %v3644, %v3643
      %v3654 = vpack.c.bf16 %v3646, %v3645
      %v3655 = vpack.c.bf16 %v3648, %v3647
      %v3656 = vpack.c.bf16 %v3650, %v3649
      %v3657 = vpack.c.bf16 %v3652, %v3651
      %s3658 = scalar_lea.vmem %s4, 48
      %v3659 = vld [vmem:[%s3658] sm:$0xf]
      %v3660 = vld [vmem:[%s3658 + $0x4] sm:$0xf]
      %v3661 = vld [vmem:[%s3658 + $0x8] sm:$0xf]
      %v3662 = vld [vmem:[%s3658 + $0xc] sm:$0xf]
      %v3663 = vld [vmem:[%s3658 + $0x10] sm:$0xf]
      %v3664 = vld [vmem:[%s3658 + $0x14] sm:$0xf]
      %v3665 = vld [vmem:[%s3658 + $0x18] sm:$0xf]
      %v3666 = vld [vmem:[%s3658 + $0x1c] sm:$0xf]
      %v3667 = vld [vmem:[%s3658 + $0x20] sm:$0xf]
      %v3668 = vld [vmem:[%s3658 + $0x24] sm:$0xf]
      %v3669 = vld [vmem:[%s3658 + $0x28] sm:$0xf]
      %v3670 = vld [vmem:[%s3658 + $0x2c] sm:$0xf]
      %v3683 = vunpack.c.l.b16 %v3659
      %v3684 = vunpack.c.l.b16 %v3660
      %v3685 = vunpack.c.l.b16 %v3661
      %v3686 = vunpack.c.l.b16 %v3662
      %v3687 = vunpack.c.l.b16 %v3663
      %v3688 = vunpack.c.l.b16 %v3664
      %v3689 = vunpack.c.l.b16 %v3665
      %v3690 = vunpack.c.l.b16 %v3666
      %v3691 = vunpack.c.l.b16 %v3667
      %v3692 = vunpack.c.l.b16 %v3668
      %v3693 = vunpack.c.l.b16 %v3669
      %v3694 = vunpack.c.l.b16 %v3670
      %v3695 = vpack.c.b16 %v3684, %v3683
      %v3696 = vpack.c.b16 %v3686, %v3685
      %v3697 = vpack.c.b16 %v3688, %v3687
      %v3698 = vpack.c.b16 %v3690, %v3689
      %v3699 = vpack.c.b16 %v3692, %v3691
      %v3700 = vpack.c.b16 %v3694, %v3693
      %v3708 = vsel %vm253, %v3653, 0
      %v3711 = vsel %vm253, %v3654, 0
      %v3714 = vsel %vm253, %v3655, 0
      %v3717 = vsel %vm253, %v3656, 0
      %v3720 = vsel %vm253, %v3657, 0
      %3722 = vmatpush.bf16.msra.mxu0 0
      %3723 = vmatpush.bf16.msra.mxu0 0
      %3724 = vmatpush.bf16.msra.mxu0 %v3700
      %3725 = vmatpush.bf16.msra.mxu0 %v3699
      %3726 = vmatpush.bf16.msra.mxu0 %v3698
      %3727 = vmatpush.bf16.msra.mxu0 %v3697
      %3728 = vmatpush.bf16.msra.mxu0 %v3696
      %3729 = vmatpush.bf16.msra.mxu0 %v3695
      %3730 = vmatmul.bf16.gmra.mxu0 %v3708
      %v3731 = vpop.f32.mrf.mxu0
      %v3732 = vadd.f32 0.0, %v3731
      %v3733 = vpop.f32.mrf.mxu0
      %v3734 = vadd.f32 0.0, %v3733
      %3735 = vmatmul.bf16.gmra.mxu0 %v3711
      %v3736 = vpop.f32.mrf.mxu0
      %v3737 = vadd.f32 0.0, %v3736
      %v3738 = vpop.f32.mrf.mxu0
      %v3739 = vadd.f32 0.0, %v3738
      %3740 = vmatmul.bf16.gmra.mxu0 %v3714
      %v3741 = vpop.f32.mrf.mxu0
      %v3742 = vadd.f32 0.0, %v3741
      %v3743 = vpop.f32.mrf.mxu0
      %v3744 = vadd.f32 0.0, %v3743
      %3745 = vmatmul.bf16.gmra.mxu0 %v3717
      %v3746 = vpop.f32.mrf.mxu0
      %v3747 = vadd.f32 0.0, %v3746
      %v3748 = vpop.f32.mrf.mxu0
      %v3749 = vadd.f32 0.0, %v3748
      %3750 = vmatmul.bf16.gmra.mxu0 %v3720
      %v3751 = vpop.f32.mrf.mxu0
      %v3752 = vadd.f32 0.0, %v3751
      %v3753 = vpop.f32.mrf.mxu0
      %v3754 = vadd.f32 0.0, %v3753
      %3755 = vdwg.mxu0
      %v3768 = vunpack.c.l.b16 %v3631
      %v3769 = vunpack.c.l.b16 %v3632
      %v3770 = vunpack.c.l.b16 %v3633
      %v3771 = vunpack.c.l.b16 %v3634
      %v3772 = vunpack.c.l.b16 %v3635
      %v3773 = vunpack.c.l.b16 %v3636
      %v3774 = vunpack.c.l.b16 %v3637
      %v3775 = vunpack.c.l.b16 %v3638
      %v3776 = vunpack.c.l.b16 %v3639
      %v3777 = vunpack.c.l.b16 %v3640
      %v3778 = vunpack.c.l.b16 %v3641
      %v3779 = vunpack.c.l.b16 %v3642
      %v3780 = vpack.c.b16 %v3769, %v3768
      %v3781 = vpack.c.b16 %v3771, %v3770
      %v3782 = vpack.c.b16 %v3773, %v3772
      %v3783 = vpack.c.b16 %v3775, %v3774
      %v3784 = vpack.c.b16 %v3777, %v3776
      %v3785 = vpack.c.b16 %v3779, %v3778
      %v3793 = vsel %vm253, %v3626, 0
      %v3796 = vsel %vm253, %v3627, 0
      %v3799 = vsel %vm253, %v3628, 0
      %v3802 = vsel %vm253, %v3629, 0
      %v3805 = vsel %vm253, %v3630, 0
      %3807 = vmatpush.bf16.msra.mxu0 0
      %3808 = vmatpush.bf16.msra.mxu0 0
      %3809 = vmatpush.bf16.msra.mxu0 %v3785
      %3810 = vmatpush.bf16.msra.mxu0 %v3784
      %3811 = vmatpush.bf16.msra.mxu0 %v3783
      %3812 = vmatpush.bf16.msra.mxu0 %v3782
      %3813 = vmatpush.bf16.msra.mxu0 %v3781
      %3814 = vmatpush.bf16.msra.mxu0 %v3780
      %3815 = vmatmul.bf16.gmra.mxu0 %v3793
      %v3816 = vpop.f32.mrf.mxu0
      %v3817 = vadd.f32 %v3732, %v3816
      %v3818 = vpop.f32.mrf.mxu0
      %v3819 = vadd.f32 %v3734, %v3818
      %3820 = vmatmul.bf16.gmra.mxu0 %v3796
      %v3821 = vpop.f32.mrf.mxu0
      %v3822 = vadd.f32 %v3737, %v3821
      %v3823 = vpop.f32.mrf.mxu0
      %v3824 = vadd.f32 %v3739, %v3823
      %3825 = vmatmul.bf16.gmra.mxu0 %v3799
      %v3826 = vpop.f32.mrf.mxu0
      %v3827 = vadd.f32 %v3742, %v3826
      %v3828 = vpop.f32.mrf.mxu0
      %v3829 = vadd.f32 %v3744, %v3828
      %3830 = vmatmul.bf16.gmra.mxu0 %v3802
      %v3831 = vpop.f32.mrf.mxu0
      %v3832 = vadd.f32 %v3747, %v3831
      %v3833 = vpop.f32.mrf.mxu0
      %v3834 = vadd.f32 %v3749, %v3833
      %3835 = vmatmul.bf16.gmra.mxu0 %v3805
      %v3836 = vpop.f32.mrf.mxu0
      %v3837 = vadd.f32 %v3752, %v3836
      %v3838 = vpop.f32.mrf.mxu0
      %v3839 = vadd.f32 %v3754, %v3838
      %3840 = vdwg.mxu0
      %v3841 = vld [vmem:[#allocation2 + $0x14] sm:$0xff]
      %v3842 = vld [vmem:[#allocation2 + $0x1c] sm:$0xff]
      %v3843 = vld [vmem:[#allocation2 + $0x24] sm:$0xff]
      %v3844 = vld [vmem:[#allocation2 + $0x2c] sm:$0xff]
      %v3845 = vld [vmem:[#allocation2 + $0x34] sm:$0xff]
      %v3846 = vld [vmem:[#allocation2 + $0x3c] sm:$0xff]
      %v3847 = vld [vmem:[#allocation2 + $0x44] sm:$0xff]
      %v3848 = vld [vmem:[#allocation2 + $0x4c] sm:$0xff]
      %v3849 = vld [vmem:[#allocation2 + $0x54] sm:$0xff]
      %v3850 = vld [vmem:[#allocation2 + $0x5c] sm:$0xff]
      %v3851 = vpack.c.bf16 %v3842, %v3841
      %v3852 = vpack.c.bf16 %v3844, %v3843
      %v3853 = vpack.c.bf16 %v3846, %v3845
      %v3854 = vpack.c.bf16 %v3848, %v3847
      %v3855 = vpack.c.bf16 %v3850, %v3849
      %s3856 = scalar_lea.vmem %s4, 96
      %v3857 = vld [vmem:[%s3856] sm:$0xf]
      %v3858 = vld [vmem:[%s3856 + $0x4] sm:$0xf]
      %v3859 = vld [vmem:[%s3856 + $0x8] sm:$0xf]
      %v3860 = vld [vmem:[%s3856 + $0xc] sm:$0xf]
      %v3861 = vld [vmem:[%s3856 + $0x10] sm:$0xf]
      %v3862 = vld [vmem:[%s3856 + $0x14] sm:$0xf]
      %v3863 = vld [vmem:[%s3856 + $0x18] sm:$0xf]
      %v3864 = vld [vmem:[%s3856 + $0x1c] sm:$0xf]
      %v3865 = vld [vmem:[%s3856 + $0x20] sm:$0xf]
      %v3866 = vld [vmem:[%s3856 + $0x24] sm:$0xf]
      %v3867 = vld [vmem:[%s3856 + $0x28] sm:$0xf]
      %v3868 = vld [vmem:[%s3856 + $0x2c] sm:$0xf]
      %v3881 = vunpack.c.l.b16 %v3857
      %v3882 = vunpack.c.l.b16 %v3858
      %v3883 = vunpack.c.l.b16 %v3859
      %v3884 = vunpack.c.l.b16 %v3860
      %v3885 = vunpack.c.l.b16 %v3861
      %v3886 = vunpack.c.l.b16 %v3862
      %v3887 = vunpack.c.l.b16 %v3863
      %v3888 = vunpack.c.l.b16 %v3864
      %v3889 = vunpack.c.l.b16 %v3865
      %v3890 = vunpack.c.l.b16 %v3866
      %v3891 = vunpack.c.l.b16 %v3867
      %v3892 = vunpack.c.l.b16 %v3868
      %v3893 = vpack.c.b16 %v3882, %v3881
      %v3894 = vpack.c.b16 %v3884, %v3883
      %v3895 = vpack.c.b16 %v3886, %v3885
      %v3896 = vpack.c.b16 %v3888, %v3887
      %v3897 = vpack.c.b16 %v3890, %v3889
      %v3898 = vpack.c.b16 %v3892, %v3891
      %v3906 = vsel %vm253, %v3851, 0
      %v3909 = vsel %vm253, %v3852, 0
      %v3912 = vsel %vm253, %v3853, 0
      %v3915 = vsel %vm253, %v3854, 0
      %v3918 = vsel %vm253, %v3855, 0
      %3920 = vmatpush.bf16.msra.mxu0 0
      %3921 = vmatpush.bf16.msra.mxu0 0
      %3922 = vmatpush.bf16.msra.mxu0 %v3898
      %3923 = vmatpush.bf16.msra.mxu0 %v3897
      %3924 = vmatpush.bf16.msra.mxu0 %v3896
      %3925 = vmatpush.bf16.msra.mxu0 %v3895
      %3926 = vmatpush.bf16.msra.mxu0 %v3894
      %3927 = vmatpush.bf16.msra.mxu0 %v3893
      %3928 = vmatmul.bf16.gmra.mxu0 %v3906
      %v3929 = vpop.f32.mrf.mxu0
      %v3930 = vadd.f32 0.0, %v3929
      %v3931 = vpop.f32.mrf.mxu0
      %v3932 = vadd.f32 0.0, %v3931
      %3933 = vmatmul.bf16.gmra.mxu0 %v3909
      %v3934 = vpop.f32.mrf.mxu0
      %v3935 = vadd.f32 0.0, %v3934
      %v3936 = vpop.f32.mrf.mxu0
      %v3937 = vadd.f32 0.0, %v3936
      %3938 = vmatmul.bf16.gmra.mxu0 %v3912
      %v3939 = vpop.f32.mrf.mxu0
      %v3940 = vadd.f32 0.0, %v3939
      %v3941 = vpop.f32.mrf.mxu0
      %v3942 = vadd.f32 0.0, %v3941
      %3943 = vmatmul.bf16.gmra.mxu0 %v3915
      %v3944 = vpop.f32.mrf.mxu0
      %v3945 = vadd.f32 0.0, %v3944
      %v3946 = vpop.f32.mrf.mxu0
      %v3947 = vadd.f32 0.0, %v3946
      %3948 = vmatmul.bf16.gmra.mxu0 %v3918
      %v3949 = vpop.f32.mrf.mxu0
      %v3950 = vadd.f32 0.0, %v3949
      %v3951 = vpop.f32.mrf.mxu0
      %v3952 = vadd.f32 0.0, %v3951
      %3953 = vdwg.mxu0
      %v3954 = vadd.f32 %v3817, %v3930
      %v3955 = vadd.f32 %v3819, %v3932
      %v3956 = vadd.f32 %v3822, %v3935
      %v3957 = vadd.f32 %v3824, %v3937
      %v3958 = vadd.f32 %v3827, %v3940
      %v3959 = vadd.f32 %v3829, %v3942
      %v3960 = vadd.f32 %v3832, %v3945
      %v3961 = vadd.f32 %v3834, %v3947
      %v3962 = vadd.f32 %v3837, %v3950
      %v3963 = vadd.f32 %v3839, %v3952
      %v3964 = vld [vmem:[%s5] sm:$0x1]
      %v3966 = vperm.slane %v3964, 0
      %v3968 = vadd.f32 %v3954, %v3966
      %v3969 = vadd.f32 %v3955, %v3966
      %v3970 = vadd.f32 %v3956, %v3966
      %v3971 = vadd.f32 %v3957, %v3966
      %v3972 = vadd.f32 %v3958, %v3966
      %v3973 = vadd.f32 %v3959, %v3966
      %v3974 = vadd.f32 %v3960, %v3966
      %v3975 = vadd.f32 %v3961, %v3966
      %v3976 = vadd.f32 %v3962, %v3966
      %v3977 = vadd.f32 %v3963, %v3966
      %v3978 = vpack.c.bf16 %v3968, %v3968
      %v3979 = vpack.c.bf16 %v3969, %v3969
      %v3980 = vpack.c.bf16 %v3970, %v3970
      %v3981 = vpack.c.bf16 %v3971, %v3971
      %v3982 = vpack.c.bf16 %v3972, %v3972
      %v3983 = vpack.c.bf16 %v3973, %v3973
      %v3984 = vpack.c.bf16 %v3974, %v3974
      %v3985 = vpack.c.bf16 %v3975, %v3975
      %v3986 = vpack.c.bf16 %v3976, %v3976
      %v3987 = vpack.c.bf16 %v3977, %v3977
      %3988 = vst [vmem:[%s251] sm:$0xf] %v3978
      %3989 = vst [vmem:[%s251 + $0x4] sm:$0xf] %v3979
      %3990 = vst [vmem:[%s251 + $0x8] sm:$0xf] %v3980
      %3991 = vst [vmem:[%s251 + $0xc] sm:$0xf] %v3981
      %3992 = vst [vmem:[%s251 + $0x10] sm:$0xf] %v3982
      %3993 = vst [vmem:[%s251 + $0x14] sm:$0xf] %v3983
      %3994 = vst [vmem:[%s251 + $0x18] sm:$0xf] %v3984
      %3995 = vst [vmem:[%s251 + $0x1c] sm:$0xf] %v3985
      %3996 = vst [vmem:[%s251 + $0x20] sm:$0xf] %v3986
      %3997 = vst [vmem:[%s251 + $0x24] sm:$0xf] %v3987
      %p3998 = scmp.lt.s32.totalorder %s17, 1
      %s3999 = scalar_select %p3998, %s17, 1
      %s4000 = smul.addr %s3999, 10
      %s4001 = smul.addr %s4000, 4
      %s4002 = scalar_lea.vmem %s6, %s4001
      // Predicated region
      $region45: #{net_forward.4} parent=43 // pred_check
        %p4003 = pneg %p166
      $region46: #{net_forward.4} parent=43 // pred_check_branch
        %4005 = sbr.rel (%p4003) target = $region48
      $region47: #{net_forward.4} parent=43 // pred_region
        _
      $region48: #{net_forward.4} parent=43 // pred_fallthru
        _
    $region44: #{net_forward.4} parent=5 // pred_fallthru
      _
    %p4006 = scmp.le.s32.totalorder 2, %s12
    // Predicated region
    $region49: #{net_forward.4} parent=5 // pred_check
      %p4007 = pneg %p4006
    $region50: #{net_forward.4} parent=5 // pred_check_branch
      %4009 = sbr.rel (%p4007) target = $region52
    $region51: #{net_forward.4} parent=5 // pred_region
      %s4010 = ssub.s32 %s12, 2
      // Predicated region
      $region53: #{net_forward.4} parent=51 // pred_check
        %p4011 = pneg %p172
      $region54: #{net_forward.4} parent=51 // pred_check_branch
        %4013 = sbr.rel (%p4011) target = $region56
      $region55: #{net_forward.4} parent=51 // pred_region
        %p4014 = scmp.lt.s32.totalorder %s18, 1
        %s4015 = scalar_select %p4014, %s18, 1
        %s4016 = smul.addr %s4015, 10
        %s4017 = smul.addr %s4016, 4
        %s4018 = scalar_lea.vmem %s6, %s4017
      $region56: #{net_forward.4} parent=51 // pred_fallthru
        _
    $region52: #{net_forward.4} parent=5 // pred_fallthru
      _
  $region6: #{net_forward.4} parent=0 // loop_footer
    %s16 = sadd.s32 1, %s12
  $region7: #{net_forward.4} parent=0 // loop_footer_branch
    %11 = sbr.rel target = $region3
  $region8: #{net_forward.4} parent=0 // loop_exit
    _

// kernel: net_forward.5
$region0: #{net_forward.5}
  #allocation0 [shape = 'u32[]', space=smem, size = 0x4, offset = 0x4, fixed_abs, tag = 'smem constant byte address 0x4 - core index']
  #allocation1 [shape = 'u32[72,128]{1,0:T(1,128)}', space=vmem, size = 0x9000, scoped, tag = 'internal scratch']
  #allocation2 [shape = 'f32[328,96]{1,0:T(8,128)}', space=vmem, size = 0x29000, scoped, tag = 'scratch operand']
  %s0 = inlined_call_operand.vmem [shape: bf16[2,288,32], index: 0, kind: input, shape index: {}]
  %s1 = inlined_call_operand.vmem [shape: bf16[2,288,32], index: 1, kind: input, shape index: {}]
  %s2 = inlined_call_operand.vmem [shape: bf16[3,96,3], index: 2, kind: input, shape index: {}]
  %s3 = inlined_call_operand.vmem [shape: f32[2,288,3], index: 3, kind: output, shape index: {}]
  %s4 = sld [smem:[#allocation0]]
  $region45: #{net_forward.5} parent=0
    _
  %s6 = ssub.s32 1, %s4
  %s7 = scalar_select 0, %s6, %s4
  loop: start=0, step=1, limit=4
  $region2: #{net_forward.5} parent=0 // loop_pre_header
    _
  $region3: #{net_forward.5} parent=0 // loop_header
    %s9 = sphi 0, %s13
    %p10 = scmp.ge.s32.totalorder %s9, 4
    %s19 = sphi 0, %s21
    %s22 = sphi 0, %s19
    %s23 = sphi 0, %s22
    %s39 = sphi 0, %s23
    %s45 = sphi 0, %s47
    %s48 = sphi 0, %s45
    %s49 = sphi 0, %s48
    %s65 = sphi 0, %s49
    %s69 = sphi 0, %s69
    %s71 = sphi 0, %s69
    %s72 = sphi 0, %s71
    %s86 = sphi 0, %s72
    %s92 = sphi 0, %s94
    %s95 = sphi 0, %s92
    %s96 = sphi 0, %s95
    %s112 = sphi 0, %s96
  $region4: #{net_forward.5} parent=0 // loop_header_branch
    %12 = sbr.rel (%p10) target = $region8
  $region5: #{net_forward.5} parent=0 // loop_body
    %s14 = ssub.s32 %s9, 1
    %s15 = ssub.s32 %s9, 2
    %s16 = sadd.s32 %s9, 1
    %s17 = ssub.s32 %s9, %s16
    %p18 = scmp.eq.s32.totalorder %s17, 0
    %s20 = sadd.s32 %s19, 1
    %s21 = scalar_select %p18, %s19, %s20
    %p24 = pneg %p18
    %p25 = scmp.eq.s32.totalorder %s9, 1
    %p26 = por %p24, %p25
    %p27 = scmp.ne.s32.totalorder %s19, %s22
    %p28 = scmp.eq.s32.totalorder %s9, 0
    %p29 = por %p27, %p28
    %p30 = scmp.ne.s32.totalorder %s19, %s22
    %p31 = scmp.eq.s32.totalorder %s14, 1
    %p32 = por %p30, %p31
    %p33 = scmp.ne.s32.totalorder %s22, %s23
    %p34 = scmp.eq.s32.totalorder %s14, 0
    %p35 = por %p33, %p34
    %p36 = scmp.ne.s32.totalorder %s22, %s23
    %p37 = scmp.eq.s32.totalorder %s15, 1
    %p38 = por %p36, %p37
    %p40 = scmp.ne.s32.totalorder %s23, %s39
    %p41 = scmp.eq.s32.totalorder %s15, 0
    %p42 = por %p40, %p41
    %s43 = ssub.s32 %s9, %s16
    %p44 = scmp.eq.s32.totalorder %s43, 0
    %s46 = sadd.s32 %s45, 1
    %s47 = scalar_select %p44, %s45, %s46
    %p50 = pneg %p44
    %p51 = scmp.eq.s32.totalorder %s9, 1
    %p52 = por %p50, %p51
    %p53 = scmp.ne.s32.totalorder %s45, %s48
    %p54 = scmp.eq.s32.totalorder %s9, 0
    %p55 = por %p53, %p54
    %p56 = scmp.ne.s32.totalorder %s45, %s48
    %p57 = scmp.eq.s32.totalorder %s14, 1
    %p58 = por %p56, %p57
    %p59 = scmp.ne.s32.totalorder %s48, %s49
    %p60 = scmp.eq.s32.totalorder %s14, 0
    %p61 = por %p59, %p60
    %p62 = scmp.ne.s32.totalorder %s48, %s49
    %p63 = scmp.eq.s32.totalorder %s15, 1
    %p64 = por %p62, %p63
    %p66 = scmp.ne.s32.totalorder %s49, %s65
    %p67 = scmp.eq.s32.totalorder %s15, 0
    %p68 = por %p66, %p67
    %s70 = sadd.s32 %s69, 1
    %p73 = scmp.eq.s32.totalorder %s9, 1
    %p74 = scmp.ne.s32.totalorder %s69, %s71
    %p75 = scmp.eq.s32.totalorder %s9, 0
    %p76 = por %p74, %p75
    %p77 = scmp.ne.s32.totalorder %s69, %s71
    %p78 = scmp.eq.s32.totalorder %s14, 1
    %p79 = por %p77, %p78
    %p80 = scmp.ne.s32.totalorder %s71, %s72
    %p81 = scmp.eq.s32.totalorder %s14, 0
    %p82 = por %p80, %p81
    %p83 = scmp.ne.s32.totalorder %s71, %s72
    %p84 = scmp.eq.s32.totalorder %s15, 1
    %p85 = por %p83, %p84
    %p87 = scmp.ne.s32.totalorder %s72, %s86
    %p88 = scmp.eq.s32.totalorder %s15, 0
    %p89 = por %p87, %p88
    %s90 = ssub.s32 %s9, %s16
    %p91 = scmp.eq.s32.totalorder %s90, 0
    %s93 = sadd.s32 %s92, 1
    %s94 = scalar_select %p91, %s92, %s93
    %p97 = pneg %p91
    %p98 = scmp.eq.s32.totalorder %s9, 1
    %p99 = por %p97, %p98
    %p100 = scmp.ne.s32.totalorder %s92, %s95
    %p101 = scmp.eq.s32.totalorder %s9, 0
    %p102 = por %p100, %p101
    %p103 = scmp.ne.s32.totalorder %s92, %s95
    %p104 = scmp.eq.s32.totalorder %s14, 1
    %p105 = por %p103, %p104
    %p106 = scmp.ne.s32.totalorder %s95, %s96
    %p107 = scmp.eq.s32.totalorder %s14, 0
    %p108 = por %p106, %p107
    %p109 = scmp.ne.s32.totalorder %s95, %s96
    %p110 = scmp.eq.s32.totalorder %s15, 1
    %p111 = por %p109, %p110
    %p113 = scmp.ne.s32.totalorder %s96, %s112
    %p114 = scmp.eq.s32.totalorder %s15, 0
    %p115 = por %p113, %p114
    %p116 = scmp.le.s32.totalorder 1, %s9
    %p117 = scmp.lt.s32.totalorder %s9, 3
    %p118 = pnand %p116, %p117
    %p119 = pneg %p118
    // Predicated region
    $region9: #{net_forward.5} parent=5 // pred_check
      _
    $region10: #{net_forward.5} parent=5 // pred_check_branch
      %121 = sbr.rel (%p118) target = $region12
    $region11: #{net_forward.5} parent=5 // pred_region
      %s122 = ssub.s32 %s9, 1
      // Predicated region
      $region13: #{net_forward.5} parent=11 // pred_check
        %p123 = pneg %p82
      $region14: #{net_forward.5} parent=11 // pred_check_branch
        %125 = sbr.rel (%p123) target = $region16
      $region15: #{net_forward.5} parent=11 // pred_region
        _
      $region16: #{net_forward.5} parent=11 // pred_fallthru
        _
    $region12: #{net_forward.5} parent=5 // pred_fallthru
      _
    %p126 = scmp.lt.s32.totalorder %s9, 2
    // Predicated region
    $region17: #{net_forward.5} parent=5 // pred_check
      %p127 = pneg %p126
    $region18: #{net_forward.5} parent=5 // pred_check_branch
      %129 = sbr.rel (%p127) target = $region20
    $region19: #{net_forward.5} parent=5 // pred_region
      // Predicated region
      $region21: #{net_forward.5} parent=19 // pred_check
        %p130 = pneg %p29
      $region22: #{net_forward.5} parent=19 // pred_check_branch
        %132 = sbr.rel (%p130) target = $region24
      $region23: #{net_forward.5} parent=19 // pred_region
        %p133 = scmp.lt.s32.totalorder %s9, 1
        %s134 = scalar_select %p133, %s9, 1
        %s135 = smul.addr %s134, 36
        %s136 = smul.addr %s135, 4
        %s137 = scalar_lea.vmem %s0, %s136
      $region24: #{net_forward.5} parent=19 // pred_fallthru
        _
      // Predicated region
      $region25: #{net_forward.5} parent=19 // pred_check
        %p138 = pneg %p55
      $region26: #{net_forward.5} parent=19 // pred_check_branch
        %140 = sbr.rel (%p138) target = $region28
      $region27: #{net_forward.5} parent=19 // pred_region
        %p141 = scmp.lt.s32.totalorder %s9, 1
        %s142 = scalar_select %p141, %s9, 1
        %s143 = smul.addr %s142, 36
        %s144 = smul.addr %s143, 4
        %s145 = scalar_lea.vmem %s1, %s144
      $region28: #{net_forward.5} parent=19 // pred_fallthru
        _
    $region20: #{net_forward.5} parent=5 // pred_fallthru
      _
    %p146 = scmp.le.s32.totalorder 1, %s9
    %p147 = scmp.lt.s32.totalorder %s9, 3
    %p148 = pnand %p146, %p147
    %p149 = pneg %p148
    // Predicated region
    $region29: #{net_forward.5} parent=5 // pred_check
      _
    $region30: #{net_forward.5} parent=5 // pred_check_branch
      %151 = sbr.rel (%p148) target = $region32
    $region31: #{net_forward.5} parent=5 // pred_region
      %s152 = ssub.s32 %s9, 1
      %p153 = scmp.lt.s32.totalorder %s14, 1
      %s154 = scalar_select %p153, %s14, 1
      %s155 = smul.addr %s154, 36
      %s156 = smul.addr %s155, 4
      %s157 = scalar_lea.vmem %s0, %s156
      %p158 = pneg %p35
      %p159 = pneg %p32
      %p160 = scmp.lt.s32.totalorder %s14, 1
      %s161 = scalar_select %p160, %s14, 1
      %s162 = smul.addr %s161, 36
      %s163 = smul.addr %s162, 4
      %s164 = scalar_lea.vmem %s1, %s163
      %p165 = pneg %p61
      %p166 = pneg %p58
      %p167 = pneg %p82
      %p168 = pneg %p79
      %p169 = pneg %p108
      %p170 = pneg %p105
      %p171 = scmp.lt.s32.totalorder %s14, 1
      %s172 = scalar_select %p171, %s14, 1
      %s173 = smul.addr %s172, 36
      %s174 = smul.addr %s173, 8
      %s175 = scalar_lea.vmem %s3, %s174
      %p176 = scmp.lt.s32.totalorder %s14, 1
      %s177 = scalar_select %p176, %s14, 1
      %s178 = smul.addr %s177, 36
      %s179 = smul.addr %s178, 4
      %s180 = scalar_lea.vmem %s0, %s179
      %p181 = scmp.lt.s32.totalorder %s14, 1
      %s182 = scalar_select %p181, %s14, 1
      %s183 = smul.addr %s182, 36
      %s184 = smul.addr %s183, 4
      %s185 = scalar_lea.vmem %s1, %s184
      %p186 = scmp.lt.s32.totalorder %s14, 1
      %s187 = scalar_select %p186, %s14, 1
      %s188 = smul.addr %s187, 36
      %s189 = smul.addr %s188, 8
      %s190 = scalar_lea.vmem %s3, %s189
      %vm192 = vcmask 785408
      %193 = vst.msk [vmem:[#allocation2] sm:$0xff] %vm192, 0.0
      %194 = vst.msk [vmem:[#allocation2 + $0x8] sm:$0xff] %vm192, 0.0
      %195 = vst.msk [vmem:[#allocation2 + $0x10] sm:$0xff] %vm192, 0.0
      %196 = vst.msk [vmem:[#allocation2 + $0x18] sm:$0xff] %vm192, 0.0
      %197 = vst.msk [vmem:[#allocation2 + $0x20] sm:$0xff] %vm192, 0.0
      %198 = vst.msk [vmem:[#allocation2 + $0x28] sm:$0xff] %vm192, 0.0
      %199 = vst.msk [vmem:[#allocation2 + $0x30] sm:$0xff] %vm192, 0.0
      %200 = vst.msk [vmem:[#allocation2 + $0x38] sm:$0xff] %vm192, 0.0
      %201 = vst.msk [vmem:[#allocation2 + $0x40] sm:$0xff] %vm192, 0.0
      %202 = vst.msk [vmem:[#allocation2 + $0x48] sm:$0xff] %vm192, 0.0
      %203 = vst.msk [vmem:[#allocation2 + $0x50] sm:$0xff] %vm192, 0.0
      %204 = vst.msk [vmem:[#allocation2 + $0x58] sm:$0xff] %vm192, 0.0
      %205 = vst.msk [vmem:[#allocation2 + $0x60] sm:$0xff] %vm192, 0.0
      %206 = vst.msk [vmem:[#allocation2 + $0x68] sm:$0xff] %vm192, 0.0
      %207 = vst.msk [vmem:[#allocation2 + $0x70] sm:$0xff] %vm192, 0.0
      %208 = vst.msk [vmem:[#allocation2 + $0x78] sm:$0xff] %vm192, 0.0
      %209 = vst.msk [vmem:[#allocation2 + $0x80] sm:$0xff] %vm192, 0.0
      %210 = vst.msk [vmem:[#allocation2 + $0x88] sm:$0xff] %vm192, 0.0
      %211 = vst.msk [vmem:[#allocation2 + $0x90] sm:$0xff] %vm192, 0.0
      %212 = vst.msk [vmem:[#allocation2 + $0x98] sm:$0xff] %vm192, 0.0
      %213 = vst.msk [vmem:[#allocation2 + $0xa0] sm:$0xff] %vm192, 0.0
      %214 = vst.msk [vmem:[#allocation2 + $0xa8] sm:$0xff] %vm192, 0.0
      %215 = vst.msk [vmem:[#allocation2 + $0xb0] sm:$0xff] %vm192, 0.0
      %216 = vst.msk [vmem:[#allocation2 + $0xb8] sm:$0xff] %vm192, 0.0
      %217 = vst.msk [vmem:[#allocation2 + $0xc0] sm:$0xff] %vm192, 0.0
      %218 = vst.msk [vmem:[#allocation2 + $0xc8] sm:$0xff] %vm192, 0.0
      %219 = vst.msk [vmem:[#allocation2 + $0xd0] sm:$0xff] %vm192, 0.0
      %220 = vst.msk [vmem:[#allocation2 + $0xd8] sm:$0xff] %vm192, 0.0
      %221 = vst.msk [vmem:[#allocation2 + $0xe0] sm:$0xff] %vm192, 0.0
      %222 = vst.msk [vmem:[#allocation2 + $0xe8] sm:$0xff] %vm192, 0.0
      %223 = vst.msk [vmem:[#allocation2 + $0xf0] sm:$0xff] %vm192, 0.0
      %224 = vst.msk [vmem:[#allocation2 + $0xf8] sm:$0xff] %vm192, 0.0
      %225 = vst.msk [vmem:[#allocation2 + $0x100] sm:$0xff] %vm192, 0.0
      %226 = vst.msk [vmem:[#allocation2 + $0x108] sm:$0xff] %vm192, 0.0
      %227 = vst.msk [vmem:[#allocation2 + $0x110] sm:$0xff] %vm192, 0.0
      %228 = vst.msk [vmem:[#allocation2 + $0x118] sm:$0xff] %vm192, 0.0
      %229 = vst.msk [vmem:[#allocation2 + $0x120] sm:$0xff] %vm192, 0.0
      %230 = vst.msk [vmem:[#allocation2 + $0x128] sm:$0xff] %vm192, 0.0
      %231 = vst.msk [vmem:[#allocation2 + $0x130] sm:$0xff] %vm192, 0.0
      %232 = vst.msk [vmem:[#allocation2 + $0x138] sm:$0xff] %vm192, 0.0
      %233 = vst.msk [vmem:[#allocation2 + $0x140] sm:$0xff] %vm192, 0.0
      %v234 = vlaneseq
      %v235 = vshrl.u32 %v234, 7
      %v236 = vadd.s32 %v235, 8
      %v237 = vadd.s32 %v235, 16
      %v238 = vadd.s32 %v235, 24
      %v239 = vadd.s32 %v235, 32
      %v240 = vadd.s32 %v235, 40
      %v241 = vadd.s32 %v235, 48
      %v242 = vadd.s32 %v235, 56
      %v243 = vadd.s32 %v235, 64
      %v244 = vadd.s32 %v235, 72
      %v245 = vadd.s32 %v235, 80
      %v246 = vadd.s32 %v235, 88
      %v247 = vadd.s32 %v235, 96
      %v248 = vadd.s32 %v235, 104
      %v249 = vadd.s32 %v235, 112
      %v250 = vadd.s32 %v235, 120
      %v251 = vadd.s32 %v235, 128
      %v252 = vadd.s32 %v235, 136
      %v253 = vadd.s32 %v235, 144
      %v254 = vadd.s32 %v235, 152
      %v255 = vadd.s32 %v235, 160
      %v256 = vadd.s32 %v235, 168
      %v257 = vadd.s32 %v235, 176
      %v258 = vadd.s32 %v235, 184
      %v259 = vadd.s32 %v235, 192
      %v260 = vadd.s32 %v235, 200
      %v261 = vadd.s32 %v235, 208
      %v262 = vadd.s32 %v235, 216
      %v263 = vadd.s32 %v235, 224
      %v264 = vadd.s32 %v235, 232
      %v265 = vadd.s32 %v235, 240
      %v266 = vadd.s32 %v235, 248
      %v267 = vadd.s32 %v235, 256
      %v268 = vadd.s32 %v235, 264
      %v269 = vadd.s32 %v235, 272
      %v270 = vadd.s32 %v235, 280
      %vm271 = vcmp.lt.s32.totalorder %v235, 0
      %v272 = vsub.s32 0, %v235
      %v273 = vsel %vm271, %v272, %v235
      %v274 = vand.u32 %v273, 65535
      %v275 = vshrl.u32 %v273, 16
      %v277 = vmul.u32 %v274, 14564
      %v278 = vmul.u32 %v274, 58254
      %v279 = vmul.u32 %v275, 14564
      %v280 = vmul.u32 %v275, 58254
      %v281 = vshll.u32 %v278, 16
      %v282 = vshrl.u32 %v278, 16
      %v283 = vshll.u32 %v279, 16
      %v284 = vshrl.u32 %v279, 16
      %vm285 = vc.u32 %v277, %v281
      %v286 = vsel %vm285, 1, 0
      %v287 = vadd.s32 %v277, %v281
      %v288 = vadd.s32 %v280, %v286
      %vm289 = vc.u32 %v287, %v283
      %v290 = vsel %vm289, 1, 0
      %v291 = vadd.s32 %v287, %v283
      %v292 = vadd.s32 %v288, %v290
      %v293 = vadd.s32 %v292, %v282
      %v294 = vadd.s32 %v293, %v284
      %v295 = vshrl.u32 %v294, 4
      %v296 = vmul.u32 %v295, 18
      %v297 = vsub.s32 %v273, %v296
      %v298 = vsub.s32 0, %v297
      %v299 = vsel %vm271, %v298, %v297
      %vm300 = vcmp.lt.s32.totalorder %v236, 0
      %v301 = vsub.s32 0, %v236
      %v302 = vsel %vm300, %v301, %v236
      %v303 = vand.u32 %v302, 65535
      %v304 = vshrl.u32 %v302, 16
      %v306 = vmul.u32 %v303, 14564
      %v307 = vmul.u32 %v303, 58254
      %v308 = vmul.u32 %v304, 14564
      %v309 = vmul.u32 %v304, 58254
      %v310 = vshll.u32 %v307, 16
      %v311 = vshrl.u32 %v307, 16
      %v312 = vshll.u32 %v308, 16
      %v313 = vshrl.u32 %v308, 16
      %vm314 = vc.u32 %v306, %v310
      %v315 = vsel %vm314, 1, 0
      %v316 = vadd.s32 %v306, %v310
      %v317 = vadd.s32 %v309, %v315
      %vm318 = vc.u32 %v316, %v312
      %v319 = vsel %vm318, 1, 0
      %v320 = vadd.s32 %v316, %v312
      %v321 = vadd.s32 %v317, %v319
      %v322 = vadd.s32 %v321, %v311
      %v323 = vadd.s32 %v322, %v313
      %v324 = vshrl.u32 %v323, 4
      %v325 = vmul.u32 %v324, 18
      %v326 = vsub.s32 %v302, %v325
      %v327 = vsub.s32 0, %v326
      %v328 = vsel %vm300, %v327, %v326
      %vm329 = vcmp.lt.s32.totalorder %v237, 0
      %v330 = vsub.s32 0, %v237
      %v331 = vsel %vm329, %v330, %v237
      %v332 = vand.u32 %v331, 65535
      %v333 = vshrl.u32 %v331, 16
      %v335 = vmul.u32 %v332, 14564
      %v336 = vmul.u32 %v332, 58254
      %v337 = vmul.u32 %v333, 14564
      %v338 = vmul.u32 %v333, 58254
      %v339 = vshll.u32 %v336, 16
      %v340 = vshrl.u32 %v336, 16
      %v341 = vshll.u32 %v337, 16
      %v342 = vshrl.u32 %v337, 16
      %vm343 = vc.u32 %v335, %v339
      %v344 = vsel %vm343, 1, 0
      %v345 = vadd.s32 %v335, %v339
      %v346 = vadd.s32 %v338, %v344
      %vm347 = vc.u32 %v345, %v341
      %v348 = vsel %vm347, 1, 0
      %v349 = vadd.s32 %v345, %v341
      %v350 = vadd.s32 %v346, %v348
      %v351 = vadd.s32 %v350, %v340
      %v352 = vadd.s32 %v351, %v342
      %v353 = vshrl.u32 %v352, 4
      %v354 = vmul.u32 %v353, 18
      %v355 = vsub.s32 %v331, %v354
      %v356 = vsub.s32 0, %v355
      %v357 = vsel %vm329, %v356, %v355
      %vm358 = vcmp.lt.s32.totalorder %v238, 0
      %v359 = vsub.s32 0, %v238
      %v360 = vsel %vm358, %v359, %v238
      %v361 = vand.u32 %v360, 65535
      %v362 = vshrl.u32 %v360, 16
      %v364 = vmul.u32 %v361, 14564
      %v365 = vmul.u32 %v361, 58254
      %v366 = vmul.u32 %v362, 14564
      %v367 = vmul.u32 %v362, 58254
      %v368 = vshll.u32 %v365, 16
      %v369 = vshrl.u32 %v365, 16
      %v370 = vshll.u32 %v366, 16
      %v371 = vshrl.u32 %v366, 16
      %vm372 = vc.u32 %v364, %v368
      %v373 = vsel %vm372, 1, 0
      %v374 = vadd.s32 %v364, %v368
      %v375 = vadd.s32 %v367, %v373
      %vm376 = vc.u32 %v374, %v370
      %v377 = vsel %vm376, 1, 0
      %v378 = vadd.s32 %v374, %v370
      %v379 = vadd.s32 %v375, %v377
      %v380 = vadd.s32 %v379, %v369
      %v381 = vadd.s32 %v380, %v371
      %v382 = vshrl.u32 %v381, 4
      %v383 = vmul.u32 %v382, 18
      %v384 = vsub.s32 %v360, %v383
      %v385 = vsub.s32 0, %v384
      %v386 = vsel %vm358, %v385, %v384
      %vm387 = vcmp.lt.s32.totalorder %v239, 0
      %v388 = vsub.s32 0, %v239
      %v389 = vsel %vm387, %v388, %v239
      %v390 = vand.u32 %v389, 65535
      %v391 = vshrl.u32 %v389, 16
      %v393 = vmul.u32 %v390, 14564
      %v394 = vmul.u32 %v390, 58254
      %v395 = vmul.u32 %v391, 14564
      %v396 = vmul.u32 %v391, 58254
      %v397 = vshll.u32 %v394, 16
      %v398 = vshrl.u32 %v394, 16
      %v399 = vshll.u32 %v395, 16
      %v400 = vshrl.u32 %v395, 16
      %vm401 = vc.u32 %v393, %v397
      %v402 = vsel %vm401, 1, 0
      %v403 = vadd.s32 %v393, %v397
      %v404 = vadd.s32 %v396, %v402
      %vm405 = vc.u32 %v403, %v399
      %v406 = vsel %vm405, 1, 0
      %v407 = vadd.s32 %v403, %v399
      %v408 = vadd.s32 %v404, %v406
      %v409 = vadd.s32 %v408, %v398
      %v410 = vadd.s32 %v409, %v400
      %v411 = vshrl.u32 %v410, 4
      %v412 = vmul.u32 %v411, 18
      %v413 = vsub.s32 %v389, %v412
      %v414 = vsub.s32 0, %v413
      %v415 = vsel %vm387, %v414, %v413
      %vm416 = vcmp.lt.s32.totalorder %v240, 0
      %v417 = vsub.s32 0, %v240
      %v418 = vsel %vm416, %v417, %v240
      %v419 = vand.u32 %v418, 65535
      %v420 = vshrl.u32 %v418, 16
      %v422 = vmul.u32 %v419, 14564
      %v423 = vmul.u32 %v419, 58254
      %v424 = vmul.u32 %v420, 14564
      %v425 = vmul.u32 %v420, 58254
      %v426 = vshll.u32 %v423, 16
      %v427 = vshrl.u32 %v423, 16
      %v428 = vshll.u32 %v424, 16
      %v429 = vshrl.u32 %v424, 16
      %vm430 = vc.u32 %v422, %v426
      %v431 = vsel %vm430, 1, 0
      %v432 = vadd.s32 %v422, %v426
      %v433 = vadd.s32 %v425, %v431
      %vm434 = vc.u32 %v432, %v428
      %v435 = vsel %vm434, 1, 0
      %v436 = vadd.s32 %v432, %v428
      %v437 = vadd.s32 %v433, %v435
      %v438 = vadd.s32 %v437, %v427
      %v439 = vadd.s32 %v438, %v429
      %v440 = vshrl.u32 %v439, 4
      %v441 = vmul.u32 %v440, 18
      %v442 = vsub.s32 %v418, %v441
      %v443 = vsub.s32 0, %v442
      %v444 = vsel %vm416, %v443, %v442
      %vm445 = vcmp.lt.s32.totalorder %v241, 0
      %v446 = vsub.s32 0, %v241
      %v447 = vsel %vm445, %v446, %v241
      %v448 = vand.u32 %v447, 65535
      %v449 = vshrl.u32 %v447, 16
      %v451 = vmul.u32 %v448, 14564
      %v452 = vmul.u32 %v448, 58254
      %v453 = vmul.u32 %v449, 14564
      %v454 = vmul.u32 %v449, 58254
      %v455 = vshll.u32 %v452, 16
      %v456 = vshrl.u32 %v452, 16
      %v457 = vshll.u32 %v453, 16
      %v458 = vshrl.u32 %v453, 16
      %vm459 = vc.u32 %v451, %v455
      %v460 = vsel %vm459, 1, 0
      %v461 = vadd.s32 %v451, %v455
      %v462 = vadd.s32 %v454, %v460
      %vm463 = vc.u32 %v461, %v457
      %v464 = vsel %vm463, 1, 0
      %v465 = vadd.s32 %v461, %v457
      %v466 = vadd.s32 %v462, %v464
      %v467 = vadd.s32 %v466, %v456
      %v468 = vadd.s32 %v467, %v458
      %v469 = vshrl.u32 %v468, 4
      %v470 = vmul.u32 %v469, 18
      %v471 = vsub.s32 %v447, %v470
      %v472 = vsub.s32 0, %v471
      %v473 = vsel %vm445, %v472, %v471
      %vm474 = vcmp.lt.s32.totalorder %v242, 0
      %v475 = vsub.s32 0, %v242
      %v476 = vsel %vm474, %v475, %v242
      %v477 = vand.u32 %v476, 65535
      %v478 = vshrl.u32 %v476, 16
      %v480 = vmul.u32 %v477, 14564
      %v481 = vmul.u32 %v477, 58254
      %v482 = vmul.u32 %v478, 14564
      %v483 = vmul.u32 %v478, 58254
      %v484 = vshll.u32 %v481, 16
      %v485 = vshrl.u32 %v481, 16
      %v486 = vshll.u32 %v482, 16
      %v487 = vshrl.u32 %v482, 16
      %vm488 = vc.u32 %v480, %v484
      %v489 = vsel %vm488, 1, 0
      %v490 = vadd.s32 %v480, %v484
      %v491 = vadd.s32 %v483, %v489
      %vm492 = vc.u32 %v490, %v486
      %v493 = vsel %vm492, 1, 0
      %v494 = vadd.s32 %v490, %v486
      %v495 = vadd.s32 %v491, %v493
      %v496 = vadd.s32 %v495, %v485
      %v497 = vadd.s32 %v496, %v487
      %v498 = vshrl.u32 %v497, 4
      %v499 = vmul.u32 %v498, 18
      %v500 = vsub.s32 %v476, %v499
      %v501 = vsub.s32 0, %v500
      %v502 = vsel %vm474, %v501, %v500
      %vm503 = vcmp.lt.s32.totalorder %v243, 0
      %v504 = vsub.s32 0, %v243
      %v505 = vsel %vm503, %v504, %v243
      %v506 = vand.u32 %v505, 65535
      %v507 = vshrl.u32 %v505, 16
      %v509 = vmul.u32 %v506, 14564
      %v510 = vmul.u32 %v506, 58254
      %v511 = vmul.u32 %v507, 14564
      %v512 = vmul.u32 %v507, 58254
      %v513 = vshll.u32 %v510, 16
      %v514 = vshrl.u32 %v510, 16
      %v515 = vshll.u32 %v511, 16
      %v516 = vshrl.u32 %v511, 16
      %vm517 = vc.u32 %v509, %v513
      %v518 = vsel %vm517, 1, 0
      %v519 = vadd.s32 %v509, %v513
      %v520 = vadd.s32 %v512, %v518
      %vm521 = vc.u32 %v519, %v515
      %v522 = vsel %vm521, 1, 0
      %v523 = vadd.s32 %v519, %v515
      %v524 = vadd.s32 %v520, %v522
      %v525 = vadd.s32 %v524, %v514
      %v526 = vadd.s32 %v525, %v516
      %v527 = vshrl.u32 %v526, 4
      %v528 = vmul.u32 %v527, 18
      %v529 = vsub.s32 %v505, %v528
      %v530 = vsub.s32 0, %v529
      %v531 = vsel %vm503, %v530, %v529
      %vm532 = vcmp.lt.s32.totalorder %v244, 0
      %v533 = vsub.s32 0, %v244
      %v534 = vsel %vm532, %v533, %v244
      %v535 = vand.u32 %v534, 65535
      %v536 = vshrl.u32 %v534, 16
      %v538 = vmul.u32 %v535, 14564
      %v539 = vmul.u32 %v535, 58254
      %v540 = vmul.u32 %v536, 14564
      %v541 = vmul.u32 %v536, 58254
      %v542 = vshll.u32 %v539, 16
      %v543 = vshrl.u32 %v539, 16
      %v544 = vshll.u32 %v540, 16
      %v545 = vshrl.u32 %v540, 16
      %vm546 = vc.u32 %v538, %v542
      %v547 = vsel %vm546, 1, 0
      %v548 = vadd.s32 %v538, %v542
      %v549 = vadd.s32 %v541, %v547
      %vm550 = vc.u32 %v548, %v544
      %v551 = vsel %vm550, 1, 0
      %v552 = vadd.s32 %v548, %v544
      %v553 = vadd.s32 %v549, %v551
      %v554 = vadd.s32 %v553, %v543
      %v555 = vadd.s32 %v554, %v545
      %v556 = vshrl.u32 %v555, 4
      %v557 = vmul.u32 %v556, 18
      %v558 = vsub.s32 %v534, %v557
      %v559 = vsub.s32 0, %v558
      %v560 = vsel %vm532, %v559, %v558
      %vm561 = vcmp.lt.s32.totalorder %v245, 0
      %v562 = vsub.s32 0, %v245
      %v563 = vsel %vm561, %v562, %v245
      %v564 = vand.u32 %v563, 65535
      %v565 = vshrl.u32 %v563, 16
      %v567 = vmul.u32 %v564, 14564
      %v568 = vmul.u32 %v564, 58254
      %v569 = vmul.u32 %v565, 14564
      %v570 = vmul.u32 %v565, 58254
      %v571 = vshll.u32 %v568, 16
      %v572 = vshrl.u32 %v568, 16
      %v573 = vshll.u32 %v569, 16
      %v574 = vshrl.u32 %v569, 16
      %vm575 = vc.u32 %v567, %v571
      %v576 = vsel %vm575, 1, 0
      %v577 = vadd.s32 %v567, %v571
      %v578 = vadd.s32 %v570, %v576
      %vm579 = vc.u32 %v577, %v573
      %v580 = vsel %vm579, 1, 0
      %v581 = vadd.s32 %v577, %v573
      %v582 = vadd.s32 %v578, %v580
      %v583 = vadd.s32 %v582, %v572
      %v584 = vadd.s32 %v583, %v574
      %v585 = vshrl.u32 %v584, 4
      %v586 = vmul.u32 %v585, 18
      %v587 = vsub.s32 %v563, %v586
      %v588 = vsub.s32 0, %v587
      %v589 = vsel %vm561, %v588, %v587
      %vm590 = vcmp.lt.s32.totalorder %v246, 0
      %v591 = vsub.s32 0, %v246
      %v592 = vsel %vm590, %v591, %v246
      %v593 = vand.u32 %v592, 65535
      %v594 = vshrl.u32 %v592, 16
      %v596 = vmul.u32 %v593, 14564
      %v597 = vmul.u32 %v593, 58254
      %v598 = vmul.u32 %v594, 14564
      %v599 = vmul.u32 %v594, 58254
      %v600 = vshll.u32 %v597, 16
      %v601 = vshrl.u32 %v597, 16
      %v602 = vshll.u32 %v598, 16
      %v603 = vshrl.u32 %v598, 16
      %vm604 = vc.u32 %v596, %v600
      %v605 = vsel %vm604, 1, 0
      %v606 = vadd.s32 %v596, %v600
      %v607 = vadd.s32 %v599, %v605
      %vm608 = vc.u32 %v606, %v602
      %v609 = vsel %vm608, 1, 0
      %v610 = vadd.s32 %v606, %v602
      %v611 = vadd.s32 %v607, %v609
      %v612 = vadd.s32 %v611, %v601
      %v613 = vadd.s32 %v612, %v603
      %v614 = vshrl.u32 %v613, 4
      %v615 = vmul.u32 %v614, 18
      %v616 = vsub.s32 %v592, %v615
      %v617 = vsub.s32 0, %v616
      %v618 = vsel %vm590, %v617, %v616
      %vm619 = vcmp.lt.s32.totalorder %v247, 0
      %v620 = vsub.s32 0, %v247
      %v621 = vsel %vm619, %v620, %v247
      %v622 = vand.u32 %v621, 65535
      %v623 = vshrl.u32 %v621, 16
      %v625 = vmul.u32 %v622, 14564
      %v626 = vmul.u32 %v622, 58254
      %v627 = vmul.u32 %v623, 14564
      %v628 = vmul.u32 %v623, 58254
      %v629 = vshll.u32 %v626, 16
      %v630 = vshrl.u32 %v626, 16
      %v631 = vshll.u32 %v627, 16
      %v632 = vshrl.u32 %v627, 16
      %vm633 = vc.u32 %v625, %v629
      %v634 = vsel %vm633, 1, 0
      %v635 = vadd.s32 %v625, %v629
      %v636 = vadd.s32 %v628, %v634
      %vm637 = vc.u32 %v635, %v631
      %v638 = vsel %vm637, 1, 0
      %v639 = vadd.s32 %v635, %v631
      %v640 = vadd.s32 %v636, %v638
      %v641 = vadd.s32 %v640, %v630
      %v642 = vadd.s32 %v641, %v632
      %v643 = vshrl.u32 %v642, 4
      %v644 = vmul.u32 %v643, 18
      %v645 = vsub.s32 %v621, %v644
      %v646 = vsub.s32 0, %v645
      %v647 = vsel %vm619, %v646, %v645
      %vm648 = vcmp.lt.s32.totalorder %v248, 0
      %v649 = vsub.s32 0, %v248
      %v650 = vsel %vm648, %v649, %v248
      %v651 = vand.u32 %v650, 65535
      %v652 = vshrl.u32 %v650, 16
      %v654 = vmul.u32 %v651, 14564
      %v655 = vmul.u32 %v651, 58254
      %v656 = vmul.u32 %v652, 14564
      %v657 = vmul.u32 %v652, 58254
      %v658 = vshll.u32 %v655, 16
      %v659 = vshrl.u32 %v655, 16
      %v660 = vshll.u32 %v656, 16
      %v661 = vshrl.u32 %v656, 16
      %vm662 = vc.u32 %v654, %v658
      %v663 = vsel %vm662, 1, 0
      %v664 = vadd.s32 %v654, %v658
      %v665 = vadd.s32 %v657, %v663
      %vm666 = vc.u32 %v664, %v660
      %v667 = vsel %vm666, 1, 0
      %v668 = vadd.s32 %v664, %v660
      %v669 = vadd.s32 %v665, %v667
      %v670 = vadd.s32 %v669, %v659
      %v671 = vadd.s32 %v670, %v661
      %v672 = vshrl.u32 %v671, 4
      %v673 = vmul.u32 %v672, 18
      %v674 = vsub.s32 %v650, %v673
      %v675 = vsub.s32 0, %v674
      %v676 = vsel %vm648, %v675, %v674
      %vm677 = vcmp.lt.s32.totalorder %v249, 0
      %v678 = vsub.s32 0, %v249
      %v679 = vsel %vm677, %v678, %v249
      %v680 = vand.u32 %v679, 65535
      %v681 = vshrl.u32 %v679, 16
      %v683 = vmul.u32 %v680, 14564
      %v684 = vmul.u32 %v680, 58254
      %v685 = vmul.u32 %v681, 14564
      %v686 = vmul.u32 %v681, 58254
      %v687 = vshll.u32 %v684, 16
      %v688 = vshrl.u32 %v684, 16
      %v689 = vshll.u32 %v685, 16
      %v690 = vshrl.u32 %v685, 16
      %vm691 = vc.u32 %v683, %v687
      %v692 = vsel %vm691, 1, 0
      %v693 = vadd.s32 %v683, %v687
      %v694 = vadd.s32 %v686, %v692
      %vm695 = vc.u32 %v693, %v689
      %v696 = vsel %vm695, 1, 0
      %v697 = vadd.s32 %v693, %v689
      %v698 = vadd.s32 %v694, %v696
      %v699 = vadd.s32 %v698, %v688
      %v700 = vadd.s32 %v699, %v690
      %v701 = vshrl.u32 %v700, 4
      %v702 = vmul.u32 %v701, 18
      %v703 = vsub.s32 %v679, %v702
      %v704 = vsub.s32 0, %v703
      %v705 = vsel %vm677, %v704, %v703
      %vm706 = vcmp.lt.s32.totalorder %v250, 0
      %v707 = vsub.s32 0, %v250
      %v708 = vsel %vm706, %v707, %v250
      %v709 = vand.u32 %v708, 65535
      %v710 = vshrl.u32 %v708, 16
      %v712 = vmul.u32 %v709, 14564
      %v713 = vmul.u32 %v709, 58254
      %v714 = vmul.u32 %v710, 14564
      %v715 = vmul.u32 %v710, 58254
      %v716 = vshll.u32 %v713, 16
      %v717 = vshrl.u32 %v713, 16
      %v718 = vshll.u32 %v714, 16
      %v719 = vshrl.u32 %v714, 16
      %vm720 = vc.u32 %v712, %v716
      %v721 = vsel %vm720, 1, 0
      %v722 = vadd.s32 %v712, %v716
      %v723 = vadd.s32 %v715, %v721
      %vm724 = vc.u32 %v722, %v718
      %v725 = vsel %vm724, 1, 0
      %v726 = vadd.s32 %v722, %v718
      %v727 = vadd.s32 %v723, %v725
      %v728 = vadd.s32 %v727, %v717
      %v729 = vadd.s32 %v728, %v719
      %v730 = vshrl.u32 %v729, 4
      %v731 = vmul.u32 %v730, 18
      %v732 = vsub.s32 %v708, %v731
      %v733 = vsub.s32 0, %v732
      %v734 = vsel %vm706, %v733, %v732
      %vm735 = vcmp.lt.s32.totalorder %v251, 0
      %v736 = vsub.s32 0, %v251
      %v737 = vsel %vm735, %v736, %v251
      %v738 = vand.u32 %v737, 65535
      %v739 = vshrl.u32 %v737, 16
      %v741 = vmul.u32 %v738, 14564
      %v742 = vmul.u32 %v738, 58254
      %v743 = vmul.u32 %v739, 14564
      %v744 = vmul.u32 %v739, 58254
      %v745 = vshll.u32 %v742, 16
      %v746 = vshrl.u32 %v742, 16
      %v747 = vshll.u32 %v743, 16
      %v748 = vshrl.u32 %v743, 16
      %vm749 = vc.u32 %v741, %v745
      %v750 = vsel %vm749, 1, 0
      %v751 = vadd.s32 %v741, %v745
      %v752 = vadd.s32 %v744, %v750
      %vm753 = vc.u32 %v751, %v747
      %v754 = vsel %vm753, 1, 0
      %v755 = vadd.s32 %v751, %v747
      %v756 = vadd.s32 %v752, %v754
      %v757 = vadd.s32 %v756, %v746
      %v758 = vadd.s32 %v757, %v748
      %v759 = vshrl.u32 %v758, 4
      %v760 = vmul.u32 %v759, 18
      %v761 = vsub.s32 %v737, %v760
      %v762 = vsub.s32 0, %v761
      %v763 = vsel %vm735, %v762, %v761
      %vm764 = vcmp.lt.s32.totalorder %v252, 0
      %v765 = vsub.s32 0, %v252
      %v766 = vsel %vm764, %v765, %v252
      %v767 = vand.u32 %v766, 65535
      %v768 = vshrl.u32 %v766, 16
      %v770 = vmul.u32 %v767, 14564
      %v771 = vmul.u32 %v767, 58254
      %v772 = vmul.u32 %v768, 14564
      %v773 = vmul.u32 %v768, 58254
      %v774 = vshll.u32 %v771, 16
      %v775 = vshrl.u32 %v771, 16
      %v776 = vshll.u32 %v772, 16
      %v777 = vshrl.u32 %v772, 16
      %vm778 = vc.u32 %v770, %v774
      %v779 = vsel %vm778, 1, 0
      %v780 = vadd.s32 %v770, %v774
      %v781 = vadd.s32 %v773, %v779
      %vm782 = vc.u32 %v780, %v776
      %v783 = vsel %vm782, 1, 0
      %v784 = vadd.s32 %v780, %v776
      %v785 = vadd.s32 %v781, %v783
      %v786 = vadd.s32 %v785, %v775
      %v787 = vadd.s32 %v786, %v777
      %v788 = vshrl.u32 %v787, 4
      %v789 = vmul.u32 %v788, 18
      %v790 = vsub.s32 %v766, %v789
      %v791 = vsub.s32 0, %v790
      %v792 = vsel %vm764, %v791, %v790
      %vm793 = vcmp.lt.s32.totalorder %v253, 0
      %v794 = vsub.s32 0, %v253
      %v795 = vsel %vm793, %v794, %v253
      %v796 = vand.u32 %v795, 65535
      %v797 = vshrl.u32 %v795, 16
      %v799 = vmul.u32 %v796, 14564
      %v800 = vmul.u32 %v796, 58254
      %v801 = vmul.u32 %v797, 14564
      %v802 = vmul.u32 %v797, 58254
      %v803 = vshll.u32 %v800, 16
      %v804 = vshrl.u32 %v800, 16
      %v805 = vshll.u32 %v801, 16
      %v806 = vshrl.u32 %v801, 16
      %vm807 = vc.u32 %v799, %v803
      %v808 = vsel %vm807, 1, 0
      %v809 = vadd.s32 %v799, %v803
      %v810 = vadd.s32 %v802, %v808
      %vm811 = vc.u32 %v809, %v805
      %v812 = vsel %vm811, 1, 0
      %v813 = vadd.s32 %v809, %v805
      %v814 = vadd.s32 %v810, %v812
      %v815 = vadd.s32 %v814, %v804
      %v816 = vadd.s32 %v815, %v806
      %v817 = vshrl.u32 %v816, 4
      %v818 = vmul.u32 %v817, 18
      %v819 = vsub.s32 %v795, %v818
      %v820 = vsub.s32 0, %v819
      %v821 = vsel %vm793, %v820, %v819
      %vm822 = vcmp.lt.s32.totalorder %v254, 0
      %v823 = vsub.s32 0, %v254
      %v824 = vsel %vm822, %v823, %v254
      %v825 = vand.u32 %v824, 65535
      %v826 = vshrl.u32 %v824, 16
      %v828 = vmul.u32 %v825, 14564
      %v829 = vmul.u32 %v825, 58254
      %v830 = vmul.u32 %v826, 14564
      %v831 = vmul.u32 %v826, 58254
      %v832 = vshll.u32 %v829, 16
      %v833 = vshrl.u32 %v829, 16
      %v834 = vshll.u32 %v830, 16
      %v835 = vshrl.u32 %v830, 16
      %vm836 = vc.u32 %v828, %v832
      %v837 = vsel %vm836, 1, 0
      %v838 = vadd.s32 %v828, %v832
      %v839 = vadd.s32 %v831, %v837
      %vm840 = vc.u32 %v838, %v834
      %v841 = vsel %vm840, 1, 0
      %v842 = vadd.s32 %v838, %v834
      %v843 = vadd.s32 %v839, %v841
      %v844 = vadd.s32 %v843, %v833
      %v845 = vadd.s32 %v844, %v835
      %v846 = vshrl.u32 %v845, 4
      %v847 = vmul.u32 %v846, 18
      %v848 = vsub.s32 %v824, %v847
      %v849 = vsub.s32 0, %v848
      %v850 = vsel %vm822, %v849, %v848
      %vm851 = vcmp.lt.s32.totalorder %v255, 0
      %v852 = vsub.s32 0, %v255
      %v853 = vsel %vm851, %v852, %v255
      %v854 = vand.u32 %v853, 65535
      %v855 = vshrl.u32 %v853, 16
      %v857 = vmul.u32 %v854, 14564
      %v858 = vmul.u32 %v854, 58254
      %v859 = vmul.u32 %v855, 14564
      %v860 = vmul.u32 %v855, 58254
      %v861 = vshll.u32 %v858, 16
      %v862 = vshrl.u32 %v858, 16
      %v863 = vshll.u32 %v859, 16
      %v864 = vshrl.u32 %v859, 16
      %vm865 = vc.u32 %v857, %v861
      %v866 = vsel %vm865, 1, 0
      %v867 = vadd.s32 %v857, %v861
      %v868 = vadd.s32 %v860, %v866
      %vm869 = vc.u32 %v867, %v863
      %v870 = vsel %vm869, 1, 0
      %v871 = vadd.s32 %v867, %v863
      %v872 = vadd.s32 %v868, %v870
      %v873 = vadd.s32 %v872, %v862
      %v874 = vadd.s32 %v873, %v864
      %v875 = vshrl.u32 %v874, 4
      %v876 = vmul.u32 %v875, 18
      %v877 = vsub.s32 %v853, %v876
      %v878 = vsub.s32 0, %v877
      %v879 = vsel %vm851, %v878, %v877
      %vm880 = vcmp.lt.s32.totalorder %v256, 0
      %v881 = vsub.s32 0, %v256
      %v882 = vsel %vm880, %v881, %v256
      %v883 = vand.u32 %v882, 65535
      %v884 = vshrl.u32 %v882, 16
      %v886 = vmul.u32 %v883, 14564
      %v887 = vmul.u32 %v883, 58254
      %v888 = vmul.u32 %v884, 14564
      %v889 = vmul.u32 %v884, 58254
      %v890 = vshll.u32 %v887, 16
      %v891 = vshrl.u32 %v887, 16
      %v892 = vshll.u32 %v888, 16
      %v893 = vshrl.u32 %v888, 16
      %vm894 = vc.u32 %v886, %v890
      %v895 = vsel %vm894, 1, 0
      %v896 = vadd.s32 %v886, %v890
      %v897 = vadd.s32 %v889, %v895
      %vm898 = vc.u32 %v896, %v892
      %v899 = vsel %vm898, 1, 0
      %v900 = vadd.s32 %v896, %v892
      %v901 = vadd.s32 %v897, %v899
      %v902 = vadd.s32 %v901, %v891
      %v903 = vadd.s32 %v902, %v893
      %v904 = vshrl.u32 %v903, 4
      %v905 = vmul.u32 %v904, 18
      %v906 = vsub.s32 %v882, %v905
      %v907 = vsub.s32 0, %v906
      %v908 = vsel %vm880, %v907, %v906
      %vm909 = vcmp.lt.s32.totalorder %v257, 0
      %v910 = vsub.s32 0, %v257
      %v911 = vsel %vm909, %v910, %v257
      %v912 = vand.u32 %v911, 65535
      %v913 = vshrl.u32 %v911, 16
      %v915 = vmul.u32 %v912, 14564
      %v916 = vmul.u32 %v912, 58254
      %v917 = vmul.u32 %v913, 14564
      %v918 = vmul.u32 %v913, 58254
      %v919 = vshll.u32 %v916, 16
      %v920 = vshrl.u32 %v916, 16
      %v921 = vshll.u32 %v917, 16
      %v922 = vshrl.u32 %v917, 16
      %vm923 = vc.u32 %v915, %v919
      %v924 = vsel %vm923, 1, 0
      %v925 = vadd.s32 %v915, %v919
      %v926 = vadd.s32 %v918, %v924
      %vm927 = vc.u32 %v925, %v921
      %v928 = vsel %vm927, 1, 0
      %v929 = vadd.s32 %v925, %v921
      %v930 = vadd.s32 %v926, %v928
      %v931 = vadd.s32 %v930, %v920
      %v932 = vadd.s32 %v931, %v922
      %v933 = vshrl.u32 %v932, 4
      %v934 = vmul.u32 %v933, 18
      %v935 = vsub.s32 %v911, %v934
      %v936 = vsub.s32 0, %v935
      %v937 = vsel %vm909, %v936, %v935
      %vm938 = vcmp.lt.s32.totalorder %v258, 0
      %v939 = vsub.s32 0, %v258
      %v940 = vsel %vm938, %v939, %v258
      %v941 = vand.u32 %v940, 65535
      %v942 = vshrl.u32 %v940, 16
      %v944 = vmul.u32 %v941, 14564
      %v945 = vmul.u32 %v941, 58254
      %v946 = vmul.u32 %v942, 14564
      %v947 = vmul.u32 %v942, 58254
      %v948 = vshll.u32 %v945, 16
      %v949 = vshrl.u32 %v945, 16
      %v950 = vshll.u32 %v946, 16
      %v951 = vshrl.u32 %v946, 16
      %vm952 = vc.u32 %v944, %v948
      %v953 = vsel %vm952, 1, 0
      %v954 = vadd.s32 %v944, %v948
      %v955 = vadd.s32 %v947, %v953
      %vm956 = vc.u32 %v954, %v950
      %v957 = vsel %vm956, 1, 0
      %v958 = vadd.s32 %v954, %v950
      %v959 = vadd.s32 %v955, %v957
      %v960 = vadd.s32 %v959, %v949
      %v961 = vadd.s32 %v960, %v951
      %v962 = vshrl.u32 %v961, 4
      %v963 = vmul.u32 %v962, 18
      %v964 = vsub.s32 %v940, %v963
      %v965 = vsub.s32 0, %v964
      %v966 = vsel %vm938, %v965, %v964
      %vm967 = vcmp.lt.s32.totalorder %v259, 0
      %v968 = vsub.s32 0, %v259
      %v969 = vsel %vm967, %v968, %v259
      %v970 = vand.u32 %v969, 65535
      %v971 = vshrl.u32 %v969, 16
      %v973 = vmul.u32 %v970, 14564
      %v974 = vmul.u32 %v970, 58254
      %v975 = vmul.u32 %v971, 14564
      %v976 = vmul.u32 %v971, 58254
      %v977 = vshll.u32 %v974, 16
      %v978 = vshrl.u32 %v974, 16
      %v979 = vshll.u32 %v975, 16
      %v980 = vshrl.u32 %v975, 16
      %vm981 = vc.u32 %v973, %v977
      %v982 = vsel %vm981, 1, 0
      %v983 = vadd.s32 %v973, %v977
      %v984 = vadd.s32 %v976, %v982
      %vm985 = vc.u32 %v983, %v979
      %v986 = vsel %vm985, 1, 0
      %v987 = vadd.s32 %v983, %v979
      %v988 = vadd.s32 %v984, %v986
      %v989 = vadd.s32 %v988, %v978
      %v990 = vadd.s32 %v989, %v980
      %v991 = vshrl.u32 %v990, 4
      %v992 = vmul.u32 %v991, 18
      %v993 = vsub.s32 %v969, %v992
      %v994 = vsub.s32 0, %v993
      %v995 = vsel %vm967, %v994, %v993
      %vm996 = vcmp.lt.s32.totalorder %v260, 0
      %v997 = vsub.s32 0, %v260
      %v998 = vsel %vm996, %v997, %v260
      %v999 = vand.u32 %v998, 65535
      %v1000 = vshrl.u32 %v998, 16
      %v1002 = vmul.u32 %v999, 14564
      %v1003 = vmul.u32 %v999, 58254
      %v1004 = vmul.u32 %v1000, 14564
      %v1005 = vmul.u32 %v1000, 58254
      %v1006 = vshll.u32 %v1003, 16
      %v1007 = vshrl.u32 %v1003, 16
      %v1008 = vshll.u32 %v1004, 16
      %v1009 = vshrl.u32 %v1004, 16
      %vm1010 = vc.u32 %v1002, %v1006
      %v1011 = vsel %vm1010, 1, 0
      %v1012 = vadd.s32 %v1002, %v1006
      %v1013 = vadd.s32 %v1005, %v1011
      %vm1014 = vc.u32 %v1012, %v1008
      %v1015 = vsel %vm1014, 1, 0
      %v1016 = vadd.s32 %v1012, %v1008
      %v1017 = vadd.s32 %v1013, %v1015
      %v1018 = vadd.s32 %v1017, %v1007
      %v1019 = vadd.s32 %v1018, %v1009
      %v1020 = vshrl.u32 %v1019, 4
      %v1021 = vmul.u32 %v1020, 18
      %v1022 = vsub.s32 %v998, %v1021
      %v1023 = vsub.s32 0, %v1022
      %v1024 = vsel %vm996, %v1023, %v1022
      %vm1025 = vcmp.lt.s32.totalorder %v261, 0
      %v1026 = vsub.s32 0, %v261
      %v1027 = vsel %vm1025, %v1026, %v261
      %v1028 = vand.u32 %v1027, 65535
      %v1029 = vshrl.u32 %v1027, 16
      %v1031 = vmul.u32 %v1028, 14564
      %v1032 = vmul.u32 %v1028, 58254
      %v1033 = vmul.u32 %v1029, 14564
      %v1034 = vmul.u32 %v1029, 58254
      %v1035 = vshll.u32 %v1032, 16
      %v1036 = vshrl.u32 %v1032, 16
      %v1037 = vshll.u32 %v1033, 16
      %v1038 = vshrl.u32 %v1033, 16
      %vm1039 = vc.u32 %v1031, %v1035
      %v1040 = vsel %vm1039, 1, 0
      %v1041 = vadd.s32 %v1031, %v1035
      %v1042 = vadd.s32 %v1034, %v1040
      %vm1043 = vc.u32 %v1041, %v1037
      %v1044 = vsel %vm1043, 1, 0
      %v1045 = vadd.s32 %v1041, %v1037
      %v1046 = vadd.s32 %v1042, %v1044
      %v1047 = vadd.s32 %v1046, %v1036
      %v1048 = vadd.s32 %v1047, %v1038
      %v1049 = vshrl.u32 %v1048, 4
      %v1050 = vmul.u32 %v1049, 18
      %v1051 = vsub.s32 %v1027, %v1050
      %v1052 = vsub.s32 0, %v1051
      %v1053 = vsel %vm1025, %v1052, %v1051
      %vm1054 = vcmp.lt.s32.totalorder %v262, 0
      %v1055 = vsub.s32 0, %v262
      %v1056 = vsel %vm1054, %v1055, %v262
      %v1057 = vand.u32 %v1056, 65535
      %v1058 = vshrl.u32 %v1056, 16
      %v1060 = vmul.u32 %v1057, 14564
      %v1061 = vmul.u32 %v1057, 58254
      %v1062 = vmul.u32 %v1058, 14564
      %v1063 = vmul.u32 %v1058, 58254
      %v1064 = vshll.u32 %v1061, 16
      %v1065 = vshrl.u32 %v1061, 16
      %v1066 = vshll.u32 %v1062, 16
      %v1067 = vshrl.u32 %v1062, 16
      %vm1068 = vc.u32 %v1060, %v1064
      %v1069 = vsel %vm1068, 1, 0
      %v1070 = vadd.s32 %v1060, %v1064
      %v1071 = vadd.s32 %v1063, %v1069
      %vm1072 = vc.u32 %v1070, %v1066
      %v1073 = vsel %vm1072, 1, 0
      %v1074 = vadd.s32 %v1070, %v1066
      %v1075 = vadd.s32 %v1071, %v1073
      %v1076 = vadd.s32 %v1075, %v1065
      %v1077 = vadd.s32 %v1076, %v1067
      %v1078 = vshrl.u32 %v1077, 4
      %v1079 = vmul.u32 %v1078, 18
      %v1080 = vsub.s32 %v1056, %v1079
      %v1081 = vsub.s32 0, %v1080
      %v1082 = vsel %vm1054, %v1081, %v1080
      %vm1083 = vcmp.lt.s32.totalorder %v263, 0
      %v1084 = vsub.s32 0, %v263
      %v1085 = vsel %vm1083, %v1084, %v263
      %v1086 = vand.u32 %v1085, 65535
      %v1087 = vshrl.u32 %v1085, 16
      %v1089 = vmul.u32 %v1086, 14564
      %v1090 = vmul.u32 %v1086, 58254
      %v1091 = vmul.u32 %v1087, 14564
      %v1092 = vmul.u32 %v1087, 58254
      %v1093 = vshll.u32 %v1090, 16
      %v1094 = vshrl.u32 %v1090, 16
      %v1095 = vshll.u32 %v1091, 16
      %v1096 = vshrl.u32 %v1091, 16
      %vm1097 = vc.u32 %v1089, %v1093
      %v1098 = vsel %vm1097, 1, 0
      %v1099 = vadd.s32 %v1089, %v1093
      %v1100 = vadd.s32 %v1092, %v1098
      %vm1101 = vc.u32 %v1099, %v1095
      %v1102 = vsel %vm1101, 1, 0
      %v1103 = vadd.s32 %v1099, %v1095
      %v1104 = vadd.s32 %v1100, %v1102
      %v1105 = vadd.s32 %v1104, %v1094
      %v1106 = vadd.s32 %v1105, %v1096
      %v1107 = vshrl.u32 %v1106, 4
      %v1108 = vmul.u32 %v1107, 18
      %v1109 = vsub.s32 %v1085, %v1108
      %v1110 = vsub.s32 0, %v1109
      %v1111 = vsel %vm1083, %v1110, %v1109
      %vm1112 = vcmp.lt.s32.totalorder %v264, 0
      %v1113 = vsub.s32 0, %v264
      %v1114 = vsel %vm1112, %v1113, %v264
      %v1115 = vand.u32 %v1114, 65535
      %v1116 = vshrl.u32 %v1114, 16
      %v1118 = vmul.u32 %v1115, 14564
      %v1119 = vmul.u32 %v1115, 58254
      %v1120 = vmul.u32 %v1116, 14564
      %v1121 = vmul.u32 %v1116, 58254
      %v1122 = vshll.u32 %v1119, 16
      %v1123 = vshrl.u32 %v1119, 16
      %v1124 = vshll.u32 %v1120, 16
      %v1125 = vshrl.u32 %v1120, 16
      %vm1126 = vc.u32 %v1118, %v1122
      %v1127 = vsel %vm1126, 1, 0
      %v1128 = vadd.s32 %v1118, %v1122
      %v1129 = vadd.s32 %v1121, %v1127
      %vm1130 = vc.u32 %v1128, %v1124
      %v1131 = vsel %vm1130, 1, 0
      %v1132 = vadd.s32 %v1128, %v1124
      %v1133 = vadd.s32 %v1129, %v1131
      %v1134 = vadd.s32 %v1133, %v1123
      %v1135 = vadd.s32 %v1134, %v1125
      %v1136 = vshrl.u32 %v1135, 4
      %v1137 = vmul.u32 %v1136, 18
      %v1138 = vsub.s32 %v1114, %v1137
      %v1139 = vsub.s32 0, %v1138
      %v1140 = vsel %vm1112, %v1139, %v1138
      %vm1141 = vcmp.lt.s32.totalorder %v265, 0
      %v1142 = vsub.s32 0, %v265
      %v1143 = vsel %vm1141, %v1142, %v265
      %v1144 = vand.u32 %v1143, 65535
      %v1145 = vshrl.u32 %v1143, 16
      %v1147 = vmul.u32 %v1144, 14564
      %v1148 = vmul.u32 %v1144, 58254
      %v1149 = vmul.u32 %v1145, 14564
      %v1150 = vmul.u32 %v1145, 58254
      %v1151 = vshll.u32 %v1148, 16
      %v1152 = vshrl.u32 %v1148, 16
      %v1153 = vshll.u32 %v1149, 16
      %v1154 = vshrl.u32 %v1149, 16
      %vm1155 = vc.u32 %v1147, %v1151
      %v1156 = vsel %vm1155, 1, 0
      %v1157 = vadd.s32 %v1147, %v1151
      %v1158 = vadd.s32 %v1150, %v1156
      %vm1159 = vc.u32 %v1157, %v1153
      %v1160 = vsel %vm1159, 1, 0
      %v1161 = vadd.s32 %v1157, %v1153
      %v1162 = vadd.s32 %v1158, %v1160
      %v1163 = vadd.s32 %v1162, %v1152
      %v1164 = vadd.s32 %v1163, %v1154
      %v1165 = vshrl.u32 %v1164, 4
      %v1166 = vmul.u32 %v1165, 18
      %v1167 = vsub.s32 %v1143, %v1166
      %v1168 = vsub.s32 0, %v1167
      %v1169 = vsel %vm1141, %v1168, %v1167
      %vm1170 = vcmp.lt.s32.totalorder %v266, 0
      %v1171 = vsub.s32 0, %v266
      %v1172 = vsel %vm1170, %v1171, %v266
      %v1173 = vand.u32 %v1172, 65535
      %v1174 = vshrl.u32 %v1172, 16
      %v1176 = vmul.u32 %v1173, 14564
      %v1177 = vmul.u32 %v1173, 58254
      %v1178 = vmul.u32 %v1174, 14564
      %v1179 = vmul.u32 %v1174, 58254
      %v1180 = vshll.u32 %v1177, 16
      %v1181 = vshrl.u32 %v1177, 16
      %v1182 = vshll.u32 %v1178, 16
      %v1183 = vshrl.u32 %v1178, 16
      %vm1184 = vc.u32 %v1176, %v1180
      %v1185 = vsel %vm1184, 1, 0
      %v1186 = vadd.s32 %v1176, %v1180
      %v1187 = vadd.s32 %v1179, %v1185
      %vm1188 = vc.u32 %v1186, %v1182
      %v1189 = vsel %vm1188, 1, 0
      %v1190 = vadd.s32 %v1186, %v1182
      %v1191 = vadd.s32 %v1187, %v1189
      %v1192 = vadd.s32 %v1191, %v1181
      %v1193 = vadd.s32 %v1192, %v1183
      %v1194 = vshrl.u32 %v1193, 4
      %v1195 = vmul.u32 %v1194, 18
      %v1196 = vsub.s32 %v1172, %v1195
      %v1197 = vsub.s32 0, %v1196
      %v1198 = vsel %vm1170, %v1197, %v1196
      %vm1199 = vcmp.lt.s32.totalorder %v267, 0
      %v1200 = vsub.s32 0, %v267
      %v1201 = vsel %vm1199, %v1200, %v267
      %v1202 = vand.u32 %v1201, 65535
      %v1203 = vshrl.u32 %v1201, 16
      %v1205 = vmul.u32 %v1202, 14564
      %v1206 = vmul.u32 %v1202, 58254
      %v1207 = vmul.u32 %v1203, 14564
      %v1208 = vmul.u32 %v1203, 58254
      %v1209 = vshll.u32 %v1206, 16
      %v1210 = vshrl.u32 %v1206, 16
      %v1211 = vshll.u32 %v1207, 16
      %v1212 = vshrl.u32 %v1207, 16
      %vm1213 = vc.u32 %v1205, %v1209
      %v1214 = vsel %vm1213, 1, 0
      %v1215 = vadd.s32 %v1205, %v1209
      %v1216 = vadd.s32 %v1208, %v1214
      %vm1217 = vc.u32 %v1215, %v1211
      %v1218 = vsel %vm1217, 1, 0
      %v1219 = vadd.s32 %v1215, %v1211
      %v1220 = vadd.s32 %v1216, %v1218
      %v1221 = vadd.s32 %v1220, %v1210
      %v1222 = vadd.s32 %v1221, %v1212
      %v1223 = vshrl.u32 %v1222, 4
      %v1224 = vmul.u32 %v1223, 18
      %v1225 = vsub.s32 %v1201, %v1224
      %v1226 = vsub.s32 0, %v1225
      %v1227 = vsel %vm1199, %v1226, %v1225
      %vm1228 = vcmp.lt.s32.totalorder %v268, 0
      %v1229 = vsub.s32 0, %v268
      %v1230 = vsel %vm1228, %v1229, %v268
      %v1231 = vand.u32 %v1230, 65535
      %v1232 = vshrl.u32 %v1230, 16
      %v1234 = vmul.u32 %v1231, 14564
      %v1235 = vmul.u32 %v1231, 58254
      %v1236 = vmul.u32 %v1232, 14564
      %v1237 = vmul.u32 %v1232, 58254
      %v1238 = vshll.u32 %v1235, 16
      %v1239 = vshrl.u32 %v1235, 16
      %v1240 = vshll.u32 %v1236, 16
      %v1241 = vshrl.u32 %v1236, 16
      %vm1242 = vc.u32 %v1234, %v1238
      %v1243 = vsel %vm1242, 1, 0
      %v1244 = vadd.s32 %v1234, %v1238
      %v1245 = vadd.s32 %v1237, %v1243
      %vm1246 = vc.u32 %v1244, %v1240
      %v1247 = vsel %vm1246, 1, 0
      %v1248 = vadd.s32 %v1244, %v1240
      %v1249 = vadd.s32 %v1245, %v1247
      %v1250 = vadd.s32 %v1249, %v1239
      %v1251 = vadd.s32 %v1250, %v1241
      %v1252 = vshrl.u32 %v1251, 4
      %v1253 = vmul.u32 %v1252, 18
      %v1254 = vsub.s32 %v1230, %v1253
      %v1255 = vsub.s32 0, %v1254
      %v1256 = vsel %vm1228, %v1255, %v1254
      %vm1257 = vcmp.lt.s32.totalorder %v269, 0
      %v1258 = vsub.s32 0, %v269
      %v1259 = vsel %vm1257, %v1258, %v269
      %v1260 = vand.u32 %v1259, 65535
      %v1261 = vshrl.u32 %v1259, 16
      %v1263 = vmul.u32 %v1260, 14564
      %v1264 = vmul.u32 %v1260, 58254
      %v1265 = vmul.u32 %v1261, 14564
      %v1266 = vmul.u32 %v1261, 58254
      %v1267 = vshll.u32 %v1264, 16
      %v1268 = vshrl.u32 %v1264, 16
      %v1269 = vshll.u32 %v1265, 16
      %v1270 = vshrl.u32 %v1265, 16
      %vm1271 = vc.u32 %v1263, %v1267
      %v1272 = vsel %vm1271, 1, 0
      %v1273 = vadd.s32 %v1263, %v1267
      %v1274 = vadd.s32 %v1266, %v1272
      %vm1275 = vc.u32 %v1273, %v1269
      %v1276 = vsel %vm1275, 1, 0
      %v1277 = vadd.s32 %v1273, %v1269
      %v1278 = vadd.s32 %v1274, %v1276
      %v1279 = vadd.s32 %v1278, %v1268
      %v1280 = vadd.s32 %v1279, %v1270
      %v1281 = vshrl.u32 %v1280, 4
      %v1282 = vmul.u32 %v1281, 18
      %v1283 = vsub.s32 %v1259, %v1282
      %v1284 = vsub.s32 0, %v1283
      %v1285 = vsel %vm1257, %v1284, %v1283
      %vm1286 = vcmp.lt.s32.totalorder %v270, 0
      %v1287 = vsub.s32 0, %v270
      %v1288 = vsel %vm1286, %v1287, %v270
      %v1289 = vand.u32 %v1288, 65535
      %v1290 = vshrl.u32 %v1288, 16
      %v1292 = vmul.u32 %v1289, 14564
      %v1293 = vmul.u32 %v1289, 58254
      %v1294 = vmul.u32 %v1290, 14564
      %v1295 = vmul.u32 %v1290, 58254
      %v1296 = vshll.u32 %v1293, 16
      %v1297 = vshrl.u32 %v1293, 16
      %v1298 = vshll.u32 %v1294, 16
      %v1299 = vshrl.u32 %v1294, 16
      %vm1300 = vc.u32 %v1292, %v1296
      %v1301 = vsel %vm1300, 1, 0
      %v1302 = vadd.s32 %v1292, %v1296
      %v1303 = vadd.s32 %v1295, %v1301
      %vm1304 = vc.u32 %v1302, %v1298
      %v1305 = vsel %vm1304, 1, 0
      %v1306 = vadd.s32 %v1302, %v1298
      %v1307 = vadd.s32 %v1303, %v1305
      %v1308 = vadd.s32 %v1307, %v1297
      %v1309 = vadd.s32 %v1308, %v1299
      %v1310 = vshrl.u32 %v1309, 4
      %v1311 = vmul.u32 %v1310, 18
      %v1312 = vsub.s32 %v1288, %v1311
      %v1313 = vsub.s32 0, %v1312
      %v1314 = vsel %vm1286, %v1313, %v1312
      %vm1315 = vcmp.ne.s32.totalorder %v299, 0
      %vm1316 = vcmp.ne.s32.totalorder %v328, 0
      %vm1317 = vcmp.ne.s32.totalorder %v357, 0
      %vm1318 = vcmp.ne.s32.totalorder %v386, 0
      %vm1319 = vcmp.ne.s32.totalorder %v415, 0
      %vm1320 = vcmp.ne.s32.totalorder %v444, 0
      %vm1321 = vcmp.ne.s32.totalorder %v473, 0
      %vm1322 = vcmp.ne.s32.totalorder %v502, 0
      %vm1323 = vcmp.ne.s32.totalorder %v531, 0
      %vm1324 = vcmp.ne.s32.totalorder %v560, 0
      %vm1325 = vcmp.ne.s32.totalorder %v589, 0
      %vm1326 = vcmp.ne.s32.totalorder %v618, 0
      %vm1327 = vcmp.ne.s32.totalorder %v647, 0
      %vm1328 = vcmp.ne.s32.totalorder %v676, 0
      %vm1329 = vcmp.ne.s32.totalorder %v705, 0
      %vm1330 = vcmp.ne.s32.totalorder %v734, 0
      %vm1331 = vcmp.ne.s32.totalorder %v763, 0
      %vm1332 = vcmp.ne.s32.totalorder %v792, 0
      %vm1333 = vcmp.ne.s32.totalorder %v821, 0
      %vm1334 = vcmp.ne.s32.totalorder %v850, 0
      %vm1335 = vcmp.ne.s32.totalorder %v879, 0
      %vm1336 = vcmp.ne.s32.totalorder %v908, 0
      %vm1337 = vcmp.ne.s32.totalorder %v937, 0
      %vm1338 = vcmp.ne.s32.totalorder %v966, 0
      %vm1339 = vcmp.ne.s32.totalorder %v995, 0
      %vm1340 = vcmp.ne.s32.totalorder %v1024, 0
      %vm1341 = vcmp.ne.s32.totalorder %v1053, 0
      %vm1342 = vcmp.ne.s32.totalorder %v1082, 0
      %vm1343 = vcmp.ne.s32.totalorder %v1111, 0
      %vm1344 = vcmp.ne.s32.totalorder %v1140, 0
      %vm1345 = vcmp.ne.s32.totalorder %v1169, 0
      %vm1346 = vcmp.ne.s32.totalorder %v1198, 0
      %vm1347 = vcmp.ne.s32.totalorder %v1227, 0
      %vm1348 = vcmp.ne.s32.totalorder %v1256, 0
      %vm1349 = vcmp.ne.s32.totalorder %v1285, 0
      %vm1350 = vcmp.ne.s32.totalorder %v1314, 0
      %vm1351 = vcmp.lt.s32.totalorder %v299, 0
      %vm1352 = vcmp.lt.s32.totalorder %v328, 0
      %vm1353 = vcmp.lt.s32.totalorder %v357, 0
      %vm1354 = vcmp.lt.s32.totalorder %v386, 0
      %vm1355 = vcmp.lt.s32.totalorder %v415, 0
      %vm1356 = vcmp.lt.s32.totalorder %v444, 0
      %vm1357 = vcmp.lt.s32.totalorder %v473, 0
      %vm1358 = vcmp.lt.s32.totalorder %v502, 0
      %vm1359 = vcmp.lt.s32.totalorder %v531, 0
      %vm1360 = vcmp.lt.s32.totalorder %v560, 0
      %vm1361 = vcmp.lt.s32.totalorder %v589, 0
      %vm1362 = vcmp.lt.s32.totalorder %v618, 0
      %vm1363 = vcmp.lt.s32.totalorder %v647, 0
      %vm1364 = vcmp.lt.s32.totalorder %v676, 0
      %vm1365 = vcmp.lt.s32.totalorder %v705, 0
      %vm1366 = vcmp.lt.s32.totalorder %v734, 0
      %vm1367 = vcmp.lt.s32.totalorder %v763, 0
      %vm1368 = vcmp.lt.s32.totalorder %v792, 0
      %vm1369 = vcmp.lt.s32.totalorder %v821, 0
      %vm1370 = vcmp.lt.s32.totalorder %v850, 0
      %vm1371 = vcmp.lt.s32.totalorder %v879, 0
      %vm1372 = vcmp.lt.s32.totalorder %v908, 0
      %vm1373 = vcmp.lt.s32.totalorder %v937, 0
      %vm1374 = vcmp.lt.s32.totalorder %v966, 0
      %vm1375 = vcmp.lt.s32.totalorder %v995, 0
      %vm1376 = vcmp.lt.s32.totalorder %v1024, 0
      %vm1377 = vcmp.lt.s32.totalorder %v1053, 0
      %vm1378 = vcmp.lt.s32.totalorder %v1082, 0
      %vm1379 = vcmp.lt.s32.totalorder %v1111, 0
      %vm1380 = vcmp.lt.s32.totalorder %v1140, 0
      %vm1381 = vcmp.lt.s32.totalorder %v1169, 0
      %vm1382 = vcmp.lt.s32.totalorder %v1198, 0
      %vm1383 = vcmp.lt.s32.totalorder %v1227, 0
      %vm1384 = vcmp.lt.s32.totalorder %v1256, 0
      %vm1385 = vcmp.lt.s32.totalorder %v1285, 0
      %vm1386 = vcmp.lt.s32.totalorder %v1314, 0
      %vm1387 = vmand %vm1351, %vm1315
      %vm1388 = vmand %vm1352, %vm1316
      %vm1389 = vmand %vm1353, %vm1317
      %vm1390 = vmand %vm1354, %vm1318
      %vm1391 = vmand %vm1355, %vm1319
      %vm1392 = vmand %vm1356, %vm1320
      %vm1393 = vmand %vm1357, %vm1321
      %vm1394 = vmand %vm1358, %vm1322
      %vm1395 = vmand %vm1359, %vm1323
      %vm1396 = vmand %vm1360, %vm1324
      %vm1397 = vmand %vm1361, %vm1325
      %vm1398 = vmand %vm1362, %vm1326
      %vm1399 = vmand %vm1363, %vm1327
      %vm1400 = vmand %vm1364, %vm1328
      %vm1401 = vmand %vm1365, %vm1329
      %vm1402 = vmand %vm1366, %vm1330
      %vm1403 = vmand %vm1367, %vm1331
      %vm1404 = vmand %vm1368, %vm1332
      %vm1405 = vmand %vm1369, %vm1333
      %vm1406 = vmand %vm1370, %vm1334
      %vm1407 = vmand %vm1371, %vm1335
      %vm1408 = vmand %vm1372, %vm1336
      %vm1409 = vmand %vm1373, %vm1337
      %vm1410 = vmand %vm1374, %vm1338
      %vm1411 = vmand %vm1375, %vm1339
      %vm1412 = vmand %vm1376, %vm1340
      %vm1413 = vmand %vm1377, %vm1341
      %vm1414 = vmand %vm1378, %vm1342
      %vm1415 = vmand %vm1379, %vm1343
      %vm1416 = vmand %vm1380, %vm1344
      %vm1417 = vmand %vm1381, %vm1345
      %vm1418 = vmand %vm1382, %vm1346
      %vm1419 = vmand %vm1383, %vm1347
      %vm1420 = vmand %vm1384, %vm1348
      %vm1421 = vmand %vm1385, %vm1349
      %vm1422 = vmand %vm1386, %vm1350
      %v1423 = vadd.s32 %v299, 18
      %v1424 = vadd.s32 %v328, 18
      %v1425 = vadd.s32 %v357, 18
      %v1426 = vadd.s32 %v386, 18
      %v1427 = vadd.s32 %v415, 18
      %v1428 = vadd.s32 %v444, 18
      %v1429 = vadd.s32 %v473, 18
      %v1430 = vadd.s32 %v502, 18
      %v1431 = vadd.s32 %v531, 18
      %v1432 = vadd.s32 %v560, 18
      %v1433 = vadd.s32 %v589, 18
      %v1434 = vadd.s32 %v618, 18
      %v1435 = vadd.s32 %v647, 18
      %v1436 = vadd.s32 %v676, 18
      %v1437 = vadd.s32 %v705, 18
      %v1438 = vadd.s32 %v734, 18
      %v1439 = vadd.s32 %v763, 18
      %v1440 = vadd.s32 %v792, 18
      %v1441 = vadd.s32 %v821, 18
      %v1442 = vadd.s32 %v850, 18
      %v1443 = vadd.s32 %v879, 18
      %v1444 = vadd.s32 %v908, 18
      %v1445 = vadd.s32 %v937, 18
      %v1446 = vadd.s32 %v966, 18
      %v1447 = vadd.s32 %v995, 18
      %v1448 = vadd.s32 %v1024, 18
      %v1449 = vadd.s32 %v1053, 18
      %v1450 = vadd.s32 %v1082, 18
      %v1451 = vadd.s32 %v1111, 18
      %v1452 = vadd.s32 %v1140, 18
      %v1453 = vadd.s32 %v1169, 18
      %v1454 = vadd.s32 %v1198, 18
      %v1455 = vadd.s32 %v1227, 18
      %v1456 = vadd.s32 %v1256, 18
      %v1457 = vadd.s32 %v1285, 18
      %v1458 = vadd.s32 %v1314, 18
      %v1459 = vsel %vm1387, %v1423, %v299
      %v1460 = vsel %vm1388, %v1424, %v328
      %v1461 = vsel %vm1389, %v1425, %v357
      %v1462 = vsel %vm1390, %v1426, %v386
      %v1463 = vsel %vm1391, %v1427, %v415
      %v1464 = vsel %vm1392, %v1428, %v444
      %v1465 = vsel %vm1393, %v1429, %v473
      %v1466 = vsel %vm1394, %v1430, %v502
      %v1467 = vsel %vm1395, %v1431, %v531
      %v1468 = vsel %vm1396, %v1432, %v560
      %v1469 = vsel %vm1397, %v1433, %v589
      %v1470 = vsel %vm1398, %v1434, %v618
      %v1471 = vsel %vm1399, %v1435, %v647
      %v1472 = vsel %vm1400, %v1436, %v676
      %v1473 = vsel %vm1401, %v1437, %v705
      %v1474 = vsel %vm1402, %v1438, %v734
      %v1475 = vsel %vm1403, %v1439, %v763
      %v1476 = vsel %vm1404, %v1440, %v792
      %v1477 = vsel %vm1405, %v1441, %v821
      %v1478 = vsel %vm1406, %v1442, %v850
      %v1479 = vsel %vm1407, %v1443, %v879
      %v1480 = vsel %vm1408, %v1444, %v908
      %v1481 = vsel %vm1409, %v1445, %v937
      %v1482 = vsel %vm1410, %v1446, %v966
      %v1483 = vsel %vm1411, %v1447, %v995
      %v1484 = vsel %vm1412, %v1448, %v1024
      %v1485 = vsel %vm1413, %v1449, %v1053
      %v1486 = vsel %vm1414, %v1450, %v1082
      %v1487 = vsel %vm1415, %v1451, %v1111
      %v1488 = vsel %vm1416, %v1452, %v1140
      %v1489 = vsel %vm1417, %v1453, %v1169
      %v1490 = vsel %vm1418, %v1454, %v1198
      %v1491 = vsel %vm1419, %v1455, %v1227
      %v1492 = vsel %vm1420, %v1456, %v1256
      %v1493 = vsel %vm1421, %v1457, %v1285
      %v1494 = vsel %vm1422, %v1458, %v1314
      %vm1495 = vcmp.lt.s32.totalorder %v1459, 16
      %vm1496 = vcmp.lt.s32.totalorder %v1460, 16
      %vm1497 = vcmp.lt.s32.totalorder %v1461, 16
      %vm1498 = vcmp.lt.s32.totalorder %v1462, 16
      %vm1499 = vcmp.lt.s32.totalorder %v1463, 16
      %vm1500 = vcmp.lt.s32.totalorder %v1464, 16
      %vm1501 = vcmp.lt.s32.totalorder %v1465, 16
      %vm1502 = vcmp.lt.s32.totalorder %v1466, 16
      %vm1503 = vcmp.lt.s32.totalorder %v1467, 16
      %vm1504 = vcmp.lt.s32.totalorder %v1468, 16
      %vm1505 = vcmp.lt.s32.totalorder %v1469, 16
      %vm1506 = vcmp.lt.s32.totalorder %v1470, 16
      %vm1507 = vcmp.lt.s32.totalorder %v1471, 16
      %vm1508 = vcmp.lt.s32.totalorder %v1472, 16
      %vm1509 = vcmp.lt.s32.totalorder %v1473, 16
      %vm1510 = vcmp.lt.s32.totalorder %v1474, 16
      %vm1511 = vcmp.lt.s32.totalorder %v1475, 16
      %vm1512 = vcmp.lt.s32.totalorder %v1476, 16
      %vm1513 = vcmp.lt.s32.totalorder %v1477, 16
      %vm1514 = vcmp.lt.s32.totalorder %v1478, 16
      %vm1515 = vcmp.lt.s32.totalorder %v1479, 16
      %vm1516 = vcmp.lt.s32.totalorder %v1480, 16
      %vm1517 = vcmp.lt.s32.totalorder %v1481, 16
      %vm1518 = vcmp.lt.s32.totalorder %v1482, 16
      %vm1519 = vcmp.lt.s32.totalorder %v1483, 16
      %vm1520 = vcmp.lt.s32.totalorder %v1484, 16
      %vm1521 = vcmp.lt.s32.totalorder %v1485, 16
      %vm1522 = vcmp.lt.s32.totalorder %v1486, 16
      %vm1523 = vcmp.lt.s32.totalorder %v1487, 16
      %vm1524 = vcmp.lt.s32.totalorder %v1488, 16
      %vm1525 = vcmp.lt.s32.totalorder %v1489, 16
      %vm1526 = vcmp.lt.s32.totalorder %v1490, 16
      %vm1527 = vcmp.lt.s32.totalorder %v1491, 16
      %vm1528 = vcmp.lt.s32.totalorder %v1492, 16
      %vm1529 = vcmp.lt.s32.totalorder %v1493, 16
      %vm1530 = vcmp.lt.s32.totalorder %v1494, 16
      %v1531 = vld [vmem:[%s180] sm:$0xf]
      %v1532 = vld [vmem:[%s180 + $0x4] sm:$0xf]
      %v1533 = vld [vmem:[%s180 + $0x8] sm:$0xf]
      %v1534 = vld [vmem:[%s180 + $0xc] sm:$0xf]
      %v1535 = vld [vmem:[%s180 + $0x10] sm:$0xf]
      %v1536 = vld [vmem:[%s180 + $0x14] sm:$0xf]
      %v1537 = vld [vmem:[%s180 + $0x18] sm:$0xf]
      %v1538 = vld [vmem:[%s180 + $0x1c] sm:$0xf]
      %v1539 = vld [vmem:[%s180 + $0x20] sm:$0xf]
      %v1540 = vld [vmem:[%s180 + $0x24] sm:$0xf]
      %v1541 = vld [vmem:[%s180 + $0x28] sm:$0xf]
      %v1542 = vld [vmem:[%s180 + $0x2c] sm:$0xf]
      %v1543 = vld [vmem:[%s180 + $0x30] sm:$0xf]
      %v1544 = vld [vmem:[%s180 + $0x34] sm:$0xf]
      %v1545 = vld [vmem:[%s180 + $0x38] sm:$0xf]
      %v1546 = vld [vmem:[%s180 + $0x3c] sm:$0xf]
      %v1547 = vld [vmem:[%s180 + $0x40] sm:$0xf]
      %v1548 = vld [vmem:[%s180 + $0x44] sm:$0xf]
      %v1549 = vld [vmem:[%s180 + $0x48] sm:$0xf]
      %v1550 = vld [vmem:[%s180 + $0x4c] sm:$0xf]
      %v1551 = vld [vmem:[%s180 + $0x50] sm:$0xf]
      %v1552 = vld [vmem:[%s180 + $0x54] sm:$0xf]
      %v1553 = vld [vmem:[%s180 + $0x58] sm:$0xf]
      %v1554 = vld [vmem:[%s180 + $0x5c] sm:$0xf]
      %v1555 = vld [vmem:[%s180 + $0x60] sm:$0xf]
      %v1556 = vld [vmem:[%s180 + $0x64] sm:$0xf]
      %v1557 = vld [vmem:[%s180 + $0x68] sm:$0xf]
      %v1558 = vld [vmem:[%s180 + $0x6c] sm:$0xf]
      %v1559 = vld [vmem:[%s180 + $0x70] sm:$0xf]
      %v1560 = vld [vmem:[%s180 + $0x74] sm:$0xf]
      %v1561 = vld [vmem:[%s180 + $0x78] sm:$0xf]
      %v1562 = vld [vmem:[%s180 + $0x7c] sm:$0xf]
      %v1563 = vld [vmem:[%s180 + $0x80] sm:$0xf]
      %v1564 = vld [vmem:[%s180 + $0x84] sm:$0xf]
      %v1565 = vld [vmem:[%s180 + $0x88] sm:$0xf]
      %v1566 = vld [vmem:[%s180 + $0x8c] sm:$0xf]
      %v1567 = vunpack.c.l.bf16 %v1531
      %v1568 = vunpack.c.l.bf16 %v1532
      %v1569 = vunpack.c.l.bf16 %v1533
      %v1570 = vunpack.c.l.bf16 %v1534
      %v1571 = vunpack.c.l.bf16 %v1535
      %v1572 = vunpack.c.l.bf16 %v1536
      %v1573 = vunpack.c.l.bf16 %v1537
      %v1574 = vunpack.c.l.bf16 %v1538
      %v1575 = vunpack.c.l.bf16 %v1539
      %v1576 = vunpack.c.l.bf16 %v1540
      %v1577 = vunpack.c.l.bf16 %v1541
      %v1578 = vunpack.c.l.bf16 %v1542
      %v1579 = vunpack.c.l.bf16 %v1543
      %v1580 = vunpack.c.l.bf16 %v1544
      %v1581 = vunpack.c.l.bf16 %v1545
      %v1582 = vunpack.c.l.bf16 %v1546
      %v1583 = vunpack.c.l.bf16 %v1547
      %v1584 = vunpack.c.l.bf16 %v1548
      %v1585 = vunpack.c.l.bf16 %v1549
      %v1586 = vunpack.c.l.bf16 %v1550
      %v1587 = vunpack.c.l.bf16 %v1551
      %v1588 = vunpack.c.l.bf16 %v1552
      %v1589 = vunpack.c.l.bf16 %v1553
      %v1590 = vunpack.c.l.bf16 %v1554
      %v1591 = vunpack.c.l.bf16 %v1555
      %v1592 = vunpack.c.l.bf16 %v1556
      %v1593 = vunpack.c.l.bf16 %v1557
      %v1594 = vunpack.c.l.bf16 %v1558
      %v1595 = vunpack.c.l.bf16 %v1559
      %v1596 = vunpack.c.l.bf16 %v1560
      %v1597 = vunpack.c.l.bf16 %v1561
      %v1598 = vunpack.c.l.bf16 %v1562
      %v1599 = vunpack.c.l.bf16 %v1563
      %v1600 = vunpack.c.l.bf16 %v1564
      %v1601 = vunpack.c.l.bf16 %v1565
      %v1602 = vunpack.c.l.bf16 %v1566
      %v1603 = vld [vmem:[%s185] sm:$0xf]
      %v1604 = vld [vmem:[%s185 + $0x4] sm:$0xf]
      %v1605 = vld [vmem:[%s185 + $0x8] sm:$0xf]
      %v1606 = vld [vmem:[%s185 + $0xc] sm:$0xf]
      %v1607 = vld [vmem:[%s185 + $0x10] sm:$0xf]
      %v1608 = vld [vmem:[%s185 + $0x14] sm:$0xf]
      %v1609 = vld [vmem:[%s185 + $0x18] sm:$0xf]
      %v1610 = vld [vmem:[%s185 + $0x1c] sm:$0xf]
      %v1611 = vld [vmem:[%s185 + $0x20] sm:$0xf]
      %v1612 = vld [vmem:[%s185 + $0x24] sm:$0xf]
      %v1613 = vld [vmem:[%s185 + $0x28] sm:$0xf]
      %v1614 = vld [vmem:[%s185 + $0x2c] sm:$0xf]
      %v1615 = vld [vmem:[%s185 + $0x30] sm:$0xf]
      %v1616 = vld [vmem:[%s185 + $0x34] sm:$0xf]
      %v1617 = vld [vmem:[%s185 + $0x38] sm:$0xf]
      %v1618 = vld [vmem:[%s185 + $0x3c] sm:$0xf]
      %v1619 = vld [vmem:[%s185 + $0x40] sm:$0xf]
      %v1620 = vld [vmem:[%s185 + $0x44] sm:$0xf]
      %v1621 = vld [vmem:[%s185 + $0x48] sm:$0xf]
      %v1622 = vld [vmem:[%s185 + $0x4c] sm:$0xf]
      %v1623 = vld [vmem:[%s185 + $0x50] sm:$0xf]
      %v1624 = vld [vmem:[%s185 + $0x54] sm:$0xf]
      %v1625 = vld [vmem:[%s185 + $0x58] sm:$0xf]
      %v1626 = vld [vmem:[%s185 + $0x5c] sm:$0xf]
      %v1627 = vld [vmem:[%s185 + $0x60] sm:$0xf]
      %v1628 = vld [vmem:[%s185 + $0x64] sm:$0xf]
      %v1629 = vld [vmem:[%s185 + $0x68] sm:$0xf]
      %v1630 = vld [vmem:[%s185 + $0x6c] sm:$0xf]
      %v1631 = vld [vmem:[%s185 + $0x70] sm:$0xf]
      %v1632 = vld [vmem:[%s185 + $0x74] sm:$0xf]
      %v1633 = vld [vmem:[%s185 + $0x78] sm:$0xf]
      %v1634 = vld [vmem:[%s185 + $0x7c] sm:$0xf]
      %v1635 = vld [vmem:[%s185 + $0x80] sm:$0xf]
      %v1636 = vld [vmem:[%s185 + $0x84] sm:$0xf]
      %v1637 = vld [vmem:[%s185 + $0x88] sm:$0xf]
      %v1638 = vld [vmem:[%s185 + $0x8c] sm:$0xf]
      %v1639 = vunpack.c.l.bf16 %v1603
      %v1640 = vunpack.c.l.bf16 %v1604
      %v1641 = vunpack.c.l.bf16 %v1605
      %v1642 = vunpack.c.l.bf16 %v1606
      %v1643 = vunpack.c.l.bf16 %v1607
      %v1644 = vunpack.c.l.bf16 %v1608
      %v1645 = vunpack.c.l.bf16 %v1609
      %v1646 = vunpack.c.l.bf16 %v1610
      %v1647 = vunpack.c.l.bf16 %v1611
      %v1648 = vunpack.c.l.bf16 %v1612
      %v1649 = vunpack.c.l.bf16 %v1613
      %v1650 = vunpack.c.l.bf16 %v1614
      %v1651 = vunpack.c.l.bf16 %v1615
      %v1652 = vunpack.c.l.bf16 %v1616
      %v1653 = vunpack.c.l.bf16 %v1617
      %v1654 = vunpack.c.l.bf16 %v1618
      %v1655 = vunpack.c.l.bf16 %v1619
      %v1656 = vunpack.c.l.bf16 %v1620
      %v1657 = vunpack.c.l.bf16 %v1621
      %v1658 = vunpack.c.l.bf16 %v1622
      %v1659 = vunpack.c.l.bf16 %v1623
      %v1660 = vunpack.c.l.bf16 %v1624
      %v1661 = vunpack.c.l.bf16 %v1625
      %v1662 = vunpack.c.l.bf16 %v1626
      %v1663 = vunpack.c.l.bf16 %v1627
      %v1664 = vunpack.c.l.bf16 %v1628
      %v1665 = vunpack.c.l.bf16 %v1629
      %v1666 = vunpack.c.l.bf16 %v1630
      %v1667 = vunpack.c.l.bf16 %v1631
      %v1668 = vunpack.c.l.bf16 %v1632
      %v1669 = vunpack.c.l.bf16 %v1633
      %v1670 = vunpack.c.l.bf16 %v1634
      %v1671 = vunpack.c.l.bf16 %v1635
      %v1672 = vunpack.c.l.bf16 %v1636
      %v1673 = vunpack.c.l.bf16 %v1637
      %v1674 = vunpack.c.l.bf16 %v1638
      %v1675 = vadd.f32 %v1567, %v1639
      %v1676 = vadd.f32 %v1568, %v1640
      %v1677 = vadd.f32 %v1569, %v1641
      %v1678 = vadd.f32 %v1570, %v1642
      %v1679 = vadd.f32 %v1571, %v1643
      %v1680 = vadd.f32 %v1572, %v1644
      %v1681 = vadd.f32 %v1573, %v1645
      %v1682 = vadd.f32 %v1574, %v1646
      %v1683 = vadd.f32 %v1575, %v1647
      %v1684 = vadd.f32 %v1576, %v1648
      %v1685 = vadd.f32 %v1577, %v1649
      %v1686 = vadd.f32 %v1578, %v1650
      %v1687 = vadd.f32 %v1579, %v1651
      %v1688 = vadd.f32 %v1580, %v1652
      %v1689 = vadd.f32 %v1581, %v1653
      %v1690 = vadd.f32 %v1582, %v1654
      %v1691 = vadd.f32 %v1583, %v1655
      %v1692 = vadd.f32 %v1584, %v1656
      %v1693 = vadd.f32 %v1585, %v1657
      %v1694 = vadd.f32 %v1586, %v1658
      %v1695 = vadd.f32 %v1587, %v1659
      %v1696 = vadd.f32 %v1588, %v1660
      %v1697 = vadd.f32 %v1589, %v1661
      %v1698 = vadd.f32 %v1590, %v1662
      %v1699 = vadd.f32 %v1591, %v1663
      %v1700 = vadd.f32 %v1592, %v1664
      %v1701 = vadd.f32 %v1593, %v1665
      %v1702 = vadd.f32 %v1594, %v1666
      %v1703 = vadd.f32 %v1595, %v1667
      %v1704 = vadd.f32 %v1596, %v1668
      %v1705 = vadd.f32 %v1597, %v1669
      %v1706 = vadd.f32 %v1598, %v1670
      %v1707 = vadd.f32 %v1599, %v1671
      %v1708 = vadd.f32 %v1600, %v1672
      %v1709 = vadd.f32 %v1601, %v1673
      %v1710 = vadd.f32 %v1602, %v1674
      %v1711 = vsel %vm1495, %v1675, 0.0
      %v1712 = vsel %vm1496, %v1676, 0.0
      %v1713 = vsel %vm1497, %v1677, 0.0
      %v1714 = vsel %vm1498, %v1678, 0.0
      %v1715 = vsel %vm1499, %v1679, 0.0
      %v1716 = vsel %vm1500, %v1680, 0.0
      %v1717 = vsel %vm1501, %v1681, 0.0
      %v1718 = vsel %vm1502, %v1682, 0.0
      %v1719 = vsel %vm1503, %v1683, 0.0
      %v1720 = vsel %vm1504, %v1684, 0.0
      %v1721 = vsel %vm1505, %v1685, 0.0
      %v1722 = vsel %vm1506, %v1686, 0.0
      %v1723 = vsel %vm1507, %v1687, 0.0
      %v1724 = vsel %vm1508, %v1688, 0.0
      %v1725 = vsel %vm1509, %v1689, 0.0
      %v1726 = vsel %vm1510, %v1690, 0.0
      %v1727 = vsel %vm1511, %v1691, 0.0
      %v1728 = vsel %vm1512, %v1692, 0.0
      %v1729 = vsel %vm1513, %v1693, 0.0
      %v1730 = vsel %vm1514, %v1694, 0.0
      %v1731 = vsel %vm1515, %v1695, 0.0
      %v1732 = vsel %vm1516, %v1696, 0.0
      %v1733 = vsel %vm1517, %v1697, 0.0
      %v1734 = vsel %vm1518, %v1698, 0.0
      %v1735 = vsel %vm1519, %v1699, 0.0
      %v1736 = vsel %vm1520, %v1700, 0.0
      %v1737 = vsel %vm1521, %v1701, 0.0
      %v1738 = vsel %vm1522, %v1702, 0.0
      %v1739 = vsel %vm1523, %v1703, 0.0
      %v1740 = vsel %vm1524, %v1704, 0.0
      %v1741 = vsel %vm1525, %v1705, 0.0
      %v1742 = vsel %vm1526, %v1706, 0.0
      %v1743 = vsel %vm1527, %v1707, 0.0
      %v1744 = vsel %vm1528, %v1708, 0.0
      %v1745 = vsel %vm1529, %v1709, 0.0
      %v1746 = vsel %vm1530, %v1710, 0.0
      %vm1747 = vcmask 261120
      %1748 = vst.msk [vmem:[#allocation2 + $0x13] sm:$0xff] %vm1747, %v1711
      %1749 = vst.msk [vmem:[#allocation2 + $0x1b] sm:$0xff] %vm1747, %v1712
      %1750 = vst.msk [vmem:[#allocation2 + $0x23] sm:$0xff] %vm1747, %v1713
      %1751 = vst.msk [vmem:[#allocation2 + $0x2b] sm:$0xff] %vm1747, %v1714
      %1752 = vst.msk [vmem:[#allocation2 + $0x33] sm:$0xff] %vm1747, %v1715
      %1753 = vst.msk [vmem:[#allocation2 + $0x3b] sm:$0xff] %vm1747, %v1716
      %1754 = vst.msk [vmem:[#allocation2 + $0x43] sm:$0xff] %vm1747, %v1717
      %1755 = vst.msk [vmem:[#allocation2 + $0x4b] sm:$0xff] %vm1747, %v1718
      %1756 = vst.msk [vmem:[#allocation2 + $0x53] sm:$0xff] %vm1747, %v1719
      %1757 = vst.msk [vmem:[#allocation2 + $0x5b] sm:$0xff] %vm1747, %v1720
      %1758 = vst.msk [vmem:[#allocation2 + $0x63] sm:$0xff] %vm1747, %v1721
      %1759 = vst.msk [vmem:[#allocation2 + $0x6b] sm:$0xff] %vm1747, %v1722
      %1760 = vst.msk [vmem:[#allocation2 + $0x73] sm:$0xff] %vm1747, %v1723
      %1761 = vst.msk [vmem:[#allocation2 + $0x7b] sm:$0xff] %vm1747, %v1724
      %1762 = vst.msk [vmem:[#allocation2 + $0x83] sm:$0xff] %vm1747, %v1725
      %1763 = vst.msk [vmem:[#allocation2 + $0x8b] sm:$0xff] %vm1747, %v1726
      %1764 = vst.msk [vmem:[#allocation2 + $0x93] sm:$0xff] %vm1747, %v1727
      %1765 = vst.msk [vmem:[#allocation2 + $0x9b] sm:$0xff] %vm1747, %v1728
      %1766 = vst.msk [vmem:[#allocation2 + $0xa3] sm:$0xff] %vm1747, %v1729
      %1767 = vst.msk [vmem:[#allocation2 + $0xab] sm:$0xff] %vm1747, %v1730
      %1768 = vst.msk [vmem:[#allocation2 + $0xb3] sm:$0xff] %vm1747, %v1731
      %1769 = vst.msk [vmem:[#allocation2 + $0xbb] sm:$0xff] %vm1747, %v1732
      %1770 = vst.msk [vmem:[#allocation2 + $0xc3] sm:$0xff] %vm1747, %v1733
      %1771 = vst.msk [vmem:[#allocation2 + $0xcb] sm:$0xff] %vm1747, %v1734
      %1772 = vst.msk [vmem:[#allocation2 + $0xd3] sm:$0xff] %vm1747, %v1735
      %1773 = vst.msk [vmem:[#allocation2 + $0xdb] sm:$0xff] %vm1747, %v1736
      %1774 = vst.msk [vmem:[#allocation2 + $0xe3] sm:$0xff] %vm1747, %v1737
      %1775 = vst.msk [vmem:[#allocation2 + $0xeb] sm:$0xff] %vm1747, %v1738
      %1776 = vst.msk [vmem:[#allocation2 + $0xf3] sm:$0xff] %vm1747, %v1739
      %1777 = vst.msk [vmem:[#allocation2 + $0xfb] sm:$0xff] %vm1747, %v1740
      %1778 = vst.msk [vmem:[#allocation2 + $0x103] sm:$0xff] %vm1747, %v1741
      %1779 = vst.msk [vmem:[#allocation2 + $0x10b] sm:$0xff] %vm1747, %v1742
      %1780 = vst.msk [vmem:[#allocation2 + $0x113] sm:$0xff] %vm1747, %v1743
      %1781 = vst.msk [vmem:[#allocation2 + $0x11b] sm:$0xff] %vm1747, %v1744
      %1782 = vst.msk [vmem:[#allocation2 + $0x123] sm:$0xff] %vm1747, %v1745
      %1783 = vst.msk [vmem:[#allocation2 + $0x12b] sm:$0xff] %vm1747, %v1746
      %1820 = vrot.lane.b32.xlu0 %v1711, 32
      %v1821 = vpop.permute.xlu0 %1820
      %1822 = vrot.lane.b32.xlu0 %v1712, 32
      %v1823 = vpop.permute.xlu0 %1822
      %1824 = vrot.lane.b32.xlu0 %v1713, 32
      %v1825 = vpop.permute.xlu0 %1824
      %1826 = vrot.lane.b32.xlu0 %v1714, 32
      %v1827 = vpop.permute.xlu0 %1826
      %1828 = vrot.lane.b32.xlu0 %v1715, 32
      %v1829 = vpop.permute.xlu0 %1828
      %1830 = vrot.lane.b32.xlu0 %v1716, 32
      %v1831 = vpop.permute.xlu0 %1830
      %1832 = vrot.lane.b32.xlu0 %v1717, 32
      %v1833 = vpop.permute.xlu0 %1832
      %1834 = vrot.lane.b32.xlu0 %v1718, 32
      %v1835 = vpop.permute.xlu0 %1834
      %1836 = vrot.lane.b32.xlu0 %v1719, 32
      %v1837 = vpop.permute.xlu0 %1836
      %1838 = vrot.lane.b32.xlu0 %v1720, 32
      %v1839 = vpop.permute.xlu0 %1838
      %1840 = vrot.lane.b32.xlu0 %v1721, 32
      %v1841 = vpop.permute.xlu0 %1840
      %1842 = vrot.lane.b32.xlu0 %v1722, 32
      %v1843 = vpop.permute.xlu0 %1842
      %1844 = vrot.lane.b32.xlu0 %v1723, 32
      %v1845 = vpop.permute.xlu0 %1844
      %1846 = vrot.lane.b32.xlu0 %v1724, 32
      %v1847 = vpop.permute.xlu0 %1846
      %1848 = vrot.lane.b32.xlu0 %v1725, 32
      %v1849 = vpop.permute.xlu0 %1848
      %1850 = vrot.lane.b32.xlu0 %v1726, 32
      %v1851 = vpop.permute.xlu0 %1850
      %1852 = vrot.lane.b32.xlu0 %v1727, 32
      %v1853 = vpop.permute.xlu0 %1852
      %1854 = vrot.lane.b32.xlu0 %v1728, 32
      %v1855 = vpop.permute.xlu0 %1854
      %1856 = vrot.lane.b32.xlu0 %v1729, 32
      %v1857 = vpop.permute.xlu0 %1856
      %1858 = vrot.lane.b32.xlu0 %v1730, 32
      %v1859 = vpop.permute.xlu0 %1858
      %1860 = vrot.lane.b32.xlu0 %v1731, 32
      %v1861 = vpop.permute.xlu0 %1860
      %1862 = vrot.lane.b32.xlu0 %v1732, 32
      %v1863 = vpop.permute.xlu0 %1862
      %1864 = vrot.lane.b32.xlu0 %v1733, 32
      %v1865 = vpop.permute.xlu0 %1864
      %1866 = vrot.lane.b32.xlu0 %v1734, 32
      %v1867 = vpop.permute.xlu0 %1866
      %1868 = vrot.lane.b32.xlu0 %v1735, 32
      %v1869 = vpop.permute.xlu0 %1868
      %1870 = vrot.lane.b32.xlu0 %v1736, 32
      %v1871 = vpop.permute.xlu0 %1870
      %1872 = vrot.lane.b32.xlu0 %v1737, 32
      %v1873 = vpop.permute.xlu0 %1872
      %1874 = vrot.lane.b32.xlu0 %v1738, 32
      %v1875 = vpop.permute.xlu0 %1874
      %1876 = vrot.lane.b32.xlu0 %v1739, 32
      %v1877 = vpop.permute.xlu0 %1876
      %1878 = vrot.lane.b32.xlu0 %v1740, 32
      %v1879 = vpop.permute.xlu0 %1878
      %1880 = vrot.lane.b32.xlu0 %v1741, 32
      %v1881 = vpop.permute.xlu0 %1880
      %1882 = vrot.lane.b32.xlu0 %v1742, 32
      %v1883 = vpop.permute.xlu0 %1882
      %1884 = vrot.lane.b32.xlu0 %v1743, 32
      %v1885 = vpop.permute.xlu0 %1884
      %1886 = vrot.lane.b32.xlu0 %v1744, 32
      %v1887 = vpop.permute.xlu0 %1886
      %1888 = vrot.lane.b32.xlu0 %v1745, 32
      %v1889 = vpop.permute.xlu0 %1888
      %1890 = vrot.lane.b32.xlu0 %v1746, 32
      %v1891 = vpop.permute.xlu0 %1890
      %vm1928 = vcmask 523520
      %1929 = vst.msk [vmem:[#allocation2 + $0x12] sm:$0xff] %vm1928, %v1821
      %1930 = vst.msk [vmem:[#allocation2 + $0x1a] sm:$0xff] %vm1928, %v1823
      %1931 = vst.msk [vmem:[#allocation2 + $0x22] sm:$0xff] %vm1928, %v1825
      %1932 = vst.msk [vmem:[#allocation2 + $0x2a] sm:$0xff] %vm1928, %v1827
      %1933 = vst.msk [vmem:[#allocation2 + $0x32] sm:$0xff] %vm1928, %v1829
      %1934 = vst.msk [vmem:[#allocation2 + $0x3a] sm:$0xff] %vm1928, %v1831
      %1935 = vst.msk [vmem:[#allocation2 + $0x42] sm:$0xff] %vm1928, %v1833
      %1936 = vst.msk [vmem:[#allocation2 + $0x4a] sm:$0xff] %vm1928, %v1835
      %1937 = vst.msk [vmem:[#allocation2 + $0x52] sm:$0xff] %vm1928, %v1837
      %1938 = vst.msk [vmem:[#allocation2 + $0x5a] sm:$0xff] %vm1928, %v1839
      %1939 = vst.msk [vmem:[#allocation2 + $0x62] sm:$0xff] %vm1928, %v1841
      %1940 = vst.msk [vmem:[#allocation2 + $0x6a] sm:$0xff] %vm1928, %v1843
      %1941 = vst.msk [vmem:[#allocation2 + $0x72] sm:$0xff] %vm1928, %v1845
      %1942 = vst.msk [vmem:[#allocation2 + $0x7a] sm:$0xff] %vm1928, %v1847
      %1943 = vst.msk [vmem:[#allocation2 + $0x82] sm:$0xff] %vm1928, %v1849
      %1944 = vst.msk [vmem:[#allocation2 + $0x8a] sm:$0xff] %vm1928, %v1851
      %1945 = vst.msk [vmem:[#allocation2 + $0x92] sm:$0xff] %vm1928, %v1853
      %1946 = vst.msk [vmem:[#allocation2 + $0x9a] sm:$0xff] %vm1928, %v1855
      %1947 = vst.msk [vmem:[#allocation2 + $0xa2] sm:$0xff] %vm1928, %v1857
      %1948 = vst.msk [vmem:[#allocation2 + $0xaa] sm:$0xff] %vm1928, %v1859
      %1949 = vst.msk [vmem:[#allocation2 + $0xb2] sm:$0xff] %vm1928, %v1861
      %1950 = vst.msk [vmem:[#allocation2 + $0xba] sm:$0xff] %vm1928, %v1863
      %1951 = vst.msk [vmem:[#allocation2 + $0xc2] sm:$0xff] %vm1928, %v1865
      %1952 = vst.msk [vmem:[#allocation2 + $0xca] sm:$0xff] %vm1928, %v1867
      %1953 = vst.msk [vmem:[#allocation2 + $0xd2] sm:$0xff] %vm1928, %v1869
      %1954 = vst.msk [vmem:[#allocation2 + $0xda] sm:$0xff] %vm1928, %v1871
      %1955 = vst.msk [vmem:[#allocation2 + $0xe2] sm:$0xff] %vm1928, %v1873
      %1956 = vst.msk [vmem:[#allocation2 + $0xea] sm:$0xff] %vm1928, %v1875
      %1957 = vst.msk [vmem:[#allocation2 + $0xf2] sm:$0xff] %vm1928, %v1877
      %1958 = vst.msk [vmem:[#allocation2 + $0xfa] sm:$0xff] %vm1928, %v1879
      %1959 = vst.msk [vmem:[#allocation2 + $0x102] sm:$0xff] %vm1928, %v1881
      %1960 = vst.msk [vmem:[#allocation2 + $0x10a] sm:$0xff] %vm1928, %v1883
      %1961 = vst.msk [vmem:[#allocation2 + $0x112] sm:$0xff] %vm1928, %v1885
      %1962 = vst.msk [vmem:[#allocation2 + $0x11a] sm:$0xff] %vm1928, %v1887
      %1963 = vst.msk [vmem:[#allocation2 + $0x122] sm:$0xff] %vm1928, %v1889
      %1964 = vst.msk [vmem:[#allocation2 + $0x12a] sm:$0xff] %vm1928, %v1891
      %1965 = vrot.lane.b32.xlu0 %v1711, 64
      %v1966 = vpop.permute.xlu0 %1965
      %1967 = vrot.lane.b32.xlu0 %v1712, 64
      %v1968 = vpop.permute.xlu0 %1967
      %1969 = vrot.lane.b32.xlu0 %v1713, 64
      %v1970 = vpop.permute.xlu0 %1969
      %1971 = vrot.lane.b32.xlu0 %v1714, 64
      %v1972 = vpop.permute.xlu0 %1971
      %1973 = vrot.lane.b32.xlu0 %v1715, 64
      %v1974 = vpop.permute.xlu0 %1973
      %1975 = vrot.lane.b32.xlu0 %v1716, 64
      %v1976 = vpop.permute.xlu0 %1975
      %1977 = vrot.lane.b32.xlu0 %v1717, 64
      %v1978 = vpop.permute.xlu0 %1977
      %1979 = vrot.lane.b32.xlu0 %v1718, 64
      %v1980 = vpop.permute.xlu0 %1979
      %1981 = vrot.lane.b32.xlu0 %v1719, 64
      %v1982 = vpop.permute.xlu0 %1981
      %1983 = vrot.lane.b32.xlu0 %v1720, 64
      %v1984 = vpop.permute.xlu0 %1983
      %1985 = vrot.lane.b32.xlu0 %v1721, 64
      %v1986 = vpop.permute.xlu0 %1985
      %1987 = vrot.lane.b32.xlu0 %v1722, 64
      %v1988 = vpop.permute.xlu0 %1987
      %1989 = vrot.lane.b32.xlu0 %v1723, 64
      %v1990 = vpop.permute.xlu0 %1989
      %1991 = vrot.lane.b32.xlu0 %v1724, 64
      %v1992 = vpop.permute.xlu0 %1991
      %1993 = vrot.lane.b32.xlu0 %v1725, 64
      %v1994 = vpop.permute.xlu0 %1993
      %1995 = vrot.lane.b32.xlu0 %v1726, 64
      %v1996 = vpop.permute.xlu0 %1995
      %1997 = vrot.lane.b32.xlu0 %v1727, 64
      %v1998 = vpop.permute.xlu0 %1997
      %1999 = vrot.lane.b32.xlu0 %v1728, 64
      %v2000 = vpop.permute.xlu0 %1999
      %2001 = vrot.lane.b32.xlu0 %v1729, 64
      %v2002 = vpop.permute.xlu0 %2001
      %2003 = vrot.lane.b32.xlu0 %v1730, 64
      %v2004 = vpop.permute.xlu0 %2003
      %2005 = vrot.lane.b32.xlu0 %v1731, 64
      %v2006 = vpop.permute.xlu0 %2005
      %2007 = vrot.lane.b32.xlu0 %v1732, 64
      %v2008 = vpop.permute.xlu0 %2007
      %2009 = vrot.lane.b32.xlu0 %v1733, 64
      %v2010 = vpop.permute.xlu0 %2009
      %2011 = vrot.lane.b32.xlu0 %v1734, 64
      %v2012 = vpop.permute.xlu0 %2011
      %2013 = vrot.lane.b32.xlu0 %v1735, 64
      %v2014 = vpop.permute.xlu0 %2013
      %2015 = vrot.lane.b32.xlu0 %v1736, 64
      %v2016 = vpop.permute.xlu0 %2015
      %2017 = vrot.lane.b32.xlu0 %v1737, 64
      %v2018 = vpop.permute.xlu0 %2017
      %2019 = vrot.lane.b32.xlu0 %v1738, 64
      %v2020 = vpop.permute.xlu0 %2019
      %2021 = vrot.lane.b32.xlu0 %v1739, 64
      %v2022 = vpop.permute.xlu0 %2021
      %2023 = vrot.lane.b32.xlu0 %v1740, 64
      %v2024 = vpop.permute.xlu0 %2023
      %2025 = vrot.lane.b32.xlu0 %v1741, 64
      %v2026 = vpop.permute.xlu0 %2025
      %2027 = vrot.lane.b32.xlu0 %v1742, 64
      %v2028 = vpop.permute.xlu0 %2027
      %2029 = vrot.lane.b32.xlu0 %v1743, 64
      %v2030 = vpop.permute.xlu0 %2029
      %2031 = vrot.lane.b32.xlu0 %v1744, 64
      %v2032 = vpop.permute.xlu0 %2031
      %2033 = vrot.lane.b32.xlu0 %v1745, 64
      %v2034 = vpop.permute.xlu0 %2033
      %2035 = vrot.lane.b32.xlu0 %v1746, 64
      %v2036 = vpop.permute.xlu0 %2035
      %vm2073 = vcmask 785920
      %2074 = vst.msk [vmem:[#allocation2 + $0x11] sm:$0xff] %vm2073, %v1966
      %2075 = vst.msk [vmem:[#allocation2 + $0x19] sm:$0xff] %vm2073, %v1968
      %2076 = vst.msk [vmem:[#allocation2 + $0x21] sm:$0xff] %vm2073, %v1970
      %2077 = vst.msk [vmem:[#allocation2 + $0x29] sm:$0xff] %vm2073, %v1972
      %2078 = vst.msk [vmem:[#allocation2 + $0x31] sm:$0xff] %vm2073, %v1974
      %2079 = vst.msk [vmem:[#allocation2 + $0x39] sm:$0xff] %vm2073, %v1976
      %2080 = vst.msk [vmem:[#allocation2 + $0x41] sm:$0xff] %vm2073, %v1978
      %2081 = vst.msk [vmem:[#allocation2 + $0x49] sm:$0xff] %vm2073, %v1980
      %2082 = vst.msk [vmem:[#allocation2 + $0x51] sm:$0xff] %vm2073, %v1982
      %2083 = vst.msk [vmem:[#allocation2 + $0x59] sm:$0xff] %vm2073, %v1984
      %2084 = vst.msk [vmem:[#allocation2 + $0x61] sm:$0xff] %vm2073, %v1986
      %2085 = vst.msk [vmem:[#allocation2 + $0x69] sm:$0xff] %vm2073, %v1988
      %2086 = vst.msk [vmem:[#allocation2 + $0x71] sm:$0xff] %vm2073, %v1990
      %2087 = vst.msk [vmem:[#allocation2 + $0x79] sm:$0xff] %vm2073, %v1992
      %2088 = vst.msk [vmem:[#allocation2 + $0x81] sm:$0xff] %vm2073, %v1994
      %2089 = vst.msk [vmem:[#allocation2 + $0x89] sm:$0xff] %vm2073, %v1996
      %2090 = vst.msk [vmem:[#allocation2 + $0x91] sm:$0xff] %vm2073, %v1998
      %2091 = vst.msk [vmem:[#allocation2 + $0x99] sm:$0xff] %vm2073, %v2000
      %2092 = vst.msk [vmem:[#allocation2 + $0xa1] sm:$0xff] %vm2073, %v2002
      %2093 = vst.msk [vmem:[#allocation2 + $0xa9] sm:$0xff] %vm2073, %v2004
      %2094 = vst.msk [vmem:[#allocation2 + $0xb1] sm:$0xff] %vm2073, %v2006
      %2095 = vst.msk [vmem:[#allocation2 + $0xb9] sm:$0xff] %vm2073, %v2008
      %2096 = vst.msk [vmem:[#allocation2 + $0xc1] sm:$0xff] %vm2073, %v2010
      %2097 = vst.msk [vmem:[#allocation2 + $0xc9] sm:$0xff] %vm2073, %v2012
      %2098 = vst.msk [vmem:[#allocation2 + $0xd1] sm:$0xff] %vm2073, %v2014
      %2099 = vst.msk [vmem:[#allocation2 + $0xd9] sm:$0xff] %vm2073, %v2016
      %2100 = vst.msk [vmem:[#allocation2 + $0xe1] sm:$0xff] %vm2073, %v2018
      %2101 = vst.msk [vmem:[#allocation2 + $0xe9] sm:$0xff] %vm2073, %v2020
      %2102 = vst.msk [vmem:[#allocation2 + $0xf1] sm:$0xff] %vm2073, %v2022
      %2103 = vst.msk [vmem:[#allocation2 + $0xf9] sm:$0xff] %vm2073, %v2024
      %2104 = vst.msk [vmem:[#allocation2 + $0x101] sm:$0xff] %vm2073, %v2026
      %2105 = vst.msk [vmem:[#allocation2 + $0x109] sm:$0xff] %vm2073, %v2028
      %2106 = vst.msk [vmem:[#allocation2 + $0x111] sm:$0xff] %vm2073, %v2030
      %2107 = vst.msk [vmem:[#allocation2 + $0x119] sm:$0xff] %vm2073, %v2032
      %2108 = vst.msk [vmem:[#allocation2 + $0x121] sm:$0xff] %vm2073, %v2034
      %2109 = vst.msk [vmem:[#allocation2 + $0x129] sm:$0xff] %vm2073, %v2036
      %v2110 = vld [vmem:[#allocation2] sm:$0xff]
      %v2111 = vld [vmem:[#allocation2 + $0x8] sm:$0xff]
      %v2112 = vld [vmem:[#allocation2 + $0x10] sm:$0xff]
      %v2113 = vld [vmem:[#allocation2 + $0x18] sm:$0xff]
      %v2114 = vld [vmem:[#allocation2 + $0x20] sm:$0xff]
      %v2115 = vld [vmem:[#allocation2 + $0x28] sm:$0xff]
      %v2116 = vld [vmem:[#allocation2 + $0x30] sm:$0xff]
      %v2117 = vld [vmem:[#allocation2 + $0x38] sm:$0xff]
      %v2118 = vld [vmem:[#allocation2 + $0x40] sm:$0xff]
      %v2119 = vld [vmem:[#allocation2 + $0x48] sm:$0xff]
      %v2120 = vld [vmem:[#allocation2 + $0x50] sm:$0xff]
      %v2121 = vld [vmem:[#allocation2 + $0x58] sm:$0xff]
      %v2122 = vld [vmem:[#allocation2 + $0x60] sm:$0xff]
      %v2123 = vld [vmem:[#allocation2 + $0x68] sm:$0xff]
      %v2124 = vld [vmem:[#allocation2 + $0x70] sm:$0xff]
      %v2125 = vld [vmem:[#allocation2 + $0x78] sm:$0xff]
      %v2126 = vld [vmem:[#allocation2 + $0x80] sm:$0xff]
      %v2127 = vld [vmem:[#allocation2 + $0x88] sm:$0xff]
      %v2128 = vld [vmem:[#allocation2 + $0x90] sm:$0xff]
      %v2129 = vld [vmem:[#allocation2 + $0x98] sm:$0xff]
      %v2130 = vld [vmem:[#allocation2 + $0xa0] sm:$0xff]
      %v2131 = vld [vmem:[#allocation2 + $0xa8] sm:$0xff]
      %v2132 = vld [vmem:[#allocation2 + $0xb0] sm:$0xff]
      %v2133 = vld [vmem:[#allocation2 + $0xb8] sm:$0xff]
      %v2134 = vld [vmem:[#allocation2 + $0xc0] sm:$0xff]
      %v2135 = vld [vmem:[#allocation2 + $0xc8] sm:$0xff]
      %v2136 = vld [vmem:[#allocation2 + $0xd0] sm:$0xff]
      %v2137 = vld [vmem:[#allocation2 + $0xd8] sm:$0xff]
      %v2138 = vld [vmem:[#allocation2 + $0xe0] sm:$0xff]
      %v2139 = vld [vmem:[#allocation2 + $0xe8] sm:$0xff]
      %v2140 = vld [vmem:[#allocation2 + $0xf0] sm:$0xff]
      %v2141 = vld [vmem:[#allocation2 + $0xf8] sm:$0xff]
      %v2142 = vld [vmem:[#allocation2 + $0x100] sm:$0xff]
      %v2143 = vld [vmem:[#allocation2 + $0x108] sm:$0xff]
      %v2144 = vld [vmem:[#allocation2 + $0x110] sm:$0xff]
      %v2145 = vld [vmem:[#allocation2 + $0x118] sm:$0xff]
      %v2146 = vpack.c.bf16 %v2111, %v2110
      %v2147 = vpack.c.bf16 %v2113, %v2112
      %v2148 = vpack.c.bf16 %v2115, %v2114
      %v2149 = vpack.c.bf16 %v2117, %v2116
      %v2150 = vpack.c.bf16 %v2119, %v2118
      %v2151 = vpack.c.bf16 %v2121, %v2120
      %v2152 = vpack.c.bf16 %v2123, %v2122
      %v2153 = vpack.c.bf16 %v2125, %v2124
      %v2154 = vpack.c.bf16 %v2127, %v2126
      %v2155 = vpack.c.bf16 %v2129, %v2128
      %v2156 = vpack.c.bf16 %v2131, %v2130
      %v2157 = vpack.c.bf16 %v2133, %v2132
      %v2158 = vpack.c.bf16 %v2135, %v2134
      %v2159 = vpack.c.bf16 %v2137, %v2136
      %v2160 = vpack.c.bf16 %v2139, %v2138
      %v2161 = vpack.c.bf16 %v2141, %v2140
      %v2162 = vpack.c.bf16 %v2143, %v2142
      %v2163 = vpack.c.bf16 %v2145, %v2144
      %v2164 = vld [vmem:[%s2] sm:$0xf]
      %v2165 = vld [vmem:[%s2 + $0x4] sm:$0xf]
      %v2166 = vld [vmem:[%s2 + $0x8] sm:$0xf]
      %v2167 = vld [vmem:[%s2 + $0xc] sm:$0xf]
      %v2168 = vld [vmem:[%s2 + $0x10] sm:$0xf]
      %v2169 = vld [vmem:[%s2 + $0x14] sm:$0xf]
      %v2170 = vld [vmem:[%s2 + $0x18] sm:$0xf]
      %v2171 = vld [vmem:[%s2 + $0x1c] sm:$0xf]
      %v2172 = vld [vmem:[%s2 + $0x20] sm:$0xf]
      %v2173 = vld [vmem:[%s2 + $0x24] sm:$0xf]
      %v2174 = vld [vmem:[%s2 + $0x28] sm:$0xf]
      %v2175 = vld [vmem:[%s2 + $0x2c] sm:$0xf]
      %v2176 = vld [vmem:[#allocation2 + $0x12] sm:$0xff]
      %v2177 = vld [vmem:[#allocation2 + $0x1a] sm:$0xff]
      %v2178 = vld [vmem:[#allocation2 + $0x22] sm:$0xff]
      %v2179 = vld [vmem:[#allocation2 + $0x2a] sm:$0xff]
      %v2180 = vld [vmem:[#allocation2 + $0x32] sm:$0xff]
      %v2181 = vld [vmem:[#allocation2 + $0x3a] sm:$0xff]
      %v2182 = vld [vmem:[#allocation2 + $0x42] sm:$0xff]
      %v2183 = vld [vmem:[#allocation2 + $0x4a] sm:$0xff]
      %v2184 = vld [vmem:[#allocation2 + $0x52] sm:$0xff]
      %v2185 = vld [vmem:[#allocation2 + $0x5a] sm:$0xff]
      %v2186 = vld [vmem:[#allocation2 + $0x62] sm:$0xff]
      %v2187 = vld [vmem:[#allocation2 + $0x6a] sm:$0xff]
      %v2188 = vld [vmem:[#allocation2 + $0x72] sm:$0xff]
      %v2189 = vld [vmem:[#allocation2 + $0x7a] sm:$0xff]
      %v2190 = vld [vmem:[#allocation2 + $0x82] sm:$0xff]
      %v2191 = vld [vmem:[#allocation2 + $0x8a] sm:$0xff]
      %v2192 = vld [vmem:[#allocation2 + $0x92] sm:$0xff]
      %v2193 = vld [vmem:[#allocation2 + $0x9a] sm:$0xff]
      %v2194 = vld [vmem:[#allocation2 + $0xa2] sm:$0xff]
      %v2195 = vld [vmem:[#allocation2 + $0xaa] sm:$0xff]
      %v2196 = vld [vmem:[#allocation2 + $0xb2] sm:$0xff]
      %v2197 = vld [vmem:[#allocation2 + $0xba] sm:$0xff]
      %v2198 = vld [vmem:[#allocation2 + $0xc2] sm:$0xff]
      %v2199 = vld [vmem:[#allocation2 + $0xca] sm:$0xff]
      %v2200 = vld [vmem:[#allocation2 + $0xd2] sm:$0xff]
      %v2201 = vld [vmem:[#allocation2 + $0xda] sm:$0xff]
      %v2202 = vld [vmem:[#allocation2 + $0xe2] sm:$0xff]
      %v2203 = vld [vmem:[#allocation2 + $0xea] sm:$0xff]
      %v2204 = vld [vmem:[#allocation2 + $0xf2] sm:$0xff]
      %v2205 = vld [vmem:[#allocation2 + $0xfa] sm:$0xff]
      %v2206 = vld [vmem:[#allocation2 + $0x102] sm:$0xff]
      %v2207 = vld [vmem:[#allocation2 + $0x10a] sm:$0xff]
      %v2208 = vld [vmem:[#allocation2 + $0x112] sm:$0xff]
      %v2209 = vld [vmem:[#allocation2 + $0x11a] sm:$0xff]
      %v2210 = vld [vmem:[#allocation2 + $0x122] sm:$0xff]
      %v2211 = vld [vmem:[#allocation2 + $0x12a] sm:$0xff]
      %v2212 = vpack.c.bf16 %v2177, %v2176
      %v2213 = vpack.c.bf16 %v2179, %v2178
      %v2214 = vpack.c.bf16 %v2181, %v2180
      %v2215 = vpack.c.bf16 %v2183, %v2182
      %v2216 = vpack.c.bf16 %v2185, %v2184
      %v2217 = vpack.c.bf16 %v2187, %v2186
      %v2218 = vpack.c.bf16 %v2189, %v2188
      %v2219 = vpack.c.bf16 %v2191, %v2190
      %v2220 = vpack.c.bf16 %v2193, %v2192
      %v2221 = vpack.c.bf16 %v2195, %v2194
      %v2222 = vpack.c.bf16 %v2197, %v2196
      %v2223 = vpack.c.bf16 %v2199, %v2198
      %v2224 = vpack.c.bf16 %v2201, %v2200
      %v2225 = vpack.c.bf16 %v2203, %v2202
      %v2226 = vpack.c.bf16 %v2205, %v2204
      %v2227 = vpack.c.bf16 %v2207, %v2206
      %v2228 = vpack.c.bf16 %v2209, %v2208
      %v2229 = vpack.c.bf16 %v2211, %v2210
      %s2230 = scalar_lea.vmem %s2, 48
      %v2231 = vld [vmem:[%s2230] sm:$0xf]
      %v2232 = vld [vmem:[%s2230 + $0x4] sm:$0xf]
      %v2233 = vld [vmem:[%s2230 + $0x8] sm:$0xf]
      %v2234 = vld [vmem:[%s2230 + $0xc] sm:$0xf]
      %v2235 = vld [vmem:[%s2230 + $0x10] sm:$0xf]
      %v2236 = vld [vmem:[%s2230 + $0x14] sm:$0xf]
      %v2237 = vld [vmem:[%s2230 + $0x18] sm:$0xf]
      %v2238 = vld [vmem:[%s2230 + $0x1c] sm:$0xf]
      %v2239 = vld [vmem:[%s2230 + $0x20] sm:$0xf]
      %v2240 = vld [vmem:[%s2230 + $0x24] sm:$0xf]
      %v2241 = vld [vmem:[%s2230 + $0x28] sm:$0xf]
      %v2242 = vld [vmem:[%s2230 + $0x2c] sm:$0xf]
      %v2255 = vunpack.c.l.b16 %v2231
      %v2256 = vunpack.c.l.b16 %v2232
      %v2257 = vunpack.c.l.b16 %v2233
      %v2258 = vunpack.c.l.b16 %v2234
      %v2259 = vunpack.c.l.b16 %v2235
      %v2260 = vunpack.c.l.b16 %v2236
      %v2261 = vunpack.c.l.b16 %v2237
      %v2262 = vunpack.c.l.b16 %v2238
      %v2263 = vunpack.c.l.b16 %v2239
      %v2264 = vunpack.c.l.b16 %v2240
      %v2265 = vunpack.c.l.b16 %v2241
      %v2266 = vunpack.c.l.b16 %v2242
      %v2267 = vpack.c.b16 %v2256, %v2255
      %v2268 = vpack.c.b16 %v2258, %v2257
      %v2269 = vpack.c.b16 %v2260, %v2259
      %v2270 = vpack.c.b16 %v2262, %v2261
      %v2271 = vpack.c.b16 %v2264, %v2263
      %v2272 = vpack.c.b16 %v2266, %v2265
      %v2280 = vsel %vm192, %v2212, 0
      %v2283 = vsel %vm192, %v2213, 0
      %v2286 = vsel %vm192, %v2214, 0
      %v2289 = vsel %vm192, %v2215, 0
      %v2292 = vsel %vm192, %v2216, 0
      %v2295 = vsel %vm192, %v2217, 0
      %v2298 = vsel %vm192, %v2218, 0
      %v2301 = vsel %vm192, %v2219, 0
      %v2304 = vsel %vm192, %v2220, 0
      %v2307 = vsel %vm192, %v2221, 0
      %v2310 = vsel %vm192, %v2222, 0
      %v2313 = vsel %vm192, %v2223, 0
      %v2316 = vsel %vm192, %v2224, 0
      %v2319 = vsel %vm192, %v2225, 0
      %v2322 = vsel %vm192, %v2226, 0
      %v2325 = vsel %vm192, %v2227, 0
      %v2328 = vsel %vm192, %v2228, 0
      %v2331 = vsel %vm192, %v2229, 0
      %2333 = vmatpush.bf16.msra.mxu0 0
      %2334 = vmatpush.bf16.msra.mxu0 0
      %2335 = vmatpush.bf16.msra.mxu0 %v2272
      %2336 = vmatpush.bf16.msra.mxu0 %v2271
      %2337 = vmatpush.bf16.msra.mxu0 %v2270
      %2338 = vmatpush.bf16.msra.mxu0 %v2269
      %2339 = vmatpush.bf16.msra.mxu0 %v2268
      %2340 = vmatpush.bf16.msra.mxu0 %v2267
      %2341 = vmatmul.bf16.gmra.mxu0 %v2280
      %v2342 = vpop.f32.mrf.mxu0
      %v2343 = vadd.f32 0.0, %v2342
      %v2344 = vpop.f32.mrf.mxu0
      %v2345 = vadd.f32 0.0, %v2344
      %2346 = vmatmul.bf16.gmra.mxu0 %v2283
      %v2347 = vpop.f32.mrf.mxu0
      %v2348 = vadd.f32 0.0, %v2347
      %v2349 = vpop.f32.mrf.mxu0
      %v2350 = vadd.f32 0.0, %v2349
      %2351 = vmatmul.bf16.gmra.mxu0 %v2286
      %v2352 = vpop.f32.mrf.mxu0
      %v2353 = vadd.f32 0.0, %v2352
      %v2354 = vpop.f32.mrf.mxu0
      %v2355 = vadd.f32 0.0, %v2354
      %2356 = vmatmul.bf16.gmra.mxu0 %v2289
      %v2357 = vpop.f32.mrf.mxu0
      %v2358 = vadd.f32 0.0, %v2357
      %v2359 = vpop.f32.mrf.mxu0
      %v2360 = vadd.f32 0.0, %v2359
      %2361 = vmatmul.bf16.gmra.mxu0 %v2292
      %v2362 = vpop.f32.mrf.mxu0
      %v2363 = vadd.f32 0.0, %v2362
      %v2364 = vpop.f32.mrf.mxu0
      %v2365 = vadd.f32 0.0, %v2364
      %2366 = vmatmul.bf16.gmra.mxu0 %v2295
      %v2367 = vpop.f32.mrf.mxu0
      %v2368 = vadd.f32 0.0, %v2367
      %v2369 = vpop.f32.mrf.mxu0
      %v2370 = vadd.f32 0.0, %v2369
      %2371 = vmatmul.bf16.gmra.mxu0 %v2298
      %v2372 = vpop.f32.mrf.mxu0
      %v2373 = vadd.f32 0.0, %v2372
      %v2374 = vpop.f32.mrf.mxu0
      %v2375 = vadd.f32 0.0, %v2374
      %2376 = vmatmul.bf16.gmra.mxu0 %v2301
      %v2377 = vpop.f32.mrf.mxu0
      %v2378 = vadd.f32 0.0, %v2377
      %v2379 = vpop.f32.mrf.mxu0
      %v2380 = vadd.f32 0.0, %v2379
      %2381 = vmatmul.bf16.gmra.mxu0 %v2304
      %v2382 = vpop.f32.mrf.mxu0
      %v2383 = vadd.f32 0.0, %v2382
      %v2384 = vpop.f32.mrf.mxu0
      %v2385 = vadd.f32 0.0, %v2384
      %2386 = vmatmul.bf16.gmra.mxu0 %v2307
      %v2387 = vpop.f32.mrf.mxu0
      %v2388 = vadd.f32 0.0, %v2387
      %v2389 = vpop.f32.mrf.mxu0
      %v2390 = vadd.f32 0.0, %v2389
      %2391 = vmatmul.bf16.gmra.mxu0 %v2310
      %v2392 = vpop.f32.mrf.mxu0
      %v2393 = vadd.f32 0.0, %v2392
      %v2394 = vpop.f32.mrf.mxu0
      %v2395 = vadd.f32 0.0, %v2394
      %2396 = vmatmul.bf16.gmra.mxu0 %v2313
      %v2397 = vpop.f32.mrf.mxu0
      %v2398 = vadd.f32 0.0, %v2397
      %v2399 = vpop.f32.mrf.mxu0
      %v2400 = vadd.f32 0.0, %v2399
      %2401 = vmatmul.bf16.gmra.mxu0 %v2316
      %v2402 = vpop.f32.mrf.mxu0
      %v2403 = vadd.f32 0.0, %v2402
      %v2404 = vpop.f32.mrf.mxu0
      %v2405 = vadd.f32 0.0, %v2404
      %2406 = vmatmul.bf16.gmra.mxu0 %v2319
      %v2407 = vpop.f32.mrf.mxu0
      %v2408 = vadd.f32 0.0, %v2407
      %v2409 = vpop.f32.mrf.mxu0
      %v2410 = vadd.f32 0.0, %v2409
      %2411 = vmatmul.bf16.gmra.mxu0 %v2322
      %v2412 = vpop.f32.mrf.mxu0
      %v2413 = vadd.f32 0.0, %v2412
      %v2414 = vpop.f32.mrf.mxu0
      %v2415 = vadd.f32 0.0, %v2414
      %2416 = vmatmul.bf16.gmra.mxu0 %v2325
      %v2417 = vpop.f32.mrf.mxu0
      %v2418 = vadd.f32 0.0, %v2417
      %v2419 = vpop.f32.mrf.mxu0
      %v2420 = vadd.f32 0.0, %v2419
      %2421 = vmatmul.bf16.gmra.mxu0 %v2328
      %v2422 = vpop.f32.mrf.mxu0
      %v2423 = vadd.f32 0.0, %v2422
      %v2424 = vpop.f32.mrf.mxu0
      %v2425 = vadd.f32 0.0, %v2424
      %2426 = vmatmul.bf16.gmra.mxu0 %v2331
      %v2427 = vpop.f32.mrf.mxu0
      %v2428 = vadd.f32 0.0, %v2427
      %v2429 = vpop.f32.mrf.mxu0
      %v2430 = vadd.f32 0.0, %v2429
      %2431 = vdwg.mxu0
      %v2444 = vunpack.c.l.b16 %v2164
      %v2445 = vunpack.c.l.b16 %v2165
      %v2446 = vunpack.c.l.b16 %v2166
      %v2447 = vunpack.c.l.b16 %v2167
      %v2448 = vunpack.c.l.b16 %v2168
      %v2449 = vunpack.c.l.b16 %v2169
      %v2450 = vunpack.c.l.b16 %v2170
      %v2451 = vunpack.c.l.b16 %v2171
      %v2452 = vunpack.c.l.b16 %v2172
      %v2453 = vunpack.c.l.b16 %v2173
      %v2454 = vunpack.c.l.b16 %v2174
      %v2455 = vunpack.c.l.b16 %v2175
      %v2456 = vpack.c.b16 %v2445, %v2444
      %v2457 = vpack.c.b16 %v2447, %v2446
      %v2458 = vpack.c.b16 %v2449, %v2448
      %v2459 = vpack.c.b16 %v2451, %v2450
      %v2460 = vpack.c.b16 %v2453, %v2452
      %v2461 = vpack.c.b16 %v2455, %v2454
      %v2469 = vsel %vm192, %v2146, 0
      %v2472 = vsel %vm192, %v2147, 0
      %v2475 = vsel %vm192, %v2148, 0
      %v2478 = vsel %vm192, %v2149, 0
      %v2481 = vsel %vm192, %v2150, 0
      %v2484 = vsel %vm192, %v2151, 0
      %v2487 = vsel %vm192, %v2152, 0
      %v2490 = vsel %vm192, %v2153, 0
      %v2493 = vsel %vm192, %v2154, 0
      %v2496 = vsel %vm192, %v2155, 0
      %v2499 = vsel %vm192, %v2156, 0
      %v2502 = vsel %vm192, %v2157, 0
      %v2505 = vsel %vm192, %v2158, 0
      %v2508 = vsel %vm192, %v2159, 0
      %v2511 = vsel %vm192, %v2160, 0
      %v2514 = vsel %vm192, %v2161, 0
      %v2517 = vsel %vm192, %v2162, 0
      %v2520 = vsel %vm192, %v2163, 0
      %2522 = vmatpush.bf16.msra.mxu0 0
      %2523 = vmatpush.bf16.msra.mxu0 0
      %2524 = vmatpush.bf16.msra.mxu0 %v2461
      %2525 = vmatpush.bf16.msra.mxu0 %v2460
      %2526 = vmatpush.bf16.msra.mxu0 %v2459
      %2527 = vmatpush.bf16.msra.mxu0 %v2458
      %2528 = vmatpush.bf16.msra.mxu0 %v2457
      %2529 = vmatpush.bf16.msra.mxu0 %v2456
      %2530 = vmatmul.bf16.gmra.mxu0 %v2469
      %v2531 = vpop.f32.mrf.mxu0
      %v2532 = vadd.f32 %v2343, %v2531
      %v2533 = vpop.f32.mrf.mxu0
      %v2534 = vadd.f32 %v2345, %v2533
      %2535 = vmatmul.bf16.gmra.mxu0 %v2472
      %v2536 = vpop.f32.mrf.mxu0
      %v2537 = vadd.f32 %v2348, %v2536
      %v2538 = vpop.f32.mrf.mxu0
      %v2539 = vadd.f32 %v2350, %v2538
      %2540 = vmatmul.bf16.gmra.mxu0 %v2475
      %v2541 = vpop.f32.mrf.mxu0
      %v2542 = vadd.f32 %v2353, %v2541
      %v2543 = vpop.f32.mrf.mxu0
      %v2544 = vadd.f32 %v2355, %v2543
      %2545 = vmatmul.bf16.gmra.mxu0 %v2478
      %v2546 = vpop.f32.mrf.mxu0
      %v2547 = vadd.f32 %v2358, %v2546
      %v2548 = vpop.f32.mrf.mxu0
      %v2549 = vadd.f32 %v2360, %v2548
      %2550 = vmatmul.bf16.gmra.mxu0 %v2481
      %v2551 = vpop.f32.mrf.mxu0
      %v2552 = vadd.f32 %v2363, %v2551
      %v2553 = vpop.f32.mrf.mxu0
      %v2554 = vadd.f32 %v2365, %v2553
      %2555 = vmatmul.bf16.gmra.mxu0 %v2484
      %v2556 = vpop.f32.mrf.mxu0
      %v2557 = vadd.f32 %v2368, %v2556
      %v2558 = vpop.f32.mrf.mxu0
      %v2559 = vadd.f32 %v2370, %v2558
      %2560 = vmatmul.bf16.gmra.mxu0 %v2487
      %v2561 = vpop.f32.mrf.mxu0
      %v2562 = vadd.f32 %v2373, %v2561
      %v2563 = vpop.f32.mrf.mxu0
      %v2564 = vadd.f32 %v2375, %v2563
      %2565 = vmatmul.bf16.gmra.mxu0 %v2490
      %v2566 = vpop.f32.mrf.mxu0
      %v2567 = vadd.f32 %v2378, %v2566
      %v2568 = vpop.f32.mrf.mxu0
      %v2569 = vadd.f32 %v2380, %v2568
      %2570 = vmatmul.bf16.gmra.mxu0 %v2493
      %v2571 = vpop.f32.mrf.mxu0
      %v2572 = vadd.f32 %v2383, %v2571
      %v2573 = vpop.f32.mrf.mxu0
      %v2574 = vadd.f32 %v2385, %v2573
      %2575 = vmatmul.bf16.gmra.mxu0 %v2496
      %v2576 = vpop.f32.mrf.mxu0
      %v2577 = vadd.f32 %v2388, %v2576
      %v2578 = vpop.f32.mrf.mxu0
      %v2579 = vadd.f32 %v2390, %v2578
      %2580 = vmatmul.bf16.gmra.mxu0 %v2499
      %v2581 = vpop.f32.mrf.mxu0
      %v2582 = vadd.f32 %v2393, %v2581
      %v2583 = vpop.f32.mrf.mxu0
      %v2584 = vadd.f32 %v2395, %v2583
      %2585 = vmatmul.bf16.gmra.mxu0 %v2502
      %v2586 = vpop.f32.mrf.mxu0
      %v2587 = vadd.f32 %v2398, %v2586
      %v2588 = vpop.f32.mrf.mxu0
      %v2589 = vadd.f32 %v2400, %v2588
      %2590 = vmatmul.bf16.gmra.mxu0 %v2505
      %v2591 = vpop.f32.mrf.mxu0
      %v2592 = vadd.f32 %v2403, %v2591
      %v2593 = vpop.f32.mrf.mxu0
      %v2594 = vadd.f32 %v2405, %v2593
      %2595 = vmatmul.bf16.gmra.mxu0 %v2508
      %v2596 = vpop.f32.mrf.mxu0
      %v2597 = vadd.f32 %v2408, %v2596
      %v2598 = vpop.f32.mrf.mxu0
      %v2599 = vadd.f32 %v2410, %v2598
      %2600 = vmatmul.bf16.gmra.mxu0 %v2511
      %v2601 = vpop.f32.mrf.mxu0
      %v2602 = vadd.f32 %v2413, %v2601
      %v2603 = vpop.f32.mrf.mxu0
      %v2604 = vadd.f32 %v2415, %v2603
      %2605 = vmatmul.bf16.gmra.mxu0 %v2514
      %v2606 = vpop.f32.mrf.mxu0
      %v2607 = vadd.f32 %v2418, %v2606
      %v2608 = vpop.f32.mrf.mxu0
      %v2609 = vadd.f32 %v2420, %v2608
      %2610 = vmatmul.bf16.gmra.mxu0 %v2517
      %v2611 = vpop.f32.mrf.mxu0
      %v2612 = vadd.f32 %v2423, %v2611
      %v2613 = vpop.f32.mrf.mxu0
      %v2614 = vadd.f32 %v2425, %v2613
      %2615 = vmatmul.bf16.gmra.mxu0 %v2520
      %v2616 = vpop.f32.mrf.mxu0
      %v2617 = vadd.f32 %v2428, %v2616
      %v2618 = vpop.f32.mrf.mxu0
      %v2619 = vadd.f32 %v2430, %v2618
      %2620 = vdwg.mxu0
      %v2621 = vld [vmem:[#allocation2 + $0x24] sm:$0xff]
      %v2622 = vld [vmem:[#allocation2 + $0x2c] sm:$0xff]
      %v2623 = vld [vmem:[#allocation2 + $0x34] sm:$0xff]
      %v2624 = vld [vmem:[#allocation2 + $0x3c] sm:$0xff]
      %v2625 = vld [vmem:[#allocation2 + $0x44] sm:$0xff]
      %v2626 = vld [vmem:[#allocation2 + $0x4c] sm:$0xff]
      %v2627 = vld [vmem:[#allocation2 + $0x54] sm:$0xff]
      %v2628 = vld [vmem:[#allocation2 + $0x5c] sm:$0xff]
      %v2629 = vld [vmem:[#allocation2 + $0x64] sm:$0xff]
      %v2630 = vld [vmem:[#allocation2 + $0x6c] sm:$0xff]
      %v2631 = vld [vmem:[#allocation2 + $0x74] sm:$0xff]
      %v2632 = vld [vmem:[#allocation2 + $0x7c] sm:$0xff]
      %v2633 = vld [vmem:[#allocation2 + $0x84] sm:$0xff]
      %v2634 = vld [vmem:[#allocation2 + $0x8c] sm:$0xff]
      %v2635 = vld [vmem:[#allocation2 + $0x94] sm:$0xff]
      %v2636 = vld [vmem:[#allocation2 + $0x9c] sm:$0xff]
      %v2637 = vld [vmem:[#allocation2 + $0xa4] sm:$0xff]
      %v2638 = vld [vmem:[#allocation2 + $0xac] sm:$0xff]
      %v2639 = vld [vmem:[#allocation2 + $0xb4] sm:$0xff]
      %v2640 = vld [vmem:[#allocation2 + $0xbc] sm:$0xff]
      %v2641 = vld [vmem:[#allocation2 + $0xc4] sm:$0xff]
      %v2642 = vld [vmem:[#allocation2 + $0xcc] sm:$0xff]
      %v2643 = vld [vmem:[#allocation2 + $0xd4] sm:$0xff]
      %v2644 = vld [vmem:[#allocation2 + $0xdc] sm:$0xff]
      %v2645 = vld [vmem:[#allocation2 + $0xe4] sm:$0xff]
      %v2646 = vld [vmem:[#allocation2 + $0xec] sm:$0xff]
      %v2647 = vld [vmem:[#allocation2 + $0xf4] sm:$0xff]
      %v2648 = vld [vmem:[#allocation2 + $0xfc] sm:$0xff]
      %v2649 = vld [vmem:[#allocation2 + $0x104] sm:$0xff]
      %v2650 = vld [vmem:[#allocation2 + $0x10c] sm:$0xff]
      %v2651 = vld [vmem:[#allocation2 + $0x114] sm:$0xff]
      %v2652 = vld [vmem:[#allocation2 + $0x11c] sm:$0xff]
      %v2653 = vld [vmem:[#allocation2 + $0x124] sm:$0xff]
      %v2654 = vld [vmem:[#allocation2 + $0x12c] sm:$0xff]
      %v2655 = vld [vmem:[#allocation2 + $0x134] sm:$0xff]
      %v2656 = vld [vmem:[#allocation2 + $0x13c] sm:$0xff]
      %v2657 = vpack.c.bf16 %v2622, %v2621
      %v2658 = vpack.c.bf16 %v2624, %v2623
      %v2659 = vpack.c.bf16 %v2626, %v2625
      %v2660 = vpack.c.bf16 %v2628, %v2627
      %v2661 = vpack.c.bf16 %v2630, %v2629
      %v2662 = vpack.c.bf16 %v2632, %v2631
      %v2663 = vpack.c.bf16 %v2634, %v2633
      %v2664 = vpack.c.bf16 %v2636, %v2635
      %v2665 = vpack.c.bf16 %v2638, %v2637
      %v2666 = vpack.c.bf16 %v2640, %v2639
      %v2667 = vpack.c.bf16 %v2642, %v2641
      %v2668 = vpack.c.bf16 %v2644, %v2643
      %v2669 = vpack.c.bf16 %v2646, %v2645
      %v2670 = vpack.c.bf16 %v2648, %v2647
      %v2671 = vpack.c.bf16 %v2650, %v2649
      %v2672 = vpack.c.bf16 %v2652, %v2651
      %v2673 = vpack.c.bf16 %v2654, %v2653
      %v2674 = vpack.c.bf16 %v2656, %v2655
      %s2675 = scalar_lea.vmem %s2, 96
      %v2676 = vld [vmem:[%s2675] sm:$0xf]
      %v2677 = vld [vmem:[%s2675 + $0x4] sm:$0xf]
      %v2678 = vld [vmem:[%s2675 + $0x8] sm:$0xf]
      %v2679 = vld [vmem:[%s2675 + $0xc] sm:$0xf]
      %v2680 = vld [vmem:[%s2675 + $0x10] sm:$0xf]
      %v2681 = vld [vmem:[%s2675 + $0x14] sm:$0xf]
      %v2682 = vld [vmem:[%s2675 + $0x18] sm:$0xf]
      %v2683 = vld [vmem:[%s2675 + $0x1c] sm:$0xf]
      %v2684 = vld [vmem:[%s2675 + $0x20] sm:$0xf]
      %v2685 = vld [vmem:[%s2675 + $0x24] sm:$0xf]
      %v2686 = vld [vmem:[%s2675 + $0x28] sm:$0xf]
      %v2687 = vld [vmem:[%s2675 + $0x2c] sm:$0xf]
      %v2700 = vunpack.c.l.b16 %v2676
      %v2701 = vunpack.c.l.b16 %v2677
      %v2702 = vunpack.c.l.b16 %v2678
      %v2703 = vunpack.c.l.b16 %v2679
      %v2704 = vunpack.c.l.b16 %v2680
      %v2705 = vunpack.c.l.b16 %v2681
      %v2706 = vunpack.c.l.b16 %v2682
      %v2707 = vunpack.c.l.b16 %v2683
      %v2708 = vunpack.c.l.b16 %v2684
      %v2709 = vunpack.c.l.b16 %v2685
      %v2710 = vunpack.c.l.b16 %v2686
      %v2711 = vunpack.c.l.b16 %v2687
      %v2712 = vpack.c.b16 %v2701, %v2700
      %v2713 = vpack.c.b16 %v2703, %v2702
      %v2714 = vpack.c.b16 %v2705, %v2704
      %v2715 = vpack.c.b16 %v2707, %v2706
      %v2716 = vpack.c.b16 %v2709, %v2708
      %v2717 = vpack.c.b16 %v2711, %v2710
      %v2725 = vsel %vm192, %v2657, 0
      %v2728 = vsel %vm192, %v2658, 0
      %v2731 = vsel %vm192, %v2659, 0
      %v2734 = vsel %vm192, %v2660, 0
      %v2737 = vsel %vm192, %v2661, 0
      %v2740 = vsel %vm192, %v2662, 0
      %v2743 = vsel %vm192, %v2663, 0
      %v2746 = vsel %vm192, %v2664, 0
      %v2749 = vsel %vm192, %v2665, 0
      %v2752 = vsel %vm192, %v2666, 0
      %v2755 = vsel %vm192, %v2667, 0
      %v2758 = vsel %vm192, %v2668, 0
      %v2761 = vsel %vm192, %v2669, 0
      %v2764 = vsel %vm192, %v2670, 0
      %v2767 = vsel %vm192, %v2671, 0
      %v2770 = vsel %vm192, %v2672, 0
      %v2773 = vsel %vm192, %v2673, 0
      %v2776 = vsel %vm192, %v2674, 0
      %2778 = vmatpush.bf16.msra.mxu0 0
      %2779 = vmatpush.bf16.msra.mxu0 0
      %2780 = vmatpush.bf16.msra.mxu0 %v2717
      %2781 = vmatpush.bf16.msra.mxu0 %v2716
      %2782 = vmatpush.bf16.msra.mxu0 %v2715
      %2783 = vmatpush.bf16.msra.mxu0 %v2714
      %2784 = vmatpush.bf16.msra.mxu0 %v2713
      %2785 = vmatpush.bf16.msra.mxu0 %v2712
      %2786 = vmatmul.bf16.gmra.mxu0 %v2725
      %v2787 = vpop.f32.mrf.mxu0
      %v2788 = vadd.f32 0.0, %v2787
      %v2789 = vpop.f32.mrf.mxu0
      %v2790 = vadd.f32 0.0, %v2789
      %2791 = vmatmul.bf16.gmra.mxu0 %v2728
      %v2792 = vpop.f32.mrf.mxu0
      %v2793 = vadd.f32 0.0, %v2792
      %v2794 = vpop.f32.mrf.mxu0
      %v2795 = vadd.f32 0.0, %v2794
      %2796 = vmatmul.bf16.gmra.mxu0 %v2731
      %v2797 = vpop.f32.mrf.mxu0
      %v2798 = vadd.f32 0.0, %v2797
      %v2799 = vpop.f32.mrf.mxu0
      %v2800 = vadd.f32 0.0, %v2799
      %2801 = vmatmul.bf16.gmra.mxu0 %v2734
      %v2802 = vpop.f32.mrf.mxu0
      %v2803 = vadd.f32 0.0, %v2802
      %v2804 = vpop.f32.mrf.mxu0
      %v2805 = vadd.f32 0.0, %v2804
      %2806 = vmatmul.bf16.gmra.mxu0 %v2737
      %v2807 = vpop.f32.mrf.mxu0
      %v2808 = vadd.f32 0.0, %v2807
      %v2809 = vpop.f32.mrf.mxu0
      %v2810 = vadd.f32 0.0, %v2809
      %2811 = vmatmul.bf16.gmra.mxu0 %v2740
      %v2812 = vpop.f32.mrf.mxu0
      %v2813 = vadd.f32 0.0, %v2812
      %v2814 = vpop.f32.mrf.mxu0
      %v2815 = vadd.f32 0.0, %v2814
      %2816 = vmatmul.bf16.gmra.mxu0 %v2743
      %v2817 = vpop.f32.mrf.mxu0
      %v2818 = vadd.f32 0.0, %v2817
      %v2819 = vpop.f32.mrf.mxu0
      %v2820 = vadd.f32 0.0, %v2819
      %2821 = vmatmul.bf16.gmra.mxu0 %v2746
      %v2822 = vpop.f32.mrf.mxu0
      %v2823 = vadd.f32 0.0, %v2822
      %v2824 = vpop.f32.mrf.mxu0
      %v2825 = vadd.f32 0.0, %v2824
      %2826 = vmatmul.bf16.gmra.mxu0 %v2749
      %v2827 = vpop.f32.mrf.mxu0
      %v2828 = vadd.f32 0.0, %v2827
      %v2829 = vpop.f32.mrf.mxu0
      %v2830 = vadd.f32 0.0, %v2829
      %2831 = vmatmul.bf16.gmra.mxu0 %v2752
      %v2832 = vpop.f32.mrf.mxu0
      %v2833 = vadd.f32 0.0, %v2832
      %v2834 = vpop.f32.mrf.mxu0
      %v2835 = vadd.f32 0.0, %v2834
      %2836 = vmatmul.bf16.gmra.mxu0 %v2755
      %v2837 = vpop.f32.mrf.mxu0
      %v2838 = vadd.f32 0.0, %v2837
      %v2839 = vpop.f32.mrf.mxu0
      %v2840 = vadd.f32 0.0, %v2839
      %2841 = vmatmul.bf16.gmra.mxu0 %v2758
      %v2842 = vpop.f32.mrf.mxu0
      %v2843 = vadd.f32 0.0, %v2842
      %v2844 = vpop.f32.mrf.mxu0
      %v2845 = vadd.f32 0.0, %v2844
      %2846 = vmatmul.bf16.gmra.mxu0 %v2761
      %v2847 = vpop.f32.mrf.mxu0
      %v2848 = vadd.f32 0.0, %v2847
      %v2849 = vpop.f32.mrf.mxu0
      %v2850 = vadd.f32 0.0, %v2849
      %2851 = vmatmul.bf16.gmra.mxu0 %v2764
      %v2852 = vpop.f32.mrf.mxu0
      %v2853 = vadd.f32 0.0, %v2852
      %v2854 = vpop.f32.mrf.mxu0
      %v2855 = vadd.f32 0.0, %v2854
      %2856 = vmatmul.bf16.gmra.mxu0 %v2767
      %v2857 = vpop.f32.mrf.mxu0
      %v2858 = vadd.f32 0.0, %v2857
      %v2859 = vpop.f32.mrf.mxu0
      %v2860 = vadd.f32 0.0, %v2859
      %2861 = vmatmul.bf16.gmra.mxu0 %v2770
      %v2862 = vpop.f32.mrf.mxu0
      %v2863 = vadd.f32 0.0, %v2862
      %v2864 = vpop.f32.mrf.mxu0
      %v2865 = vadd.f32 0.0, %v2864
      %2866 = vmatmul.bf16.gmra.mxu0 %v2773
      %v2867 = vpop.f32.mrf.mxu0
      %v2868 = vadd.f32 0.0, %v2867
      %v2869 = vpop.f32.mrf.mxu0
      %v2870 = vadd.f32 0.0, %v2869
      %2871 = vmatmul.bf16.gmra.mxu0 %v2776
      %v2872 = vpop.f32.mrf.mxu0
      %v2873 = vadd.f32 0.0, %v2872
      %v2874 = vpop.f32.mrf.mxu0
      %v2875 = vadd.f32 0.0, %v2874
      %2876 = vdwg.mxu0
      %v2877 = vadd.f32 %v2532, %v2788
      %v2878 = vadd.f32 %v2534, %v2790
      %v2879 = vadd.f32 %v2537, %v2793
      %v2880 = vadd.f32 %v2539, %v2795
      %v2881 = vadd.f32 %v2542, %v2798
      %v2882 = vadd.f32 %v2544, %v2800
      %v2883 = vadd.f32 %v2547, %v2803
      %v2884 = vadd.f32 %v2549, %v2805
      %v2885 = vadd.f32 %v2552, %v2808
      %v2886 = vadd.f32 %v2554, %v2810
      %v2887 = vadd.f32 %v2557, %v2813
      %v2888 = vadd.f32 %v2559, %v2815
      %v2889 = vadd.f32 %v2562, %v2818
      %v2890 = vadd.f32 %v2564, %v2820
      %v2891 = vadd.f32 %v2567, %v2823
      %v2892 = vadd.f32 %v2569, %v2825
      %v2893 = vadd.f32 %v2572, %v2828
      %v2894 = vadd.f32 %v2574, %v2830
      %v2895 = vadd.f32 %v2577, %v2833
      %v2896 = vadd.f32 %v2579, %v2835
      %v2897 = vadd.f32 %v2582, %v2838
      %v2898 = vadd.f32 %v2584, %v2840
      %v2899 = vadd.f32 %v2587, %v2843
      %v2900 = vadd.f32 %v2589, %v2845
      %v2901 = vadd.f32 %v2592, %v2848
      %v2902 = vadd.f32 %v2594, %v2850
      %v2903 = vadd.f32 %v2597, %v2853
      %v2904 = vadd.f32 %v2599, %v2855
      %v2905 = vadd.f32 %v2602, %v2858
      %v2906 = vadd.f32 %v2604, %v2860
      %v2907 = vadd.f32 %v2607, %v2863
      %v2908 = vadd.f32 %v2609, %v2865
      %v2909 = vadd.f32 %v2612, %v2868
      %v2910 = vadd.f32 %v2614, %v2870
      %v2911 = vadd.f32 %v2617, %v2873
      %v2912 = vadd.f32 %v2619, %v2875
      %vm2913 = vcmask 23552
      %2914 = vst.msk [vmem:[%s190] sm:$0xff] %vm2913, %v2877
      %2915 = vst.msk [vmem:[%s190 + $0x8] sm:$0xff] %vm2913, %v2878
      %2916 = vst.msk [vmem:[%s190 + $0x10] sm:$0xff] %vm2913, %v2879
      %2917 = vst.msk [vmem:[%s190 + $0x18] sm:$0xff] %vm2913, %v2880
      %2918 = vst.msk [vmem:[%s190 + $0x20] sm:$0xff] %vm2913, %v2881
      %2919 = vst.msk [vmem:[%s190 + $0x28] sm:$0xff] %vm2913, %v2882
      %2920 = vst.msk [vmem:[%s190 + $0x30] sm:$0xff] %vm2913, %v2883
      %2921 = vst.msk [vmem:[%s190 + $0x38] sm:$0xff] %vm2913, %v2884
      %2922 = vst.msk [vmem:[%s190 + $0x40] sm:$0xff] %vm2913, %v2885
      %2923 = vst.msk [vmem:[%s190 + $0x48] sm:$0xff] %vm2913, %v2886
      %2924 = vst.msk [vmem:[%s190 + $0x50] sm:$0xff] %vm2913, %v2887
      %2925 = vst.msk [vmem:[%s190 + $0x58] sm:$0xff] %vm2913, %v2888
      %2926 = vst.msk [vmem:[%s190 + $0x60] sm:$0xff] %vm2913, %v2889
      %2927 = vst.msk [vmem:[%s190 + $0x68] sm:$0xff] %vm2913, %v2890
      %2928 = vst.msk [vmem:[%s190 + $0x70] sm:$0xff] %vm2913, %v2891
      %2929 = vst.msk [vmem:[%s190 + $0x78] sm:$0xff] %vm2913, %v2892
      %2930 = vst.msk [vmem:[%s190 + $0x80] sm:$0xff] %vm2913, %v2893
      %2931 = vst.msk [vmem:[%s190 + $0x88] sm:$0xff] %vm2913, %v2894
      %2932 = vst.msk [vmem:[%s190 + $0x90] sm:$0xff] %vm2913, %v2895
      %2933 = vst.msk [vmem:[%s190 + $0x98] sm:$0xff] %vm2913, %v2896
      %2934 = vst.msk [vmem:[%s190 + $0xa0] sm:$0xff] %vm2913, %v2897
      %2935 = vst.msk [vmem:[%s190 + $0xa8] sm:$0xff] %vm2913, %v2898
      %2936 = vst.msk [vmem:[%s190 + $0xb0] sm:$0xff] %vm2913, %v2899
      %2937 = vst.msk [vmem:[%s190 + $0xb8] sm:$0xff] %vm2913, %v2900
      %2938 = vst.msk [vmem:[%s190 + $0xc0] sm:$0xff] %vm2913, %v2901
      %2939 = vst.msk [vmem:[%s190 + $0xc8] sm:$0xff] %vm2913, %v2902
      %2940 = vst.msk [vmem:[%s190 + $0xd0] sm:$0xff] %vm2913, %v2903
      %2941 = vst.msk [vmem:[%s190 + $0xd8] sm:$0xff] %vm2913, %v2904
      %2942 = vst.msk [vmem:[%s190 + $0xe0] sm:$0xff] %vm2913, %v2905
      %2943 = vst.msk [vmem:[%s190 + $0xe8] sm:$0xff] %vm2913, %v2906
      %2944 = vst.msk [vmem:[%s190 + $0xf0] sm:$0xff] %vm2913, %v2907
      %2945 = vst.msk [vmem:[%s190 + $0xf8] sm:$0xff] %vm2913, %v2908
      %2946 = vst.msk [vmem:[%s190 + $0x100] sm:$0xff] %vm2913, %v2909
      %2947 = vst.msk [vmem:[%s190 + $0x108] sm:$0xff] %vm2913, %v2910
      %2948 = vst.msk [vmem:[%s190 + $0x110] sm:$0xff] %vm2913, %v2911
      %2949 = vst.msk [vmem:[%s190 + $0x118] sm:$0xff] %vm2913, %v2912
      %p2950 = scmp.lt.s32.totalorder %s14, 1
      %s2951 = scalar_select %p2950, %s14, 1
      %s2952 = smul.addr %s2951, 36
      %s2953 = smul.addr %s2952, 8
      %s2954 = scalar_lea.vmem %s3, %s2953
      // Predicated region
      $region33: #{net_forward.5} parent=31 // pred_check
        %p2955 = pneg %p105
      $region34: #{net_forward.5} parent=31 // pred_check_branch
        %2957 = sbr.rel (%p2955) target = $region36
      $region35: #{net_forward.5} parent=31 // pred_region
        _
      $region36: #{net_forward.5} parent=31 // pred_fallthru
        _
    $region32: #{net_forward.5} parent=5 // pred_fallthru
      _
    %p2958 = scmp.le.s32.totalorder 2, %s9
    // Predicated region
    $region37: #{net_forward.5} parent=5 // pred_check
      %p2959 = pneg %p2958
    $region38: #{net_forward.5} parent=5 // pred_check_branch
      %2961 = sbr.rel (%p2959) target = $region40
    $region39: #{net_forward.5} parent=5 // pred_region
      %s2962 = ssub.s32 %s9, 2
      // Predicated region
      $region41: #{net_forward.5} parent=39 // pred_check
        %p2963 = pneg %p111
      $region42: #{net_forward.5} parent=39 // pred_check_branch
        %2965 = sbr.rel (%p2963) target = $region44
      $region43: #{net_forward.5} parent=39 // pred_region
        %p2966 = scmp.lt.s32.totalorder %s15, 1
        %s2967 = scalar_select %p2966, %s15, 1
        %s2968 = smul.addr %s2967, 36
        %s2969 = smul.addr %s2968, 8
        %s2970 = scalar_lea.vmem %s3, %s2969
      $region44: #{net_forward.5} parent=39 // pred_fallthru
        _
    $region40: #{net_forward.5} parent=5 // pred_fallthru
      _
  $region6: #{net_forward.5} parent=0 // loop_footer
    %s13 = sadd.s32 1, %s9
  $region7: #{net_forward.5} parent=0 // loop_footer_branch
    %8 = sbr.rel target = $region3
  $region8: #{net_forward.5} parent=0 // loop_exit
    _

</llo_original>
